<compile_context>
chip_gen: v6e
topology: v6e:2x2x1
jax: 0.10.0
libtpu: 0.0.40
codegen_flags: <defaults>
</compile_context>

<pallas_src>
import functools

import jax
import jax.numpy as jnp
from jax.experimental import pallas as pl
from jax.experimental.pallas import tpu as pltpu


_UNROLL_T_MAX = 16  # static Python unroll up to this many decode steps, else fori_loop


# ----------------------------------------------------------------------------
# Fused Pallas kernel: full T-step decode
# ----------------------------------------------------------------------------
def _make_fused_kernel(L, B, S, T, E, H, V, g_truth):
    H4 = 4 * H

    def kernel(x_ref, tgt_emb_ref, tok_emb_ref,
               w_attn_ref, w_in_ref, whh_blk_ref, b_lstm_ref, w_fin_ref,
               out_ref, h_ref, c_ref, fb_ref, ax_ref):
        # ---- init state (PyTorch: h = c = zeros; first input token = target_seq[:, 0]) ----
        h_ref[...] = jnp.zeros_like(h_ref)                 # (B, L*H)
        c_ref[...] = jnp.zeros_like(c_ref)                 # (B, L*H)
        fb_ref[...] = tgt_emb_ref[0]                       # embedding of target_seq[:, 0]

        # ---- loop-invariant attention term, hoisted: x @ W1x + b1, parked in VMEM ----
        w1x = w_attn_ref[0:E]                              # (E, H)
        b1 = w_attn_ref[E + H:E + H + 1]                   # (1, H)
        ax_ref[...] = (jnp.dot(x_ref[...].reshape(B * S, E), w1x,
                               preferred_element_type=jnp.float32)
                       + b1).reshape(B, S, H)

        def step(t):
            x = x_ref[...]                                 # (B, S, E)

            # current input embedding: teacher forcing when g_truth; otherwise fb_ref holds
            # the t==0 target embedding initially and the greedy prediction afterwards.
            if g_truth:
                cur_emb = tgt_emb_ref[t]                   # (B, E)
            else:
                cur_emb = fb_ref[...]                      # (B, E)

            # ---- Attention MLP over all source positions + LogSoftmax(dim=1) ----
            h_last = h_ref[:, (L - 1) * H:L * H]           # pre-update h[-1], (B, H)
            w1h = w_attn_ref[E:E + H]                      # (H, H)
            w2row = w_attn_ref[E + H + 1:E + H + 2]        # (1, H)  (second attention Linear)
            ah = jnp.dot(h_last, w1h, preferred_element_type=jnp.float32)      # (B, H)
            a = jnp.maximum(ax_ref[...] + ah[:, None, :], 0.0)                 # ReLU, (B, S, H)
            # b2 (bias of Linear(H,1)) omitted: constant over S -> cancels in log-softmax.
            scores = jnp.sum(a * w2row.reshape(1, 1, H), axis=2)               # (B, S)
            m = jnp.max(scores, axis=1, keepdims=True)
            sh = scores - m
            logsm = sh - jnp.log(jnp.sum(jnp.exp(sh), axis=1, keepdims=True))
            # module multiplies x by *log*-softmax weights (faithfully reproduced)
            context = jnp.sum(logsm[:, :, None] * x, axis=1)                   # (B, E)

            # ---- L-layer LSTM cell, one step (gate order i, f, g, o like nn.LSTM) ----
            # TODO(synk): nn.LSTM inter-layer dropout (p=0.3, training mode) is stochastic; omitted.
            # all recurrent matmuls use PREVIOUS-step h -> one block-diagonal matmul:
            rec = jnp.dot(h_ref[...], whh_blk_ref[...],
                          preferred_element_type=jnp.float32)                  # (B, L*4H)

            layer_in = cur_emb
            for l in range(L):
                if l == 0:
                    # layer-0 input weight split (cur_emb rows / context rows): no lane concat
                    g_in = (jnp.dot(cur_emb, w_in_ref[0:E],
                                    preferred_element_type=jnp.float32)
                            + jnp.dot(context, w_in_ref[E:2 * E],
                                      preferred_element_type=jnp.float32))
                else:
                    r0 = 2 * E + (l - 1) * H
                    g_in = jnp.dot(layer_in, w_in_ref[r0:r0 + H],
                                   preferred_element_type=jnp.float32)
                gates = g_in + rec[:, l * H4:(l + 1) * H4] + b_lstm_ref[l:l + 1, :]  # (B, 4H)
                sg = jax.nn.sigmoid(gates)                 # one full-vreg sigmoid (i, f, -, o)
                i_g = sg[:, 0:H]
                f_g = sg[:, H:2 * H]
                o_g = sg[:, 3 * H:4 * H]
                g_g = jnp.tanh(gates[:, 2 * H:3 * H])
                c_prev = c_ref[:, l * H:(l + 1) * H]
                c_new = f_g * c_prev + i_g * g_g
                h_new = o_g * jnp.tanh(c_new)
                c_ref[:, l * H:(l + 1) * H] = c_new
                h_ref[:, l * H:(l + 1) * H] = h_new
                layer_in = h_new

            # ---- final projection + LogSoftmax over vocab ----
            logits = (jnp.dot(layer_in, w_fin_ref[0:H],
                              preferred_element_type=jnp.float32)
                      + w_fin_ref[H:H + 1])                                     # (B, V)
            mm = jnp.max(logits, axis=1, keepdims=True)
            z = logits - mm
            logp = z - jnp.log(jnp.sum(jnp.exp(z), axis=1, keepdims=True))      # (B, V)
            off = t * V if isinstance(t, int) else pl.multiple_of(t * V, V)
            out_ref[:, pl.ds(off, V)] = logp               # lane slice of the (B, T*V) slab

            # ---- in-kernel greedy feedback for the next step ----
            if not g_truth:
                # argmax (first-max tie-break, matching torch.argmax) as a one-hot matmul
                col = jax.lax.broadcasted_iota(jnp.int32, (B, V), 1)
                is_max = logp == jnp.max(logp, axis=1, keepdims=True)
                first = jnp.min(jnp.where(is_max, col, V), axis=1, keepdims=True)
                onehot = (col == first).astype(jnp.float32)                      # (B, V)
                # tok_emb = emb_table[token_set] (pre-gathered) -> embedding of predicted token
                fb_ref[...] = jnp.dot(onehot, tok_emb_ref[...],
                                      preferred_element_type=jnp.float32)        # (B, E)

        if T <= _UNROLL_T_MAX:
            # small static T: full unroll (every ref index static, full scheduler visibility)
            for t in range(T):
                step(t)
        else:
            # realistic T: bounded live ranges, state carried in the VMEM refs
            def body(t, carry):
                step(t)
                return carry
            jax.lax.fori_loop(0, T, body, 0, unroll=2)

    return kernel


# ----------------------------------------------------------------------------
# LSTM_ATTN_Decoder.forward (training / teacher-forcing branch)
# ----------------------------------------------------------------------------
@functools.partial(jax.jit, static_argnames=("g_truth",))
def lstm_attn_decoder_forward(dec_params, x, target_seq, emb_table, g_truth=False):
    B, S, E = x.shape
    H = dec_params["whh0"].shape[0]
    H4 = 4 * H
    V = dec_params["wf"].shape[1]
    L = 0
    while f"wih{L}" in dec_params:
        L += 1
    T = target_seq.shape[1]

    # ---- one-time gathers (replace per-step embedding/token_set lookups) ----
    tgt_emb = jnp.transpose(jnp.take(emb_table, target_seq, axis=0), (1, 0, 2))   # (T, B, E)
    tok_emb = jnp.take(emb_table, dec_params["token_set"], axis=0)                # (V, E)

    # ---- one-time weight re-layout / packing ----
    # attention pack: [W1x (E); W1h (H); b1 (1); w2^T (1)]  -> (E+H+2, H)
    #   b2 dropped: constant over S, cancels exactly under LogSoftmax(dim=1).
    w_attn = jnp.concatenate([dec_params["w1x"], dec_params["w1h"], dec_params["b1"],
                              jnp.transpose(dec_params["w2"])], axis=0)
    # layer-input weights packed along sublanes: [wih0 (2E); wih1 (H); ...] -> (2E+(L-1)H, 4H)
    w_in = jnp.concatenate([dec_params["wih0"]]
                           + [dec_params[f"wih{l}"] for l in range(1, L)], axis=0)
    # block-diagonal recurrent weights: (L*H, L*4H), one matmul covers every layer's h_prev
    whh_blk = jnp.zeros((L * H, L * H4), jnp.float32)
    for l in range(L):
        whh_blk = whh_blk.at[l * H:(l + 1) * H, l * H4:(l + 1) * H4].set(dec_params[f"whh{l}"])
    # folded biases (b_ih + b_hh) per layer: (L, 4H)
    b_lstm = jnp.concatenate([dec_params[f"bih{l}"] + dec_params[f"bhh{l}"] for l in range(L)],
                             axis=0)
    # final projection pack: [Wf (H); bf (1)] -> (H+1, V)
    w_fin = jnp.concatenate([dec_params["wf"], dec_params["bf"]], axis=0)

    kernel = _make_fused_kernel(L, B, S, T, E, H, V, bool(g_truth))
    vmem = pl.BlockSpec(memory_space=pltpu.MemorySpace.VMEM)
    args = [x, tgt_emb, tok_emb, w_attn, w_in, whh_blk, b_lstm, w_fin]

    out_flat = pl.pallas_call(
        kernel,
        out_shape=jax.ShapeDtypeStruct((B, T * V), jnp.float32),   # lane-dense output slab
        in_specs=[vmem] * len(args),
        out_specs=vmem,
        scratch_shapes=[pltpu.VMEM((B, L * H), jnp.float32),   # h (flattened over layers)
                        pltpu.VMEM((B, L * H), jnp.float32),   # c
                        pltpu.VMEM((B, E), jnp.float32),       # fed-back embedding
                        pltpu.VMEM((B, S, H), jnp.float32)],   # hoisted x @ W1x + b1
        compiler_params=pltpu.CompilerParams(vmem_limit_bytes=32 * 1024 * 1024),
    )(*args)
    return out_flat.reshape(B, T, V)                           # free row-major reshape, no transpose
    # TODO(synk): eval-mode beam search (data-dependent Python control flow, variable-length
    # sequences, pad_sequence) has no clean Pallas equivalent; only the training path is kernelized.


# ----------------------------------------------------------------------------
# SEQ2SEQ.forward (training branch)
# ----------------------------------------------------------------------------
def seq2seq_forward(params, language, input_ids, attention_mask, g_truth=False):
    # TODO(synk): frozen pretrained XLM-R encoder cannot be reproduced without its checkpoint;
    # approximated here by the shared word-embedding lookup masked by attention_mask.
    emb_table = params["emb_table"]
    x = jnp.take(emb_table, input_ids, axis=0) * attention_mask[..., None].astype(jnp.float32)
    dec_params = params["decoders"][language]
    # SEQ2SEQ passes target_seq = input_ids in its training branch.
    return lstm_attn_decoder_forward(dec_params, x, input_ids, emb_table, g_truth=g_truth)


# ----------------------------------------------------------------------------
# deterministic synthetic parameters
# ----------------------------------------------------------------------------
def init_params(key, *, vocab, E, H, L, V, n_langs):
    keys = iter(jax.random.split(key, 8 + n_langs * (8 + 4 * L)))

    def w(shape, scale=0.1):
        return (scale * jax.random.normal(next(keys), shape)).astype(jnp.float32)

    params = {"emb_table": w((vocab, E)), "decoders": []}
    for _ in range(n_langs):
        dec = {
            "w1x": w((E, H)), "w1h": w((H, H)), "b1": w((1, H)),
            "w2": w((H, 1)), "b2": w((1, 1)),      # b2 kept for module parity; cancels in log-softmax
            "wf": w((H, V)), "bf": w((1, V)),
            "token_set": jax.random.permutation(next(keys), vocab)[:V].astype(jnp.int32),
        }
        for l in range(L):
            in_dim = 2 * E if l == 0 else H
            dec[f"wih{l}"] = w((in_dim, 4 * H))
            dec[f"whh{l}"] = w((H, 4 * H))
            dec[f"bih{l}"] = w((1, 4 * H))
            dec[f"bhh{l}"] = w((1, 4 * H))
        params["decoders"].append(dec)
    return params


if __name__ == "__main__":
    # small shapes consistent with the module (E=embedding_dim, H=decoder_hidden_dim,
    # L=num LSTM layers=3, V=no_output_tokens, vocab=tokenizer vocab size)
    B, S, E, H, L, V, VOCAB = 2, 8, 32, 32, 3, 16, 64

    key = jax.random.PRNGKey(0)
    k_params, k_ids = jax.random.split(key)
    params = init_params(k_params, vocab=VOCAB, E=E, H=H, L=L, V=V, n_langs=2)

    input_ids = jax.random.randint(k_ids, (B, S), 0, VOCAB, dtype=jnp.int32)
    attention_mask = jnp.ones((B, S), dtype=jnp.float32)

    # greedy-feedback path
    out = seq2seq_forward(params, language=0, input_ids=input_ids,
                          attention_mask=attention_mask, g_truth=False)
    out = jax.block_until_ready(out)
    assert out.shape == (B, S, V)
    assert bool(jnp.all(jnp.isfinite(out)))
    assert bool(jnp.allclose(jnp.sum(jnp.exp(out), axis=-1), 1.0, atol=1e-4))

    # teacher-forcing path
    out_tf = seq2seq_forward(params, language=1, input_ids=input_ids,
                             attention_mask=attention_mask, g_truth=True)
    out_tf = jax.block_until_ready(out_tf)
    assert out_tf.shape == (B, S, V)
    assert bool(jnp.all(jnp.isfinite(out_tf)))
    assert bool(jnp.allclose(jnp.sum(jnp.exp(out_tf), axis=-1), 1.0, atol=1e-4))

    print("KERNEL_OK")
</pallas_src>

<mosaic_0001>
module attributes {stable_mosaic.version = 11 : i64} {
  func.func @kernel(%arg0: memref<2x8x32xf32, #tpu.memory_space<vmem>>, %arg1: memref<8x2x32xf32, #tpu.memory_space<vmem>>, %arg2: memref<16x32xf32, #tpu.memory_space<vmem>>, %arg3: memref<66x32xf32, #tpu.memory_space<vmem>>, %arg4: memref<128x128xf32, #tpu.memory_space<vmem>>, %arg5: memref<96x384xf32, #tpu.memory_space<vmem>>, %arg6: memref<3x128xf32, #tpu.memory_space<vmem>>, %arg7: memref<33x16xf32, #tpu.memory_space<vmem>>, %arg8: memref<2x128xf32, #tpu.memory_space<vmem>>, %arg9: memref<2x96xf32, #tpu.memory_space<vmem>>, %arg10: memref<2x96xf32, #tpu.memory_space<vmem>>, %arg11: memref<2x32xf32, #tpu.memory_space<vmem>>, %arg12: memref<2x8x32xf32, #tpu.memory_space<vmem>>) attributes {dimension_semantics = [], scalar_prefetch = 0 : i64, scratch_operands = 4 : i64, tpu.core_type = #tpu.core_type<tc>} {
    %cst = arith.constant 0.000000e+00 : f32
    %0 = vector.broadcast %cst : f32 to vector<2x96xf32>
    %c0 = arith.constant 0 : index
    %c0_0 = arith.constant 0 : index
    %1 = vector.load %arg9[%c0, %c0_0] : memref<2x96xf32, #tpu.memory_space<vmem>>, vector<2x96xf32>
    tpu.vector_store %arg9[%c0, %c0_0], %0 {strides = array<i32>} : memref<2x96xf32, #tpu.memory_space<vmem>>, vector<2x96xf32>,
    %cst_1 = arith.constant 0.000000e+00 : f32
    %2 = vector.broadcast %cst_1 : f32 to vector<2x96xf32>
    %c0_2 = arith.constant 0 : index
    %c0_3 = arith.constant 0 : index
    %3 = vector.load %arg10[%c0_2, %c0_3] : memref<2x96xf32, #tpu.memory_space<vmem>>, vector<2x96xf32>
    tpu.vector_store %arg10[%c0_2, %c0_3], %2 {strides = array<i32>} : memref<2x96xf32, #tpu.memory_space<vmem>>, vector<2x96xf32>,
    %c0_4 = arith.constant 0 : index
    %c0_5 = arith.constant 0 : index
    %c0_6 = arith.constant 0 : index
    %4 = vector.load %arg1[%c0_4, %c0_5, %c0_6] : memref<8x2x32xf32, #tpu.memory_space<vmem>>, vector<1x2x32xf32>
    %5 = vector.shape_cast %4 : vector<1x2x32xf32> to vector<2x32xf32>
    %c0_7 = arith.constant 0 : index
    %c0_8 = arith.constant 0 : index
    %6 = vector.load %arg11[%c0_7, %c0_8] : memref<2x32xf32, #tpu.memory_space<vmem>>, vector<2x32xf32>
    tpu.vector_store %arg11[%c0_7, %c0_8], %5 {strides = array<i32>} : memref<2x32xf32, #tpu.memory_space<vmem>>, vector<2x32xf32>,
    %c0_9 = arith.constant 0 : index
    %c0_10 = arith.constant 0 : index
    %7 = vector.load %arg3[%c0_9, %c0_10] : memref<66x32xf32, #tpu.memory_space<vmem>>, vector<32x32xf32>
    %c64 = arith.constant 64 : index
    %c0_11 = arith.constant 0 : index
    %8 = vector.load %arg3[%c64, %c0_11] : memref<66x32xf32, #tpu.memory_space<vmem>>, vector<1x32xf32>
    %c0_12 = arith.constant 0 : index
    %c0_13 = arith.constant 0 : index
    %c0_14 = arith.constant 0 : index
    %9 = vector.load %arg0[%c0_12, %c0_13, %c0_14] : memref<2x8x32xf32, #tpu.memory_space<vmem>>, vector<2x8x32xf32>
    %10 = vector.shape_cast %9 : vector<2x8x32xf32> to vector<16x32xf32>
    %cst_15 = arith.constant dense<0.000000e+00> : vector<16x32xf32>
    %11 = tpu.matmul %10, %7, %cst_15 {dimension_numbers = #tpu.dot_dimension_numbers<[1], [0], [0], [1], [0, 0, 1, 1], [], []>} : vector<16x32xf32>, vector<32x32xf32>, vector<16x32xf32> -> vector<16x32xf32>
    %12 = vector.broadcast %8 : vector<1x32xf32> to vector<16x32xf32>
    %13 = arith.addf %11, %12 : vector<16x32xf32>
    %14 = vector.shape_cast %13 : vector<16x32xf32> to vector<2x8x32xf32>
    %c0_16 = arith.constant 0 : index
    %c0_17 = arith.constant 0 : index
    %c0_18 = arith.constant 0 : index
    %15 = vector.load %arg12[%c0_16, %c0_17, %c0_18] : memref<2x8x32xf32, #tpu.memory_space<vmem>>, vector<2x8x32xf32>
    tpu.vector_store %arg12[%c0_16, %c0_17, %c0_18], %14 {strides = array<i32>} : memref<2x8x32xf32, #tpu.memory_space<vmem>>, vector<2x8x32xf32>,
    %c0_19 = arith.constant 0 : index
    %c0_20 = arith.constant 0 : index
    %c0_21 = arith.constant 0 : index
    %16 = vector.load %arg0[%c0_19, %c0_20, %c0_21] : memref<2x8x32xf32, #tpu.memory_space<vmem>>, vector<2x8x32xf32>
    %c0_22 = arith.constant 0 : index
    %c0_23 = arith.constant 0 : index
    %17 = vector.load %arg11[%c0_22, %c0_23] : memref<2x32xf32, #tpu.memory_space<vmem>>, vector<2x32xf32>
    %c0_24 = arith.constant 0 : index
    %c64_25 = arith.constant 64 : index
    %18 = vector.load %arg9[%c0_24, %c64_25] : memref<2x96xf32, #tpu.memory_space<vmem>>, vector<2x32xf32>
    %c32 = arith.constant 32 : index
    %c0_26 = arith.constant 0 : index
    %19 = vector.load %arg3[%c32, %c0_26] : memref<66x32xf32, #tpu.memory_space<vmem>>, vector<32x32xf32>
    %c65 = arith.constant 65 : index
    %c0_27 = arith.constant 0 : index
    %20 = vector.load %arg3[%c65, %c0_27] : memref<66x32xf32, #tpu.memory_space<vmem>>, vector<1x32xf32>
    %cst_28 = arith.constant dense<0.000000e+00> : vector<2x32xf32>
    %21 = tpu.matmul %18, %19, %cst_28 {dimension_numbers = #tpu.dot_dimension_numbers<[1], [0], [0], [1], [0, 0, 1, 1], [], []>} : vector<2x32xf32>, vector<32x32xf32>, vector<2x32xf32> -> vector<2x32xf32>
    %c0_29 = arith.constant 0 : index
    %c0_30 = arith.constant 0 : index
    %c0_31 = arith.constant 0 : index
    %22 = vector.load %arg12[%c0_29, %c0_30, %c0_31] : memref<2x8x32xf32, #tpu.memory_space<vmem>>, vector<2x8x32xf32>
    %23 = vector.shape_cast %21 : vector<2x32xf32> to vector<2x1x32xf32>
    %24 = vector.broadcast %23 : vector<2x1x32xf32> to vector<2x8x32xf32>
    %25 = arith.addf %22, %24 : vector<2x8x32xf32>
    %cst_32 = arith.constant 0.000000e+00 : f32
    %26 = vector.broadcast %cst_32 : f32 to vector<2x8x32xf32>
    %27 = arith.maximumf %25, %26 : vector<2x8x32xf32>
    %28 = vector.shape_cast %20 : vector<1x32xf32> to vector<1x1x32xf32>
    %29 = vector.broadcast %28 : vector<1x1x32xf32> to vector<2x8x32xf32>
    %30 = arith.mulf %27, %29 : vector<2x8x32xf32>
    %cst_33 = arith.constant dense<0.000000e+00> : vector<2x8xf32>
    %31 = vector.multi_reduction <add>, %30, %cst_33 [2] : vector<2x8x32xf32> to vector<2x8xf32>
    %cst_34 = arith.constant dense<0xFF800000> : vector<2xf32>
    %32 = vector.multi_reduction <maximumf>, %31, %cst_34 [1] : vector<2x8xf32> to vector<2xf32>
    %33 = vector.shape_cast %32 : vector<2xf32> to vector<2x1xf32>
    %34 = vector.broadcast %33 : vector<2x1xf32> to vector<2x8xf32>
    %35 = arith.subf %31, %34 : vector<2x8xf32>
    %36 = math.exp %35 : vector<2x8xf32>
    %cst_35 = arith.constant dense<0.000000e+00> : vector<2xf32>
    %37 = vector.multi_reduction <add>, %36, %cst_35 [1] : vector<2x8xf32> to vector<2xf32>
    %38 = vector.shape_cast %37 : vector<2xf32> to vector<2x1xf32>
    %39 = math.log %38 : vector<2x1xf32>
    %40 = vector.broadcast %39 : vector<2x1xf32> to vector<2x8xf32>
    %41 = arith.subf %35, %40 : vector<2x8xf32>
    %42 = vector.shape_cast %41 : vector<2x8xf32> to vector<2x8x1xf32>
    %43 = vector.broadcast %42 : vector<2x8x1xf32> to vector<2x8x32xf32>
    %44 = arith.mulf %43, %16 : vector<2x8x32xf32>
    %cst_36 = arith.constant dense<0.000000e+00> : vector<2x32xf32>
    %45 = vector.multi_reduction <add>, %44, %cst_36 [1] : vector<2x8x32xf32> to vector<2x32xf32>
    %c0_37 = arith.constant 0 : index
    %c0_38 = arith.constant 0 : index
    %46 = vector.load %arg9[%c0_37, %c0_38] : memref<2x96xf32, #tpu.memory_space<vmem>>, vector<2x96xf32>
    %c0_39 = arith.constant 0 : index
    %c0_40 = arith.constant 0 : index
    %47 = vector.load %arg5[%c0_39, %c0_40] : memref<96x384xf32, #tpu.memory_space<vmem>>, vector<96x384xf32>
    %cst_41 = arith.constant dense<0.000000e+00> : vector<2x384xf32>
    %48 = tpu.matmul %46, %47, %cst_41 {dimension_numbers = #tpu.dot_dimension_numbers<[1], [0], [0], [1], [0, 0, 1, 1], [], []>} : vector<2x96xf32>, vector<96x384xf32>, vector<2x384xf32> -> vector<2x384xf32>
    %c0_42 = arith.constant 0 : index
    %c0_43 = arith.constant 0 : index
    %49 = vector.load %arg4[%c0_42, %c0_43] : memref<128x128xf32, #tpu.memory_space<vmem>>, vector<32x128xf32>
    %cst_44 = arith.constant dense<0.000000e+00> : vector<2x128xf32>
    %50 = tpu.matmul %17, %49, %cst_44 {dimension_numbers = #tpu.dot_dimension_numbers<[1], [0], [0], [1], [0, 0, 1, 1], [], []>} : vector<2x32xf32>, vector<32x128xf32>, vector<2x128xf32> -> vector<2x128xf32>
    %c32_45 = arith.constant 32 : index
    %c0_46 = arith.constant 0 : index
    %51 = vector.load %arg4[%c32_45, %c0_46] : memref<128x128xf32, #tpu.memory_space<vmem>>, vector<32x128xf32>
    %cst_47 = arith.constant dense<0.000000e+00> : vector<2x128xf32>
    %52 = tpu.matmul %45, %51, %cst_47 {dimension_numbers = #tpu.dot_dimension_numbers<[1], [0], [0], [1], [0, 0, 1, 1], [], []>} : vector<2x32xf32>, vector<32x128xf32>, vector<2x128xf32> -> vector<2x128xf32>
    %53 = arith.addf %50, %52 : vector<2x128xf32>
    %54 = vector.extract_strided_slice %48 {offsets = [0, 0], sizes = [2, 128], strides = [1, 1]} : vector<2x384xf32> to vector<2x128xf32>
    %55 = arith.addf %53, %54 : vector<2x128xf32>
    %c0_48 = arith.constant 0 : index
    %c0_49 = arith.constant 0 : index
    %56 = vector.load %arg6[%c0_48, %c0_49] : memref<3x128xf32, #tpu.memory_space<vmem>>, vector<1x128xf32>
    %57 = vector.broadcast %56 : vector<1x128xf32> to vector<2x128xf32>
    %58 = arith.addf %55, %57 : vector<2x128xf32>
    %59 = arith.negf %58 : vector<2x128xf32>
    %60 = math.exp %59 : vector<2x128xf32>
    %cst_50 = arith.constant 1.000000e+00 : f32
    %61 = vector.broadcast %cst_50 : f32 to vector<2x128xf32>
    %62 = arith.addf %61, %60 : vector<2x128xf32>
    %63 = arith.divf %61, %62 : vector<2x128xf32>
    %64 = vector.extract_strided_slice %63 {offsets = [0, 0], sizes = [2, 32], strides = [1, 1]} : vector<2x128xf32> to vector<2x32xf32>
    %65 = vector.extract_strided_slice %63 {offsets = [0, 32], sizes = [2, 32], strides = [1, 1]} : vector<2x128xf32> to vector<2x32xf32>
    %66 = vector.extract_strided_slice %63 {offsets = [0, 96], sizes = [2, 32], strides = [1, 1]} : vector<2x128xf32> to vector<2x32xf32>
    %67 = vector.extract_strided_slice %58 {offsets = [0, 64], sizes = [2, 32], strides = [1, 1]} : vector<2x128xf32> to vector<2x32xf32>
    %68 = math.tanh %67 : vector<2x32xf32>
    %c0_51 = arith.constant 0 : index
    %c0_52 = arith.constant 0 : index
    %69 = vector.load %arg10[%c0_51, %c0_52] : memref<2x96xf32, #tpu.memory_space<vmem>>, vector<2x32xf32>
    %70 = arith.mulf %65, %69 : vector<2x32xf32>
    %71 = arith.mulf %64, %68 : vector<2x32xf32>
    %72 = arith.addf %70, %71 : vector<2x32xf32>
    %73 = math.tanh %72 : vector<2x32xf32>
    %74 = arith.mulf %66, %73 : vector<2x32xf32>
    %c0_53 = arith.constant 0 : index
    %c0_54 = arith.constant 0 : index
    %75 = vector.load %arg10[%c0_53, %c0_54] : memref<2x96xf32, #tpu.memory_space<vmem>>, vector<2x32xf32>
    tpu.vector_store %arg10[%c0_53, %c0_54], %72 {strides = array<i32>} : memref<2x96xf32, #tpu.memory_space<vmem>>, vector<2x32xf32>,
    %c0_55 = arith.constant 0 : index
    %c0_56 = arith.constant 0 : index
    %76 = vector.load %arg9[%c0_55, %c0_56] : memref<2x96xf32, #tpu.memory_space<vmem>>, vector<2x32xf32>
    tpu.vector_store %arg9[%c0_55, %c0_56], %74 {strides = array<i32>} : memref<2x96xf32, #tpu.memory_space<vmem>>, vector<2x32xf32>,
    %c64_57 = arith.constant 64 : index
    %c0_58 = arith.constant 0 : index
    %77 = vector.load %arg4[%c64_57, %c0_58] : memref<128x128xf32, #tpu.memory_space<vmem>>, vector<32x128xf32>
    %cst_59 = arith.constant dense<0.000000e+00> : vector<2x128xf32>
    %78 = tpu.matmul %74, %77, %cst_59 {dimension_numbers = #tpu.dot_dimension_numbers<[1], [0], [0], [1], [0, 0, 1, 1], [], []>} : vector<2x32xf32>, vector<32x128xf32>, vector<2x128xf32> -> vector<2x128xf32>
    %79 = vector.extract_strided_slice %48 {offsets = [0, 128], sizes = [2, 128], strides = [1, 1]} : vector<2x384xf32> to vector<2x128xf32>
    %80 = arith.addf %78, %79 : vector<2x128xf32>
    %c1 = arith.constant 1 : index
    %c0_60 = arith.constant 0 : index
    %81 = vector.load %arg6[%c1, %c0_60] : memref<3x128xf32, #tpu.memory_space<vmem>>, vector<1x128xf32>
    %82 = vector.broadcast %81 : vector<1x128xf32> to vector<2x128xf32>
    %83 = arith.addf %80, %82 : vector<2x128xf32>
    %84 = arith.negf %83 : vector<2x128xf32>
    %85 = math.exp %84 : vector<2x128xf32>
    %cst_61 = arith.constant 1.000000e+00 : f32
    %86 = vector.broadcast %cst_61 : f32 to vector<2x128xf32>
    %87 = arith.addf %86, %85 : vector<2x128xf32>
    %88 = arith.divf %86, %87 : vector<2x128xf32>
    %89 = vector.extract_strided_slice %88 {offsets = [0, 0], sizes = [2, 32], strides = [1, 1]} : vector<2x128xf32> to vector<2x32xf32>
    %90 = vector.extract_strided_slice %88 {offsets = [0, 32], sizes = [2, 32], strides = [1, 1]} : vector<2x128xf32> to vector<2x32xf32>
    %91 = vector.extract_strided_slice %88 {offsets = [0, 96], sizes = [2, 32], strides = [1, 1]} : vector<2x128xf32> to vector<2x32xf32>
    %92 = vector.extract_strided_slice %83 {offsets = [0, 64], sizes = [2, 32], strides = [1, 1]} : vector<2x128xf32> to vector<2x32xf32>
    %93 = math.tanh %92 : vector<2x32xf32>
    %c0_62 = arith.constant 0 : index
    %c32_63 = arith.constant 32 : index
    %94 = vector.load %arg10[%c0_62, %c32_63] : memref<2x96xf32, #tpu.memory_space<vmem>>, vector<2x32xf32>
    %95 = arith.mulf %90, %94 : vector<2x32xf32>
    %96 = arith.mulf %89, %93 : vector<2x32xf32>
    %97 = arith.addf %95, %96 : vector<2x32xf32>
    %98 = math.tanh %97 : vector<2x32xf32>
    %99 = arith.mulf %91, %98 : vector<2x32xf32>
    %c0_64 = arith.constant 0 : index
    %c32_65 = arith.constant 32 : index
    %100 = vector.load %arg10[%c0_64, %c32_65] : memref<2x96xf32, #tpu.memory_space<vmem>>, vector<2x32xf32>
    tpu.vector_store %arg10[%c0_64, %c32_65], %97 {strides = array<i32>} : memref<2x96xf32, #tpu.memory_space<vmem>>, vector<2x32xf32>,
    %c0_66 = arith.constant 0 : index
    %c32_67 = arith.constant 32 : index
    %101 = vector.load %arg9[%c0_66, %c32_67] : memref<2x96xf32, #tpu.memory_space<vmem>>, vector<2x32xf32>
    tpu.vector_store %arg9[%c0_66, %c32_67], %99 {strides = array<i32>} : memref<2x96xf32, #tpu.memory_space<vmem>>, vector<2x32xf32>,
    %c96 = arith.constant 96 : index
    %c0_68 = arith.constant 0 : index
    %102 = vector.load %arg4[%c96, %c0_68] : memref<128x128xf32, #tpu.memory_space<vmem>>, vector<32x128xf32>
    %cst_69 = arith.constant dense<0.000000e+00> : vector<2x128xf32>
    %103 = tpu.matmul %99, %102, %cst_69 {dimension_numbers = #tpu.dot_dimension_numbers<[1], [0], [0], [1], [0, 0, 1, 1], [], []>} : vector<2x32xf32>, vector<32x128xf32>, vector<2x128xf32> -> vector<2x128xf32>
    %104 = vector.extract_strided_slice %48 {offsets = [0, 256], sizes = [2, 128], strides = [1, 1]} : vector<2x384xf32> to vector<2x128xf32>
    %105 = arith.addf %103, %104 : vector<2x128xf32>
    %c2 = arith.constant 2 : index
    %c0_70 = arith.constant 0 : index
    %106 = vector.load %arg6[%c2, %c0_70] : memref<3x128xf32, #tpu.memory_space<vmem>>, vector<1x128xf32>
    %107 = vector.broadcast %106 : vector<1x128xf32> to vector<2x128xf32>
    %108 = arith.addf %105, %107 : vector<2x128xf32>
    %109 = arith.negf %108 : vector<2x128xf32>
    %110 = math.exp %109 : vector<2x128xf32>
    %cst_71 = arith.constant 1.000000e+00 : f32
    %111 = vector.broadcast %cst_71 : f32 to vector<2x128xf32>
    %112 = arith.addf %111, %110 : vector<2x128xf32>
    %113 = arith.divf %111, %112 : vector<2x128xf32>
    %114 = vector.extract_strided_slice %113 {offsets = [0, 0], sizes = [2, 32], strides = [1, 1]} : vector<2x128xf32> to vector<2x32xf32>
    %115 = vector.extract_strided_slice %113 {offsets = [0, 32], sizes = [2, 32], strides = [1, 1]} : vector<2x128xf32> to vector<2x32xf32>
    %116 = vector.extract_strided_slice %113 {offsets = [0, 96], sizes = [2, 32], strides = [1, 1]} : vector<2x128xf32> to vector<2x32xf32>
    %117 = vector.extract_strided_slice %108 {offsets = [0, 64], sizes = [2, 32], strides = [1, 1]} : vector<2x128xf32> to vector<2x32xf32>
    %118 = math.tanh %117 : vector<2x32xf32>
    %c0_72 = arith.constant 0 : index
    %c64_73 = arith.constant 64 : index
    %119 = vector.load %arg10[%c0_72, %c64_73] : memref<2x96xf32, #tpu.memory_space<vmem>>, vector<2x32xf32>
    %120 = arith.mulf %115, %119 : vector<2x32xf32>
    %121 = arith.mulf %114, %118 : vector<2x32xf32>
    %122 = arith.addf %120, %121 : vector<2x32xf32>
    %123 = math.tanh %122 : vector<2x32xf32>
    %124 = arith.mulf %116, %123 : vector<2x32xf32>
    %c0_74 = arith.constant 0 : index
    %c64_75 = arith.constant 64 : index
    %125 = vector.load %arg10[%c0_74, %c64_75] : memref<2x96xf32, #tpu.memory_space<vmem>>, vector<2x32xf32>
    tpu.vector_store %arg10[%c0_74, %c64_75], %122 {strides = array<i32>} : memref<2x96xf32, #tpu.memory_space<vmem>>, vector<2x32xf32>,
    %c0_76 = arith.constant 0 : index
    %c64_77 = arith.constant 64 : index
    %126 = vector.load %arg9[%c0_76, %c64_77] : memref<2x96xf32, #tpu.memory_space<vmem>>, vector<2x32xf32>
    tpu.vector_store %arg9[%c0_76, %c64_77], %124 {strides = array<i32>} : memref<2x96xf32, #tpu.memory_space<vmem>>, vector<2x32xf32>,
    %c0_78 = arith.constant 0 : index
    %c0_79 = arith.constant 0 : index
    %127 = vector.load %arg7[%c0_78, %c0_79] : memref<33x16xf32, #tpu.memory_space<vmem>>, vector<32x16xf32>
    %cst_80 = arith.constant dense<0.000000e+00> : vector<2x16xf32>
    %128 = tpu.matmul %124, %127, %cst_80 {dimension_numbers = #tpu.dot_dimension_numbers<[1], [0], [0], [1], [0, 0, 1, 1], [], []>} : vector<2x32xf32>, vector<32x16xf32>, vector<2x16xf32> -> vector<2x16xf32>
    %c32_81 = arith.constant 32 : index
    %c0_82 = arith.constant 0 : index
    %129 = vector.load %arg7[%c32_81, %c0_82] : memref<33x16xf32, #tpu.memory_space<vmem>>, vector<1x16xf32>
    %130 = vector.broadcast %129 : vector<1x16xf32> to vector<2x16xf32>
    %131 = arith.addf %128, %130 : vector<2x16xf32>
    %cst_83 = arith.constant dense<0xFF800000> : vector<2xf32>
    %132 = vector.multi_reduction <maximumf>, %131, %cst_83 [1] : vector<2x16xf32> to vector<2xf32>
    %133 = vector.shape_cast %132 : vector<2xf32> to vector<2x1xf32>
    %134 = vector.broadcast %133 : vector<2x1xf32> to vector<2x16xf32>
    %135 = arith.subf %131, %134 : vector<2x16xf32>
    %136 = math.exp %135 : vector<2x16xf32>
    %cst_84 = arith.constant dense<0.000000e+00> : vector<2xf32>
    %137 = vector.multi_reduction <add>, %136, %cst_84 [1] : vector<2x16xf32> to vector<2xf32>
    %138 = vector.shape_cast %137 : vector<2xf32> to vector<2x1xf32>
    %139 = math.log %138 : vector<2x1xf32>
    %140 = vector.broadcast %139 : vector<2x1xf32> to vector<2x16xf32>
    %141 = arith.subf %135, %140 : vector<2x16xf32>
    %c0_85 = arith.constant 0 : index
    %c0_86 = arith.constant 0 : index
    %142 = vector.load %arg8[%c0_85, %c0_86] : memref<2x128xf32, #tpu.memory_space<vmem>>, vector<2x16xf32>
    tpu.vector_store %arg8[%c0_85, %c0_86], %141 {strides = array<i32>} : memref<2x128xf32, #tpu.memory_space<vmem>>, vector<2x16xf32>,
    %143 = tpu.iota {dimensions = array<i32: 1>} : vector<2x16xi32>
    %cst_87 = arith.constant dense<0xFF800000> : vector<2xf32>
    %144 = vector.multi_reduction <maximumf>, %141, %cst_87 [1] : vector<2x16xf32> to vector<2xf32>
    %145 = vector.shape_cast %144 : vector<2xf32> to vector<2x1xf32>
    %146 = vector.broadcast %145 : vector<2x1xf32> to vector<2x16xf32>
    %147 = arith.cmpf oeq, %141, %146 : vector<2x16xf32>
    %c16_i32 = arith.constant 16 : i32
    %148 = vector.broadcast %c16_i32 : i32 to vector<2x16xi32>
    %149 = arith.select %147, %143, %148 : vector<2x16xi1>, vector<2x16xi32>
    %cst_88 = arith.constant dense<2147483647> : vector<2xi32>
    %150 = vector.multi_reduction <minsi>, %149, %cst_88 [1] : vector<2x16xi32> to vector<2xi32>
    %151 = vector.shape_cast %150 : vector<2xi32> to vector<2x1xi32>
    %152 = vector.broadcast %151 : vector<2x1xi32> to vector<2x16xi32>
    %153 = arith.cmpi eq, %143, %152 : vector<2x16xi32>
    %154 = arith.extui %153 : vector<2x16xi1> to vector<2x16xi32>
    %155 = arith.sitofp %154 : vector<2x16xi32> to vector<2x16xf32>
    %c0_89 = arith.constant 0 : index
    %c0_90 = arith.constant 0 : index
    %156 = vector.load %arg2[%c0_89, %c0_90] : memref<16x32xf32, #tpu.memory_space<vmem>>, vector<16x32xf32>
    %cst_91 = arith.constant dense<0.000000e+00> : vector<2x32xf32>
    %157 = tpu.matmul %155, %156, %cst_91 {dimension_numbers = #tpu.dot_dimension_numbers<[1], [0], [0], [1], [0, 0, 1, 1], [], []>} : vector<2x16xf32>, vector<16x32xf32>, vector<2x32xf32> -> vector<2x32xf32>
    %c0_92 = arith.constant 0 : index
    %c0_93 = arith.constant 0 : index
    %158 = vector.load %arg11[%c0_92, %c0_93] : memref<2x32xf32, #tpu.memory_space<vmem>>, vector<2x32xf32>
    tpu.vector_store %arg11[%c0_92, %c0_93], %157 {strides = array<i32>} : memref<2x32xf32, #tpu.memory_space<vmem>>, vector<2x32xf32>,
    %c0_94 = arith.constant 0 : index
    %c0_95 = arith.constant 0 : index
    %c0_96 = arith.constant 0 : index
    %159 = vector.load %arg0[%c0_94, %c0_95, %c0_96] : memref<2x8x32xf32, #tpu.memory_space<vmem>>, vector<2x8x32xf32>
    %c0_97 = arith.constant 0 : index
    %c0_98 = arith.constant 0 : index
    %160 = vector.load %arg11[%c0_97, %c0_98] : memref<2x32xf32, #tpu.memory_space<vmem>>, vector<2x32xf32>
    %c0_99 = arith.constant 0 : index
    %c64_100 = arith.constant 64 : index
    %161 = vector.load %arg9[%c0_99, %c64_100] : memref<2x96xf32, #tpu.memory_space<vmem>>, vector<2x32xf32>
    %c32_101 = arith.constant 32 : index
    %c0_102 = arith.constant 0 : index
    %162 = vector.load %arg3[%c32_101, %c0_102] : memref<66x32xf32, #tpu.memory_space<vmem>>, vector<32x32xf32>
    %c65_103 = arith.constant 65 : index
    %c0_104 = arith.constant 0 : index
    %163 = vector.load %arg3[%c65_103, %c0_104] : memref<66x32xf32, #tpu.memory_space<vmem>>, vector<1x32xf32>
    %cst_105 = arith.constant dense<0.000000e+00> : vector<2x32xf32>
    %164 = tpu.matmul %161, %162, %cst_105 {dimension_numbers = #tpu.dot_dimension_numbers<[1], [0], [0], [1], [0, 0, 1, 1], [], []>} : vector<2x32xf32>, vector<32x32xf32>, vector<2x32xf32> -> vector<2x32xf32>
    %c0_106 = arith.constant 0 : index
    %c0_107 = arith.constant 0 : index
    %c0_108 = arith.constant 0 : index
    %165 = vector.load %arg12[%c0_106, %c0_107, %c0_108] : memref<2x8x32xf32, #tpu.memory_space<vmem>>, vector<2x8x32xf32>
    %166 = vector.shape_cast %164 : vector<2x32xf32> to vector<2x1x32xf32>
    %167 = vector.broadcast %166 : vector<2x1x32xf32> to vector<2x8x32xf32>
    %168 = arith.addf %165, %167 : vector<2x8x32xf32>
    %cst_109 = arith.constant 0.000000e+00 : f32
    %169 = vector.broadcast %cst_109 : f32 to vector<2x8x32xf32>
    %170 = arith.maximumf %168, %169 : vector<2x8x32xf32>
    %171 = vector.shape_cast %163 : vector<1x32xf32> to vector<1x1x32xf32>
    %172 = vector.broadcast %171 : vector<1x1x32xf32> to vector<2x8x32xf32>
    %173 = arith.mulf %170, %172 : vector<2x8x32xf32>
    %cst_110 = arith.constant dense<0.000000e+00> : vector<2x8xf32>
    %174 = vector.multi_reduction <add>, %173, %cst_110 [2] : vector<2x8x32xf32> to vector<2x8xf32>
    %cst_111 = arith.constant dense<0xFF800000> : vector<2xf32>
    %175 = vector.multi_reduction <maximumf>, %174, %cst_111 [1] : vector<2x8xf32> to vector<2xf32>
    %176 = vector.shape_cast %175 : vector<2xf32> to vector<2x1xf32>
    %177 = vector.broadcast %176 : vector<2x1xf32> to vector<2x8xf32>
    %178 = arith.subf %174, %177 : vector<2x8xf32>
    %179 = math.exp %178 : vector<2x8xf32>
    %cst_112 = arith.constant dense<0.000000e+00> : vector<2xf32>
    %180 = vector.multi_reduction <add>, %179, %cst_112 [1] : vector<2x8xf32> to vector<2xf32>
    %181 = vector.shape_cast %180 : vector<2xf32> to vector<2x1xf32>
    %182 = math.log %181 : vector<2x1xf32>
    %183 = vector.broadcast %182 : vector<2x1xf32> to vector<2x8xf32>
    %184 = arith.subf %178, %183 : vector<2x8xf32>
    %185 = vector.shape_cast %184 : vector<2x8xf32> to vector<2x8x1xf32>
    %186 = vector.broadcast %185 : vector<2x8x1xf32> to vector<2x8x32xf32>
    %187 = arith.mulf %186, %159 : vector<2x8x32xf32>
    %cst_113 = arith.constant dense<0.000000e+00> : vector<2x32xf32>
    %188 = vector.multi_reduction <add>, %187, %cst_113 [1] : vector<2x8x32xf32> to vector<2x32xf32>
    %c0_114 = arith.constant 0 : index
    %c0_115 = arith.constant 0 : index
    %189 = vector.load %arg9[%c0_114, %c0_115] : memref<2x96xf32, #tpu.memory_space<vmem>>, vector<2x96xf32>
    %c0_116 = arith.constant 0 : index
    %c0_117 = arith.constant 0 : index
    %190 = vector.load %arg5[%c0_116, %c0_117] : memref<96x384xf32, #tpu.memory_space<vmem>>, vector<96x384xf32>
    %cst_118 = arith.constant dense<0.000000e+00> : vector<2x384xf32>
    %191 = tpu.matmul %189, %190, %cst_118 {dimension_numbers = #tpu.dot_dimension_numbers<[1], [0], [0], [1], [0, 0, 1, 1], [], []>} : vector<2x96xf32>, vector<96x384xf32>, vector<2x384xf32> -> vector<2x384xf32>
    %c0_119 = arith.constant 0 : index
    %c0_120 = arith.constant 0 : index
    %192 = vector.load %arg4[%c0_119, %c0_120] : memref<128x128xf32, #tpu.memory_space<vmem>>, vector<32x128xf32>
    %cst_121 = arith.constant dense<0.000000e+00> : vector<2x128xf32>
    %193 = tpu.matmul %160, %192, %cst_121 {dimension_numbers = #tpu.dot_dimension_numbers<[1], [0], [0], [1], [0, 0, 1, 1], [], []>} : vector<2x32xf32>, vector<32x128xf32>, vector<2x128xf32> -> vector<2x128xf32>
    %c32_122 = arith.constant 32 : index
    %c0_123 = arith.constant 0 : index
    %194 = vector.load %arg4[%c32_122, %c0_123] : memref<128x128xf32, #tpu.memory_space<vmem>>, vector<32x128xf32>
    %cst_124 = arith.constant dense<0.000000e+00> : vector<2x128xf32>
    %195 = tpu.matmul %188, %194, %cst_124 {dimension_numbers = #tpu.dot_dimension_numbers<[1], [0], [0], [1], [0, 0, 1, 1], [], []>} : vector<2x32xf32>, vector<32x128xf32>, vector<2x128xf32> -> vector<2x128xf32>
    %196 = arith.addf %193, %195 : vector<2x128xf32>
    %197 = vector.extract_strided_slice %191 {offsets = [0, 0], sizes = [2, 128], strides = [1, 1]} : vector<2x384xf32> to vector<2x128xf32>
    %198 = arith.addf %196, %197 : vector<2x128xf32>
    %c0_125 = arith.constant 0 : index
    %c0_126 = arith.constant 0 : index
    %199 = vector.load %arg6[%c0_125, %c0_126] : memref<3x128xf32, #tpu.memory_space<vmem>>, vector<1x128xf32>
    %200 = vector.broadcast %199 : vector<1x128xf32> to vector<2x128xf32>
    %201 = arith.addf %198, %200 : vector<2x128xf32>
    %202 = arith.negf %201 : vector<2x128xf32>
    %203 = math.exp %202 : vector<2x128xf32>
    %cst_127 = arith.constant 1.000000e+00 : f32
    %204 = vector.broadcast %cst_127 : f32 to vector<2x128xf32>
    %205 = arith.addf %204, %203 : vector<2x128xf32>
    %206 = arith.divf %204, %205 : vector<2x128xf32>
    %207 = vector.extract_strided_slice %206 {offsets = [0, 0], sizes = [2, 32], strides = [1, 1]} : vector<2x128xf32> to vector<2x32xf32>
    %208 = vector.extract_strided_slice %206 {offsets = [0, 32], sizes = [2, 32], strides = [1, 1]} : vector<2x128xf32> to vector<2x32xf32>
    %209 = vector.extract_strided_slice %206 {offsets = [0, 96], sizes = [2, 32], strides = [1, 1]} : vector<2x128xf32> to vector<2x32xf32>
    %210 = vector.extract_strided_slice %201 {offsets = [0, 64], sizes = [2, 32], strides = [1, 1]} : vector<2x128xf32> to vector<2x32xf32>
    %211 = math.tanh %210 : vector<2x32xf32>
    %c0_128 = arith.constant 0 : index
    %c0_129 = arith.constant 0 : index
    %212 = vector.load %arg10[%c0_128, %c0_129] : memref<2x96xf32, #tpu.memory_space<vmem>>, vector<2x32xf32>
    %213 = arith.mulf %208, %212 : vector<2x32xf32>
    %214 = arith.mulf %207, %211 : vector<2x32xf32>
    %215 = arith.addf %213, %214 : vector<2x32xf32>
    %216 = math.tanh %215 : vector<2x32xf32>
    %217 = arith.mulf %209, %216 : vector<2x32xf32>
    %c0_130 = arith.constant 0 : index
    %c0_131 = arith.constant 0 : index
    %218 = vector.load %arg10[%c0_130, %c0_131] : memref<2x96xf32, #tpu.memory_space<vmem>>, vector<2x32xf32>
    tpu.vector_store %arg10[%c0_130, %c0_131], %215 {strides = array<i32>} : memref<2x96xf32, #tpu.memory_space<vmem>>, vector<2x32xf32>,
    %c0_132 = arith.constant 0 : index
    %c0_133 = arith.constant 0 : index
    %219 = vector.load %arg9[%c0_132, %c0_133] : memref<2x96xf32, #tpu.memory_space<vmem>>, vector<2x32xf32>
    tpu.vector_store %arg9[%c0_132, %c0_133], %217 {strides = array<i32>} : memref<2x96xf32, #tpu.memory_space<vmem>>, vector<2x32xf32>,
    %c64_134 = arith.constant 64 : index
    %c0_135 = arith.constant 0 : index
    %220 = vector.load %arg4[%c64_134, %c0_135] : memref<128x128xf32, #tpu.memory_space<vmem>>, vector<32x128xf32>
    %cst_136 = arith.constant dense<0.000000e+00> : vector<2x128xf32>
    %221 = tpu.matmul %217, %220, %cst_136 {dimension_numbers = #tpu.dot_dimension_numbers<[1], [0], [0], [1], [0, 0, 1, 1], [], []>} : vector<2x32xf32>, vector<32x128xf32>, vector<2x128xf32> -> vector<2x128xf32>
    %222 = vector.extract_strided_slice %191 {offsets = [0, 128], sizes = [2, 128], strides = [1, 1]} : vector<2x384xf32> to vector<2x128xf32>
    %223 = arith.addf %221, %222 : vector<2x128xf32>
    %c1_137 = arith.constant 1 : index
    %c0_138 = arith.constant 0 : index
    %224 = vector.load %arg6[%c1_137, %c0_138] : memref<3x128xf32, #tpu.memory_space<vmem>>, vector<1x128xf32>
    %225 = vector.broadcast %224 : vector<1x128xf32> to vector<2x128xf32>
    %226 = arith.addf %223, %225 : vector<2x128xf32>
    %227 = arith.negf %226 : vector<2x128xf32>
    %228 = math.exp %227 : vector<2x128xf32>
    %cst_139 = arith.constant 1.000000e+00 : f32
    %229 = vector.broadcast %cst_139 : f32 to vector<2x128xf32>
    %230 = arith.addf %229, %228 : vector<2x128xf32>
    %231 = arith.divf %229, %230 : vector<2x128xf32>
    %232 = vector.extract_strided_slice %231 {offsets = [0, 0], sizes = [2, 32], strides = [1, 1]} : vector<2x128xf32> to vector<2x32xf32>
    %233 = vector.extract_strided_slice %231 {offsets = [0, 32], sizes = [2, 32], strides = [1, 1]} : vector<2x128xf32> to vector<2x32xf32>
    %234 = vector.extract_strided_slice %231 {offsets = [0, 96], sizes = [2, 32], strides = [1, 1]} : vector<2x128xf32> to vector<2x32xf32>
    %235 = vector.extract_strided_slice %226 {offsets = [0, 64], sizes = [2, 32], strides = [1, 1]} : vector<2x128xf32> to vector<2x32xf32>
    %236 = math.tanh %235 : vector<2x32xf32>
    %c0_140 = arith.constant 0 : index
    %c32_141 = arith.constant 32 : index
    %237 = vector.load %arg10[%c0_140, %c32_141] : memref<2x96xf32, #tpu.memory_space<vmem>>, vector<2x32xf32>
    %238 = arith.mulf %233, %237 : vector<2x32xf32>
    %239 = arith.mulf %232, %236 : vector<2x32xf32>
    %240 = arith.addf %238, %239 : vector<2x32xf32>
    %241 = math.tanh %240 : vector<2x32xf32>
    %242 = arith.mulf %234, %241 : vector<2x32xf32>
    %c0_142 = arith.constant 0 : index
    %c32_143 = arith.constant 32 : index
    %243 = vector.load %arg10[%c0_142, %c32_143] : memref<2x96xf32, #tpu.memory_space<vmem>>, vector<2x32xf32>
    tpu.vector_store %arg10[%c0_142, %c32_143], %240 {strides = array<i32>} : memref<2x96xf32, #tpu.memory_space<vmem>>, vector<2x32xf32>,
    %c0_144 = arith.constant 0 : index
    %c32_145 = arith.constant 32 : index
    %244 = vector.load %arg9[%c0_144, %c32_145] : memref<2x96xf32, #tpu.memory_space<vmem>>, vector<2x32xf32>
    tpu.vector_store %arg9[%c0_144, %c32_145], %242 {strides = array<i32>} : memref<2x96xf32, #tpu.memory_space<vmem>>, vector<2x32xf32>,
    %c96_146 = arith.constant 96 : index
    %c0_147 = arith.constant 0 : index
    %245 = vector.load %arg4[%c96_146, %c0_147] : memref<128x128xf32, #tpu.memory_space<vmem>>, vector<32x128xf32>
    %cst_148 = arith.constant dense<0.000000e+00> : vector<2x128xf32>
    %246 = tpu.matmul %242, %245, %cst_148 {dimension_numbers = #tpu.dot_dimension_numbers<[1], [0], [0], [1], [0, 0, 1, 1], [], []>} : vector<2x32xf32>, vector<32x128xf32>, vector<2x128xf32> -> vector<2x128xf32>
    %247 = vector.extract_strided_slice %191 {offsets = [0, 256], sizes = [2, 128], strides = [1, 1]} : vector<2x384xf32> to vector<2x128xf32>
    %248 = arith.addf %246, %247 : vector<2x128xf32>
    %c2_149 = arith.constant 2 : index
    %c0_150 = arith.constant 0 : index
    %249 = vector.load %arg6[%c2_149, %c0_150] : memref<3x128xf32, #tpu.memory_space<vmem>>, vector<1x128xf32>
    %250 = vector.broadcast %249 : vector<1x128xf32> to vector<2x128xf32>
    %251 = arith.addf %248, %250 : vector<2x128xf32>
    %252 = arith.negf %251 : vector<2x128xf32>
    %253 = math.exp %252 : vector<2x128xf32>
    %cst_151 = arith.constant 1.000000e+00 : f32
    %254 = vector.broadcast %cst_151 : f32 to vector<2x128xf32>
    %255 = arith.addf %254, %253 : vector<2x128xf32>
    %256 = arith.divf %254, %255 : vector<2x128xf32>
    %257 = vector.extract_strided_slice %256 {offsets = [0, 0], sizes = [2, 32], strides = [1, 1]} : vector<2x128xf32> to vector<2x32xf32>
    %258 = vector.extract_strided_slice %256 {offsets = [0, 32], sizes = [2, 32], strides = [1, 1]} : vector<2x128xf32> to vector<2x32xf32>
    %259 = vector.extract_strided_slice %256 {offsets = [0, 96], sizes = [2, 32], strides = [1, 1]} : vector<2x128xf32> to vector<2x32xf32>
    %260 = vector.extract_strided_slice %251 {offsets = [0, 64], sizes = [2, 32], strides = [1, 1]} : vector<2x128xf32> to vector<2x32xf32>
    %261 = math.tanh %260 : vector<2x32xf32>
    %c0_152 = arith.constant 0 : index
    %c64_153 = arith.constant 64 : index
    %262 = vector.load %arg10[%c0_152, %c64_153] : memref<2x96xf32, #tpu.memory_space<vmem>>, vector<2x32xf32>
    %263 = arith.mulf %258, %262 : vector<2x32xf32>
    %264 = arith.mulf %257, %261 : vector<2x32xf32>
    %265 = arith.addf %263, %264 : vector<2x32xf32>
    %266 = math.tanh %265 : vector<2x32xf32>
    %267 = arith.mulf %259, %266 : vector<2x32xf32>
    %c0_154 = arith.constant 0 : index
    %c64_155 = arith.constant 64 : index
    %268 = vector.load %arg10[%c0_154, %c64_155] : memref<2x96xf32, #tpu.memory_space<vmem>>, vector<2x32xf32>
    tpu.vector_store %arg10[%c0_154, %c64_155], %265 {strides = array<i32>} : memref<2x96xf32, #tpu.memory_space<vmem>>, vector<2x32xf32>,
    %c0_156 = arith.constant 0 : index
    %c64_157 = arith.constant 64 : index
    %269 = vector.load %arg9[%c0_156, %c64_157] : memref<2x96xf32, #tpu.memory_space<vmem>>, vector<2x32xf32>
    tpu.vector_store %arg9[%c0_156, %c64_157], %267 {strides = array<i32>} : memref<2x96xf32, #tpu.memory_space<vmem>>, vector<2x32xf32>,
    %c0_158 = arith.constant 0 : index
    %c0_159 = arith.constant 0 : index
    %270 = vector.load %arg7[%c0_158, %c0_159] : memref<33x16xf32, #tpu.memory_space<vmem>>, vector<32x16xf32>
    %cst_160 = arith.constant dense<0.000000e+00> : vector<2x16xf32>
    %271 = tpu.matmul %267, %270, %cst_160 {dimension_numbers = #tpu.dot_dimension_numbers<[1], [0], [0], [1], [0, 0, 1, 1], [], []>} : vector<2x32xf32>, vector<32x16xf32>, vector<2x16xf32> -> vector<2x16xf32>
    %c32_161 = arith.constant 32 : index
    %c0_162 = arith.constant 0 : index
    %272 = vector.load %arg7[%c32_161, %c0_162] : memref<33x16xf32, #tpu.memory_space<vmem>>, vector<1x16xf32>
    %273 = vector.broadcast %272 : vector<1x16xf32> to vector<2x16xf32>
    %274 = arith.addf %271, %273 : vector<2x16xf32>
    %cst_163 = arith.constant dense<0xFF800000> : vector<2xf32>
    %275 = vector.multi_reduction <maximumf>, %274, %cst_163 [1] : vector<2x16xf32> to vector<2xf32>
    %276 = vector.shape_cast %275 : vector<2xf32> to vector<2x1xf32>
    %277 = vector.broadcast %276 : vector<2x1xf32> to vector<2x16xf32>
    %278 = arith.subf %274, %277 : vector<2x16xf32>
    %279 = math.exp %278 : vector<2x16xf32>
    %cst_164 = arith.constant dense<0.000000e+00> : vector<2xf32>
    %280 = vector.multi_reduction <add>, %279, %cst_164 [1] : vector<2x16xf32> to vector<2xf32>
    %281 = vector.shape_cast %280 : vector<2xf32> to vector<2x1xf32>
    %282 = math.log %281 : vector<2x1xf32>
    %283 = vector.broadcast %282 : vector<2x1xf32> to vector<2x16xf32>
    %284 = arith.subf %278, %283 : vector<2x16xf32>
    %c0_165 = arith.constant 0 : index
    %c16 = arith.constant 16 : index
    %285 = vector.load %arg8[%c0_165, %c16] : memref<2x128xf32, #tpu.memory_space<vmem>>, vector<2x16xf32>
    tpu.vector_store %arg8[%c0_165, %c16], %284 {strides = array<i32>} : memref<2x128xf32, #tpu.memory_space<vmem>>, vector<2x16xf32>,
    %286 = tpu.iota {dimensions = array<i32: 1>} : vector<2x16xi32>
    %cst_166 = arith.constant dense<0xFF800000> : vector<2xf32>
    %287 = vector.multi_reduction <maximumf>, %284, %cst_166 [1] : vector<2x16xf32> to vector<2xf32>
    %288 = vector.shape_cast %287 : vector<2xf32> to vector<2x1xf32>
    %289 = vector.broadcast %288 : vector<2x1xf32> to vector<2x16xf32>
    %290 = arith.cmpf oeq, %284, %289 : vector<2x16xf32>
    %c16_i32_167 = arith.constant 16 : i32
    %291 = vector.broadcast %c16_i32_167 : i32 to vector<2x16xi32>
    %292 = arith.select %290, %286, %291 : vector<2x16xi1>, vector<2x16xi32>
    %cst_168 = arith.constant dense<2147483647> : vector<2xi32>
    %293 = vector.multi_reduction <minsi>, %292, %cst_168 [1] : vector<2x16xi32> to vector<2xi32>
    %294 = vector.shape_cast %293 : vector<2xi32> to vector<2x1xi32>
    %295 = vector.broadcast %294 : vector<2x1xi32> to vector<2x16xi32>
    %296 = arith.cmpi eq, %286, %295 : vector<2x16xi32>
    %297 = arith.extui %296 : vector<2x16xi1> to vector<2x16xi32>
    %298 = arith.sitofp %297 : vector<2x16xi32> to vector<2x16xf32>
    %c0_169 = arith.constant 0 : index
    %c0_170 = arith.constant 0 : index
    %299 = vector.load %arg2[%c0_169, %c0_170] : memref<16x32xf32, #tpu.memory_space<vmem>>, vector<16x32xf32>
    %cst_171 = arith.constant dense<0.000000e+00> : vector<2x32xf32>
    %300 = tpu.matmul %298, %299, %cst_171 {dimension_numbers = #tpu.dot_dimension_numbers<[1], [0], [0], [1], [0, 0, 1, 1], [], []>} : vector<2x16xf32>, vector<16x32xf32>, vector<2x32xf32> -> vector<2x32xf32>
    %c0_172 = arith.constant 0 : index
    %c0_173 = arith.constant 0 : index
    %301 = vector.load %arg11[%c0_172, %c0_173] : memref<2x32xf32, #tpu.memory_space<vmem>>, vector<2x32xf32>
    tpu.vector_store %arg11[%c0_172, %c0_173], %300 {strides = array<i32>} : memref<2x32xf32, #tpu.memory_space<vmem>>, vector<2x32xf32>,
    %c0_174 = arith.constant 0 : index
    %c0_175 = arith.constant 0 : index
    %c0_176 = arith.constant 0 : index
    %302 = vector.load %arg0[%c0_174, %c0_175, %c0_176] : memref<2x8x32xf32, #tpu.memory_space<vmem>>, vector<2x8x32xf32>
    %c0_177 = arith.constant 0 : index
    %c0_178 = arith.constant 0 : index
    %303 = vector.load %arg11[%c0_177, %c0_178] : memref<2x32xf32, #tpu.memory_space<vmem>>, vector<2x32xf32>
    %c0_179 = arith.constant 0 : index
    %c64_180 = arith.constant 64 : index
    %304 = vector.load %arg9[%c0_179, %c64_180] : memref<2x96xf32, #tpu.memory_space<vmem>>, vector<2x32xf32>
    %c32_181 = arith.constant 32 : index
    %c0_182 = arith.constant 0 : index
    %305 = vector.load %arg3[%c32_181, %c0_182] : memref<66x32xf32, #tpu.memory_space<vmem>>, vector<32x32xf32>
    %c65_183 = arith.constant 65 : index
    %c0_184 = arith.constant 0 : index
    %306 = vector.load %arg3[%c65_183, %c0_184] : memref<66x32xf32, #tpu.memory_space<vmem>>, vector<1x32xf32>
    %cst_185 = arith.constant dense<0.000000e+00> : vector<2x32xf32>
    %307 = tpu.matmul %304, %305, %cst_185 {dimension_numbers = #tpu.dot_dimension_numbers<[1], [0], [0], [1], [0, 0, 1, 1], [], []>} : vector<2x32xf32>, vector<32x32xf32>, vector<2x32xf32> -> vector<2x32xf32>
    %c0_186 = arith.constant 0 : index
    %c0_187 = arith.constant 0 : index
    %c0_188 = arith.constant 0 : index
    %308 = vector.load %arg12[%c0_186, %c0_187, %c0_188] : memref<2x8x32xf32, #tpu.memory_space<vmem>>, vector<2x8x32xf32>
    %309 = vector.shape_cast %307 : vector<2x32xf32> to vector<2x1x32xf32>
    %310 = vector.broadcast %309 : vector<2x1x32xf32> to vector<2x8x32xf32>
    %311 = arith.addf %308, %310 : vector<2x8x32xf32>
    %cst_189 = arith.constant 0.000000e+00 : f32
    %312 = vector.broadcast %cst_189 : f32 to vector<2x8x32xf32>
    %313 = arith.maximumf %311, %312 : vector<2x8x32xf32>
    %314 = vector.shape_cast %306 : vector<1x32xf32> to vector<1x1x32xf32>
    %315 = vector.broadcast %314 : vector<1x1x32xf32> to vector<2x8x32xf32>
    %316 = arith.mulf %313, %315 : vector<2x8x32xf32>
    %cst_190 = arith.constant dense<0.000000e+00> : vector<2x8xf32>
    %317 = vector.multi_reduction <add>, %316, %cst_190 [2] : vector<2x8x32xf32> to vector<2x8xf32>
    %cst_191 = arith.constant dense<0xFF800000> : vector<2xf32>
    %318 = vector.multi_reduction <maximumf>, %317, %cst_191 [1] : vector<2x8xf32> to vector<2xf32>
    %319 = vector.shape_cast %318 : vector<2xf32> to vector<2x1xf32>
    %320 = vector.broadcast %319 : vector<2x1xf32> to vector<2x8xf32>
    %321 = arith.subf %317, %320 : vector<2x8xf32>
    %322 = math.exp %321 : vector<2x8xf32>
    %cst_192 = arith.constant dense<0.000000e+00> : vector<2xf32>
    %323 = vector.multi_reduction <add>, %322, %cst_192 [1] : vector<2x8xf32> to vector<2xf32>
    %324 = vector.shape_cast %323 : vector<2xf32> to vector<2x1xf32>
    %325 = math.log %324 : vector<2x1xf32>
    %326 = vector.broadcast %325 : vector<2x1xf32> to vector<2x8xf32>
    %327 = arith.subf %321, %326 : vector<2x8xf32>
    %328 = vector.shape_cast %327 : vector<2x8xf32> to vector<2x8x1xf32>
    %329 = vector.broadcast %328 : vector<2x8x1xf32> to vector<2x8x32xf32>
    %330 = arith.mulf %329, %302 : vector<2x8x32xf32>
    %cst_193 = arith.constant dense<0.000000e+00> : vector<2x32xf32>
    %331 = vector.multi_reduction <add>, %330, %cst_193 [1] : vector<2x8x32xf32> to vector<2x32xf32>
    %c0_194 = arith.constant 0 : index
    %c0_195 = arith.constant 0 : index
    %332 = vector.load %arg9[%c0_194, %c0_195] : memref<2x96xf32, #tpu.memory_space<vmem>>, vector<2x96xf32>
    %c0_196 = arith.constant 0 : index
    %c0_197 = arith.constant 0 : index
    %333 = vector.load %arg5[%c0_196, %c0_197] : memref<96x384xf32, #tpu.memory_space<vmem>>, vector<96x384xf32>
    %cst_198 = arith.constant dense<0.000000e+00> : vector<2x384xf32>
    %334 = tpu.matmul %332, %333, %cst_198 {dimension_numbers = #tpu.dot_dimension_numbers<[1], [0], [0], [1], [0, 0, 1, 1], [], []>} : vector<2x96xf32>, vector<96x384xf32>, vector<2x384xf32> -> vector<2x384xf32>
    %c0_199 = arith.constant 0 : index
    %c0_200 = arith.constant 0 : index
    %335 = vector.load %arg4[%c0_199, %c0_200] : memref<128x128xf32, #tpu.memory_space<vmem>>, vector<32x128xf32>
    %cst_201 = arith.constant dense<0.000000e+00> : vector<2x128xf32>
    %336 = tpu.matmul %303, %335, %cst_201 {dimension_numbers = #tpu.dot_dimension_numbers<[1], [0], [0], [1], [0, 0, 1, 1], [], []>} : vector<2x32xf32>, vector<32x128xf32>, vector<2x128xf32> -> vector<2x128xf32>
    %c32_202 = arith.constant 32 : index
    %c0_203 = arith.constant 0 : index
    %337 = vector.load %arg4[%c32_202, %c0_203] : memref<128x128xf32, #tpu.memory_space<vmem>>, vector<32x128xf32>
    %cst_204 = arith.constant dense<0.000000e+00> : vector<2x128xf32>
    %338 = tpu.matmul %331, %337, %cst_204 {dimension_numbers = #tpu.dot_dimension_numbers<[1], [0], [0], [1], [0, 0, 1, 1], [], []>} : vector<2x32xf32>, vector<32x128xf32>, vector<2x128xf32> -> vector<2x128xf32>
    %339 = arith.addf %336, %338 : vector<2x128xf32>
    %340 = vector.extract_strided_slice %334 {offsets = [0, 0], sizes = [2, 128], strides = [1, 1]} : vector<2x384xf32> to vector<2x128xf32>
    %341 = arith.addf %339, %340 : vector<2x128xf32>
    %c0_205 = arith.constant 0 : index
    %c0_206 = arith.constant 0 : index
    %342 = vector.load %arg6[%c0_205, %c0_206] : memref<3x128xf32, #tpu.memory_space<vmem>>, vector<1x128xf32>
    %343 = vector.broadcast %342 : vector<1x128xf32> to vector<2x128xf32>
    %344 = arith.addf %341, %343 : vector<2x128xf32>
    %345 = arith.negf %344 : vector<2x128xf32>
    %346 = math.exp %345 : vector<2x128xf32>
    %cst_207 = arith.constant 1.000000e+00 : f32
    %347 = vector.broadcast %cst_207 : f32 to vector<2x128xf32>
    %348 = arith.addf %347, %346 : vector<2x128xf32>
    %349 = arith.divf %347, %348 : vector<2x128xf32>
    %350 = vector.extract_strided_slice %349 {offsets = [0, 0], sizes = [2, 32], strides = [1, 1]} : vector<2x128xf32> to vector<2x32xf32>
    %351 = vector.extract_strided_slice %349 {offsets = [0, 32], sizes = [2, 32], strides = [1, 1]} : vector<2x128xf32> to vector<2x32xf32>
    %352 = vector.extract_strided_slice %349 {offsets = [0, 96], sizes = [2, 32], strides = [1, 1]} : vector<2x128xf32> to vector<2x32xf32>
    %353 = vector.extract_strided_slice %344 {offsets = [0, 64], sizes = [2, 32], strides = [1, 1]} : vector<2x128xf32> to vector<2x32xf32>
    %354 = math.tanh %353 : vector<2x32xf32>
    %c0_208 = arith.constant 0 : index
    %c0_209 = arith.constant 0 : index
    %355 = vector.load %arg10[%c0_208, %c0_209] : memref<2x96xf32, #tpu.memory_space<vmem>>, vector<2x32xf32>
    %356 = arith.mulf %351, %355 : vector<2x32xf32>
    %357 = arith.mulf %350, %354 : vector<2x32xf32>
    %358 = arith.addf %356, %357 : vector<2x32xf32>
    %359 = math.tanh %358 : vector<2x32xf32>
    %360 = arith.mulf %352, %359 : vector<2x32xf32>
    %c0_210 = arith.constant 0 : index
    %c0_211 = arith.constant 0 : index
    %361 = vector.load %arg10[%c0_210, %c0_211] : memref<2x96xf32, #tpu.memory_space<vmem>>, vector<2x32xf32>
    tpu.vector_store %arg10[%c0_210, %c0_211], %358 {strides = array<i32>} : memref<2x96xf32, #tpu.memory_space<vmem>>, vector<2x32xf32>,
    %c0_212 = arith.constant 0 : index
    %c0_213 = arith.constant 0 : index
    %362 = vector.load %arg9[%c0_212, %c0_213] : memref<2x96xf32, #tpu.memory_space<vmem>>, vector<2x32xf32>
    tpu.vector_store %arg9[%c0_212, %c0_213], %360 {strides = array<i32>} : memref<2x96xf32, #tpu.memory_space<vmem>>, vector<2x32xf32>,
    %c64_214 = arith.constant 64 : index
    %c0_215 = arith.constant 0 : index
    %363 = vector.load %arg4[%c64_214, %c0_215] : memref<128x128xf32, #tpu.memory_space<vmem>>, vector<32x128xf32>
    %cst_216 = arith.constant dense<0.000000e+00> : vector<2x128xf32>
    %364 = tpu.matmul %360, %363, %cst_216 {dimension_numbers = #tpu.dot_dimension_numbers<[1], [0], [0], [1], [0, 0, 1, 1], [], []>} : vector<2x32xf32>, vector<32x128xf32>, vector<2x128xf32> -> vector<2x128xf32>
    %365 = vector.extract_strided_slice %334 {offsets = [0, 128], sizes = [2, 128], strides = [1, 1]} : vector<2x384xf32> to vector<2x128xf32>
    %366 = arith.addf %364, %365 : vector<2x128xf32>
    %c1_217 = arith.constant 1 : index
    %c0_218 = arith.constant 0 : index
    %367 = vector.load %arg6[%c1_217, %c0_218] : memref<3x128xf32, #tpu.memory_space<vmem>>, vector<1x128xf32>
    %368 = vector.broadcast %367 : vector<1x128xf32> to vector<2x128xf32>
    %369 = arith.addf %366, %368 : vector<2x128xf32>
    %370 = arith.negf %369 : vector<2x128xf32>
    %371 = math.exp %370 : vector<2x128xf32>
    %cst_219 = arith.constant 1.000000e+00 : f32
    %372 = vector.broadcast %cst_219 : f32 to vector<2x128xf32>
    %373 = arith.addf %372, %371 : vector<2x128xf32>
    %374 = arith.divf %372, %373 : vector<2x128xf32>
    %375 = vector.extract_strided_slice %374 {offsets = [0, 0], sizes = [2, 32], strides = [1, 1]} : vector<2x128xf32> to vector<2x32xf32>
    %376 = vector.extract_strided_slice %374 {offsets = [0, 32], sizes = [2, 32], strides = [1, 1]} : vector<2x128xf32> to vector<2x32xf32>
    %377 = vector.extract_strided_slice %374 {offsets = [0, 96], sizes = [2, 32], strides = [1, 1]} : vector<2x128xf32> to vector<2x32xf32>
    %378 = vector.extract_strided_slice %369 {offsets = [0, 64], sizes = [2, 32], strides = [1, 1]} : vector<2x128xf32> to vector<2x32xf32>
    %379 = math.tanh %378 : vector<2x32xf32>
    %c0_220 = arith.constant 0 : index
    %c32_221 = arith.constant 32 : index
    %380 = vector.load %arg10[%c0_220, %c32_221] : memref<2x96xf32, #tpu.memory_space<vmem>>, vector<2x32xf32>
    %381 = arith.mulf %376, %380 : vector<2x32xf32>
    %382 = arith.mulf %375, %379 : vector<2x32xf32>
    %383 = arith.addf %381, %382 : vector<2x32xf32>
    %384 = math.tanh %383 : vector<2x32xf32>
    %385 = arith.mulf %377, %384 : vector<2x32xf32>
    %c0_222 = arith.constant 0 : index
    %c32_223 = arith.constant 32 : index
    %386 = vector.load %arg10[%c0_222, %c32_223] : memref<2x96xf32, #tpu.memory_space<vmem>>, vector<2x32xf32>
    tpu.vector_store %arg10[%c0_222, %c32_223], %383 {strides = array<i32>} : memref<2x96xf32, #tpu.memory_space<vmem>>, vector<2x32xf32>,
    %c0_224 = arith.constant 0 : index
    %c32_225 = arith.constant 32 : index
    %387 = vector.load %arg9[%c0_224, %c32_225] : memref<2x96xf32, #tpu.memory_space<vmem>>, vector<2x32xf32>
    tpu.vector_store %arg9[%c0_224, %c32_225], %385 {strides = array<i32>} : memref<2x96xf32, #tpu.memory_space<vmem>>, vector<2x32xf32>,
    %c96_226 = arith.constant 96 : index
    %c0_227 = arith.constant 0 : index
    %388 = vector.load %arg4[%c96_226, %c0_227] : memref<128x128xf32, #tpu.memory_space<vmem>>, vector<32x128xf32>
    %cst_228 = arith.constant dense<0.000000e+00> : vector<2x128xf32>
    %389 = tpu.matmul %385, %388, %cst_228 {dimension_numbers = #tpu.dot_dimension_numbers<[1], [0], [0], [1], [0, 0, 1, 1], [], []>} : vector<2x32xf32>, vector<32x128xf32>, vector<2x128xf32> -> vector<2x128xf32>
    %390 = vector.extract_strided_slice %334 {offsets = [0, 256], sizes = [2, 128], strides = [1, 1]} : vector<2x384xf32> to vector<2x128xf32>
    %391 = arith.addf %389, %390 : vector<2x128xf32>
    %c2_229 = arith.constant 2 : index
    %c0_230 = arith.constant 0 : index
    %392 = vector.load %arg6[%c2_229, %c0_230] : memref<3x128xf32, #tpu.memory_space<vmem>>, vector<1x128xf32>
    %393 = vector.broadcast %392 : vector<1x128xf32> to vector<2x128xf32>
    %394 = arith.addf %391, %393 : vector<2x128xf32>
    %395 = arith.negf %394 : vector<2x128xf32>
    %396 = math.exp %395 : vector<2x128xf32>
    %cst_231 = arith.constant 1.000000e+00 : f32
    %397 = vector.broadcast %cst_231 : f32 to vector<2x128xf32>
    %398 = arith.addf %397, %396 : vector<2x128xf32>
    %399 = arith.divf %397, %398 : vector<2x128xf32>
    %400 = vector.extract_strided_slice %399 {offsets = [0, 0], sizes = [2, 32], strides = [1, 1]} : vector<2x128xf32> to vector<2x32xf32>
    %401 = vector.extract_strided_slice %399 {offsets = [0, 32], sizes = [2, 32], strides = [1, 1]} : vector<2x128xf32> to vector<2x32xf32>
    %402 = vector.extract_strided_slice %399 {offsets = [0, 96], sizes = [2, 32], strides = [1, 1]} : vector<2x128xf32> to vector<2x32xf32>
    %403 = vector.extract_strided_slice %394 {offsets = [0, 64], sizes = [2, 32], strides = [1, 1]} : vector<2x128xf32> to vector<2x32xf32>
    %404 = math.tanh %403 : vector<2x32xf32>
    %c0_232 = arith.constant 0 : index
    %c64_233 = arith.constant 64 : index
    %405 = vector.load %arg10[%c0_232, %c64_233] : memref<2x96xf32, #tpu.memory_space<vmem>>, vector<2x32xf32>
    %406 = arith.mulf %401, %405 : vector<2x32xf32>
    %407 = arith.mulf %400, %404 : vector<2x32xf32>
    %408 = arith.addf %406, %407 : vector<2x32xf32>
    %409 = math.tanh %408 : vector<2x32xf32>
    %410 = arith.mulf %402, %409 : vector<2x32xf32>
    %c0_234 = arith.constant 0 : index
    %c64_235 = arith.constant 64 : index
    %411 = vector.load %arg10[%c0_234, %c64_235] : memref<2x96xf32, #tpu.memory_space<vmem>>, vector<2x32xf32>
    tpu.vector_store %arg10[%c0_234, %c64_235], %408 {strides = array<i32>} : memref<2x96xf32, #tpu.memory_space<vmem>>, vector<2x32xf32>,
    %c0_236 = arith.constant 0 : index
    %c64_237 = arith.constant 64 : index
    %412 = vector.load %arg9[%c0_236, %c64_237] : memref<2x96xf32, #tpu.memory_space<vmem>>, vector<2x32xf32>
    tpu.vector_store %arg9[%c0_236, %c64_237], %410 {strides = array<i32>} : memref<2x96xf32, #tpu.memory_space<vmem>>, vector<2x32xf32>,
    %c0_238 = arith.constant 0 : index
    %c0_239 = arith.constant 0 : index
    %413 = vector.load %arg7[%c0_238, %c0_239] : memref<33x16xf32, #tpu.memory_space<vmem>>, vector<32x16xf32>
    %cst_240 = arith.constant dense<0.000000e+00> : vector<2x16xf32>
    %414 = tpu.matmul %410, %413, %cst_240 {dimension_numbers = #tpu.dot_dimension_numbers<[1], [0], [0], [1], [0, 0, 1, 1], [], []>} : vector<2x32xf32>, vector<32x16xf32>, vector<2x16xf32> -> vector<2x16xf32>
    %c32_241 = arith.constant 32 : index
    %c0_242 = arith.constant 0 : index
    %415 = vector.load %arg7[%c32_241, %c0_242] : memref<33x16xf32, #tpu.memory_space<vmem>>, vector<1x16xf32>
    %416 = vector.broadcast %415 : vector<1x16xf32> to vector<2x16xf32>
    %417 = arith.addf %414, %416 : vector<2x16xf32>
    %cst_243 = arith.constant dense<0xFF800000> : vector<2xf32>
    %418 = vector.multi_reduction <maximumf>, %417, %cst_243 [1] : vector<2x16xf32> to vector<2xf32>
    %419 = vector.shape_cast %418 : vector<2xf32> to vector<2x1xf32>
    %420 = vector.broadcast %419 : vector<2x1xf32> to vector<2x16xf32>
    %421 = arith.subf %417, %420 : vector<2x16xf32>
    %422 = math.exp %421 : vector<2x16xf32>
    %cst_244 = arith.constant dense<0.000000e+00> : vector<2xf32>
    %423 = vector.multi_reduction <add>, %422, %cst_244 [1] : vector<2x16xf32> to vector<2xf32>
    %424 = vector.shape_cast %423 : vector<2xf32> to vector<2x1xf32>
    %425 = math.log %424 : vector<2x1xf32>
    %426 = vector.broadcast %425 : vector<2x1xf32> to vector<2x16xf32>
    %427 = arith.subf %421, %426 : vector<2x16xf32>
    %c0_245 = arith.constant 0 : index
    %c32_246 = arith.constant 32 : index
    %428 = vector.load %arg8[%c0_245, %c32_246] : memref<2x128xf32, #tpu.memory_space<vmem>>, vector<2x16xf32>
    tpu.vector_store %arg8[%c0_245, %c32_246], %427 {strides = array<i32>} : memref<2x128xf32, #tpu.memory_space<vmem>>, vector<2x16xf32>,
    %429 = tpu.iota {dimensions = array<i32: 1>} : vector<2x16xi32>
    %cst_247 = arith.constant dense<0xFF800000> : vector<2xf32>
    %430 = vector.multi_reduction <maximumf>, %427, %cst_247 [1] : vector<2x16xf32> to vector<2xf32>
    %431 = vector.shape_cast %430 : vector<2xf32> to vector<2x1xf32>
    %432 = vector.broadcast %431 : vector<2x1xf32> to vector<2x16xf32>
    %433 = arith.cmpf oeq, %427, %432 : vector<2x16xf32>
    %c16_i32_248 = arith.constant 16 : i32
    %434 = vector.broadcast %c16_i32_248 : i32 to vector<2x16xi32>
    %435 = arith.select %433, %429, %434 : vector<2x16xi1>, vector<2x16xi32>
    %cst_249 = arith.constant dense<2147483647> : vector<2xi32>
    %436 = vector.multi_reduction <minsi>, %435, %cst_249 [1] : vector<2x16xi32> to vector<2xi32>
    %437 = vector.shape_cast %436 : vector<2xi32> to vector<2x1xi32>
    %438 = vector.broadcast %437 : vector<2x1xi32> to vector<2x16xi32>
    %439 = arith.cmpi eq, %429, %438 : vector<2x16xi32>
    %440 = arith.extui %439 : vector<2x16xi1> to vector<2x16xi32>
    %441 = arith.sitofp %440 : vector<2x16xi32> to vector<2x16xf32>
    %c0_250 = arith.constant 0 : index
    %c0_251 = arith.constant 0 : index
    %442 = vector.load %arg2[%c0_250, %c0_251] : memref<16x32xf32, #tpu.memory_space<vmem>>, vector<16x32xf32>
    %cst_252 = arith.constant dense<0.000000e+00> : vector<2x32xf32>
    %443 = tpu.matmul %441, %442, %cst_252 {dimension_numbers = #tpu.dot_dimension_numbers<[1], [0], [0], [1], [0, 0, 1, 1], [], []>} : vector<2x16xf32>, vector<16x32xf32>, vector<2x32xf32> -> vector<2x32xf32>
    %c0_253 = arith.constant 0 : index
    %c0_254 = arith.constant 0 : index
    %444 = vector.load %arg11[%c0_253, %c0_254] : memref<2x32xf32, #tpu.memory_space<vmem>>, vector<2x32xf32>
    tpu.vector_store %arg11[%c0_253, %c0_254], %443 {strides = array<i32>} : memref<2x32xf32, #tpu.memory_space<vmem>>, vector<2x32xf32>,
    %c0_255 = arith.constant 0 : index
    %c0_256 = arith.constant 0 : index
    %c0_257 = arith.constant 0 : index
    %445 = vector.load %arg0[%c0_255, %c0_256, %c0_257] : memref<2x8x32xf32, #tpu.memory_space<vmem>>, vector<2x8x32xf32>
    %c0_258 = arith.constant 0 : index
    %c0_259 = arith.constant 0 : index
    %446 = vector.load %arg11[%c0_258, %c0_259] : memref<2x32xf32, #tpu.memory_space<vmem>>, vector<2x32xf32>
    %c0_260 = arith.constant 0 : index
    %c64_261 = arith.constant 64 : index
    %447 = vector.load %arg9[%c0_260, %c64_261] : memref<2x96xf32, #tpu.memory_space<vmem>>, vector<2x32xf32>
    %c32_262 = arith.constant 32 : index
    %c0_263 = arith.constant 0 : index
    %448 = vector.load %arg3[%c32_262, %c0_263] : memref<66x32xf32, #tpu.memory_space<vmem>>, vector<32x32xf32>
    %c65_264 = arith.constant 65 : index
    %c0_265 = arith.constant 0 : index
    %449 = vector.load %arg3[%c65_264, %c0_265] : memref<66x32xf32, #tpu.memory_space<vmem>>, vector<1x32xf32>
    %cst_266 = arith.constant dense<0.000000e+00> : vector<2x32xf32>
    %450 = tpu.matmul %447, %448, %cst_266 {dimension_numbers = #tpu.dot_dimension_numbers<[1], [0], [0], [1], [0, 0, 1, 1], [], []>} : vector<2x32xf32>, vector<32x32xf32>, vector<2x32xf32> -> vector<2x32xf32>
    %c0_267 = arith.constant 0 : index
    %c0_268 = arith.constant 0 : index
    %c0_269 = arith.constant 0 : index
    %451 = vector.load %arg12[%c0_267, %c0_268, %c0_269] : memref<2x8x32xf32, #tpu.memory_space<vmem>>, vector<2x8x32xf32>
    %452 = vector.shape_cast %450 : vector<2x32xf32> to vector<2x1x32xf32>
    %453 = vector.broadcast %452 : vector<2x1x32xf32> to vector<2x8x32xf32>
    %454 = arith.addf %451, %453 : vector<2x8x32xf32>
    %cst_270 = arith.constant 0.000000e+00 : f32
    %455 = vector.broadcast %cst_270 : f32 to vector<2x8x32xf32>
    %456 = arith.maximumf %454, %455 : vector<2x8x32xf32>
    %457 = vector.shape_cast %449 : vector<1x32xf32> to vector<1x1x32xf32>
    %458 = vector.broadcast %457 : vector<1x1x32xf32> to vector<2x8x32xf32>
    %459 = arith.mulf %456, %458 : vector<2x8x32xf32>
    %cst_271 = arith.constant dense<0.000000e+00> : vector<2x8xf32>
    %460 = vector.multi_reduction <add>, %459, %cst_271 [2] : vector<2x8x32xf32> to vector<2x8xf32>
    %cst_272 = arith.constant dense<0xFF800000> : vector<2xf32>
    %461 = vector.multi_reduction <maximumf>, %460, %cst_272 [1] : vector<2x8xf32> to vector<2xf32>
    %462 = vector.shape_cast %461 : vector<2xf32> to vector<2x1xf32>
    %463 = vector.broadcast %462 : vector<2x1xf32> to vector<2x8xf32>
    %464 = arith.subf %460, %463 : vector<2x8xf32>
    %465 = math.exp %464 : vector<2x8xf32>
    %cst_273 = arith.constant dense<0.000000e+00> : vector<2xf32>
    %466 = vector.multi_reduction <add>, %465, %cst_273 [1] : vector<2x8xf32> to vector<2xf32>
    %467 = vector.shape_cast %466 : vector<2xf32> to vector<2x1xf32>
    %468 = math.log %467 : vector<2x1xf32>
    %469 = vector.broadcast %468 : vector<2x1xf32> to vector<2x8xf32>
    %470 = arith.subf %464, %469 : vector<2x8xf32>
    %471 = vector.shape_cast %470 : vector<2x8xf32> to vector<2x8x1xf32>
    %472 = vector.broadcast %471 : vector<2x8x1xf32> to vector<2x8x32xf32>
    %473 = arith.mulf %472, %445 : vector<2x8x32xf32>
    %cst_274 = arith.constant dense<0.000000e+00> : vector<2x32xf32>
    %474 = vector.multi_reduction <add>, %473, %cst_274 [1] : vector<2x8x32xf32> to vector<2x32xf32>
    %c0_275 = arith.constant 0 : index
    %c0_276 = arith.constant 0 : index
    %475 = vector.load %arg9[%c0_275, %c0_276] : memref<2x96xf32, #tpu.memory_space<vmem>>, vector<2x96xf32>
    %c0_277 = arith.constant 0 : index
    %c0_278 = arith.constant 0 : index
    %476 = vector.load %arg5[%c0_277, %c0_278] : memref<96x384xf32, #tpu.memory_space<vmem>>, vector<96x384xf32>
    %cst_279 = arith.constant dense<0.000000e+00> : vector<2x384xf32>
    %477 = tpu.matmul %475, %476, %cst_279 {dimension_numbers = #tpu.dot_dimension_numbers<[1], [0], [0], [1], [0, 0, 1, 1], [], []>} : vector<2x96xf32>, vector<96x384xf32>, vector<2x384xf32> -> vector<2x384xf32>
    %c0_280 = arith.constant 0 : index
    %c0_281 = arith.constant 0 : index
    %478 = vector.load %arg4[%c0_280, %c0_281] : memref<128x128xf32, #tpu.memory_space<vmem>>, vector<32x128xf32>
    %cst_282 = arith.constant dense<0.000000e+00> : vector<2x128xf32>
    %479 = tpu.matmul %446, %478, %cst_282 {dimension_numbers = #tpu.dot_dimension_numbers<[1], [0], [0], [1], [0, 0, 1, 1], [], []>} : vector<2x32xf32>, vector<32x128xf32>, vector<2x128xf32> -> vector<2x128xf32>
    %c32_283 = arith.constant 32 : index
    %c0_284 = arith.constant 0 : index
    %480 = vector.load %arg4[%c32_283, %c0_284] : memref<128x128xf32, #tpu.memory_space<vmem>>, vector<32x128xf32>
    %cst_285 = arith.constant dense<0.000000e+00> : vector<2x128xf32>
    %481 = tpu.matmul %474, %480, %cst_285 {dimension_numbers = #tpu.dot_dimension_numbers<[1], [0], [0], [1], [0, 0, 1, 1], [], []>} : vector<2x32xf32>, vector<32x128xf32>, vector<2x128xf32> -> vector<2x128xf32>
    %482 = arith.addf %479, %481 : vector<2x128xf32>
    %483 = vector.extract_strided_slice %477 {offsets = [0, 0], sizes = [2, 128], strides = [1, 1]} : vector<2x384xf32> to vector<2x128xf32>
    %484 = arith.addf %482, %483 : vector<2x128xf32>
    %c0_286 = arith.constant 0 : index
    %c0_287 = arith.constant 0 : index
    %485 = vector.load %arg6[%c0_286, %c0_287] : memref<3x128xf32, #tpu.memory_space<vmem>>, vector<1x128xf32>
    %486 = vector.broadcast %485 : vector<1x128xf32> to vector<2x128xf32>
    %487 = arith.addf %484, %486 : vector<2x128xf32>
    %488 = arith.negf %487 : vector<2x128xf32>
    %489 = math.exp %488 : vector<2x128xf32>
    %cst_288 = arith.constant 1.000000e+00 : f32
    %490 = vector.broadcast %cst_288 : f32 to vector<2x128xf32>
    %491 = arith.addf %490, %489 : vector<2x128xf32>
    %492 = arith.divf %490, %491 : vector<2x128xf32>
    %493 = vector.extract_strided_slice %492 {offsets = [0, 0], sizes = [2, 32], strides = [1, 1]} : vector<2x128xf32> to vector<2x32xf32>
    %494 = vector.extract_strided_slice %492 {offsets = [0, 32], sizes = [2, 32], strides = [1, 1]} : vector<2x128xf32> to vector<2x32xf32>
    %495 = vector.extract_strided_slice %492 {offsets = [0, 96], sizes = [2, 32], strides = [1, 1]} : vector<2x128xf32> to vector<2x32xf32>
    %496 = vector.extract_strided_slice %487 {offsets = [0, 64], sizes = [2, 32], strides = [1, 1]} : vector<2x128xf32> to vector<2x32xf32>
    %497 = math.tanh %496 : vector<2x32xf32>
    %c0_289 = arith.constant 0 : index
    %c0_290 = arith.constant 0 : index
    %498 = vector.load %arg10[%c0_289, %c0_290] : memref<2x96xf32, #tpu.memory_space<vmem>>, vector<2x32xf32>
    %499 = arith.mulf %494, %498 : vector<2x32xf32>
    %500 = arith.mulf %493, %497 : vector<2x32xf32>
    %501 = arith.addf %499, %500 : vector<2x32xf32>
    %502 = math.tanh %501 : vector<2x32xf32>
    %503 = arith.mulf %495, %502 : vector<2x32xf32>
    %c0_291 = arith.constant 0 : index
    %c0_292 = arith.constant 0 : index
    %504 = vector.load %arg10[%c0_291, %c0_292] : memref<2x96xf32, #tpu.memory_space<vmem>>, vector<2x32xf32>
    tpu.vector_store %arg10[%c0_291, %c0_292], %501 {strides = array<i32>} : memref<2x96xf32, #tpu.memory_space<vmem>>, vector<2x32xf32>,
    %c0_293 = arith.constant 0 : index
    %c0_294 = arith.constant 0 : index
    %505 = vector.load %arg9[%c0_293, %c0_294] : memref<2x96xf32, #tpu.memory_space<vmem>>, vector<2x32xf32>
    tpu.vector_store %arg9[%c0_293, %c0_294], %503 {strides = array<i32>} : memref<2x96xf32, #tpu.memory_space<vmem>>, vector<2x32xf32>,
    %c64_295 = arith.constant 64 : index
    %c0_296 = arith.constant 0 : index
    %506 = vector.load %arg4[%c64_295, %c0_296] : memref<128x128xf32, #tpu.memory_space<vmem>>, vector<32x128xf32>
    %cst_297 = arith.constant dense<0.000000e+00> : vector<2x128xf32>
    %507 = tpu.matmul %503, %506, %cst_297 {dimension_numbers = #tpu.dot_dimension_numbers<[1], [0], [0], [1], [0, 0, 1, 1], [], []>} : vector<2x32xf32>, vector<32x128xf32>, vector<2x128xf32> -> vector<2x128xf32>
    %508 = vector.extract_strided_slice %477 {offsets = [0, 128], sizes = [2, 128], strides = [1, 1]} : vector<2x384xf32> to vector<2x128xf32>
    %509 = arith.addf %507, %508 : vector<2x128xf32>
    %c1_298 = arith.constant 1 : index
    %c0_299 = arith.constant 0 : index
    %510 = vector.load %arg6[%c1_298, %c0_299] : memref<3x128xf32, #tpu.memory_space<vmem>>, vector<1x128xf32>
    %511 = vector.broadcast %510 : vector<1x128xf32> to vector<2x128xf32>
    %512 = arith.addf %509, %511 : vector<2x128xf32>
    %513 = arith.negf %512 : vector<2x128xf32>
    %514 = math.exp %513 : vector<2x128xf32>
    %cst_300 = arith.constant 1.000000e+00 : f32
    %515 = vector.broadcast %cst_300 : f32 to vector<2x128xf32>
    %516 = arith.addf %515, %514 : vector<2x128xf32>
    %517 = arith.divf %515, %516 : vector<2x128xf32>
    %518 = vector.extract_strided_slice %517 {offsets = [0, 0], sizes = [2, 32], strides = [1, 1]} : vector<2x128xf32> to vector<2x32xf32>
    %519 = vector.extract_strided_slice %517 {offsets = [0, 32], sizes = [2, 32], strides = [1, 1]} : vector<2x128xf32> to vector<2x32xf32>
    %520 = vector.extract_strided_slice %517 {offsets = [0, 96], sizes = [2, 32], strides = [1, 1]} : vector<2x128xf32> to vector<2x32xf32>
    %521 = vector.extract_strided_slice %512 {offsets = [0, 64], sizes = [2, 32], strides = [1, 1]} : vector<2x128xf32> to vector<2x32xf32>
    %522 = math.tanh %521 : vector<2x32xf32>
    %c0_301 = arith.constant 0 : index
    %c32_302 = arith.constant 32 : index
    %523 = vector.load %arg10[%c0_301, %c32_302] : memref<2x96xf32, #tpu.memory_space<vmem>>, vector<2x32xf32>
    %524 = arith.mulf %519, %523 : vector<2x32xf32>
    %525 = arith.mulf %518, %522 : vector<2x32xf32>
    %526 = arith.addf %524, %525 : vector<2x32xf32>
    %527 = math.tanh %526 : vector<2x32xf32>
    %528 = arith.mulf %520, %527 : vector<2x32xf32>
    %c0_303 = arith.constant 0 : index
    %c32_304 = arith.constant 32 : index
    %529 = vector.load %arg10[%c0_303, %c32_304] : memref<2x96xf32, #tpu.memory_space<vmem>>, vector<2x32xf32>
    tpu.vector_store %arg10[%c0_303, %c32_304], %526 {strides = array<i32>} : memref<2x96xf32, #tpu.memory_space<vmem>>, vector<2x32xf32>,
    %c0_305 = arith.constant 0 : index
    %c32_306 = arith.constant 32 : index
    %530 = vector.load %arg9[%c0_305, %c32_306] : memref<2x96xf32, #tpu.memory_space<vmem>>, vector<2x32xf32>
    tpu.vector_store %arg9[%c0_305, %c32_306], %528 {strides = array<i32>} : memref<2x96xf32, #tpu.memory_space<vmem>>, vector<2x32xf32>,
    %c96_307 = arith.constant 96 : index
    %c0_308 = arith.constant 0 : index
    %531 = vector.load %arg4[%c96_307, %c0_308] : memref<128x128xf32, #tpu.memory_space<vmem>>, vector<32x128xf32>
    %cst_309 = arith.constant dense<0.000000e+00> : vector<2x128xf32>
    %532 = tpu.matmul %528, %531, %cst_309 {dimension_numbers = #tpu.dot_dimension_numbers<[1], [0], [0], [1], [0, 0, 1, 1], [], []>} : vector<2x32xf32>, vector<32x128xf32>, vector<2x128xf32> -> vector<2x128xf32>
    %533 = vector.extract_strided_slice %477 {offsets = [0, 256], sizes = [2, 128], strides = [1, 1]} : vector<2x384xf32> to vector<2x128xf32>
    %534 = arith.addf %532, %533 : vector<2x128xf32>
    %c2_310 = arith.constant 2 : index
    %c0_311 = arith.constant 0 : index
    %535 = vector.load %arg6[%c2_310, %c0_311] : memref<3x128xf32, #tpu.memory_space<vmem>>, vector<1x128xf32>
    %536 = vector.broadcast %535 : vector<1x128xf32> to vector<2x128xf32>
    %537 = arith.addf %534, %536 : vector<2x128xf32>
    %538 = arith.negf %537 : vector<2x128xf32>
    %539 = math.exp %538 : vector<2x128xf32>
    %cst_312 = arith.constant 1.000000e+00 : f32
    %540 = vector.broadcast %cst_312 : f32 to vector<2x128xf32>
    %541 = arith.addf %540, %539 : vector<2x128xf32>
    %542 = arith.divf %540, %541 : vector<2x128xf32>
    %543 = vector.extract_strided_slice %542 {offsets = [0, 0], sizes = [2, 32], strides = [1, 1]} : vector<2x128xf32> to vector<2x32xf32>
    %544 = vector.extract_strided_slice %542 {offsets = [0, 32], sizes = [2, 32], strides = [1, 1]} : vector<2x128xf32> to vector<2x32xf32>
    %545 = vector.extract_strided_slice %542 {offsets = [0, 96], sizes = [2, 32], strides = [1, 1]} : vector<2x128xf32> to vector<2x32xf32>
    %546 = vector.extract_strided_slice %537 {offsets = [0, 64], sizes = [2, 32], strides = [1, 1]} : vector<2x128xf32> to vector<2x32xf32>
    %547 = math.tanh %546 : vector<2x32xf32>
    %c0_313 = arith.constant 0 : index
    %c64_314 = arith.constant 64 : index
    %548 = vector.load %arg10[%c0_313, %c64_314] : memref<2x96xf32, #tpu.memory_space<vmem>>, vector<2x32xf32>
    %549 = arith.mulf %544, %548 : vector<2x32xf32>
    %550 = arith.mulf %543, %547 : vector<2x32xf32>
    %551 = arith.addf %549, %550 : vector<2x32xf32>
    %552 = math.tanh %551 : vector<2x32xf32>
    %553 = arith.mulf %545, %552 : vector<2x32xf32>
    %c0_315 = arith.constant 0 : index
    %c64_316 = arith.constant 64 : index
    %554 = vector.load %arg10[%c0_315, %c64_316] : memref<2x96xf32, #tpu.memory_space<vmem>>, vector<2x32xf32>
    tpu.vector_store %arg10[%c0_315, %c64_316], %551 {strides = array<i32>} : memref<2x96xf32, #tpu.memory_space<vmem>>, vector<2x32xf32>,
    %c0_317 = arith.constant 0 : index
    %c64_318 = arith.constant 64 : index
    %555 = vector.load %arg9[%c0_317, %c64_318] : memref<2x96xf32, #tpu.memory_space<vmem>>, vector<2x32xf32>
    tpu.vector_store %arg9[%c0_317, %c64_318], %553 {strides = array<i32>} : memref<2x96xf32, #tpu.memory_space<vmem>>, vector<2x32xf32>,
    %c0_319 = arith.constant 0 : index
    %c0_320 = arith.constant 0 : index
    %556 = vector.load %arg7[%c0_319, %c0_320] : memref<33x16xf32, #tpu.memory_space<vmem>>, vector<32x16xf32>
    %cst_321 = arith.constant dense<0.000000e+00> : vector<2x16xf32>
    %557 = tpu.matmul %553, %556, %cst_321 {dimension_numbers = #tpu.dot_dimension_numbers<[1], [0], [0], [1], [0, 0, 1, 1], [], []>} : vector<2x32xf32>, vector<32x16xf32>, vector<2x16xf32> -> vector<2x16xf32>
    %c32_322 = arith.constant 32 : index
    %c0_323 = arith.constant 0 : index
    %558 = vector.load %arg7[%c32_322, %c0_323] : memref<33x16xf32, #tpu.memory_space<vmem>>, vector<1x16xf32>
    %559 = vector.broadcast %558 : vector<1x16xf32> to vector<2x16xf32>
    %560 = arith.addf %557, %559 : vector<2x16xf32>
    %cst_324 = arith.constant dense<0xFF800000> : vector<2xf32>
    %561 = vector.multi_reduction <maximumf>, %560, %cst_324 [1] : vector<2x16xf32> to vector<2xf32>
    %562 = vector.shape_cast %561 : vector<2xf32> to vector<2x1xf32>
    %563 = vector.broadcast %562 : vector<2x1xf32> to vector<2x16xf32>
    %564 = arith.subf %560, %563 : vector<2x16xf32>
    %565 = math.exp %564 : vector<2x16xf32>
    %cst_325 = arith.constant dense<0.000000e+00> : vector<2xf32>
    %566 = vector.multi_reduction <add>, %565, %cst_325 [1] : vector<2x16xf32> to vector<2xf32>
    %567 = vector.shape_cast %566 : vector<2xf32> to vector<2x1xf32>
    %568 = math.log %567 : vector<2x1xf32>
    %569 = vector.broadcast %568 : vector<2x1xf32> to vector<2x16xf32>
    %570 = arith.subf %564, %569 : vector<2x16xf32>
    %c0_326 = arith.constant 0 : index
    %c48 = arith.constant 48 : index
    %571 = vector.load %arg8[%c0_326, %c48] : memref<2x128xf32, #tpu.memory_space<vmem>>, vector<2x16xf32>
    tpu.vector_store %arg8[%c0_326, %c48], %570 {strides = array<i32>} : memref<2x128xf32, #tpu.memory_space<vmem>>, vector<2x16xf32>,
    %572 = tpu.iota {dimensions = array<i32: 1>} : vector<2x16xi32>
    %cst_327 = arith.constant dense<0xFF800000> : vector<2xf32>
    %573 = vector.multi_reduction <maximumf>, %570, %cst_327 [1] : vector<2x16xf32> to vector<2xf32>
    %574 = vector.shape_cast %573 : vector<2xf32> to vector<2x1xf32>
    %575 = vector.broadcast %574 : vector<2x1xf32> to vector<2x16xf32>
    %576 = arith.cmpf oeq, %570, %575 : vector<2x16xf32>
    %c16_i32_328 = arith.constant 16 : i32
    %577 = vector.broadcast %c16_i32_328 : i32 to vector<2x16xi32>
    %578 = arith.select %576, %572, %577 : vector<2x16xi1>, vector<2x16xi32>
    %cst_329 = arith.constant dense<2147483647> : vector<2xi32>
    %579 = vector.multi_reduction <minsi>, %578, %cst_329 [1] : vector<2x16xi32> to vector<2xi32>
    %580 = vector.shape_cast %579 : vector<2xi32> to vector<2x1xi32>
    %581 = vector.broadcast %580 : vector<2x1xi32> to vector<2x16xi32>
    %582 = arith.cmpi eq, %572, %581 : vector<2x16xi32>
    %583 = arith.extui %582 : vector<2x16xi1> to vector<2x16xi32>
    %584 = arith.sitofp %583 : vector<2x16xi32> to vector<2x16xf32>
    %c0_330 = arith.constant 0 : index
    %c0_331 = arith.constant 0 : index
    %585 = vector.load %arg2[%c0_330, %c0_331] : memref<16x32xf32, #tpu.memory_space<vmem>>, vector<16x32xf32>
    %cst_332 = arith.constant dense<0.000000e+00> : vector<2x32xf32>
    %586 = tpu.matmul %584, %585, %cst_332 {dimension_numbers = #tpu.dot_dimension_numbers<[1], [0], [0], [1], [0, 0, 1, 1], [], []>} : vector<2x16xf32>, vector<16x32xf32>, vector<2x32xf32> -> vector<2x32xf32>
    %c0_333 = arith.constant 0 : index
    %c0_334 = arith.constant 0 : index
    %587 = vector.load %arg11[%c0_333, %c0_334] : memref<2x32xf32, #tpu.memory_space<vmem>>, vector<2x32xf32>
    tpu.vector_store %arg11[%c0_333, %c0_334], %586 {strides = array<i32>} : memref<2x32xf32, #tpu.memory_space<vmem>>, vector<2x32xf32>,
    %c0_335 = arith.constant 0 : index
    %c0_336 = arith.constant 0 : index
    %c0_337 = arith.constant 0 : index
    %588 = vector.load %arg0[%c0_335, %c0_336, %c0_337] : memref<2x8x32xf32, #tpu.memory_space<vmem>>, vector<2x8x32xf32>
    %c0_338 = arith.constant 0 : index
    %c0_339 = arith.constant 0 : index
    %589 = vector.load %arg11[%c0_338, %c0_339] : memref<2x32xf32, #tpu.memory_space<vmem>>, vector<2x32xf32>
    %c0_340 = arith.constant 0 : index
    %c64_341 = arith.constant 64 : index
    %590 = vector.load %arg9[%c0_340, %c64_341] : memref<2x96xf32, #tpu.memory_space<vmem>>, vector<2x32xf32>
    %c32_342 = arith.constant 32 : index
    %c0_343 = arith.constant 0 : index
    %591 = vector.load %arg3[%c32_342, %c0_343] : memref<66x32xf32, #tpu.memory_space<vmem>>, vector<32x32xf32>
    %c65_344 = arith.constant 65 : index
    %c0_345 = arith.constant 0 : index
    %592 = vector.load %arg3[%c65_344, %c0_345] : memref<66x32xf32, #tpu.memory_space<vmem>>, vector<1x32xf32>
    %cst_346 = arith.constant dense<0.000000e+00> : vector<2x32xf32>
    %593 = tpu.matmul %590, %591, %cst_346 {dimension_numbers = #tpu.dot_dimension_numbers<[1], [0], [0], [1], [0, 0, 1, 1], [], []>} : vector<2x32xf32>, vector<32x32xf32>, vector<2x32xf32> -> vector<2x32xf32>
    %c0_347 = arith.constant 0 : index
    %c0_348 = arith.constant 0 : index
    %c0_349 = arith.constant 0 : index
    %594 = vector.load %arg12[%c0_347, %c0_348, %c0_349] : memref<2x8x32xf32, #tpu.memory_space<vmem>>, vector<2x8x32xf32>
    %595 = vector.shape_cast %593 : vector<2x32xf32> to vector<2x1x32xf32>
    %596 = vector.broadcast %595 : vector<2x1x32xf32> to vector<2x8x32xf32>
    %597 = arith.addf %594, %596 : vector<2x8x32xf32>
    %cst_350 = arith.constant 0.000000e+00 : f32
    %598 = vector.broadcast %cst_350 : f32 to vector<2x8x32xf32>
    %599 = arith.maximumf %597, %598 : vector<2x8x32xf32>
    %600 = vector.shape_cast %592 : vector<1x32xf32> to vector<1x1x32xf32>
    %601 = vector.broadcast %600 : vector<1x1x32xf32> to vector<2x8x32xf32>
    %602 = arith.mulf %599, %601 : vector<2x8x32xf32>
    %cst_351 = arith.constant dense<0.000000e+00> : vector<2x8xf32>
    %603 = vector.multi_reduction <add>, %602, %cst_351 [2] : vector<2x8x32xf32> to vector<2x8xf32>
    %cst_352 = arith.constant dense<0xFF800000> : vector<2xf32>
    %604 = vector.multi_reduction <maximumf>, %603, %cst_352 [1] : vector<2x8xf32> to vector<2xf32>
    %605 = vector.shape_cast %604 : vector<2xf32> to vector<2x1xf32>
    %606 = vector.broadcast %605 : vector<2x1xf32> to vector<2x8xf32>
    %607 = arith.subf %603, %606 : vector<2x8xf32>
    %608 = math.exp %607 : vector<2x8xf32>
    %cst_353 = arith.constant dense<0.000000e+00> : vector<2xf32>
    %609 = vector.multi_reduction <add>, %608, %cst_353 [1] : vector<2x8xf32> to vector<2xf32>
    %610 = vector.shape_cast %609 : vector<2xf32> to vector<2x1xf32>
    %611 = math.log %610 : vector<2x1xf32>
    %612 = vector.broadcast %611 : vector<2x1xf32> to vector<2x8xf32>
    %613 = arith.subf %607, %612 : vector<2x8xf32>
    %614 = vector.shape_cast %613 : vector<2x8xf32> to vector<2x8x1xf32>
    %615 = vector.broadcast %614 : vector<2x8x1xf32> to vector<2x8x32xf32>
    %616 = arith.mulf %615, %588 : vector<2x8x32xf32>
    %cst_354 = arith.constant dense<0.000000e+00> : vector<2x32xf32>
    %617 = vector.multi_reduction <add>, %616, %cst_354 [1] : vector<2x8x32xf32> to vector<2x32xf32>
    %c0_355 = arith.constant 0 : index
    %c0_356 = arith.constant 0 : index
    %618 = vector.load %arg9[%c0_355, %c0_356] : memref<2x96xf32, #tpu.memory_space<vmem>>, vector<2x96xf32>
    %c0_357 = arith.constant 0 : index
    %c0_358 = arith.constant 0 : index
    %619 = vector.load %arg5[%c0_357, %c0_358] : memref<96x384xf32, #tpu.memory_space<vmem>>, vector<96x384xf32>
    %cst_359 = arith.constant dense<0.000000e+00> : vector<2x384xf32>
    %620 = tpu.matmul %618, %619, %cst_359 {dimension_numbers = #tpu.dot_dimension_numbers<[1], [0], [0], [1], [0, 0, 1, 1], [], []>} : vector<2x96xf32>, vector<96x384xf32>, vector<2x384xf32> -> vector<2x384xf32>
    %c0_360 = arith.constant 0 : index
    %c0_361 = arith.constant 0 : index
    %621 = vector.load %arg4[%c0_360, %c0_361] : memref<128x128xf32, #tpu.memory_space<vmem>>, vector<32x128xf32>
    %cst_362 = arith.constant dense<0.000000e+00> : vector<2x128xf32>
    %622 = tpu.matmul %589, %621, %cst_362 {dimension_numbers = #tpu.dot_dimension_numbers<[1], [0], [0], [1], [0, 0, 1, 1], [], []>} : vector<2x32xf32>, vector<32x128xf32>, vector<2x128xf32> -> vector<2x128xf32>
    %c32_363 = arith.constant 32 : index
    %c0_364 = arith.constant 0 : index
    %623 = vector.load %arg4[%c32_363, %c0_364] : memref<128x128xf32, #tpu.memory_space<vmem>>, vector<32x128xf32>
    %cst_365 = arith.constant dense<0.000000e+00> : vector<2x128xf32>
    %624 = tpu.matmul %617, %623, %cst_365 {dimension_numbers = #tpu.dot_dimension_numbers<[1], [0], [0], [1], [0, 0, 1, 1], [], []>} : vector<2x32xf32>, vector<32x128xf32>, vector<2x128xf32> -> vector<2x128xf32>
    %625 = arith.addf %622, %624 : vector<2x128xf32>
    %626 = vector.extract_strided_slice %620 {offsets = [0, 0], sizes = [2, 128], strides = [1, 1]} : vector<2x384xf32> to vector<2x128xf32>
    %627 = arith.addf %625, %626 : vector<2x128xf32>
    %c0_366 = arith.constant 0 : index
    %c0_367 = arith.constant 0 : index
    %628 = vector.load %arg6[%c0_366, %c0_367] : memref<3x128xf32, #tpu.memory_space<vmem>>, vector<1x128xf32>
    %629 = vector.broadcast %628 : vector<1x128xf32> to vector<2x128xf32>
    %630 = arith.addf %627, %629 : vector<2x128xf32>
    %631 = arith.negf %630 : vector<2x128xf32>
    %632 = math.exp %631 : vector<2x128xf32>
    %cst_368 = arith.constant 1.000000e+00 : f32
    %633 = vector.broadcast %cst_368 : f32 to vector<2x128xf32>
    %634 = arith.addf %633, %632 : vector<2x128xf32>
    %635 = arith.divf %633, %634 : vector<2x128xf32>
    %636 = vector.extract_strided_slice %635 {offsets = [0, 0], sizes = [2, 32], strides = [1, 1]} : vector<2x128xf32> to vector<2x32xf32>
    %637 = vector.extract_strided_slice %635 {offsets = [0, 32], sizes = [2, 32], strides = [1, 1]} : vector<2x128xf32> to vector<2x32xf32>
    %638 = vector.extract_strided_slice %635 {offsets = [0, 96], sizes = [2, 32], strides = [1, 1]} : vector<2x128xf32> to vector<2x32xf32>
    %639 = vector.extract_strided_slice %630 {offsets = [0, 64], sizes = [2, 32], strides = [1, 1]} : vector<2x128xf32> to vector<2x32xf32>
    %640 = math.tanh %639 : vector<2x32xf32>
    %c0_369 = arith.constant 0 : index
    %c0_370 = arith.constant 0 : index
    %641 = vector.load %arg10[%c0_369, %c0_370] : memref<2x96xf32, #tpu.memory_space<vmem>>, vector<2x32xf32>
    %642 = arith.mulf %637, %641 : vector<2x32xf32>
    %643 = arith.mulf %636, %640 : vector<2x32xf32>
    %644 = arith.addf %642, %643 : vector<2x32xf32>
    %645 = math.tanh %644 : vector<2x32xf32>
    %646 = arith.mulf %638, %645 : vector<2x32xf32>
    %c0_371 = arith.constant 0 : index
    %c0_372 = arith.constant 0 : index
    %647 = vector.load %arg10[%c0_371, %c0_372] : memref<2x96xf32, #tpu.memory_space<vmem>>, vector<2x32xf32>
    tpu.vector_store %arg10[%c0_371, %c0_372], %644 {strides = array<i32>} : memref<2x96xf32, #tpu.memory_space<vmem>>, vector<2x32xf32>,
    %c0_373 = arith.constant 0 : index
    %c0_374 = arith.constant 0 : index
    %648 = vector.load %arg9[%c0_373, %c0_374] : memref<2x96xf32, #tpu.memory_space<vmem>>, vector<2x32xf32>
    tpu.vector_store %arg9[%c0_373, %c0_374], %646 {strides = array<i32>} : memref<2x96xf32, #tpu.memory_space<vmem>>, vector<2x32xf32>,
    %c64_375 = arith.constant 64 : index
    %c0_376 = arith.constant 0 : index
    %649 = vector.load %arg4[%c64_375, %c0_376] : memref<128x128xf32, #tpu.memory_space<vmem>>, vector<32x128xf32>
    %cst_377 = arith.constant dense<0.000000e+00> : vector<2x128xf32>
    %650 = tpu.matmul %646, %649, %cst_377 {dimension_numbers = #tpu.dot_dimension_numbers<[1], [0], [0], [1], [0, 0, 1, 1], [], []>} : vector<2x32xf32>, vector<32x128xf32>, vector<2x128xf32> -> vector<2x128xf32>
    %651 = vector.extract_strided_slice %620 {offsets = [0, 128], sizes = [2, 128], strides = [1, 1]} : vector<2x384xf32> to vector<2x128xf32>
    %652 = arith.addf %650, %651 : vector<2x128xf32>
    %c1_378 = arith.constant 1 : index
    %c0_379 = arith.constant 0 : index
    %653 = vector.load %arg6[%c1_378, %c0_379] : memref<3x128xf32, #tpu.memory_space<vmem>>, vector<1x128xf32>
    %654 = vector.broadcast %653 : vector<1x128xf32> to vector<2x128xf32>
    %655 = arith.addf %652, %654 : vector<2x128xf32>
    %656 = arith.negf %655 : vector<2x128xf32>
    %657 = math.exp %656 : vector<2x128xf32>
    %cst_380 = arith.constant 1.000000e+00 : f32
    %658 = vector.broadcast %cst_380 : f32 to vector<2x128xf32>
    %659 = arith.addf %658, %657 : vector<2x128xf32>
    %660 = arith.divf %658, %659 : vector<2x128xf32>
    %661 = vector.extract_strided_slice %660 {offsets = [0, 0], sizes = [2, 32], strides = [1, 1]} : vector<2x128xf32> to vector<2x32xf32>
    %662 = vector.extract_strided_slice %660 {offsets = [0, 32], sizes = [2, 32], strides = [1, 1]} : vector<2x128xf32> to vector<2x32xf32>
    %663 = vector.extract_strided_slice %660 {offsets = [0, 96], sizes = [2, 32], strides = [1, 1]} : vector<2x128xf32> to vector<2x32xf32>
    %664 = vector.extract_strided_slice %655 {offsets = [0, 64], sizes = [2, 32], strides = [1, 1]} : vector<2x128xf32> to vector<2x32xf32>
    %665 = math.tanh %664 : vector<2x32xf32>
    %c0_381 = arith.constant 0 : index
    %c32_382 = arith.constant 32 : index
    %666 = vector.load %arg10[%c0_381, %c32_382] : memref<2x96xf32, #tpu.memory_space<vmem>>, vector<2x32xf32>
    %667 = arith.mulf %662, %666 : vector<2x32xf32>
    %668 = arith.mulf %661, %665 : vector<2x32xf32>
    %669 = arith.addf %667, %668 : vector<2x32xf32>
    %670 = math.tanh %669 : vector<2x32xf32>
    %671 = arith.mulf %663, %670 : vector<2x32xf32>
    %c0_383 = arith.constant 0 : index
    %c32_384 = arith.constant 32 : index
    %672 = vector.load %arg10[%c0_383, %c32_384] : memref<2x96xf32, #tpu.memory_space<vmem>>, vector<2x32xf32>
    tpu.vector_store %arg10[%c0_383, %c32_384], %669 {strides = array<i32>} : memref<2x96xf32, #tpu.memory_space<vmem>>, vector<2x32xf32>,
    %c0_385 = arith.constant 0 : index
    %c32_386 = arith.constant 32 : index
    %673 = vector.load %arg9[%c0_385, %c32_386] : memref<2x96xf32, #tpu.memory_space<vmem>>, vector<2x32xf32>
    tpu.vector_store %arg9[%c0_385, %c32_386], %671 {strides = array<i32>} : memref<2x96xf32, #tpu.memory_space<vmem>>, vector<2x32xf32>,
    %c96_387 = arith.constant 96 : index
    %c0_388 = arith.constant 0 : index
    %674 = vector.load %arg4[%c96_387, %c0_388] : memref<128x128xf32, #tpu.memory_space<vmem>>, vector<32x128xf32>
    %cst_389 = arith.constant dense<0.000000e+00> : vector<2x128xf32>
    %675 = tpu.matmul %671, %674, %cst_389 {dimension_numbers = #tpu.dot_dimension_numbers<[1], [0], [0], [1], [0, 0, 1, 1], [], []>} : vector<2x32xf32>, vector<32x128xf32>, vector<2x128xf32> -> vector<2x128xf32>
    %676 = vector.extract_strided_slice %620 {offsets = [0, 256], sizes = [2, 128], strides = [1, 1]} : vector<2x384xf32> to vector<2x128xf32>
    %677 = arith.addf %675, %676 : vector<2x128xf32>
    %c2_390 = arith.constant 2 : index
    %c0_391 = arith.constant 0 : index
    %678 = vector.load %arg6[%c2_390, %c0_391] : memref<3x128xf32, #tpu.memory_space<vmem>>, vector<1x128xf32>
    %679 = vector.broadcast %678 : vector<1x128xf32> to vector<2x128xf32>
    %680 = arith.addf %677, %679 : vector<2x128xf32>
    %681 = arith.negf %680 : vector<2x128xf32>
    %682 = math.exp %681 : vector<2x128xf32>
    %cst_392 = arith.constant 1.000000e+00 : f32
    %683 = vector.broadcast %cst_392 : f32 to vector<2x128xf32>
    %684 = arith.addf %683, %682 : vector<2x128xf32>
    %685 = arith.divf %683, %684 : vector<2x128xf32>
    %686 = vector.extract_strided_slice %685 {offsets = [0, 0], sizes = [2, 32], strides = [1, 1]} : vector<2x128xf32> to vector<2x32xf32>
    %687 = vector.extract_strided_slice %685 {offsets = [0, 32], sizes = [2, 32], strides = [1, 1]} : vector<2x128xf32> to vector<2x32xf32>
    %688 = vector.extract_strided_slice %685 {offsets = [0, 96], sizes = [2, 32], strides = [1, 1]} : vector<2x128xf32> to vector<2x32xf32>
    %689 = vector.extract_strided_slice %680 {offsets = [0, 64], sizes = [2, 32], strides = [1, 1]} : vector<2x128xf32> to vector<2x32xf32>
    %690 = math.tanh %689 : vector<2x32xf32>
    %c0_393 = arith.constant 0 : index
    %c64_394 = arith.constant 64 : index
    %691 = vector.load %arg10[%c0_393, %c64_394] : memref<2x96xf32, #tpu.memory_space<vmem>>, vector<2x32xf32>
    %692 = arith.mulf %687, %691 : vector<2x32xf32>
    %693 = arith.mulf %686, %690 : vector<2x32xf32>
    %694 = arith.addf %692, %693 : vector<2x32xf32>
    %695 = math.tanh %694 : vector<2x32xf32>
    %696 = arith.mulf %688, %695 : vector<2x32xf32>
    %c0_395 = arith.constant 0 : index
    %c64_396 = arith.constant 64 : index
    %697 = vector.load %arg10[%c0_395, %c64_396] : memref<2x96xf32, #tpu.memory_space<vmem>>, vector<2x32xf32>
    tpu.vector_store %arg10[%c0_395, %c64_396], %694 {strides = array<i32>} : memref<2x96xf32, #tpu.memory_space<vmem>>, vector<2x32xf32>,
    %c0_397 = arith.constant 0 : index
    %c64_398 = arith.constant 64 : index
    %698 = vector.load %arg9[%c0_397, %c64_398] : memref<2x96xf32, #tpu.memory_space<vmem>>, vector<2x32xf32>
    tpu.vector_store %arg9[%c0_397, %c64_398], %696 {strides = array<i32>} : memref<2x96xf32, #tpu.memory_space<vmem>>, vector<2x32xf32>,
    %c0_399 = arith.constant 0 : index
    %c0_400 = arith.constant 0 : index
    %699 = vector.load %arg7[%c0_399, %c0_400] : memref<33x16xf32, #tpu.memory_space<vmem>>, vector<32x16xf32>
    %cst_401 = arith.constant dense<0.000000e+00> : vector<2x16xf32>
    %700 = tpu.matmul %696, %699, %cst_401 {dimension_numbers = #tpu.dot_dimension_numbers<[1], [0], [0], [1], [0, 0, 1, 1], [], []>} : vector<2x32xf32>, vector<32x16xf32>, vector<2x16xf32> -> vector<2x16xf32>
    %c32_402 = arith.constant 32 : index
    %c0_403 = arith.constant 0 : index
    %701 = vector.load %arg7[%c32_402, %c0_403] : memref<33x16xf32, #tpu.memory_space<vmem>>, vector<1x16xf32>
    %702 = vector.broadcast %701 : vector<1x16xf32> to vector<2x16xf32>
    %703 = arith.addf %700, %702 : vector<2x16xf32>
    %cst_404 = arith.constant dense<0xFF800000> : vector<2xf32>
    %704 = vector.multi_reduction <maximumf>, %703, %cst_404 [1] : vector<2x16xf32> to vector<2xf32>
    %705 = vector.shape_cast %704 : vector<2xf32> to vector<2x1xf32>
    %706 = vector.broadcast %705 : vector<2x1xf32> to vector<2x16xf32>
    %707 = arith.subf %703, %706 : vector<2x16xf32>
    %708 = math.exp %707 : vector<2x16xf32>
    %cst_405 = arith.constant dense<0.000000e+00> : vector<2xf32>
    %709 = vector.multi_reduction <add>, %708, %cst_405 [1] : vector<2x16xf32> to vector<2xf32>
    %710 = vector.shape_cast %709 : vector<2xf32> to vector<2x1xf32>
    %711 = math.log %710 : vector<2x1xf32>
    %712 = vector.broadcast %711 : vector<2x1xf32> to vector<2x16xf32>
    %713 = arith.subf %707, %712 : vector<2x16xf32>
    %c0_406 = arith.constant 0 : index
    %c64_407 = arith.constant 64 : index
    %714 = vector.load %arg8[%c0_406, %c64_407] : memref<2x128xf32, #tpu.memory_space<vmem>>, vector<2x16xf32>
    tpu.vector_store %arg8[%c0_406, %c64_407], %713 {strides = array<i32>} : memref<2x128xf32, #tpu.memory_space<vmem>>, vector<2x16xf32>,
    %715 = tpu.iota {dimensions = array<i32: 1>} : vector<2x16xi32>
    %cst_408 = arith.constant dense<0xFF800000> : vector<2xf32>
    %716 = vector.multi_reduction <maximumf>, %713, %cst_408 [1] : vector<2x16xf32> to vector<2xf32>
    %717 = vector.shape_cast %716 : vector<2xf32> to vector<2x1xf32>
    %718 = vector.broadcast %717 : vector<2x1xf32> to vector<2x16xf32>
    %719 = arith.cmpf oeq, %713, %718 : vector<2x16xf32>
    %c16_i32_409 = arith.constant 16 : i32
    %720 = vector.broadcast %c16_i32_409 : i32 to vector<2x16xi32>
    %721 = arith.select %719, %715, %720 : vector<2x16xi1>, vector<2x16xi32>
    %cst_410 = arith.constant dense<2147483647> : vector<2xi32>
    %722 = vector.multi_reduction <minsi>, %721, %cst_410 [1] : vector<2x16xi32> to vector<2xi32>
    %723 = vector.shape_cast %722 : vector<2xi32> to vector<2x1xi32>
    %724 = vector.broadcast %723 : vector<2x1xi32> to vector<2x16xi32>
    %725 = arith.cmpi eq, %715, %724 : vector<2x16xi32>
    %726 = arith.extui %725 : vector<2x16xi1> to vector<2x16xi32>
    %727 = arith.sitofp %726 : vector<2x16xi32> to vector<2x16xf32>
    %c0_411 = arith.constant 0 : index
    %c0_412 = arith.constant 0 : index
    %728 = vector.load %arg2[%c0_411, %c0_412] : memref<16x32xf32, #tpu.memory_space<vmem>>, vector<16x32xf32>
    %cst_413 = arith.constant dense<0.000000e+00> : vector<2x32xf32>
    %729 = tpu.matmul %727, %728, %cst_413 {dimension_numbers = #tpu.dot_dimension_numbers<[1], [0], [0], [1], [0, 0, 1, 1], [], []>} : vector<2x16xf32>, vector<16x32xf32>, vector<2x32xf32> -> vector<2x32xf32>
    %c0_414 = arith.constant 0 : index
    %c0_415 = arith.constant 0 : index
    %730 = vector.load %arg11[%c0_414, %c0_415] : memref<2x32xf32, #tpu.memory_space<vmem>>, vector<2x32xf32>
    tpu.vector_store %arg11[%c0_414, %c0_415], %729 {strides = array<i32>} : memref<2x32xf32, #tpu.memory_space<vmem>>, vector<2x32xf32>,
    %c0_416 = arith.constant 0 : index
    %c0_417 = arith.constant 0 : index
    %c0_418 = arith.constant 0 : index
    %731 = vector.load %arg0[%c0_416, %c0_417, %c0_418] : memref<2x8x32xf32, #tpu.memory_space<vmem>>, vector<2x8x32xf32>
    %c0_419 = arith.constant 0 : index
    %c0_420 = arith.constant 0 : index
    %732 = vector.load %arg11[%c0_419, %c0_420] : memref<2x32xf32, #tpu.memory_space<vmem>>, vector<2x32xf32>
    %c0_421 = arith.constant 0 : index
    %c64_422 = arith.constant 64 : index
    %733 = vector.load %arg9[%c0_421, %c64_422] : memref<2x96xf32, #tpu.memory_space<vmem>>, vector<2x32xf32>
    %c32_423 = arith.constant 32 : index
    %c0_424 = arith.constant 0 : index
    %734 = vector.load %arg3[%c32_423, %c0_424] : memref<66x32xf32, #tpu.memory_space<vmem>>, vector<32x32xf32>
    %c65_425 = arith.constant 65 : index
    %c0_426 = arith.constant 0 : index
    %735 = vector.load %arg3[%c65_425, %c0_426] : memref<66x32xf32, #tpu.memory_space<vmem>>, vector<1x32xf32>
    %cst_427 = arith.constant dense<0.000000e+00> : vector<2x32xf32>
    %736 = tpu.matmul %733, %734, %cst_427 {dimension_numbers = #tpu.dot_dimension_numbers<[1], [0], [0], [1], [0, 0, 1, 1], [], []>} : vector<2x32xf32>, vector<32x32xf32>, vector<2x32xf32> -> vector<2x32xf32>
    %c0_428 = arith.constant 0 : index
    %c0_429 = arith.constant 0 : index
    %c0_430 = arith.constant 0 : index
    %737 = vector.load %arg12[%c0_428, %c0_429, %c0_430] : memref<2x8x32xf32, #tpu.memory_space<vmem>>, vector<2x8x32xf32>
    %738 = vector.shape_cast %736 : vector<2x32xf32> to vector<2x1x32xf32>
    %739 = vector.broadcast %738 : vector<2x1x32xf32> to vector<2x8x32xf32>
    %740 = arith.addf %737, %739 : vector<2x8x32xf32>
    %cst_431 = arith.constant 0.000000e+00 : f32
    %741 = vector.broadcast %cst_431 : f32 to vector<2x8x32xf32>
    %742 = arith.maximumf %740, %741 : vector<2x8x32xf32>
    %743 = vector.shape_cast %735 : vector<1x32xf32> to vector<1x1x32xf32>
    %744 = vector.broadcast %743 : vector<1x1x32xf32> to vector<2x8x32xf32>
    %745 = arith.mulf %742, %744 : vector<2x8x32xf32>
    %cst_432 = arith.constant dense<0.000000e+00> : vector<2x8xf32>
    %746 = vector.multi_reduction <add>, %745, %cst_432 [2] : vector<2x8x32xf32> to vector<2x8xf32>
    %cst_433 = arith.constant dense<0xFF800000> : vector<2xf32>
    %747 = vector.multi_reduction <maximumf>, %746, %cst_433 [1] : vector<2x8xf32> to vector<2xf32>
    %748 = vector.shape_cast %747 : vector<2xf32> to vector<2x1xf32>
    %749 = vector.broadcast %748 : vector<2x1xf32> to vector<2x8xf32>
    %750 = arith.subf %746, %749 : vector<2x8xf32>
    %751 = math.exp %750 : vector<2x8xf32>
    %cst_434 = arith.constant dense<0.000000e+00> : vector<2xf32>
    %752 = vector.multi_reduction <add>, %751, %cst_434 [1] : vector<2x8xf32> to vector<2xf32>
    %753 = vector.shape_cast %752 : vector<2xf32> to vector<2x1xf32>
    %754 = math.log %753 : vector<2x1xf32>
    %755 = vector.broadcast %754 : vector<2x1xf32> to vector<2x8xf32>
    %756 = arith.subf %750, %755 : vector<2x8xf32>
    %757 = vector.shape_cast %756 : vector<2x8xf32> to vector<2x8x1xf32>
    %758 = vector.broadcast %757 : vector<2x8x1xf32> to vector<2x8x32xf32>
    %759 = arith.mulf %758, %731 : vector<2x8x32xf32>
    %cst_435 = arith.constant dense<0.000000e+00> : vector<2x32xf32>
    %760 = vector.multi_reduction <add>, %759, %cst_435 [1] : vector<2x8x32xf32> to vector<2x32xf32>
    %c0_436 = arith.constant 0 : index
    %c0_437 = arith.constant 0 : index
    %761 = vector.load %arg9[%c0_436, %c0_437] : memref<2x96xf32, #tpu.memory_space<vmem>>, vector<2x96xf32>
    %c0_438 = arith.constant 0 : index
    %c0_439 = arith.constant 0 : index
    %762 = vector.load %arg5[%c0_438, %c0_439] : memref<96x384xf32, #tpu.memory_space<vmem>>, vector<96x384xf32>
    %cst_440 = arith.constant dense<0.000000e+00> : vector<2x384xf32>
    %763 = tpu.matmul %761, %762, %cst_440 {dimension_numbers = #tpu.dot_dimension_numbers<[1], [0], [0], [1], [0, 0, 1, 1], [], []>} : vector<2x96xf32>, vector<96x384xf32>, vector<2x384xf32> -> vector<2x384xf32>
    %c0_441 = arith.constant 0 : index
    %c0_442 = arith.constant 0 : index
    %764 = vector.load %arg4[%c0_441, %c0_442] : memref<128x128xf32, #tpu.memory_space<vmem>>, vector<32x128xf32>
    %cst_443 = arith.constant dense<0.000000e+00> : vector<2x128xf32>
    %765 = tpu.matmul %732, %764, %cst_443 {dimension_numbers = #tpu.dot_dimension_numbers<[1], [0], [0], [1], [0, 0, 1, 1], [], []>} : vector<2x32xf32>, vector<32x128xf32>, vector<2x128xf32> -> vector<2x128xf32>
    %c32_444 = arith.constant 32 : index
    %c0_445 = arith.constant 0 : index
    %766 = vector.load %arg4[%c32_444, %c0_445] : memref<128x128xf32, #tpu.memory_space<vmem>>, vector<32x128xf32>
    %cst_446 = arith.constant dense<0.000000e+00> : vector<2x128xf32>
    %767 = tpu.matmul %760, %766, %cst_446 {dimension_numbers = #tpu.dot_dimension_numbers<[1], [0], [0], [1], [0, 0, 1, 1], [], []>} : vector<2x32xf32>, vector<32x128xf32>, vector<2x128xf32> -> vector<2x128xf32>
    %768 = arith.addf %765, %767 : vector<2x128xf32>
    %769 = vector.extract_strided_slice %763 {offsets = [0, 0], sizes = [2, 128], strides = [1, 1]} : vector<2x384xf32> to vector<2x128xf32>
    %770 = arith.addf %768, %769 : vector<2x128xf32>
    %c0_447 = arith.constant 0 : index
    %c0_448 = arith.constant 0 : index
    %771 = vector.load %arg6[%c0_447, %c0_448] : memref<3x128xf32, #tpu.memory_space<vmem>>, vector<1x128xf32>
    %772 = vector.broadcast %771 : vector<1x128xf32> to vector<2x128xf32>
    %773 = arith.addf %770, %772 : vector<2x128xf32>
    %774 = arith.negf %773 : vector<2x128xf32>
    %775 = math.exp %774 : vector<2x128xf32>
    %cst_449 = arith.constant 1.000000e+00 : f32
    %776 = vector.broadcast %cst_449 : f32 to vector<2x128xf32>
    %777 = arith.addf %776, %775 : vector<2x128xf32>
    %778 = arith.divf %776, %777 : vector<2x128xf32>
    %779 = vector.extract_strided_slice %778 {offsets = [0, 0], sizes = [2, 32], strides = [1, 1]} : vector<2x128xf32> to vector<2x32xf32>
    %780 = vector.extract_strided_slice %778 {offsets = [0, 32], sizes = [2, 32], strides = [1, 1]} : vector<2x128xf32> to vector<2x32xf32>
    %781 = vector.extract_strided_slice %778 {offsets = [0, 96], sizes = [2, 32], strides = [1, 1]} : vector<2x128xf32> to vector<2x32xf32>
    %782 = vector.extract_strided_slice %773 {offsets = [0, 64], sizes = [2, 32], strides = [1, 1]} : vector<2x128xf32> to vector<2x32xf32>
    %783 = math.tanh %782 : vector<2x32xf32>
    %c0_450 = arith.constant 0 : index
    %c0_451 = arith.constant 0 : index
    %784 = vector.load %arg10[%c0_450, %c0_451] : memref<2x96xf32, #tpu.memory_space<vmem>>, vector<2x32xf32>
    %785 = arith.mulf %780, %784 : vector<2x32xf32>
    %786 = arith.mulf %779, %783 : vector<2x32xf32>
    %787 = arith.addf %785, %786 : vector<2x32xf32>
    %788 = math.tanh %787 : vector<2x32xf32>
    %789 = arith.mulf %781, %788 : vector<2x32xf32>
    %c0_452 = arith.constant 0 : index
    %c0_453 = arith.constant 0 : index
    %790 = vector.load %arg10[%c0_452, %c0_453] : memref<2x96xf32, #tpu.memory_space<vmem>>, vector<2x32xf32>
    tpu.vector_store %arg10[%c0_452, %c0_453], %787 {strides = array<i32>} : memref<2x96xf32, #tpu.memory_space<vmem>>, vector<2x32xf32>,
    %c0_454 = arith.constant 0 : index
    %c0_455 = arith.constant 0 : index
    %791 = vector.load %arg9[%c0_454, %c0_455] : memref<2x96xf32, #tpu.memory_space<vmem>>, vector<2x32xf32>
    tpu.vector_store %arg9[%c0_454, %c0_455], %789 {strides = array<i32>} : memref<2x96xf32, #tpu.memory_space<vmem>>, vector<2x32xf32>,
    %c64_456 = arith.constant 64 : index
    %c0_457 = arith.constant 0 : index
    %792 = vector.load %arg4[%c64_456, %c0_457] : memref<128x128xf32, #tpu.memory_space<vmem>>, vector<32x128xf32>
    %cst_458 = arith.constant dense<0.000000e+00> : vector<2x128xf32>
    %793 = tpu.matmul %789, %792, %cst_458 {dimension_numbers = #tpu.dot_dimension_numbers<[1], [0], [0], [1], [0, 0, 1, 1], [], []>} : vector<2x32xf32>, vector<32x128xf32>, vector<2x128xf32> -> vector<2x128xf32>
    %794 = vector.extract_strided_slice %763 {offsets = [0, 128], sizes = [2, 128], strides = [1, 1]} : vector<2x384xf32> to vector<2x128xf32>
    %795 = arith.addf %793, %794 : vector<2x128xf32>
    %c1_459 = arith.constant 1 : index
    %c0_460 = arith.constant 0 : index
    %796 = vector.load %arg6[%c1_459, %c0_460] : memref<3x128xf32, #tpu.memory_space<vmem>>, vector<1x128xf32>
    %797 = vector.broadcast %796 : vector<1x128xf32> to vector<2x128xf32>
    %798 = arith.addf %795, %797 : vector<2x128xf32>
    %799 = arith.negf %798 : vector<2x128xf32>
    %800 = math.exp %799 : vector<2x128xf32>
    %cst_461 = arith.constant 1.000000e+00 : f32
    %801 = vector.broadcast %cst_461 : f32 to vector<2x128xf32>
    %802 = arith.addf %801, %800 : vector<2x128xf32>
    %803 = arith.divf %801, %802 : vector<2x128xf32>
    %804 = vector.extract_strided_slice %803 {offsets = [0, 0], sizes = [2, 32], strides = [1, 1]} : vector<2x128xf32> to vector<2x32xf32>
    %805 = vector.extract_strided_slice %803 {offsets = [0, 32], sizes = [2, 32], strides = [1, 1]} : vector<2x128xf32> to vector<2x32xf32>
    %806 = vector.extract_strided_slice %803 {offsets = [0, 96], sizes = [2, 32], strides = [1, 1]} : vector<2x128xf32> to vector<2x32xf32>
    %807 = vector.extract_strided_slice %798 {offsets = [0, 64], sizes = [2, 32], strides = [1, 1]} : vector<2x128xf32> to vector<2x32xf32>
    %808 = math.tanh %807 : vector<2x32xf32>
    %c0_462 = arith.constant 0 : index
    %c32_463 = arith.constant 32 : index
    %809 = vector.load %arg10[%c0_462, %c32_463] : memref<2x96xf32, #tpu.memory_space<vmem>>, vector<2x32xf32>
    %810 = arith.mulf %805, %809 : vector<2x32xf32>
    %811 = arith.mulf %804, %808 : vector<2x32xf32>
    %812 = arith.addf %810, %811 : vector<2x32xf32>
    %813 = math.tanh %812 : vector<2x32xf32>
    %814 = arith.mulf %806, %813 : vector<2x32xf32>
    %c0_464 = arith.constant 0 : index
    %c32_465 = arith.constant 32 : index
    %815 = vector.load %arg10[%c0_464, %c32_465] : memref<2x96xf32, #tpu.memory_space<vmem>>, vector<2x32xf32>
    tpu.vector_store %arg10[%c0_464, %c32_465], %812 {strides = array<i32>} : memref<2x96xf32, #tpu.memory_space<vmem>>, vector<2x32xf32>,
    %c0_466 = arith.constant 0 : index
    %c32_467 = arith.constant 32 : index
    %816 = vector.load %arg9[%c0_466, %c32_467] : memref<2x96xf32, #tpu.memory_space<vmem>>, vector<2x32xf32>
    tpu.vector_store %arg9[%c0_466, %c32_467], %814 {strides = array<i32>} : memref<2x96xf32, #tpu.memory_space<vmem>>, vector<2x32xf32>,
    %c96_468 = arith.constant 96 : index
    %c0_469 = arith.constant 0 : index
    %817 = vector.load %arg4[%c96_468, %c0_469] : memref<128x128xf32, #tpu.memory_space<vmem>>, vector<32x128xf32>
    %cst_470 = arith.constant dense<0.000000e+00> : vector<2x128xf32>
    %818 = tpu.matmul %814, %817, %cst_470 {dimension_numbers = #tpu.dot_dimension_numbers<[1], [0], [0], [1], [0, 0, 1, 1], [], []>} : vector<2x32xf32>, vector<32x128xf32>, vector<2x128xf32> -> vector<2x128xf32>
    %819 = vector.extract_strided_slice %763 {offsets = [0, 256], sizes = [2, 128], strides = [1, 1]} : vector<2x384xf32> to vector<2x128xf32>
    %820 = arith.addf %818, %819 : vector<2x128xf32>
    %c2_471 = arith.constant 2 : index
    %c0_472 = arith.constant 0 : index
    %821 = vector.load %arg6[%c2_471, %c0_472] : memref<3x128xf32, #tpu.memory_space<vmem>>, vector<1x128xf32>
    %822 = vector.broadcast %821 : vector<1x128xf32> to vector<2x128xf32>
    %823 = arith.addf %820, %822 : vector<2x128xf32>
    %824 = arith.negf %823 : vector<2x128xf32>
    %825 = math.exp %824 : vector<2x128xf32>
    %cst_473 = arith.constant 1.000000e+00 : f32
    %826 = vector.broadcast %cst_473 : f32 to vector<2x128xf32>
    %827 = arith.addf %826, %825 : vector<2x128xf32>
    %828 = arith.divf %826, %827 : vector<2x128xf32>
    %829 = vector.extract_strided_slice %828 {offsets = [0, 0], sizes = [2, 32], strides = [1, 1]} : vector<2x128xf32> to vector<2x32xf32>
    %830 = vector.extract_strided_slice %828 {offsets = [0, 32], sizes = [2, 32], strides = [1, 1]} : vector<2x128xf32> to vector<2x32xf32>
    %831 = vector.extract_strided_slice %828 {offsets = [0, 96], sizes = [2, 32], strides = [1, 1]} : vector<2x128xf32> to vector<2x32xf32>
    %832 = vector.extract_strided_slice %823 {offsets = [0, 64], sizes = [2, 32], strides = [1, 1]} : vector<2x128xf32> to vector<2x32xf32>
    %833 = math.tanh %832 : vector<2x32xf32>
    %c0_474 = arith.constant 0 : index
    %c64_475 = arith.constant 64 : index
    %834 = vector.load %arg10[%c0_474, %c64_475] : memref<2x96xf32, #tpu.memory_space<vmem>>, vector<2x32xf32>
    %835 = arith.mulf %830, %834 : vector<2x32xf32>
    %836 = arith.mulf %829, %833 : vector<2x32xf32>
    %837 = arith.addf %835, %836 : vector<2x32xf32>
    %838 = math.tanh %837 : vector<2x32xf32>
    %839 = arith.mulf %831, %838 : vector<2x32xf32>
    %c0_476 = arith.constant 0 : index
    %c64_477 = arith.constant 64 : index
    %840 = vector.load %arg10[%c0_476, %c64_477] : memref<2x96xf32, #tpu.memory_space<vmem>>, vector<2x32xf32>
    tpu.vector_store %arg10[%c0_476, %c64_477], %837 {strides = array<i32>} : memref<2x96xf32, #tpu.memory_space<vmem>>, vector<2x32xf32>,
    %c0_478 = arith.constant 0 : index
    %c64_479 = arith.constant 64 : index
    %841 = vector.load %arg9[%c0_478, %c64_479] : memref<2x96xf32, #tpu.memory_space<vmem>>, vector<2x32xf32>
    tpu.vector_store %arg9[%c0_478, %c64_479], %839 {strides = array<i32>} : memref<2x96xf32, #tpu.memory_space<vmem>>, vector<2x32xf32>,
    %c0_480 = arith.constant 0 : index
    %c0_481 = arith.constant 0 : index
    %842 = vector.load %arg7[%c0_480, %c0_481] : memref<33x16xf32, #tpu.memory_space<vmem>>, vector<32x16xf32>
    %cst_482 = arith.constant dense<0.000000e+00> : vector<2x16xf32>
    %843 = tpu.matmul %839, %842, %cst_482 {dimension_numbers = #tpu.dot_dimension_numbers<[1], [0], [0], [1], [0, 0, 1, 1], [], []>} : vector<2x32xf32>, vector<32x16xf32>, vector<2x16xf32> -> vector<2x16xf32>
    %c32_483 = arith.constant 32 : index
    %c0_484 = arith.constant 0 : index
    %844 = vector.load %arg7[%c32_483, %c0_484] : memref<33x16xf32, #tpu.memory_space<vmem>>, vector<1x16xf32>
    %845 = vector.broadcast %844 : vector<1x16xf32> to vector<2x16xf32>
    %846 = arith.addf %843, %845 : vector<2x16xf32>
    %cst_485 = arith.constant dense<0xFF800000> : vector<2xf32>
    %847 = vector.multi_reduction <maximumf>, %846, %cst_485 [1] : vector<2x16xf32> to vector<2xf32>
    %848 = vector.shape_cast %847 : vector<2xf32> to vector<2x1xf32>
    %849 = vector.broadcast %848 : vector<2x1xf32> to vector<2x16xf32>
    %850 = arith.subf %846, %849 : vector<2x16xf32>
    %851 = math.exp %850 : vector<2x16xf32>
    %cst_486 = arith.constant dense<0.000000e+00> : vector<2xf32>
    %852 = vector.multi_reduction <add>, %851, %cst_486 [1] : vector<2x16xf32> to vector<2xf32>
    %853 = vector.shape_cast %852 : vector<2xf32> to vector<2x1xf32>
    %854 = math.log %853 : vector<2x1xf32>
    %855 = vector.broadcast %854 : vector<2x1xf32> to vector<2x16xf32>
    %856 = arith.subf %850, %855 : vector<2x16xf32>
    %c0_487 = arith.constant 0 : index
    %c80 = arith.constant 80 : index
    %857 = vector.load %arg8[%c0_487, %c80] : memref<2x128xf32, #tpu.memory_space<vmem>>, vector<2x16xf32>
    tpu.vector_store %arg8[%c0_487, %c80], %856 {strides = array<i32>} : memref<2x128xf32, #tpu.memory_space<vmem>>, vector<2x16xf32>,
    %858 = tpu.iota {dimensions = array<i32: 1>} : vector<2x16xi32>
    %cst_488 = arith.constant dense<0xFF800000> : vector<2xf32>
    %859 = vector.multi_reduction <maximumf>, %856, %cst_488 [1] : vector<2x16xf32> to vector<2xf32>
    %860 = vector.shape_cast %859 : vector<2xf32> to vector<2x1xf32>
    %861 = vector.broadcast %860 : vector<2x1xf32> to vector<2x16xf32>
    %862 = arith.cmpf oeq, %856, %861 : vector<2x16xf32>
    %c16_i32_489 = arith.constant 16 : i32
    %863 = vector.broadcast %c16_i32_489 : i32 to vector<2x16xi32>
    %864 = arith.select %862, %858, %863 : vector<2x16xi1>, vector<2x16xi32>
    %cst_490 = arith.constant dense<2147483647> : vector<2xi32>
    %865 = vector.multi_reduction <minsi>, %864, %cst_490 [1] : vector<2x16xi32> to vector<2xi32>
    %866 = vector.shape_cast %865 : vector<2xi32> to vector<2x1xi32>
    %867 = vector.broadcast %866 : vector<2x1xi32> to vector<2x16xi32>
    %868 = arith.cmpi eq, %858, %867 : vector<2x16xi32>
    %869 = arith.extui %868 : vector<2x16xi1> to vector<2x16xi32>
    %870 = arith.sitofp %869 : vector<2x16xi32> to vector<2x16xf32>
    %c0_491 = arith.constant 0 : index
    %c0_492 = arith.constant 0 : index
    %871 = vector.load %arg2[%c0_491, %c0_492] : memref<16x32xf32, #tpu.memory_space<vmem>>, vector<16x32xf32>
    %cst_493 = arith.constant dense<0.000000e+00> : vector<2x32xf32>
    %872 = tpu.matmul %870, %871, %cst_493 {dimension_numbers = #tpu.dot_dimension_numbers<[1], [0], [0], [1], [0, 0, 1, 1], [], []>} : vector<2x16xf32>, vector<16x32xf32>, vector<2x32xf32> -> vector<2x32xf32>
    %c0_494 = arith.constant 0 : index
    %c0_495 = arith.constant 0 : index
    %873 = vector.load %arg11[%c0_494, %c0_495] : memref<2x32xf32, #tpu.memory_space<vmem>>, vector<2x32xf32>
    tpu.vector_store %arg11[%c0_494, %c0_495], %872 {strides = array<i32>} : memref<2x32xf32, #tpu.memory_space<vmem>>, vector<2x32xf32>,
    %c0_496 = arith.constant 0 : index
    %c0_497 = arith.constant 0 : index
    %c0_498 = arith.constant 0 : index
    %874 = vector.load %arg0[%c0_496, %c0_497, %c0_498] : memref<2x8x32xf32, #tpu.memory_space<vmem>>, vector<2x8x32xf32>
    %c0_499 = arith.constant 0 : index
    %c0_500 = arith.constant 0 : index
    %875 = vector.load %arg11[%c0_499, %c0_500] : memref<2x32xf32, #tpu.memory_space<vmem>>, vector<2x32xf32>
    %c0_501 = arith.constant 0 : index
    %c64_502 = arith.constant 64 : index
    %876 = vector.load %arg9[%c0_501, %c64_502] : memref<2x96xf32, #tpu.memory_space<vmem>>, vector<2x32xf32>
    %c32_503 = arith.constant 32 : index
    %c0_504 = arith.constant 0 : index
    %877 = vector.load %arg3[%c32_503, %c0_504] : memref<66x32xf32, #tpu.memory_space<vmem>>, vector<32x32xf32>
    %c65_505 = arith.constant 65 : index
    %c0_506 = arith.constant 0 : index
    %878 = vector.load %arg3[%c65_505, %c0_506] : memref<66x32xf32, #tpu.memory_space<vmem>>, vector<1x32xf32>
    %cst_507 = arith.constant dense<0.000000e+00> : vector<2x32xf32>
    %879 = tpu.matmul %876, %877, %cst_507 {dimension_numbers = #tpu.dot_dimension_numbers<[1], [0], [0], [1], [0, 0, 1, 1], [], []>} : vector<2x32xf32>, vector<32x32xf32>, vector<2x32xf32> -> vector<2x32xf32>
    %c0_508 = arith.constant 0 : index
    %c0_509 = arith.constant 0 : index
    %c0_510 = arith.constant 0 : index
    %880 = vector.load %arg12[%c0_508, %c0_509, %c0_510] : memref<2x8x32xf32, #tpu.memory_space<vmem>>, vector<2x8x32xf32>
    %881 = vector.shape_cast %879 : vector<2x32xf32> to vector<2x1x32xf32>
    %882 = vector.broadcast %881 : vector<2x1x32xf32> to vector<2x8x32xf32>
    %883 = arith.addf %880, %882 : vector<2x8x32xf32>
    %cst_511 = arith.constant 0.000000e+00 : f32
    %884 = vector.broadcast %cst_511 : f32 to vector<2x8x32xf32>
    %885 = arith.maximumf %883, %884 : vector<2x8x32xf32>
    %886 = vector.shape_cast %878 : vector<1x32xf32> to vector<1x1x32xf32>
    %887 = vector.broadcast %886 : vector<1x1x32xf32> to vector<2x8x32xf32>
    %888 = arith.mulf %885, %887 : vector<2x8x32xf32>
    %cst_512 = arith.constant dense<0.000000e+00> : vector<2x8xf32>
    %889 = vector.multi_reduction <add>, %888, %cst_512 [2] : vector<2x8x32xf32> to vector<2x8xf32>
    %cst_513 = arith.constant dense<0xFF800000> : vector<2xf32>
    %890 = vector.multi_reduction <maximumf>, %889, %cst_513 [1] : vector<2x8xf32> to vector<2xf32>
    %891 = vector.shape_cast %890 : vector<2xf32> to vector<2x1xf32>
    %892 = vector.broadcast %891 : vector<2x1xf32> to vector<2x8xf32>
    %893 = arith.subf %889, %892 : vector<2x8xf32>
    %894 = math.exp %893 : vector<2x8xf32>
    %cst_514 = arith.constant dense<0.000000e+00> : vector<2xf32>
    %895 = vector.multi_reduction <add>, %894, %cst_514 [1] : vector<2x8xf32> to vector<2xf32>
    %896 = vector.shape_cast %895 : vector<2xf32> to vector<2x1xf32>
    %897 = math.log %896 : vector<2x1xf32>
    %898 = vector.broadcast %897 : vector<2x1xf32> to vector<2x8xf32>
    %899 = arith.subf %893, %898 : vector<2x8xf32>
    %900 = vector.shape_cast %899 : vector<2x8xf32> to vector<2x8x1xf32>
    %901 = vector.broadcast %900 : vector<2x8x1xf32> to vector<2x8x32xf32>
    %902 = arith.mulf %901, %874 : vector<2x8x32xf32>
    %cst_515 = arith.constant dense<0.000000e+00> : vector<2x32xf32>
    %903 = vector.multi_reduction <add>, %902, %cst_515 [1] : vector<2x8x32xf32> to vector<2x32xf32>
    %c0_516 = arith.constant 0 : index
    %c0_517 = arith.constant 0 : index
    %904 = vector.load %arg9[%c0_516, %c0_517] : memref<2x96xf32, #tpu.memory_space<vmem>>, vector<2x96xf32>
    %c0_518 = arith.constant 0 : index
    %c0_519 = arith.constant 0 : index
    %905 = vector.load %arg5[%c0_518, %c0_519] : memref<96x384xf32, #tpu.memory_space<vmem>>, vector<96x384xf32>
    %cst_520 = arith.constant dense<0.000000e+00> : vector<2x384xf32>
    %906 = tpu.matmul %904, %905, %cst_520 {dimension_numbers = #tpu.dot_dimension_numbers<[1], [0], [0], [1], [0, 0, 1, 1], [], []>} : vector<2x96xf32>, vector<96x384xf32>, vector<2x384xf32> -> vector<2x384xf32>
    %c0_521 = arith.constant 0 : index
    %c0_522 = arith.constant 0 : index
    %907 = vector.load %arg4[%c0_521, %c0_522] : memref<128x128xf32, #tpu.memory_space<vmem>>, vector<32x128xf32>
    %cst_523 = arith.constant dense<0.000000e+00> : vector<2x128xf32>
    %908 = tpu.matmul %875, %907, %cst_523 {dimension_numbers = #tpu.dot_dimension_numbers<[1], [0], [0], [1], [0, 0, 1, 1], [], []>} : vector<2x32xf32>, vector<32x128xf32>, vector<2x128xf32> -> vector<2x128xf32>
    %c32_524 = arith.constant 32 : index
    %c0_525 = arith.constant 0 : index
    %909 = vector.load %arg4[%c32_524, %c0_525] : memref<128x128xf32, #tpu.memory_space<vmem>>, vector<32x128xf32>
    %cst_526 = arith.constant dense<0.000000e+00> : vector<2x128xf32>
    %910 = tpu.matmul %903, %909, %cst_526 {dimension_numbers = #tpu.dot_dimension_numbers<[1], [0], [0], [1], [0, 0, 1, 1], [], []>} : vector<2x32xf32>, vector<32x128xf32>, vector<2x128xf32> -> vector<2x128xf32>
    %911 = arith.addf %908, %910 : vector<2x128xf32>
    %912 = vector.extract_strided_slice %906 {offsets = [0, 0], sizes = [2, 128], strides = [1, 1]} : vector<2x384xf32> to vector<2x128xf32>
    %913 = arith.addf %911, %912 : vector<2x128xf32>
    %c0_527 = arith.constant 0 : index
    %c0_528 = arith.constant 0 : index
    %914 = vector.load %arg6[%c0_527, %c0_528] : memref<3x128xf32, #tpu.memory_space<vmem>>, vector<1x128xf32>
    %915 = vector.broadcast %914 : vector<1x128xf32> to vector<2x128xf32>
    %916 = arith.addf %913, %915 : vector<2x128xf32>
    %917 = arith.negf %916 : vector<2x128xf32>
    %918 = math.exp %917 : vector<2x128xf32>
    %cst_529 = arith.constant 1.000000e+00 : f32
    %919 = vector.broadcast %cst_529 : f32 to vector<2x128xf32>
    %920 = arith.addf %919, %918 : vector<2x128xf32>
    %921 = arith.divf %919, %920 : vector<2x128xf32>
    %922 = vector.extract_strided_slice %921 {offsets = [0, 0], sizes = [2, 32], strides = [1, 1]} : vector<2x128xf32> to vector<2x32xf32>
    %923 = vector.extract_strided_slice %921 {offsets = [0, 32], sizes = [2, 32], strides = [1, 1]} : vector<2x128xf32> to vector<2x32xf32>
    %924 = vector.extract_strided_slice %921 {offsets = [0, 96], sizes = [2, 32], strides = [1, 1]} : vector<2x128xf32> to vector<2x32xf32>
    %925 = vector.extract_strided_slice %916 {offsets = [0, 64], sizes = [2, 32], strides = [1, 1]} : vector<2x128xf32> to vector<2x32xf32>
    %926 = math.tanh %925 : vector<2x32xf32>
    %c0_530 = arith.constant 0 : index
    %c0_531 = arith.constant 0 : index
    %927 = vector.load %arg10[%c0_530, %c0_531] : memref<2x96xf32, #tpu.memory_space<vmem>>, vector<2x32xf32>
    %928 = arith.mulf %923, %927 : vector<2x32xf32>
    %929 = arith.mulf %922, %926 : vector<2x32xf32>
    %930 = arith.addf %928, %929 : vector<2x32xf32>
    %931 = math.tanh %930 : vector<2x32xf32>
    %932 = arith.mulf %924, %931 : vector<2x32xf32>
    %c0_532 = arith.constant 0 : index
    %c0_533 = arith.constant 0 : index
    %933 = vector.load %arg10[%c0_532, %c0_533] : memref<2x96xf32, #tpu.memory_space<vmem>>, vector<2x32xf32>
    tpu.vector_store %arg10[%c0_532, %c0_533], %930 {strides = array<i32>} : memref<2x96xf32, #tpu.memory_space<vmem>>, vector<2x32xf32>,
    %c0_534 = arith.constant 0 : index
    %c0_535 = arith.constant 0 : index
    %934 = vector.load %arg9[%c0_534, %c0_535] : memref<2x96xf32, #tpu.memory_space<vmem>>, vector<2x32xf32>
    tpu.vector_store %arg9[%c0_534, %c0_535], %932 {strides = array<i32>} : memref<2x96xf32, #tpu.memory_space<vmem>>, vector<2x32xf32>,
    %c64_536 = arith.constant 64 : index
    %c0_537 = arith.constant 0 : index
    %935 = vector.load %arg4[%c64_536, %c0_537] : memref<128x128xf32, #tpu.memory_space<vmem>>, vector<32x128xf32>
    %cst_538 = arith.constant dense<0.000000e+00> : vector<2x128xf32>
    %936 = tpu.matmul %932, %935, %cst_538 {dimension_numbers = #tpu.dot_dimension_numbers<[1], [0], [0], [1], [0, 0, 1, 1], [], []>} : vector<2x32xf32>, vector<32x128xf32>, vector<2x128xf32> -> vector<2x128xf32>
    %937 = vector.extract_strided_slice %906 {offsets = [0, 128], sizes = [2, 128], strides = [1, 1]} : vector<2x384xf32> to vector<2x128xf32>
    %938 = arith.addf %936, %937 : vector<2x128xf32>
    %c1_539 = arith.constant 1 : index
    %c0_540 = arith.constant 0 : index
    %939 = vector.load %arg6[%c1_539, %c0_540] : memref<3x128xf32, #tpu.memory_space<vmem>>, vector<1x128xf32>
    %940 = vector.broadcast %939 : vector<1x128xf32> to vector<2x128xf32>
    %941 = arith.addf %938, %940 : vector<2x128xf32>
    %942 = arith.negf %941 : vector<2x128xf32>
    %943 = math.exp %942 : vector<2x128xf32>
    %cst_541 = arith.constant 1.000000e+00 : f32
    %944 = vector.broadcast %cst_541 : f32 to vector<2x128xf32>
    %945 = arith.addf %944, %943 : vector<2x128xf32>
    %946 = arith.divf %944, %945 : vector<2x128xf32>
    %947 = vector.extract_strided_slice %946 {offsets = [0, 0], sizes = [2, 32], strides = [1, 1]} : vector<2x128xf32> to vector<2x32xf32>
    %948 = vector.extract_strided_slice %946 {offsets = [0, 32], sizes = [2, 32], strides = [1, 1]} : vector<2x128xf32> to vector<2x32xf32>
    %949 = vector.extract_strided_slice %946 {offsets = [0, 96], sizes = [2, 32], strides = [1, 1]} : vector<2x128xf32> to vector<2x32xf32>
    %950 = vector.extract_strided_slice %941 {offsets = [0, 64], sizes = [2, 32], strides = [1, 1]} : vector<2x128xf32> to vector<2x32xf32>
    %951 = math.tanh %950 : vector<2x32xf32>
    %c0_542 = arith.constant 0 : index
    %c32_543 = arith.constant 32 : index
    %952 = vector.load %arg10[%c0_542, %c32_543] : memref<2x96xf32, #tpu.memory_space<vmem>>, vector<2x32xf32>
    %953 = arith.mulf %948, %952 : vector<2x32xf32>
    %954 = arith.mulf %947, %951 : vector<2x32xf32>
    %955 = arith.addf %953, %954 : vector<2x32xf32>
    %956 = math.tanh %955 : vector<2x32xf32>
    %957 = arith.mulf %949, %956 : vector<2x32xf32>
    %c0_544 = arith.constant 0 : index
    %c32_545 = arith.constant 32 : index
    %958 = vector.load %arg10[%c0_544, %c32_545] : memref<2x96xf32, #tpu.memory_space<vmem>>, vector<2x32xf32>
    tpu.vector_store %arg10[%c0_544, %c32_545], %955 {strides = array<i32>} : memref<2x96xf32, #tpu.memory_space<vmem>>, vector<2x32xf32>,
    %c0_546 = arith.constant 0 : index
    %c32_547 = arith.constant 32 : index
    %959 = vector.load %arg9[%c0_546, %c32_547] : memref<2x96xf32, #tpu.memory_space<vmem>>, vector<2x32xf32>
    tpu.vector_store %arg9[%c0_546, %c32_547], %957 {strides = array<i32>} : memref<2x96xf32, #tpu.memory_space<vmem>>, vector<2x32xf32>,
    %c96_548 = arith.constant 96 : index
    %c0_549 = arith.constant 0 : index
    %960 = vector.load %arg4[%c96_548, %c0_549] : memref<128x128xf32, #tpu.memory_space<vmem>>, vector<32x128xf32>
    %cst_550 = arith.constant dense<0.000000e+00> : vector<2x128xf32>
    %961 = tpu.matmul %957, %960, %cst_550 {dimension_numbers = #tpu.dot_dimension_numbers<[1], [0], [0], [1], [0, 0, 1, 1], [], []>} : vector<2x32xf32>, vector<32x128xf32>, vector<2x128xf32> -> vector<2x128xf32>
    %962 = vector.extract_strided_slice %906 {offsets = [0, 256], sizes = [2, 128], strides = [1, 1]} : vector<2x384xf32> to vector<2x128xf32>
    %963 = arith.addf %961, %962 : vector<2x128xf32>
    %c2_551 = arith.constant 2 : index
    %c0_552 = arith.constant 0 : index
    %964 = vector.load %arg6[%c2_551, %c0_552] : memref<3x128xf32, #tpu.memory_space<vmem>>, vector<1x128xf32>
    %965 = vector.broadcast %964 : vector<1x128xf32> to vector<2x128xf32>
    %966 = arith.addf %963, %965 : vector<2x128xf32>
    %967 = arith.negf %966 : vector<2x128xf32>
    %968 = math.exp %967 : vector<2x128xf32>
    %cst_553 = arith.constant 1.000000e+00 : f32
    %969 = vector.broadcast %cst_553 : f32 to vector<2x128xf32>
    %970 = arith.addf %969, %968 : vector<2x128xf32>
    %971 = arith.divf %969, %970 : vector<2x128xf32>
    %972 = vector.extract_strided_slice %971 {offsets = [0, 0], sizes = [2, 32], strides = [1, 1]} : vector<2x128xf32> to vector<2x32xf32>
    %973 = vector.extract_strided_slice %971 {offsets = [0, 32], sizes = [2, 32], strides = [1, 1]} : vector<2x128xf32> to vector<2x32xf32>
    %974 = vector.extract_strided_slice %971 {offsets = [0, 96], sizes = [2, 32], strides = [1, 1]} : vector<2x128xf32> to vector<2x32xf32>
    %975 = vector.extract_strided_slice %966 {offsets = [0, 64], sizes = [2, 32], strides = [1, 1]} : vector<2x128xf32> to vector<2x32xf32>
    %976 = math.tanh %975 : vector<2x32xf32>
    %c0_554 = arith.constant 0 : index
    %c64_555 = arith.constant 64 : index
    %977 = vector.load %arg10[%c0_554, %c64_555] : memref<2x96xf32, #tpu.memory_space<vmem>>, vector<2x32xf32>
    %978 = arith.mulf %973, %977 : vector<2x32xf32>
    %979 = arith.mulf %972, %976 : vector<2x32xf32>
    %980 = arith.addf %978, %979 : vector<2x32xf32>
    %981 = math.tanh %980 : vector<2x32xf32>
    %982 = arith.mulf %974, %981 : vector<2x32xf32>
    %c0_556 = arith.constant 0 : index
    %c64_557 = arith.constant 64 : index
    %983 = vector.load %arg10[%c0_556, %c64_557] : memref<2x96xf32, #tpu.memory_space<vmem>>, vector<2x32xf32>
    tpu.vector_store %arg10[%c0_556, %c64_557], %980 {strides = array<i32>} : memref<2x96xf32, #tpu.memory_space<vmem>>, vector<2x32xf32>,
    %c0_558 = arith.constant 0 : index
    %c64_559 = arith.constant 64 : index
    %984 = vector.load %arg9[%c0_558, %c64_559] : memref<2x96xf32, #tpu.memory_space<vmem>>, vector<2x32xf32>
    tpu.vector_store %arg9[%c0_558, %c64_559], %982 {strides = array<i32>} : memref<2x96xf32, #tpu.memory_space<vmem>>, vector<2x32xf32>,
    %c0_560 = arith.constant 0 : index
    %c0_561 = arith.constant 0 : index
    %985 = vector.load %arg7[%c0_560, %c0_561] : memref<33x16xf32, #tpu.memory_space<vmem>>, vector<32x16xf32>
    %cst_562 = arith.constant dense<0.000000e+00> : vector<2x16xf32>
    %986 = tpu.matmul %982, %985, %cst_562 {dimension_numbers = #tpu.dot_dimension_numbers<[1], [0], [0], [1], [0, 0, 1, 1], [], []>} : vector<2x32xf32>, vector<32x16xf32>, vector<2x16xf32> -> vector<2x16xf32>
    %c32_563 = arith.constant 32 : index
    %c0_564 = arith.constant 0 : index
    %987 = vector.load %arg7[%c32_563, %c0_564] : memref<33x16xf32, #tpu.memory_space<vmem>>, vector<1x16xf32>
    %988 = vector.broadcast %987 : vector<1x16xf32> to vector<2x16xf32>
    %989 = arith.addf %986, %988 : vector<2x16xf32>
    %cst_565 = arith.constant dense<0xFF800000> : vector<2xf32>
    %990 = vector.multi_reduction <maximumf>, %989, %cst_565 [1] : vector<2x16xf32> to vector<2xf32>
    %991 = vector.shape_cast %990 : vector<2xf32> to vector<2x1xf32>
    %992 = vector.broadcast %991 : vector<2x1xf32> to vector<2x16xf32>
    %993 = arith.subf %989, %992 : vector<2x16xf32>
    %994 = math.exp %993 : vector<2x16xf32>
    %cst_566 = arith.constant dense<0.000000e+00> : vector<2xf32>
    %995 = vector.multi_reduction <add>, %994, %cst_566 [1] : vector<2x16xf32> to vector<2xf32>
    %996 = vector.shape_cast %995 : vector<2xf32> to vector<2x1xf32>
    %997 = math.log %996 : vector<2x1xf32>
    %998 = vector.broadcast %997 : vector<2x1xf32> to vector<2x16xf32>
    %999 = arith.subf %993, %998 : vector<2x16xf32>
    %c0_567 = arith.constant 0 : index
    %c96_568 = arith.constant 96 : index
    %1000 = vector.load %arg8[%c0_567, %c96_568] : memref<2x128xf32, #tpu.memory_space<vmem>>, vector<2x16xf32>
    tpu.vector_store %arg8[%c0_567, %c96_568], %999 {strides = array<i32>} : memref<2x128xf32, #tpu.memory_space<vmem>>, vector<2x16xf32>,
    %1001 = tpu.iota {dimensions = array<i32: 1>} : vector<2x16xi32>
    %cst_569 = arith.constant dense<0xFF800000> : vector<2xf32>
    %1002 = vector.multi_reduction <maximumf>, %999, %cst_569 [1] : vector<2x16xf32> to vector<2xf32>
    %1003 = vector.shape_cast %1002 : vector<2xf32> to vector<2x1xf32>
    %1004 = vector.broadcast %1003 : vector<2x1xf32> to vector<2x16xf32>
    %1005 = arith.cmpf oeq, %999, %1004 : vector<2x16xf32>
    %c16_i32_570 = arith.constant 16 : i32
    %1006 = vector.broadcast %c16_i32_570 : i32 to vector<2x16xi32>
    %1007 = arith.select %1005, %1001, %1006 : vector<2x16xi1>, vector<2x16xi32>
    %cst_571 = arith.constant dense<2147483647> : vector<2xi32>
    %1008 = vector.multi_reduction <minsi>, %1007, %cst_571 [1] : vector<2x16xi32> to vector<2xi32>
    %1009 = vector.shape_cast %1008 : vector<2xi32> to vector<2x1xi32>
    %1010 = vector.broadcast %1009 : vector<2x1xi32> to vector<2x16xi32>
    %1011 = arith.cmpi eq, %1001, %1010 : vector<2x16xi32>
    %1012 = arith.extui %1011 : vector<2x16xi1> to vector<2x16xi32>
    %1013 = arith.sitofp %1012 : vector<2x16xi32> to vector<2x16xf32>
    %c0_572 = arith.constant 0 : index
    %c0_573 = arith.constant 0 : index
    %1014 = vector.load %arg2[%c0_572, %c0_573] : memref<16x32xf32, #tpu.memory_space<vmem>>, vector<16x32xf32>
    %cst_574 = arith.constant dense<0.000000e+00> : vector<2x32xf32>
    %1015 = tpu.matmul %1013, %1014, %cst_574 {dimension_numbers = #tpu.dot_dimension_numbers<[1], [0], [0], [1], [0, 0, 1, 1], [], []>} : vector<2x16xf32>, vector<16x32xf32>, vector<2x32xf32> -> vector<2x32xf32>
    %c0_575 = arith.constant 0 : index
    %c0_576 = arith.constant 0 : index
    %1016 = vector.load %arg11[%c0_575, %c0_576] : memref<2x32xf32, #tpu.memory_space<vmem>>, vector<2x32xf32>
    tpu.vector_store %arg11[%c0_575, %c0_576], %1015 {strides = array<i32>} : memref<2x32xf32, #tpu.memory_space<vmem>>, vector<2x32xf32>,
    %c0_577 = arith.constant 0 : index
    %c0_578 = arith.constant 0 : index
    %c0_579 = arith.constant 0 : index
    %1017 = vector.load %arg0[%c0_577, %c0_578, %c0_579] : memref<2x8x32xf32, #tpu.memory_space<vmem>>, vector<2x8x32xf32>
    %c0_580 = arith.constant 0 : index
    %c0_581 = arith.constant 0 : index
    %1018 = vector.load %arg11[%c0_580, %c0_581] : memref<2x32xf32, #tpu.memory_space<vmem>>, vector<2x32xf32>
    %c0_582 = arith.constant 0 : index
    %c64_583 = arith.constant 64 : index
    %1019 = vector.load %arg9[%c0_582, %c64_583] : memref<2x96xf32, #tpu.memory_space<vmem>>, vector<2x32xf32>
    %c32_584 = arith.constant 32 : index
    %c0_585 = arith.constant 0 : index
    %1020 = vector.load %arg3[%c32_584, %c0_585] : memref<66x32xf32, #tpu.memory_space<vmem>>, vector<32x32xf32>
    %c65_586 = arith.constant 65 : index
    %c0_587 = arith.constant 0 : index
    %1021 = vector.load %arg3[%c65_586, %c0_587] : memref<66x32xf32, #tpu.memory_space<vmem>>, vector<1x32xf32>
    %cst_588 = arith.constant dense<0.000000e+00> : vector<2x32xf32>
    %1022 = tpu.matmul %1019, %1020, %cst_588 {dimension_numbers = #tpu.dot_dimension_numbers<[1], [0], [0], [1], [0, 0, 1, 1], [], []>} : vector<2x32xf32>, vector<32x32xf32>, vector<2x32xf32> -> vector<2x32xf32>
    %c0_589 = arith.constant 0 : index
    %c0_590 = arith.constant 0 : index
    %c0_591 = arith.constant 0 : index
    %1023 = vector.load %arg12[%c0_589, %c0_590, %c0_591] : memref<2x8x32xf32, #tpu.memory_space<vmem>>, vector<2x8x32xf32>
    %1024 = vector.shape_cast %1022 : vector<2x32xf32> to vector<2x1x32xf32>
    %1025 = vector.broadcast %1024 : vector<2x1x32xf32> to vector<2x8x32xf32>
    %1026 = arith.addf %1023, %1025 : vector<2x8x32xf32>
    %cst_592 = arith.constant 0.000000e+00 : f32
    %1027 = vector.broadcast %cst_592 : f32 to vector<2x8x32xf32>
    %1028 = arith.maximumf %1026, %1027 : vector<2x8x32xf32>
    %1029 = vector.shape_cast %1021 : vector<1x32xf32> to vector<1x1x32xf32>
    %1030 = vector.broadcast %1029 : vector<1x1x32xf32> to vector<2x8x32xf32>
    %1031 = arith.mulf %1028, %1030 : vector<2x8x32xf32>
    %cst_593 = arith.constant dense<0.000000e+00> : vector<2x8xf32>
    %1032 = vector.multi_reduction <add>, %1031, %cst_593 [2] : vector<2x8x32xf32> to vector<2x8xf32>
    %cst_594 = arith.constant dense<0xFF800000> : vector<2xf32>
    %1033 = vector.multi_reduction <maximumf>, %1032, %cst_594 [1] : vector<2x8xf32> to vector<2xf32>
    %1034 = vector.shape_cast %1033 : vector<2xf32> to vector<2x1xf32>
    %1035 = vector.broadcast %1034 : vector<2x1xf32> to vector<2x8xf32>
    %1036 = arith.subf %1032, %1035 : vector<2x8xf32>
    %1037 = math.exp %1036 : vector<2x8xf32>
    %cst_595 = arith.constant dense<0.000000e+00> : vector<2xf32>
    %1038 = vector.multi_reduction <add>, %1037, %cst_595 [1] : vector<2x8xf32> to vector<2xf32>
    %1039 = vector.shape_cast %1038 : vector<2xf32> to vector<2x1xf32>
    %1040 = math.log %1039 : vector<2x1xf32>
    %1041 = vector.broadcast %1040 : vector<2x1xf32> to vector<2x8xf32>
    %1042 = arith.subf %1036, %1041 : vector<2x8xf32>
    %1043 = vector.shape_cast %1042 : vector<2x8xf32> to vector<2x8x1xf32>
    %1044 = vector.broadcast %1043 : vector<2x8x1xf32> to vector<2x8x32xf32>
    %1045 = arith.mulf %1044, %1017 : vector<2x8x32xf32>
    %cst_596 = arith.constant dense<0.000000e+00> : vector<2x32xf32>
    %1046 = vector.multi_reduction <add>, %1045, %cst_596 [1] : vector<2x8x32xf32> to vector<2x32xf32>
    %c0_597 = arith.constant 0 : index
    %c0_598 = arith.constant 0 : index
    %1047 = vector.load %arg9[%c0_597, %c0_598] : memref<2x96xf32, #tpu.memory_space<vmem>>, vector<2x96xf32>
    %c0_599 = arith.constant 0 : index
    %c0_600 = arith.constant 0 : index
    %1048 = vector.load %arg5[%c0_599, %c0_600] : memref<96x384xf32, #tpu.memory_space<vmem>>, vector<96x384xf32>
    %cst_601 = arith.constant dense<0.000000e+00> : vector<2x384xf32>
    %1049 = tpu.matmul %1047, %1048, %cst_601 {dimension_numbers = #tpu.dot_dimension_numbers<[1], [0], [0], [1], [0, 0, 1, 1], [], []>} : vector<2x96xf32>, vector<96x384xf32>, vector<2x384xf32> -> vector<2x384xf32>
    %c0_602 = arith.constant 0 : index
    %c0_603 = arith.constant 0 : index
    %1050 = vector.load %arg4[%c0_602, %c0_603] : memref<128x128xf32, #tpu.memory_space<vmem>>, vector<32x128xf32>
    %cst_604 = arith.constant dense<0.000000e+00> : vector<2x128xf32>
    %1051 = tpu.matmul %1018, %1050, %cst_604 {dimension_numbers = #tpu.dot_dimension_numbers<[1], [0], [0], [1], [0, 0, 1, 1], [], []>} : vector<2x32xf32>, vector<32x128xf32>, vector<2x128xf32> -> vector<2x128xf32>
    %c32_605 = arith.constant 32 : index
    %c0_606 = arith.constant 0 : index
    %1052 = vector.load %arg4[%c32_605, %c0_606] : memref<128x128xf32, #tpu.memory_space<vmem>>, vector<32x128xf32>
    %cst_607 = arith.constant dense<0.000000e+00> : vector<2x128xf32>
    %1053 = tpu.matmul %1046, %1052, %cst_607 {dimension_numbers = #tpu.dot_dimension_numbers<[1], [0], [0], [1], [0, 0, 1, 1], [], []>} : vector<2x32xf32>, vector<32x128xf32>, vector<2x128xf32> -> vector<2x128xf32>
    %1054 = arith.addf %1051, %1053 : vector<2x128xf32>
    %1055 = vector.extract_strided_slice %1049 {offsets = [0, 0], sizes = [2, 128], strides = [1, 1]} : vector<2x384xf32> to vector<2x128xf32>
    %1056 = arith.addf %1054, %1055 : vector<2x128xf32>
    %c0_608 = arith.constant 0 : index
    %c0_609 = arith.constant 0 : index
    %1057 = vector.load %arg6[%c0_608, %c0_609] : memref<3x128xf32, #tpu.memory_space<vmem>>, vector<1x128xf32>
    %1058 = vector.broadcast %1057 : vector<1x128xf32> to vector<2x128xf32>
    %1059 = arith.addf %1056, %1058 : vector<2x128xf32>
    %1060 = arith.negf %1059 : vector<2x128xf32>
    %1061 = math.exp %1060 : vector<2x128xf32>
    %cst_610 = arith.constant 1.000000e+00 : f32
    %1062 = vector.broadcast %cst_610 : f32 to vector<2x128xf32>
    %1063 = arith.addf %1062, %1061 : vector<2x128xf32>
    %1064 = arith.divf %1062, %1063 : vector<2x128xf32>
    %1065 = vector.extract_strided_slice %1064 {offsets = [0, 0], sizes = [2, 32], strides = [1, 1]} : vector<2x128xf32> to vector<2x32xf32>
    %1066 = vector.extract_strided_slice %1064 {offsets = [0, 32], sizes = [2, 32], strides = [1, 1]} : vector<2x128xf32> to vector<2x32xf32>
    %1067 = vector.extract_strided_slice %1064 {offsets = [0, 96], sizes = [2, 32], strides = [1, 1]} : vector<2x128xf32> to vector<2x32xf32>
    %1068 = vector.extract_strided_slice %1059 {offsets = [0, 64], sizes = [2, 32], strides = [1, 1]} : vector<2x128xf32> to vector<2x32xf32>
    %1069 = math.tanh %1068 : vector<2x32xf32>
    %c0_611 = arith.constant 0 : index
    %c0_612 = arith.constant 0 : index
    %1070 = vector.load %arg10[%c0_611, %c0_612] : memref<2x96xf32, #tpu.memory_space<vmem>>, vector<2x32xf32>
    %1071 = arith.mulf %1066, %1070 : vector<2x32xf32>
    %1072 = arith.mulf %1065, %1069 : vector<2x32xf32>
    %1073 = arith.addf %1071, %1072 : vector<2x32xf32>
    %1074 = math.tanh %1073 : vector<2x32xf32>
    %1075 = arith.mulf %1067, %1074 : vector<2x32xf32>
    %c0_613 = arith.constant 0 : index
    %c0_614 = arith.constant 0 : index
    %1076 = vector.load %arg10[%c0_613, %c0_614] : memref<2x96xf32, #tpu.memory_space<vmem>>, vector<2x32xf32>
    tpu.vector_store %arg10[%c0_613, %c0_614], %1073 {strides = array<i32>} : memref<2x96xf32, #tpu.memory_space<vmem>>, vector<2x32xf32>,
    %c0_615 = arith.constant 0 : index
    %c0_616 = arith.constant 0 : index
    %1077 = vector.load %arg9[%c0_615, %c0_616] : memref<2x96xf32, #tpu.memory_space<vmem>>, vector<2x32xf32>
    tpu.vector_store %arg9[%c0_615, %c0_616], %1075 {strides = array<i32>} : memref<2x96xf32, #tpu.memory_space<vmem>>, vector<2x32xf32>,
    %c64_617 = arith.constant 64 : index
    %c0_618 = arith.constant 0 : index
    %1078 = vector.load %arg4[%c64_617, %c0_618] : memref<128x128xf32, #tpu.memory_space<vmem>>, vector<32x128xf32>
    %cst_619 = arith.constant dense<0.000000e+00> : vector<2x128xf32>
    %1079 = tpu.matmul %1075, %1078, %cst_619 {dimension_numbers = #tpu.dot_dimension_numbers<[1], [0], [0], [1], [0, 0, 1, 1], [], []>} : vector<2x32xf32>, vector<32x128xf32>, vector<2x128xf32> -> vector<2x128xf32>
    %1080 = vector.extract_strided_slice %1049 {offsets = [0, 128], sizes = [2, 128], strides = [1, 1]} : vector<2x384xf32> to vector<2x128xf32>
    %1081 = arith.addf %1079, %1080 : vector<2x128xf32>
    %c1_620 = arith.constant 1 : index
    %c0_621 = arith.constant 0 : index
    %1082 = vector.load %arg6[%c1_620, %c0_621] : memref<3x128xf32, #tpu.memory_space<vmem>>, vector<1x128xf32>
    %1083 = vector.broadcast %1082 : vector<1x128xf32> to vector<2x128xf32>
    %1084 = arith.addf %1081, %1083 : vector<2x128xf32>
    %1085 = arith.negf %1084 : vector<2x128xf32>
    %1086 = math.exp %1085 : vector<2x128xf32>
    %cst_622 = arith.constant 1.000000e+00 : f32
    %1087 = vector.broadcast %cst_622 : f32 to vector<2x128xf32>
    %1088 = arith.addf %1087, %1086 : vector<2x128xf32>
    %1089 = arith.divf %1087, %1088 : vector<2x128xf32>
    %1090 = vector.extract_strided_slice %1089 {offsets = [0, 0], sizes = [2, 32], strides = [1, 1]} : vector<2x128xf32> to vector<2x32xf32>
    %1091 = vector.extract_strided_slice %1089 {offsets = [0, 32], sizes = [2, 32], strides = [1, 1]} : vector<2x128xf32> to vector<2x32xf32>
    %1092 = vector.extract_strided_slice %1089 {offsets = [0, 96], sizes = [2, 32], strides = [1, 1]} : vector<2x128xf32> to vector<2x32xf32>
    %1093 = vector.extract_strided_slice %1084 {offsets = [0, 64], sizes = [2, 32], strides = [1, 1]} : vector<2x128xf32> to vector<2x32xf32>
    %1094 = math.tanh %1093 : vector<2x32xf32>
    %c0_623 = arith.constant 0 : index
    %c32_624 = arith.constant 32 : index
    %1095 = vector.load %arg10[%c0_623, %c32_624] : memref<2x96xf32, #tpu.memory_space<vmem>>, vector<2x32xf32>
    %1096 = arith.mulf %1091, %1095 : vector<2x32xf32>
    %1097 = arith.mulf %1090, %1094 : vector<2x32xf32>
    %1098 = arith.addf %1096, %1097 : vector<2x32xf32>
    %1099 = math.tanh %1098 : vector<2x32xf32>
    %1100 = arith.mulf %1092, %1099 : vector<2x32xf32>
    %c0_625 = arith.constant 0 : index
    %c32_626 = arith.constant 32 : index
    %1101 = vector.load %arg10[%c0_625, %c32_626] : memref<2x96xf32, #tpu.memory_space<vmem>>, vector<2x32xf32>
    tpu.vector_store %arg10[%c0_625, %c32_626], %1098 {strides = array<i32>} : memref<2x96xf32, #tpu.memory_space<vmem>>, vector<2x32xf32>,
    %c0_627 = arith.constant 0 : index
    %c32_628 = arith.constant 32 : index
    %1102 = vector.load %arg9[%c0_627, %c32_628] : memref<2x96xf32, #tpu.memory_space<vmem>>, vector<2x32xf32>
    tpu.vector_store %arg9[%c0_627, %c32_628], %1100 {strides = array<i32>} : memref<2x96xf32, #tpu.memory_space<vmem>>, vector<2x32xf32>,
    %c96_629 = arith.constant 96 : index
    %c0_630 = arith.constant 0 : index
    %1103 = vector.load %arg4[%c96_629, %c0_630] : memref<128x128xf32, #tpu.memory_space<vmem>>, vector<32x128xf32>
    %cst_631 = arith.constant dense<0.000000e+00> : vector<2x128xf32>
    %1104 = tpu.matmul %1100, %1103, %cst_631 {dimension_numbers = #tpu.dot_dimension_numbers<[1], [0], [0], [1], [0, 0, 1, 1], [], []>} : vector<2x32xf32>, vector<32x128xf32>, vector<2x128xf32> -> vector<2x128xf32>
    %1105 = vector.extract_strided_slice %1049 {offsets = [0, 256], sizes = [2, 128], strides = [1, 1]} : vector<2x384xf32> to vector<2x128xf32>
    %1106 = arith.addf %1104, %1105 : vector<2x128xf32>
    %c2_632 = arith.constant 2 : index
    %c0_633 = arith.constant 0 : index
    %1107 = vector.load %arg6[%c2_632, %c0_633] : memref<3x128xf32, #tpu.memory_space<vmem>>, vector<1x128xf32>
    %1108 = vector.broadcast %1107 : vector<1x128xf32> to vector<2x128xf32>
    %1109 = arith.addf %1106, %1108 : vector<2x128xf32>
    %1110 = arith.negf %1109 : vector<2x128xf32>
    %1111 = math.exp %1110 : vector<2x128xf32>
    %cst_634 = arith.constant 1.000000e+00 : f32
    %1112 = vector.broadcast %cst_634 : f32 to vector<2x128xf32>
    %1113 = arith.addf %1112, %1111 : vector<2x128xf32>
    %1114 = arith.divf %1112, %1113 : vector<2x128xf32>
    %1115 = vector.extract_strided_slice %1114 {offsets = [0, 0], sizes = [2, 32], strides = [1, 1]} : vector<2x128xf32> to vector<2x32xf32>
    %1116 = vector.extract_strided_slice %1114 {offsets = [0, 32], sizes = [2, 32], strides = [1, 1]} : vector<2x128xf32> to vector<2x32xf32>
    %1117 = vector.extract_strided_slice %1114 {offsets = [0, 96], sizes = [2, 32], strides = [1, 1]} : vector<2x128xf32> to vector<2x32xf32>
    %1118 = vector.extract_strided_slice %1109 {offsets = [0, 64], sizes = [2, 32], strides = [1, 1]} : vector<2x128xf32> to vector<2x32xf32>
    %1119 = math.tanh %1118 : vector<2x32xf32>
    %c0_635 = arith.constant 0 : index
    %c64_636 = arith.constant 64 : index
    %1120 = vector.load %arg10[%c0_635, %c64_636] : memref<2x96xf32, #tpu.memory_space<vmem>>, vector<2x32xf32>
    %1121 = arith.mulf %1116, %1120 : vector<2x32xf32>
    %1122 = arith.mulf %1115, %1119 : vector<2x32xf32>
    %1123 = arith.addf %1121, %1122 : vector<2x32xf32>
    %1124 = math.tanh %1123 : vector<2x32xf32>
    %1125 = arith.mulf %1117, %1124 : vector<2x32xf32>
    %c0_637 = arith.constant 0 : index
    %c64_638 = arith.constant 64 : index
    %1126 = vector.load %arg10[%c0_637, %c64_638] : memref<2x96xf32, #tpu.memory_space<vmem>>, vector<2x32xf32>
    tpu.vector_store %arg10[%c0_637, %c64_638], %1123 {strides = array<i32>} : memref<2x96xf32, #tpu.memory_space<vmem>>, vector<2x32xf32>,
    %c0_639 = arith.constant 0 : index
    %c64_640 = arith.constant 64 : index
    %1127 = vector.load %arg9[%c0_639, %c64_640] : memref<2x96xf32, #tpu.memory_space<vmem>>, vector<2x32xf32>
    tpu.vector_store %arg9[%c0_639, %c64_640], %1125 {strides = array<i32>} : memref<2x96xf32, #tpu.memory_space<vmem>>, vector<2x32xf32>,
    %c0_641 = arith.constant 0 : index
    %c0_642 = arith.constant 0 : index
    %1128 = vector.load %arg7[%c0_641, %c0_642] : memref<33x16xf32, #tpu.memory_space<vmem>>, vector<32x16xf32>
    %cst_643 = arith.constant dense<0.000000e+00> : vector<2x16xf32>
    %1129 = tpu.matmul %1125, %1128, %cst_643 {dimension_numbers = #tpu.dot_dimension_numbers<[1], [0], [0], [1], [0, 0, 1, 1], [], []>} : vector<2x32xf32>, vector<32x16xf32>, vector<2x16xf32> -> vector<2x16xf32>
    %c32_644 = arith.constant 32 : index
    %c0_645 = arith.constant 0 : index
    %1130 = vector.load %arg7[%c32_644, %c0_645] : memref<33x16xf32, #tpu.memory_space<vmem>>, vector<1x16xf32>
    %1131 = vector.broadcast %1130 : vector<1x16xf32> to vector<2x16xf32>
    %1132 = arith.addf %1129, %1131 : vector<2x16xf32>
    %cst_646 = arith.constant dense<0xFF800000> : vector<2xf32>
    %1133 = vector.multi_reduction <maximumf>, %1132, %cst_646 [1] : vector<2x16xf32> to vector<2xf32>
    %1134 = vector.shape_cast %1133 : vector<2xf32> to vector<2x1xf32>
    %1135 = vector.broadcast %1134 : vector<2x1xf32> to vector<2x16xf32>
    %1136 = arith.subf %1132, %1135 : vector<2x16xf32>
    %1137 = math.exp %1136 : vector<2x16xf32>
    %cst_647 = arith.constant dense<0.000000e+00> : vector<2xf32>
    %1138 = vector.multi_reduction <add>, %1137, %cst_647 [1] : vector<2x16xf32> to vector<2xf32>
    %1139 = vector.shape_cast %1138 : vector<2xf32> to vector<2x1xf32>
    %1140 = math.log %1139 : vector<2x1xf32>
    %1141 = vector.broadcast %1140 : vector<2x1xf32> to vector<2x16xf32>
    %1142 = arith.subf %1136, %1141 : vector<2x16xf32>
    %c0_648 = arith.constant 0 : index
    %c112 = arith.constant 112 : index
    %1143 = vector.load %arg8[%c0_648, %c112] : memref<2x128xf32, #tpu.memory_space<vmem>>, vector<2x16xf32>
    tpu.vector_store %arg8[%c0_648, %c112], %1142 {strides = array<i32>} : memref<2x128xf32, #tpu.memory_space<vmem>>, vector<2x16xf32>,
    %1144 = tpu.iota {dimensions = array<i32: 1>} : vector<2x16xi32>
    %cst_649 = arith.constant dense<0xFF800000> : vector<2xf32>
    %1145 = vector.multi_reduction <maximumf>, %1142, %cst_649 [1] : vector<2x16xf32> to vector<2xf32>
    %1146 = vector.shape_cast %1145 : vector<2xf32> to vector<2x1xf32>
    %1147 = vector.broadcast %1146 : vector<2x1xf32> to vector<2x16xf32>
    %1148 = arith.cmpf oeq, %1142, %1147 : vector<2x16xf32>
    %c16_i32_650 = arith.constant 16 : i32
    %1149 = vector.broadcast %c16_i32_650 : i32 to vector<2x16xi32>
    %1150 = arith.select %1148, %1144, %1149 : vector<2x16xi1>, vector<2x16xi32>
    %cst_651 = arith.constant dense<2147483647> : vector<2xi32>
    %1151 = vector.multi_reduction <minsi>, %1150, %cst_651 [1] : vector<2x16xi32> to vector<2xi32>
    %1152 = vector.shape_cast %1151 : vector<2xi32> to vector<2x1xi32>
    %1153 = vector.broadcast %1152 : vector<2x1xi32> to vector<2x16xi32>
    %1154 = arith.cmpi eq, %1144, %1153 : vector<2x16xi32>
    %1155 = arith.extui %1154 : vector<2x16xi1> to vector<2x16xi32>
    %1156 = arith.sitofp %1155 : vector<2x16xi32> to vector<2x16xf32>
    %c0_652 = arith.constant 0 : index
    %c0_653 = arith.constant 0 : index
    %1157 = vector.load %arg2[%c0_652, %c0_653] : memref<16x32xf32, #tpu.memory_space<vmem>>, vector<16x32xf32>
    %cst_654 = arith.constant dense<0.000000e+00> : vector<2x32xf32>
    %1158 = tpu.matmul %1156, %1157, %cst_654 {dimension_numbers = #tpu.dot_dimension_numbers<[1], [0], [0], [1], [0, 0, 1, 1], [], []>} : vector<2x16xf32>, vector<16x32xf32>, vector<2x32xf32> -> vector<2x32xf32>
    %c0_655 = arith.constant 0 : index
    %c0_656 = arith.constant 0 : index
    %1159 = vector.load %arg11[%c0_655, %c0_656] : memref<2x32xf32, #tpu.memory_space<vmem>>, vector<2x32xf32>
    tpu.vector_store %arg11[%c0_655, %c0_656], %1158 {strides = array<i32>} : memref<2x32xf32, #tpu.memory_space<vmem>>, vector<2x32xf32>,
    return
  }
}

</mosaic_0001>

<llo_original>
// kernel: lstm_attn_decoder_forward.1
$region0: #{lstm_attn_decoder_forward.1}
  #allocation0 [shape = 'u32[]', space=smem, size = 0x4, offset = 0x4, fixed_abs, tag = 'smem constant byte address 0x4 - core index']
  #allocation1 [shape = 'u32[144,128]{1,0:T(1,128)}', space=vmem, size = 0x12000, scoped, tag = 'internal scratch']
  #allocation2 [shape = 'f32[2,96]{1,0:T(2,128)}', space=vmem, size = 0x400, scoped, tag = 'scratch operand']
  #allocation3 [shape = 'f32[2,96]{1,0:T(2,128)}', space=vmem, size = 0x400, scoped, tag = 'scratch operand']
  #allocation4 [shape = 'f32[2,32]{1,0:T(2,128)}', space=vmem, size = 0x400, scoped, tag = 'scratch operand']
  #allocation5 [shape = 'f32[2,8,32]{2,1,0:T(8,128)}', space=vmem, size = 0x2000, scoped, tag = 'scratch operand']
  %s0 = inlined_call_operand.vmem [shape: f32[2,8,32], index: 0, kind: input, shape index: {}]
  %s1 = inlined_call_operand.vmem [shape: f32[8,2,32], index: 1, kind: input, shape index: {}]
  %s2 = inlined_call_operand.vmem [shape: f32[16,32], index: 2, kind: input, shape index: {}]
  %s3 = inlined_call_operand.vmem [shape: f32[66,32], index: 3, kind: input, shape index: {}]
  %s4 = inlined_call_operand.vmem [shape: f32[128,128], index: 4, kind: input, shape index: {}]
  %s5 = inlined_call_operand.vmem [shape: f32[96,384], index: 5, kind: input, shape index: {}]
  %s6 = inlined_call_operand.vmem [shape: f32[3,128], index: 6, kind: input, shape index: {}]
  %s7 = inlined_call_operand.vmem [shape: f32[33,16], index: 7, kind: input, shape index: {}]
  %s8 = inlined_call_operand.vmem [shape: f32[2,128], index: 8, kind: output, shape index: {}]
  %s9 = sld [smem:[#allocation0]]
  $region42: #{lstm_attn_decoder_forward.1} parent=0
    _
  %s11 = ssub.s32 1, %s9
  %s12 = scalar_select 0, %s11, %s9
  // Predicated region
  $region2: #{lstm_attn_decoder_forward.1} parent=0 // pred_check
    _
  $region3: #{lstm_attn_decoder_forward.1} parent=0 // pred_check_branch
    %14 = sbr.rel (0) target = $region5
  $region4: #{lstm_attn_decoder_forward.1} parent=0 // pred_region
    _
  $region5: #{lstm_attn_decoder_forward.1} parent=0 // pred_fallthru
    _
  // Predicated region
  $region6: #{lstm_attn_decoder_forward.1} parent=0 // pred_check
    _
  $region7: #{lstm_attn_decoder_forward.1} parent=0 // pred_check_branch
    %16 = sbr.rel (0) target = $region9
  $region8: #{lstm_attn_decoder_forward.1} parent=0 // pred_region
    _
  $region9: #{lstm_attn_decoder_forward.1} parent=0 // pred_fallthru
    _
  // Predicated region
  $region10: #{lstm_attn_decoder_forward.1} parent=0 // pred_check
    _
  $region11: #{lstm_attn_decoder_forward.1} parent=0 // pred_check_branch
    %18 = sbr.rel (0) target = $region13
  $region12: #{lstm_attn_decoder_forward.1} parent=0 // pred_region
    _
  $region13: #{lstm_attn_decoder_forward.1} parent=0 // pred_fallthru
    _
  // Predicated region
  $region14: #{lstm_attn_decoder_forward.1} parent=0 // pred_check
    _
  $region15: #{lstm_attn_decoder_forward.1} parent=0 // pred_check_branch
    %20 = sbr.rel (0) target = $region17
  $region16: #{lstm_attn_decoder_forward.1} parent=0 // pred_region
    _
  $region17: #{lstm_attn_decoder_forward.1} parent=0 // pred_fallthru
    _
  // Predicated region
  $region18: #{lstm_attn_decoder_forward.1} parent=0 // pred_check
    _
  $region19: #{lstm_attn_decoder_forward.1} parent=0 // pred_check_branch
    %22 = sbr.rel (0) target = $region21
  $region20: #{lstm_attn_decoder_forward.1} parent=0 // pred_region
    _
  $region21: #{lstm_attn_decoder_forward.1} parent=0 // pred_fallthru
    _
  // Predicated region
  $region22: #{lstm_attn_decoder_forward.1} parent=0 // pred_check
    _
  $region23: #{lstm_attn_decoder_forward.1} parent=0 // pred_check_branch
    %24 = sbr.rel (0) target = $region25
  $region24: #{lstm_attn_decoder_forward.1} parent=0 // pred_region
    _
  $region25: #{lstm_attn_decoder_forward.1} parent=0 // pred_fallthru
    _
  // Predicated region
  $region26: #{lstm_attn_decoder_forward.1} parent=0 // pred_check
    _
  $region27: #{lstm_attn_decoder_forward.1} parent=0 // pred_check_branch
    %26 = sbr.rel (0) target = $region29
  $region28: #{lstm_attn_decoder_forward.1} parent=0 // pred_region
    _
  $region29: #{lstm_attn_decoder_forward.1} parent=0 // pred_fallthru
    _
  // Predicated region
  $region30: #{lstm_attn_decoder_forward.1} parent=0 // pred_check
    _
  $region31: #{lstm_attn_decoder_forward.1} parent=0 // pred_check_branch
    %28 = sbr.rel (0) target = $region33
  $region32: #{lstm_attn_decoder_forward.1} parent=0 // pred_region
    _
  $region33: #{lstm_attn_decoder_forward.1} parent=0 // pred_fallthru
    _
  %vm29 = vcmask 779264
  %30 = vst.msk [vmem:[#allocation2] sm:$0x3] %vm29, 0.0
  %31 = vst.msk [vmem:[#allocation3] sm:$0x3] %vm29, 0.0
  %v32 = vld [vmem:[%s1] sm:$0x3]
  %vm33 = vcmask 254976
  %34 = vst.msk [vmem:[#allocation4] sm:$0x3] %vm33, %v32
  %v35 = vld [vmem:[%s3] sm:$0xff]
  %v36 = vld [vmem:[%s3 + $0x8] sm:$0xff]
  %v37 = vld [vmem:[%s3 + $0x10] sm:$0xff]
  %v38 = vld [vmem:[%s3 + $0x18] sm:$0xff]
  %v39 = vld [vmem:[%s3 + $0x40] sm:$0x1]
  %v40 = vld [vmem:[%s0] sm:$0xff]
  %v41 = vld [vmem:[%s0 + $0x8] sm:$0xff]
  %v42 = vlaneseq
  %v43 = vshrl.u32 %v42, 7
  %v44 = vsub.s32 0, %v43
  %v45 = vrot.slane %v39, %v44
  %vm46 = vcmask 261120
  %v48 = vsel %vm46, %v40, 0
  %v51 = vsel %vm46, %v41, 0
  %53 = vmatprep.subr.mxu0 0.0
  %54 = vmatpush1.msra.mxu0 0.0
  %55 = vmatprep.subr.mxu0 0.0
  %56 = vmatpush1.msra.mxu0 0.0
  %57 = vmatprep.subr.mxu0 0.0
  %58 = vmatpush1.msra.mxu0 0.0
  %59 = vmatprep.subr.mxu0 0.0
  %60 = vmatpush1.msra.mxu0 0.0
  %61 = vmatprep.subr.mxu0 0.0
  %62 = vmatpush1.msra.mxu0 0.0
  %63 = vmatprep.subr.mxu0 0.0
  %64 = vmatpush1.msra.mxu0 0.0
  %65 = vmatprep.subr.mxu0 0.0
  %66 = vmatpush1.msra.mxu0 0.0
  %67 = vmatprep.subr.mxu0 0.0
  %68 = vmatpush1.msra.mxu0 0.0
  %69 = vmatprep.subr.mxu0 0.0
  %70 = vmatpush1.msra.mxu0 0.0
  %71 = vmatprep.subr.mxu0 0.0
  %72 = vmatpush1.msra.mxu0 0.0
  %73 = vmatprep.subr.mxu0 0.0
  %74 = vmatpush1.msra.mxu0 0.0
  %75 = vmatprep.subr.mxu0 0.0
  %76 = vmatpush1.msra.mxu0 0.0
  %77 = vmatprep.subr.mxu0 0.0
  %78 = vmatpush1.msra.mxu0 %v38
  %79 = vmatprep.subr.mxu0 0.0
  %80 = vmatpush1.msra.mxu0 %v37
  %81 = vmatprep.subr.mxu0 0.0
  %82 = vmatpush1.msra.mxu0 %v36
  %83 = vmatprep.subr.mxu0 0.0
  %84 = vmatpush1.msra.mxu0 %v35
  %85 = vmatprep.subr.mxu0 0.0
  %86 = vmatpush2.msra.mxu0 0.0
  %87 = vmatprep.subr.mxu0 0.0
  %88 = vmatpush2.msra.mxu0 0.0
  %89 = vmatprep.subr.mxu0 0.0
  %90 = vmatpush2.msra.mxu0 0.0
  %91 = vmatprep.subr.mxu0 0.0
  %92 = vmatpush2.msra.mxu0 0.0
  %93 = vmatprep.subr.mxu0 0.0
  %94 = vmatpush2.msra.mxu0 0.0
  %95 = vmatprep.subr.mxu0 0.0
  %96 = vmatpush2.msra.mxu0 0.0
  %97 = vmatprep.subr.mxu0 0.0
  %98 = vmatpush2.msra.mxu0 0.0
  %99 = vmatprep.subr.mxu0 0.0
  %100 = vmatpush2.msra.mxu0 0.0
  %101 = vmatprep.subr.mxu0 0.0
  %102 = vmatpush2.msra.mxu0 0.0
  %103 = vmatprep.subr.mxu0 0.0
  %104 = vmatpush2.msra.mxu0 0.0
  %105 = vmatprep.subr.mxu0 0.0
  %106 = vmatpush2.msra.mxu0 0.0
  %107 = vmatprep.subr.mxu0 0.0
  %108 = vmatpush2.msra.mxu0 0.0
  %109 = vmatprep.subr.mxu0 0.0
  %110 = vmatpush2.msra.mxu0 0.0
  %111 = vmatprep.subr.mxu0 0.0
  %112 = vmatpush2.msra.mxu0 0.0
  %113 = vmatprep.subr.mxu0 0.0
  %114 = vmatpush2.msra.mxu0 0.0
  %115 = vmatprep.subr.mxu0 0.0
  %116 = vmatpush2.msra.mxu0 0.0
  %117 = vmatprep.mubr.f32.mxu0 0.0
  %118 = vmatmul.mubr.f32.gmra.mxu0 %v48
  %v119 = vpop.f32.mrf.mxu0
  %v120 = vadd.f32 %v45, %v119
  %v121 = vpop.f32.mrf.mxu0
  %122 = vmatprep.mubr.f32.mxu0 0.0
  %123 = vmatmul.mubr.f32.gmra.mxu0 %v51
  %v124 = vpop.f32.mrf.mxu0
  %v125 = vadd.f32 %v45, %v124
  %v126 = vpop.f32.mrf.mxu0
  %127 = vdwg.mxu0
  %128 = vst.msk [vmem:[#allocation5] sm:$0xff] %vm46, %v120
  %129 = vst.msk [vmem:[#allocation5 + $0x8] sm:$0xff] %vm46, %v125
  %v130 = vld [vmem:[%s0] sm:$0xff]
  %v131 = vld [vmem:[%s0 + $0x8] sm:$0xff]
  %v132 = vld [vmem:[#allocation4] sm:$0x3]
  %v133 = vld [vmem:[#allocation2] sm:$0x3]
  %v134 = vld [vmem:[%s3 + $0x20] sm:$0xff]
  %v135 = vld [vmem:[%s3 + $0x28] sm:$0xff]
  %v136 = vld [vmem:[%s3 + $0x30] sm:$0xff]
  %v137 = vld [vmem:[%s3 + $0x38] sm:$0xff]
  %v138 = vld [vmem:[%s3 + $0x41] sm:$0x1]
  %140 = vrot.lane.b32.xlu0 %v133, 64
  %v141 = vpop.permute.xlu0 %140
  %v142 = vsel %vm46, %v141, 0
  %144 = vmatprep.subr.mxu0 0.0
  %145 = vmatpush1.msra.mxu0 0.0
  %146 = vmatprep.subr.mxu0 0.0
  %147 = vmatpush1.msra.mxu0 0.0
  %148 = vmatprep.subr.mxu0 0.0
  %149 = vmatpush1.msra.mxu0 0.0
  %150 = vmatprep.subr.mxu0 0.0
  %151 = vmatpush1.msra.mxu0 0.0
  %152 = vmatprep.subr.mxu0 0.0
  %153 = vmatpush1.msra.mxu0 0.0
  %154 = vmatprep.subr.mxu0 0.0
  %155 = vmatpush1.msra.mxu0 0.0
  %156 = vmatprep.subr.mxu0 0.0
  %157 = vmatpush1.msra.mxu0 0.0
  %158 = vmatprep.subr.mxu0 0.0
  %159 = vmatpush1.msra.mxu0 0.0
  %160 = vmatprep.subr.mxu0 0.0
  %161 = vmatpush1.msra.mxu0 0.0
  %162 = vmatprep.subr.mxu0 0.0
  %163 = vmatpush1.msra.mxu0 0.0
  %164 = vmatprep.subr.mxu0 0.0
  %165 = vmatpush1.msra.mxu0 0.0
  %166 = vmatprep.subr.mxu0 0.0
  %167 = vmatpush1.msra.mxu0 0.0
  %168 = vmatprep.subr.mxu0 0.0
  %169 = vmatpush1.msra.mxu0 %v137
  %170 = vmatprep.subr.mxu0 0.0
  %171 = vmatpush1.msra.mxu0 %v136
  %172 = vmatprep.subr.mxu0 0.0
  %173 = vmatpush1.msra.mxu0 %v135
  %174 = vmatprep.subr.mxu0 0.0
  %175 = vmatpush1.msra.mxu0 %v134
  %176 = vmatprep.subr.mxu0 0.0
  %177 = vmatpush2.msra.mxu0 0.0
  %178 = vmatprep.subr.mxu0 0.0
  %179 = vmatpush2.msra.mxu0 0.0
  %180 = vmatprep.subr.mxu0 0.0
  %181 = vmatpush2.msra.mxu0 0.0
  %182 = vmatprep.subr.mxu0 0.0
  %183 = vmatpush2.msra.mxu0 0.0
  %184 = vmatprep.subr.mxu0 0.0
  %185 = vmatpush2.msra.mxu0 0.0
  %186 = vmatprep.subr.mxu0 0.0
  %187 = vmatpush2.msra.mxu0 0.0
  %188 = vmatprep.subr.mxu0 0.0
  %189 = vmatpush2.msra.mxu0 0.0
  %190 = vmatprep.subr.mxu0 0.0
  %191 = vmatpush2.msra.mxu0 0.0
  %192 = vmatprep.subr.mxu0 0.0
  %193 = vmatpush2.msra.mxu0 0.0
  %194 = vmatprep.subr.mxu0 0.0
  %195 = vmatpush2.msra.mxu0 0.0
  %196 = vmatprep.subr.mxu0 0.0
  %197 = vmatpush2.msra.mxu0 0.0
  %198 = vmatprep.subr.mxu0 0.0
  %199 = vmatpush2.msra.mxu0 0.0
  %200 = vmatprep.subr.mxu0 0.0
  %201 = vmatpush2.msra.mxu0 0.0
  %202 = vmatprep.subr.mxu0 0.0
  %203 = vmatpush2.msra.mxu0 0.0
  %204 = vmatprep.subr.mxu0 0.0
  %205 = vmatpush2.msra.mxu0 0.0
  %206 = vmatprep.subr.mxu0 0.0
  %207 = vmatpush2.msra.mxu0 0.0
  %208 = vmatprep.mubr.f32.mxu0 0.0
  %209 = vmatmul.mubr.f32.gmra.mxu0 %v142
  %v210 = vpop.f32.mrf.mxu0
  %v211 = vadd.f32 0.0, %v210
  %v212 = vpop.f32.mrf.mxu0
  %213 = vdwg.mxu0
  %v214 = vld [vmem:[#allocation5] sm:$0xff]
  %v215 = vld [vmem:[#allocation5 + $0x8] sm:$0xff]
  %v218 = vunpack.c.l.s4 1966171168
  %v219 = vunpack.c.0.s8 %v218
  %v220 = vlaneseq
  %v221 = vshrl.u32 %v220, 7
  %v222 = vsub.s32 %v219, %v221
  %v223 = vrot.slane %v211, %v222
  %v224 = vcombine.high %v223, %v223
  %v226 = vunpack.c.l.s4 1966171168
  %v227 = vunpack.c.0.s8 %v226
  %v228 = vlaneseq
  %v229 = vshrl.u32 %v228, 7
  %v230 = vsub.s32 %v227, %v229
  %v231 = vrot.slane %v223, %v230
  %v233 = vunpack.c.l.s4 1966171168
  %v234 = vunpack.c.0.s8 %v233
  %v235 = vlaneseq
  %v236 = vshrl.u32 %v235, 7
  %v237 = vsub.s32 %v234, %v236
  %v238 = vrot.slane %v224, %v237
  %v239 = vlaneseq
  %v240 = vshrl.u32 %v239, 7
  %v241 = vsub.s32 0, %v240
  %v242 = vrot.slane %v231, %v241
  %v243 = vlaneseq
  %v244 = vshrl.u32 %v243, 7
  %v245 = vsub.s32 0, %v244
  %v246 = vrot.slane %v238, %v245
  %v249 = vadd.f32 %v214, %v242
  %v250 = vadd.f32 %v215, %v246
  %v251 = vmax.f32 %v249, 0.0
  %v252 = vmax.f32 %v250, 0.0
  %v253 = vlaneseq
  %v254 = vshrl.u32 %v253, 7
  %v255 = vsub.s32 0, %v254
  %v256 = vrot.slane %v138, %v255
  %v257 = vmul.f32 %v251, %v256
  %v258 = vmul.f32 %v252, %v256
  %v259 = vsel %vm46, %v257, 0.0
  %260 = vadd.xlane.f32.xlu0 %v259
  %v261 = vpop.xlane.xlu0 %260
  %v262 = vsel %vm46, %v258, 0.0
  %263 = vadd.xlane.f32.xlu0 %v262
  %v264 = vpop.xlane.xlu0 %263
  %v267 = vlaneseq
  %v268 = vand.u32 %v267, 127
  %v269 = vlaneseq
  %v270 = vshrl.u32 %v269, 7
  %v271 = vsub.s32 %v268, %v270
  %v272 = vrot.slane %v261, %v271
  %v273 = vlaneseq
  %v274 = vshrl.u32 %v273, 7
  %v275 = vsub.s32 %v268, %v274
  %v276 = vrot.slane %v264, %v275
  %vm277 = vcmask 1041409
  %v278 = vsel %vm277, %v276, %v272
  %vm280 = vcmask 58368
  %v281 = vsel %vm280, %v278, -inf
  %282 = vmax.xlane.f32.xlu0 %v281
  %v283 = vpop.xlane.xlu0 %282
  %v285 = vlaneseq
  %v286 = vshrl.u32 %v285, 7
  %v287 = vsub.s32 0, %v286
  %v288 = vrot.slane %v283, %v287
  %v289 = vlaneseq
  %v290 = vshrl.u32 %v289, 7
  %v291 = vsub.s32 1, %v290
  %v292 = vrot.slane %v283, %v291
  %v295 = vsub.f32 %v261, %v288
  %v296 = vsub.f32 %v264, %v292
  %v297 = vmul.f32 %v295, 1.442695
  %v298 = vpow.pop %v297
  %v299 = vmul.f32 %v296, 1.442695
  %v300 = vpow.pop %v299
  %303 = vset.pattern.permute.xlu0 0
  %304 = vperm.xlu0 %303, %v298
  %v305 = vpop.permute.xlu0 %304
  %306 = vset.pattern.permute.xlu0 0
  %307 = vperm.xlu0 %306, %v300
  %v308 = vpop.permute.xlu0 %307
  %v309 = vlaneseq
  %v310 = vshrl.u32 %v309, 7
  %v311 = vsub.s32 %v268, %v310
  %v312 = vrot.slane %v305, %v311
  %v313 = vlaneseq
  %v314 = vshrl.u32 %v313, 7
  %v315 = vsub.s32 %v268, %v314
  %v316 = vrot.slane %v308, %v315
  %v317 = vsel %vm277, %v316, %v312
  %v319 = vsel %vm280, %v317, 0.0
  %320 = vadd.xlane.f32.xlu0 %v319
  %v321 = vpop.xlane.xlu0 %320
  %v322 = vlog2.pop %v321
  %v323 = vmul.f32 %v322, 0.6931472
  %v325 = vlaneseq
  %v326 = vshrl.u32 %v325, 7
  %v327 = vsub.s32 0, %v326
  %v328 = vrot.slane %v323, %v327
  %v329 = vlaneseq
  %v330 = vshrl.u32 %v329, 7
  %v331 = vsub.s32 1, %v330
  %v332 = vrot.slane %v323, %v331
  %v335 = vsub.f32 %v295, %v328
  %v336 = vsub.f32 %v296, %v332
  %338 = vset.pattern.permute.xlu0 0
  %339 = vperm.xlu0 %338, %v335
  %v340 = vpop.permute.xlu0 %339
  %343 = vset.pattern.permute.xlu0 0
  %344 = vperm.xlu0 %343, %v336
  %v345 = vpop.permute.xlu0 %344
  %v347 = vmul.f32 %v340, %v130
  %v348 = vmul.f32 %v345, %v131
  %v349 = vsel %vm46, %v347, 0.0
  %v350 = vrot.slane %v349, 4
  %v351 = vadd.f32 %v349, %v350
  %v352 = vrot.slane %v351, 2
  %v353 = vadd.f32 %v351, %v352
  %v354 = vrot.slane %v353, 1
  %v355 = vadd.f32 %v353, %v354
  %v356 = vsel %vm46, %v348, 0.0
  %v357 = vrot.slane %v356, 4
  %v358 = vadd.f32 %v356, %v357
  %v359 = vrot.slane %v358, 2
  %v360 = vadd.f32 %v358, %v359
  %v361 = vrot.slane %v360, 1
  %v362 = vadd.f32 %v360, %v361
  %v363 = vld [vmem:[#allocation2] sm:$0x3]
  %v364 = vld [vmem:[%s5] sm:$0xff]
  %v365 = vld [vmem:[%s5 + $0x8] sm:$0xff]
  %v366 = vld [vmem:[%s5 + $0x10] sm:$0xff]
  %v367 = vld [vmem:[%s5 + $0x18] sm:$0xff]
  %v368 = vld [vmem:[%s5 + $0x20] sm:$0xff]
  %v369 = vld [vmem:[%s5 + $0x28] sm:$0xff]
  %v370 = vld [vmem:[%s5 + $0x30] sm:$0xff]
  %v371 = vld [vmem:[%s5 + $0x38] sm:$0xff]
  %v372 = vld [vmem:[%s5 + $0x40] sm:$0xff]
  %v373 = vld [vmem:[%s5 + $0x48] sm:$0xff]
  %v374 = vld [vmem:[%s5 + $0x50] sm:$0xff]
  %v375 = vld [vmem:[%s5 + $0x58] sm:$0xff]
  %v376 = vld [vmem:[%s5 + $0x60] sm:$0xff]
  %v377 = vld [vmem:[%s5 + $0x68] sm:$0xff]
  %v378 = vld [vmem:[%s5 + $0x70] sm:$0xff]
  %v379 = vld [vmem:[%s5 + $0x78] sm:$0xff]
  %v380 = vld [vmem:[%s5 + $0x80] sm:$0xff]
  %v381 = vld [vmem:[%s5 + $0x88] sm:$0xff]
  %v382 = vld [vmem:[%s5 + $0x90] sm:$0xff]
  %v383 = vld [vmem:[%s5 + $0x98] sm:$0xff]
  %v384 = vld [vmem:[%s5 + $0xa0] sm:$0xff]
  %v385 = vld [vmem:[%s5 + $0xa8] sm:$0xff]
  %v386 = vld [vmem:[%s5 + $0xb0] sm:$0xff]
  %v387 = vld [vmem:[%s5 + $0xb8] sm:$0xff]
  %v388 = vld [vmem:[%s5 + $0xc0] sm:$0xff]
  %v389 = vld [vmem:[%s5 + $0xc8] sm:$0xff]
  %v390 = vld [vmem:[%s5 + $0xd0] sm:$0xff]
  %v391 = vld [vmem:[%s5 + $0xd8] sm:$0xff]
  %v392 = vld [vmem:[%s5 + $0xe0] sm:$0xff]
  %v393 = vld [vmem:[%s5 + $0xe8] sm:$0xff]
  %v394 = vld [vmem:[%s5 + $0xf0] sm:$0xff]
  %v395 = vld [vmem:[%s5 + $0xf8] sm:$0xff]
  %v396 = vld [vmem:[%s5 + $0x100] sm:$0xff]
  %v397 = vld [vmem:[%s5 + $0x108] sm:$0xff]
  %v398 = vld [vmem:[%s5 + $0x110] sm:$0xff]
  %v399 = vld [vmem:[%s5 + $0x118] sm:$0xff]
  %vm400 = vcmask 785408
  %v402 = vsel %vm400, %v363, 0
  %404 = vmatprep.subr.mxu0 0.0
  %405 = vmatpush1.msra.mxu0 0.0
  %406 = vmatprep.subr.mxu0 0.0
  %407 = vmatpush1.msra.mxu0 0.0
  %408 = vmatprep.subr.mxu0 0.0
  %409 = vmatpush1.msra.mxu0 0.0
  %410 = vmatprep.subr.mxu0 0.0
  %411 = vmatpush1.msra.mxu0 0.0
  %412 = vmatprep.subr.mxu0 %v398
  %413 = vmatpush1.msra.mxu0 %v397
  %414 = vmatprep.subr.mxu0 %v395
  %415 = vmatpush1.msra.mxu0 %v394
  %416 = vmatprep.subr.mxu0 %v392
  %417 = vmatpush1.msra.mxu0 %v391
  %418 = vmatprep.subr.mxu0 %v389
  %419 = vmatpush1.msra.mxu0 %v388
  %420 = vmatprep.subr.mxu0 %v386
  %421 = vmatpush1.msra.mxu0 %v385
  %422 = vmatprep.subr.mxu0 %v383
  %423 = vmatpush1.msra.mxu0 %v382
  %424 = vmatprep.subr.mxu0 %v380
  %425 = vmatpush1.msra.mxu0 %v379
  %426 = vmatprep.subr.mxu0 %v377
  %427 = vmatpush1.msra.mxu0 %v376
  %428 = vmatprep.subr.mxu0 %v374
  %429 = vmatpush1.msra.mxu0 %v373
  %430 = vmatprep.subr.mxu0 %v371
  %431 = vmatpush1.msra.mxu0 %v370
  %432 = vmatprep.subr.mxu0 %v368
  %433 = vmatpush1.msra.mxu0 %v367
  %434 = vmatprep.subr.mxu0 %v365
  %435 = vmatpush1.msra.mxu0 %v364
  %436 = vmatprep.subr.mxu0 0.0
  %437 = vmatpush2.msra.mxu0 0.0
  %438 = vmatprep.subr.mxu0 0.0
  %439 = vmatpush2.msra.mxu0 0.0
  %440 = vmatprep.subr.mxu0 0.0
  %441 = vmatpush2.msra.mxu0 0.0
  %442 = vmatprep.subr.mxu0 0.0
  %443 = vmatpush2.msra.mxu0 0.0
  %444 = vmatprep.subr.mxu0 0.0
  %445 = vmatpush2.msra.mxu0 0.0
  %446 = vmatprep.subr.mxu0 0.0
  %447 = vmatpush2.msra.mxu0 0.0
  %448 = vmatprep.subr.mxu0 0.0
  %449 = vmatpush2.msra.mxu0 0.0
  %450 = vmatprep.subr.mxu0 0.0
  %451 = vmatpush2.msra.mxu0 0.0
  %452 = vmatprep.subr.mxu0 0.0
  %453 = vmatpush2.msra.mxu0 0.0
  %454 = vmatprep.subr.mxu0 0.0
  %455 = vmatpush2.msra.mxu0 0.0
  %456 = vmatprep.subr.mxu0 0.0
  %457 = vmatpush2.msra.mxu0 0.0
  %458 = vmatprep.subr.mxu0 0.0
  %459 = vmatpush2.msra.mxu0 0.0
  %460 = vmatprep.subr.mxu0 0.0
  %461 = vmatpush2.msra.mxu0 0.0
  %462 = vmatprep.subr.mxu0 0.0
  %463 = vmatpush2.msra.mxu0 0.0
  %464 = vmatprep.subr.mxu0 0.0
  %465 = vmatpush2.msra.mxu0 0.0
  %466 = vmatprep.subr.mxu0 0.0
  %467 = vmatpush2.msra.mxu0 0.0
  %468 = vmatprep.mubr.f32.mxu0 0.0
  %469 = vmatmul.mubr.f32.gmra.mxu0 %v402
  %v470 = vpop.f32.mrf.mxu0
  %v471 = vadd.f32 0.0, %v470
  %v472 = vpop.f32.mrf.mxu0
  %v473 = vadd.f32 0.0, %v472
  %474 = vdwg.mxu0
  %475 = vmatprep.subr.mxu0 0.0
  %476 = vmatpush1.msra.mxu0 0.0
  %477 = vmatprep.subr.mxu0 0.0
  %478 = vmatpush1.msra.mxu0 0.0
  %479 = vmatprep.subr.mxu0 0.0
  %480 = vmatpush1.msra.mxu0 0.0
  %481 = vmatprep.subr.mxu0 0.0
  %482 = vmatpush1.msra.mxu0 0.0
  %483 = vmatprep.subr.mxu0 0.0
  %484 = vmatpush1.msra.mxu0 %v399
  %485 = vmatprep.subr.mxu0 0.0
  %486 = vmatpush1.msra.mxu0 %v396
  %487 = vmatprep.subr.mxu0 0.0
  %488 = vmatpush1.msra.mxu0 %v393
  %489 = vmatprep.subr.mxu0 0.0
  %490 = vmatpush1.msra.mxu0 %v390
  %491 = vmatprep.subr.mxu0 0.0
  %492 = vmatpush1.msra.mxu0 %v387
  %493 = vmatprep.subr.mxu0 0.0
  %494 = vmatpush1.msra.mxu0 %v384
  %495 = vmatprep.subr.mxu0 0.0
  %496 = vmatpush1.msra.mxu0 %v381
  %497 = vmatprep.subr.mxu0 0.0
  %498 = vmatpush1.msra.mxu0 %v378
  %499 = vmatprep.subr.mxu0 0.0
  %500 = vmatpush1.msra.mxu0 %v375
  %501 = vmatprep.subr.mxu0 0.0
  %502 = vmatpush1.msra.mxu0 %v372
  %503 = vmatprep.subr.mxu0 0.0
  %504 = vmatpush1.msra.mxu0 %v369
  %505 = vmatprep.subr.mxu0 0.0
  %506 = vmatpush1.msra.mxu0 %v366
  %507 = vmatprep.subr.mxu0 0.0
  %508 = vmatpush2.msra.mxu0 0.0
  %509 = vmatprep.subr.mxu0 0.0
  %510 = vmatpush2.msra.mxu0 0.0
  %511 = vmatprep.subr.mxu0 0.0
  %512 = vmatpush2.msra.mxu0 0.0
  %513 = vmatprep.subr.mxu0 0.0
  %514 = vmatpush2.msra.mxu0 0.0
  %515 = vmatprep.subr.mxu0 0.0
  %516 = vmatpush2.msra.mxu0 0.0
  %517 = vmatprep.subr.mxu0 0.0
  %518 = vmatpush2.msra.mxu0 0.0
  %519 = vmatprep.subr.mxu0 0.0
  %520 = vmatpush2.msra.mxu0 0.0
  %521 = vmatprep.subr.mxu0 0.0
  %522 = vmatpush2.msra.mxu0 0.0
  %523 = vmatprep.subr.mxu0 0.0
  %524 = vmatpush2.msra.mxu0 0.0
  %525 = vmatprep.subr.mxu0 0.0
  %526 = vmatpush2.msra.mxu0 0.0
  %527 = vmatprep.subr.mxu0 0.0
  %528 = vmatpush2.msra.mxu0 0.0
  %529 = vmatprep.subr.mxu0 0.0
  %530 = vmatpush2.msra.mxu0 0.0
  %531 = vmatprep.subr.mxu0 0.0
  %532 = vmatpush2.msra.mxu0 0.0
  %533 = vmatprep.subr.mxu0 0.0
  %534 = vmatpush2.msra.mxu0 0.0
  %535 = vmatprep.subr.mxu0 0.0
  %536 = vmatpush2.msra.mxu0 0.0
  %537 = vmatprep.subr.mxu0 0.0
  %538 = vmatpush2.msra.mxu0 0.0
  %539 = vmatprep.mubr.f32.mxu0 0.0
  %540 = vmatmul.mubr.f32.gmra.mxu0 %v402
  %v541 = vpop.f32.mrf.mxu0
  %v542 = vadd.f32 0.0, %v541
  %v543 = vpop.f32.mrf.mxu0
  %544 = vdwg.mxu0
  %v545 = vld [vmem:[%s4] sm:$0xff]
  %v546 = vld [vmem:[%s4 + $0x8] sm:$0xff]
  %v547 = vld [vmem:[%s4 + $0x10] sm:$0xff]
  %v548 = vld [vmem:[%s4 + $0x18] sm:$0xff]
  %v549 = vld [vmem:[%s4 + $0x20] sm:$0xff]
  %v550 = vld [vmem:[%s4 + $0x28] sm:$0xff]
  %v551 = vld [vmem:[%s4 + $0x30] sm:$0xff]
  %v552 = vld [vmem:[%s4 + $0x38] sm:$0xff]
  %v555 = vsel %vm277, %v362, %v355
  %v556 = vsel %vm46, %v555, 0
  %558 = vmatprep.subr.mxu0 0.0
  %559 = vmatpush1.msra.mxu0 0.0
  %560 = vmatprep.subr.mxu0 0.0
  %561 = vmatpush1.msra.mxu0 0.0
  %562 = vmatprep.subr.mxu0 0.0
  %563 = vmatpush1.msra.mxu0 0.0
  %564 = vmatprep.subr.mxu0 0.0
  %565 = vmatpush1.msra.mxu0 0.0
  %566 = vmatprep.subr.mxu0 0.0
  %567 = vmatpush1.msra.mxu0 0.0
  %568 = vmatprep.subr.mxu0 0.0
  %569 = vmatpush1.msra.mxu0 0.0
  %570 = vmatprep.subr.mxu0 0.0
  %571 = vmatpush1.msra.mxu0 0.0
  %572 = vmatprep.subr.mxu0 0.0
  %573 = vmatpush1.msra.mxu0 0.0
  %574 = vmatprep.subr.mxu0 0.0
  %575 = vmatpush1.msra.mxu0 0.0
  %576 = vmatprep.subr.mxu0 0.0
  %577 = vmatpush1.msra.mxu0 0.0
  %578 = vmatprep.subr.mxu0 0.0
  %579 = vmatpush1.msra.mxu0 0.0
  %580 = vmatprep.subr.mxu0 0.0
  %581 = vmatpush1.msra.mxu0 0.0
  %582 = vmatprep.subr.mxu0 0.0
  %583 = vmatpush1.msra.mxu0 %v552
  %584 = vmatprep.subr.mxu0 0.0
  %585 = vmatpush1.msra.mxu0 %v551
  %586 = vmatprep.subr.mxu0 0.0
  %587 = vmatpush1.msra.mxu0 %v550
  %588 = vmatprep.subr.mxu0 0.0
  %589 = vmatpush1.msra.mxu0 %v549
  %590 = vmatprep.subr.mxu0 0.0
  %591 = vmatpush2.msra.mxu0 0.0
  %592 = vmatprep.subr.mxu0 0.0
  %593 = vmatpush2.msra.mxu0 0.0
  %594 = vmatprep.subr.mxu0 0.0
  %595 = vmatpush2.msra.mxu0 0.0
  %596 = vmatprep.subr.mxu0 0.0
  %597 = vmatpush2.msra.mxu0 0.0
  %598 = vmatprep.subr.mxu0 0.0
  %599 = vmatpush2.msra.mxu0 0.0
  %600 = vmatprep.subr.mxu0 0.0
  %601 = vmatpush2.msra.mxu0 0.0
  %602 = vmatprep.subr.mxu0 0.0
  %603 = vmatpush2.msra.mxu0 0.0
  %604 = vmatprep.subr.mxu0 0.0
  %605 = vmatpush2.msra.mxu0 0.0
  %606 = vmatprep.subr.mxu0 0.0
  %607 = vmatpush2.msra.mxu0 0.0
  %608 = vmatprep.subr.mxu0 0.0
  %609 = vmatpush2.msra.mxu0 0.0
  %610 = vmatprep.subr.mxu0 0.0
  %611 = vmatpush2.msra.mxu0 0.0
  %612 = vmatprep.subr.mxu0 0.0
  %613 = vmatpush2.msra.mxu0 0.0
  %614 = vmatprep.subr.mxu0 0.0
  %615 = vmatpush2.msra.mxu0 0.0
  %616 = vmatprep.subr.mxu0 0.0
  %617 = vmatpush2.msra.mxu0 0.0
  %618 = vmatprep.subr.mxu0 0.0
  %619 = vmatpush2.msra.mxu0 0.0
  %620 = vmatprep.subr.mxu0 0.0
  %621 = vmatpush2.msra.mxu0 0.0
  %622 = vmatprep.mubr.f32.mxu0 0.0
  %623 = vmatmul.mubr.f32.gmra.mxu0 %v556
  %v624 = vpop.f32.mrf.mxu0
  %v625 = vadd.f32 0.0, %v624
  %v626 = vpop.f32.mrf.mxu0
  %627 = vdwg.mxu0
  %v629 = vsel %vm46, %v132, 0
  %631 = vmatprep.subr.mxu0 0.0
  %632 = vmatpush1.msra.mxu0 0.0
  %633 = vmatprep.subr.mxu0 0.0
  %634 = vmatpush1.msra.mxu0 0.0
  %635 = vmatprep.subr.mxu0 0.0
  %636 = vmatpush1.msra.mxu0 0.0
  %637 = vmatprep.subr.mxu0 0.0
  %638 = vmatpush1.msra.mxu0 0.0
  %639 = vmatprep.subr.mxu0 0.0
  %640 = vmatpush1.msra.mxu0 0.0
  %641 = vmatprep.subr.mxu0 0.0
  %642 = vmatpush1.msra.mxu0 0.0
  %643 = vmatprep.subr.mxu0 0.0
  %644 = vmatpush1.msra.mxu0 0.0
  %645 = vmatprep.subr.mxu0 0.0
  %646 = vmatpush1.msra.mxu0 0.0
  %647 = vmatprep.subr.mxu0 0.0
  %648 = vmatpush1.msra.mxu0 0.0
  %649 = vmatprep.subr.mxu0 0.0
  %650 = vmatpush1.msra.mxu0 0.0
  %651 = vmatprep.subr.mxu0 0.0
  %652 = vmatpush1.msra.mxu0 0.0
  %653 = vmatprep.subr.mxu0 0.0
  %654 = vmatpush1.msra.mxu0 0.0
  %655 = vmatprep.subr.mxu0 0.0
  %656 = vmatpush1.msra.mxu0 %v548
  %657 = vmatprep.subr.mxu0 0.0
  %658 = vmatpush1.msra.mxu0 %v547
  %659 = vmatprep.subr.mxu0 0.0
  %660 = vmatpush1.msra.mxu0 %v546
  %661 = vmatprep.subr.mxu0 0.0
  %662 = vmatpush1.msra.mxu0 %v545
  %663 = vmatprep.subr.mxu0 0.0
  %664 = vmatpush2.msra.mxu0 0.0
  %665 = vmatprep.subr.mxu0 0.0
  %666 = vmatpush2.msra.mxu0 0.0
  %667 = vmatprep.subr.mxu0 0.0
  %668 = vmatpush2.msra.mxu0 0.0
  %669 = vmatprep.subr.mxu0 0.0
  %670 = vmatpush2.msra.mxu0 0.0
  %671 = vmatprep.subr.mxu0 0.0
  %672 = vmatpush2.msra.mxu0 0.0
  %673 = vmatprep.subr.mxu0 0.0
  %674 = vmatpush2.msra.mxu0 0.0
  %675 = vmatprep.subr.mxu0 0.0
  %676 = vmatpush2.msra.mxu0 0.0
  %677 = vmatprep.subr.mxu0 0.0
  %678 = vmatpush2.msra.mxu0 0.0
  %679 = vmatprep.subr.mxu0 0.0
  %680 = vmatpush2.msra.mxu0 0.0
  %681 = vmatprep.subr.mxu0 0.0
  %682 = vmatpush2.msra.mxu0 0.0
  %683 = vmatprep.subr.mxu0 0.0
  %684 = vmatpush2.msra.mxu0 0.0
  %685 = vmatprep.subr.mxu0 0.0
  %686 = vmatpush2.msra.mxu0 0.0
  %687 = vmatprep.subr.mxu0 0.0
  %688 = vmatpush2.msra.mxu0 0.0
  %689 = vmatprep.subr.mxu0 0.0
  %690 = vmatpush2.msra.mxu0 0.0
  %691 = vmatprep.subr.mxu0 0.0
  %692 = vmatpush2.msra.mxu0 0.0
  %693 = vmatprep.subr.mxu0 0.0
  %694 = vmatpush2.msra.mxu0 0.0
  %695 = vmatprep.mubr.f32.mxu0 0.0
  %696 = vmatmul.mubr.f32.gmra.mxu0 %v629
  %v697 = vpop.f32.mrf.mxu0
  %v698 = vadd.f32 %v625, %v697
  %v699 = vpop.f32.mrf.mxu0
  %700 = vdwg.mxu0
  %v701 = vadd.f32 %v698, %v471
  %v702 = vld [vmem:[%s6] sm:$0x1]
  %v703 = vlaneseq
  %v704 = vshrl.u32 %v703, 7
  %v705 = vsub.s32 0, %v704
  %v706 = vrot.slane %v702, %v705
  %v707 = vadd.f32 %v701, %v706
  %v708 = vxor.u32 %v707, 2147483648
  %v709 = vmul.f32 %v708, 1.442695
  %v710 = vpow.pop %v709
  %v711 = vadd.f32 %v710, 1.0
  %v712 = vrcp.pop %v711
  %v713 = vmul.f32 1.0, %v712
  %v714 = vtanh.pop %v707
  %v715 = vld [vmem:[#allocation3] sm:$0x3]
  %717 = vrot.lane.b32.xlu0 %v715, 32
  %v718 = vpop.permute.xlu0 %717
  %v720 = vmul.f32 %v713, %v718
  %722 = vrot.lane.b32.xlu0 %v714, 64
  %v723 = vpop.permute.xlu0 %722
  %v725 = vmul.f32 %v713, %v723
  %727 = vrot.lane.b32.xlu0 %v725, 32
  %v728 = vpop.permute.xlu0 %727
  %v730 = vadd.f32 %v720, %v728
  %v731 = vtanh.pop %v730
  %733 = vrot.lane.b32.xlu0 %v731, 64
  %v734 = vpop.permute.xlu0 %733
  %v736 = vmul.f32 %v713, %v734
  %738 = vrot.lane.b32.xlu0 %v730, 96
  %v739 = vpop.permute.xlu0 %738
  %741 = vst.msk [vmem:[#allocation3] sm:$0x3] %vm33, %v739
  %743 = vrot.lane.b32.xlu0 %v736, 32
  %v744 = vpop.permute.xlu0 %743
  %746 = vst.msk [vmem:[#allocation2] sm:$0x3] %vm33, %v744
  %v747 = vld [vmem:[%s4 + $0x40] sm:$0xff]
  %v748 = vld [vmem:[%s4 + $0x48] sm:$0xff]
  %v749 = vld [vmem:[%s4 + $0x50] sm:$0xff]
  %v750 = vld [vmem:[%s4 + $0x58] sm:$0xff]
  %v751 = vsel %vm46, %v744, 0
  %753 = vmatprep.subr.mxu0 0.0
  %754 = vmatpush1.msra.mxu0 0.0
  %755 = vmatprep.subr.mxu0 0.0
  %756 = vmatpush1.msra.mxu0 0.0
  %757 = vmatprep.subr.mxu0 0.0
  %758 = vmatpush1.msra.mxu0 0.0
  %759 = vmatprep.subr.mxu0 0.0
  %760 = vmatpush1.msra.mxu0 0.0
  %761 = vmatprep.subr.mxu0 0.0
  %762 = vmatpush1.msra.mxu0 0.0
  %763 = vmatprep.subr.mxu0 0.0
  %764 = vmatpush1.msra.mxu0 0.0
  %765 = vmatprep.subr.mxu0 0.0
  %766 = vmatpush1.msra.mxu0 0.0
  %767 = vmatprep.subr.mxu0 0.0
  %768 = vmatpush1.msra.mxu0 0.0
  %769 = vmatprep.subr.mxu0 0.0
  %770 = vmatpush1.msra.mxu0 0.0
  %771 = vmatprep.subr.mxu0 0.0
  %772 = vmatpush1.msra.mxu0 0.0
  %773 = vmatprep.subr.mxu0 0.0
  %774 = vmatpush1.msra.mxu0 0.0
  %775 = vmatprep.subr.mxu0 0.0
  %776 = vmatpush1.msra.mxu0 0.0
  %777 = vmatprep.subr.mxu0 0.0
  %778 = vmatpush1.msra.mxu0 %v750
  %779 = vmatprep.subr.mxu0 0.0
  %780 = vmatpush1.msra.mxu0 %v749
  %781 = vmatprep.subr.mxu0 0.0
  %782 = vmatpush1.msra.mxu0 %v748
  %783 = vmatprep.subr.mxu0 0.0
  %784 = vmatpush1.msra.mxu0 %v747
  %785 = vmatprep.subr.mxu0 0.0
  %786 = vmatpush2.msra.mxu0 0.0
  %787 = vmatprep.subr.mxu0 0.0
  %788 = vmatpush2.msra.mxu0 0.0
  %789 = vmatprep.subr.mxu0 0.0
  %790 = vmatpush2.msra.mxu0 0.0
  %791 = vmatprep.subr.mxu0 0.0
  %792 = vmatpush2.msra.mxu0 0.0
  %793 = vmatprep.subr.mxu0 0.0
  %794 = vmatpush2.msra.mxu0 0.0
  %795 = vmatprep.subr.mxu0 0.0
  %796 = vmatpush2.msra.mxu0 0.0
  %797 = vmatprep.subr.mxu0 0.0
  %798 = vmatpush2.msra.mxu0 0.0
  %799 = vmatprep.subr.mxu0 0.0
  %800 = vmatpush2.msra.mxu0 0.0
  %801 = vmatprep.subr.mxu0 0.0
  %802 = vmatpush2.msra.mxu0 0.0
  %803 = vmatprep.subr.mxu0 0.0
  %804 = vmatpush2.msra.mxu0 0.0
  %805 = vmatprep.subr.mxu0 0.0
  %806 = vmatpush2.msra.mxu0 0.0
  %807 = vmatprep.subr.mxu0 0.0
  %808 = vmatpush2.msra.mxu0 0.0
  %809 = vmatprep.subr.mxu0 0.0
  %810 = vmatpush2.msra.mxu0 0.0
  %811 = vmatprep.subr.mxu0 0.0
  %812 = vmatpush2.msra.mxu0 0.0
  %813 = vmatprep.subr.mxu0 0.0
  %814 = vmatpush2.msra.mxu0 0.0
  %815 = vmatprep.subr.mxu0 0.0
  %816 = vmatpush2.msra.mxu0 0.0
  %817 = vmatprep.mubr.f32.mxu0 0.0
  %818 = vmatmul.mubr.f32.gmra.mxu0 %v751
  %v819 = vpop.f32.mrf.mxu0
  %v820 = vadd.f32 %v473, %v819
  %v821 = vpop.f32.mrf.mxu0
  %822 = vdwg.mxu0
  %v823 = vld [vmem:[%s6 + $0x1] sm:$0x1]
  %v824 = vlaneseq
  %v825 = vshrl.u32 %v824, 7
  %v826 = vsub.s32 0, %v825
  %v827 = vrot.slane %v823, %v826
  %v828 = vadd.f32 %v820, %v827
  %v829 = vxor.u32 %v828, 2147483648
  %v830 = vmul.f32 %v829, 1.442695
  %v831 = vpow.pop %v830
  %v832 = vadd.f32 %v831, 1.0
  %v833 = vrcp.pop %v832
  %v834 = vmul.f32 1.0, %v833
  %v835 = vtanh.pop %v828
  %v836 = vld [vmem:[#allocation3] sm:$0x3]
  %v837 = vmul.f32 %v834, %v836
  %839 = vrot.lane.b32.xlu0 %v835, 64
  %v840 = vpop.permute.xlu0 %839
  %v842 = vmul.f32 %v834, %v840
  %844 = vrot.lane.b32.xlu0 %v842, 32
  %v845 = vpop.permute.xlu0 %844
  %v847 = vadd.f32 %v837, %v845
  %v848 = vtanh.pop %v847
  %850 = vrot.lane.b32.xlu0 %v848, 64
  %v851 = vpop.permute.xlu0 %850
  %v853 = vmul.f32 %v834, %v851
  %vm854 = vcmask 517376
  %855 = vst.msk [vmem:[#allocation3] sm:$0x3] %vm854, %v847
  %857 = vrot.lane.b32.xlu0 %v853, 64
  %v858 = vpop.permute.xlu0 %857
  %860 = vst.msk [vmem:[#allocation2] sm:$0x3] %vm854, %v858
  %v861 = vld [vmem:[%s4 + $0x60] sm:$0xff]
  %v862 = vld [vmem:[%s4 + $0x68] sm:$0xff]
  %v863 = vld [vmem:[%s4 + $0x70] sm:$0xff]
  %v864 = vld [vmem:[%s4 + $0x78] sm:$0xff]
  %865 = vrot.lane.b32.xlu0 %v853, 32
  %v866 = vpop.permute.xlu0 %865
  %v867 = vsel %vm46, %v866, 0
  %869 = vmatprep.subr.mxu0 0.0
  %870 = vmatpush1.msra.mxu0 0.0
  %871 = vmatprep.subr.mxu0 0.0
  %872 = vmatpush1.msra.mxu0 0.0
  %873 = vmatprep.subr.mxu0 0.0
  %874 = vmatpush1.msra.mxu0 0.0
  %875 = vmatprep.subr.mxu0 0.0
  %876 = vmatpush1.msra.mxu0 0.0
  %877 = vmatprep.subr.mxu0 0.0
  %878 = vmatpush1.msra.mxu0 0.0
  %879 = vmatprep.subr.mxu0 0.0
  %880 = vmatpush1.msra.mxu0 0.0
  %881 = vmatprep.subr.mxu0 0.0
  %882 = vmatpush1.msra.mxu0 0.0
  %883 = vmatprep.subr.mxu0 0.0
  %884 = vmatpush1.msra.mxu0 0.0
  %885 = vmatprep.subr.mxu0 0.0
  %886 = vmatpush1.msra.mxu0 0.0
  %887 = vmatprep.subr.mxu0 0.0
  %888 = vmatpush1.msra.mxu0 0.0
  %889 = vmatprep.subr.mxu0 0.0
  %890 = vmatpush1.msra.mxu0 0.0
  %891 = vmatprep.subr.mxu0 0.0
  %892 = vmatpush1.msra.mxu0 0.0
  %893 = vmatprep.subr.mxu0 0.0
  %894 = vmatpush1.msra.mxu0 %v864
  %895 = vmatprep.subr.mxu0 0.0
  %896 = vmatpush1.msra.mxu0 %v863
  %897 = vmatprep.subr.mxu0 0.0
  %898 = vmatpush1.msra.mxu0 %v862
  %899 = vmatprep.subr.mxu0 0.0
  %900 = vmatpush1.msra.mxu0 %v861
  %901 = vmatprep.subr.mxu0 0.0
  %902 = vmatpush2.msra.mxu0 0.0
  %903 = vmatprep.subr.mxu0 0.0
  %904 = vmatpush2.msra.mxu0 0.0
  %905 = vmatprep.subr.mxu0 0.0
  %906 = vmatpush2.msra.mxu0 0.0
  %907 = vmatprep.subr.mxu0 0.0
  %908 = vmatpush2.msra.mxu0 0.0
  %909 = vmatprep.subr.mxu0 0.0
  %910 = vmatpush2.msra.mxu0 0.0
  %911 = vmatprep.subr.mxu0 0.0
  %912 = vmatpush2.msra.mxu0 0.0
  %913 = vmatprep.subr.mxu0 0.0
  %914 = vmatpush2.msra.mxu0 0.0
  %915 = vmatprep.subr.mxu0 0.0
  %916 = vmatpush2.msra.mxu0 0.0
  %917 = vmatprep.subr.mxu0 0.0
  %918 = vmatpush2.msra.mxu0 0.0
  %919 = vmatprep.subr.mxu0 0.0
  %920 = vmatpush2.msra.mxu0 0.0
  %921 = vmatprep.subr.mxu0 0.0
  %922 = vmatpush2.msra.mxu0 0.0
  %923 = vmatprep.subr.mxu0 0.0
  %924 = vmatpush2.msra.mxu0 0.0
  %925 = vmatprep.subr.mxu0 0.0
  %926 = vmatpush2.msra.mxu0 0.0
  %927 = vmatprep.subr.mxu0 0.0
  %928 = vmatpush2.msra.mxu0 0.0
  %929 = vmatprep.subr.mxu0 0.0
  %930 = vmatpush2.msra.mxu0 0.0
  %931 = vmatprep.subr.mxu0 0.0
  %932 = vmatpush2.msra.mxu0 0.0
  %933 = vmatprep.mubr.f32.mxu0 0.0
  %934 = vmatmul.mubr.f32.gmra.mxu0 %v867
  %v935 = vpop.f32.mrf.mxu0
  %v936 = vadd.f32 %v542, %v935
  %v937 = vpop.f32.mrf.mxu0
  %938 = vdwg.mxu0
  %v939 = vld [vmem:[%s6 + $0x2] sm:$0x1]
  %v940 = vlaneseq
  %v941 = vshrl.u32 %v940, 7
  %v942 = vsub.s32 0, %v941
  %v943 = vrot.slane %v939, %v942
  %v944 = vadd.f32 %v936, %v943
  %v945 = vxor.u32 %v944, 2147483648
  %v946 = vmul.f32 %v945, 1.442695
  %v947 = vpow.pop %v946
  %v948 = vadd.f32 %v947, 1.0
  %v949 = vrcp.pop %v948
  %v950 = vmul.f32 1.0, %v949
  %v951 = vtanh.pop %v944
  %v952 = vld [vmem:[#allocation3] sm:$0x3]
  %954 = vrot.lane.b32.xlu0 %v952, 96
  %v955 = vpop.permute.xlu0 %954
  %v957 = vmul.f32 %v950, %v955
  %959 = vrot.lane.b32.xlu0 %v951, 64
  %v960 = vpop.permute.xlu0 %959
  %v962 = vmul.f32 %v950, %v960
  %964 = vrot.lane.b32.xlu0 %v962, 32
  %v965 = vpop.permute.xlu0 %964
  %v967 = vadd.f32 %v957, %v965
  %v968 = vtanh.pop %v967
  %970 = vrot.lane.b32.xlu0 %v968, 64
  %v971 = vpop.permute.xlu0 %970
  %v973 = vmul.f32 %v950, %v971
  %975 = vrot.lane.b32.xlu0 %v967, 32
  %v976 = vpop.permute.xlu0 %975
  %vm978 = vcmask 779776
  %979 = vst.msk [vmem:[#allocation3] sm:$0x3] %vm978, %v976
  %981 = vrot.lane.b32.xlu0 %v973, 96
  %v982 = vpop.permute.xlu0 %981
  %984 = vst.msk [vmem:[#allocation2] sm:$0x3] %vm978, %v982
  %v985 = vld [vmem:[%s7] sm:$0xff]
  %v986 = vld [vmem:[%s7 + $0x8] sm:$0xff]
  %v987 = vld [vmem:[%s7 + $0x10] sm:$0xff]
  %v988 = vld [vmem:[%s7 + $0x18] sm:$0xff]
  %v989 = vld [vmem:[%s7 + $0x20] sm:$0x1]
  %v990 = vlaneseq
  %v991 = vshrl.u32 %v990, 7
  %v992 = vsub.s32 0, %v991
  %v993 = vrot.slane %v989, %v992
  %994 = vrot.lane.b32.xlu0 %v973, 32
  %v995 = vpop.permute.xlu0 %994
  %v996 = vsel %vm46, %v995, 0
  %998 = vmatprep.subr.mxu0 0.0
  %999 = vmatpush1.msra.mxu0 0.0
  %1000 = vmatprep.subr.mxu0 0.0
  %1001 = vmatpush1.msra.mxu0 0.0
  %1002 = vmatprep.subr.mxu0 0.0
  %1003 = vmatpush1.msra.mxu0 0.0
  %1004 = vmatprep.subr.mxu0 0.0
  %1005 = vmatpush1.msra.mxu0 0.0
  %1006 = vmatprep.subr.mxu0 0.0
  %1007 = vmatpush1.msra.mxu0 0.0
  %1008 = vmatprep.subr.mxu0 0.0
  %1009 = vmatpush1.msra.mxu0 0.0
  %1010 = vmatprep.subr.mxu0 0.0
  %1011 = vmatpush1.msra.mxu0 0.0
  %1012 = vmatprep.subr.mxu0 0.0
  %1013 = vmatpush1.msra.mxu0 0.0
  %1014 = vmatprep.subr.mxu0 0.0
  %1015 = vmatpush1.msra.mxu0 0.0
  %1016 = vmatprep.subr.mxu0 0.0
  %1017 = vmatpush1.msra.mxu0 0.0
  %1018 = vmatprep.subr.mxu0 0.0
  %1019 = vmatpush1.msra.mxu0 0.0
  %1020 = vmatprep.subr.mxu0 0.0
  %1021 = vmatpush1.msra.mxu0 0.0
  %1022 = vmatprep.subr.mxu0 0.0
  %1023 = vmatpush1.msra.mxu0 %v988
  %1024 = vmatprep.subr.mxu0 0.0
  %1025 = vmatpush1.msra.mxu0 %v987
  %1026 = vmatprep.subr.mxu0 0.0
  %1027 = vmatpush1.msra.mxu0 %v986
  %1028 = vmatprep.subr.mxu0 0.0
  %1029 = vmatpush1.msra.mxu0 %v985
  %1030 = vmatprep.subr.mxu0 0.0
  %1031 = vmatpush2.msra.mxu0 0.0
  %1032 = vmatprep.subr.mxu0 0.0
  %1033 = vmatpush2.msra.mxu0 0.0
  %1034 = vmatprep.subr.mxu0 0.0
  %1035 = vmatpush2.msra.mxu0 0.0
  %1036 = vmatprep.subr.mxu0 0.0
  %1037 = vmatpush2.msra.mxu0 0.0
  %1038 = vmatprep.subr.mxu0 0.0
  %1039 = vmatpush2.msra.mxu0 0.0
  %1040 = vmatprep.subr.mxu0 0.0
  %1041 = vmatpush2.msra.mxu0 0.0
  %1042 = vmatprep.subr.mxu0 0.0
  %1043 = vmatpush2.msra.mxu0 0.0
  %1044 = vmatprep.subr.mxu0 0.0
  %1045 = vmatpush2.msra.mxu0 0.0
  %1046 = vmatprep.subr.mxu0 0.0
  %1047 = vmatpush2.msra.mxu0 0.0
  %1048 = vmatprep.subr.mxu0 0.0
  %1049 = vmatpush2.msra.mxu0 0.0
  %1050 = vmatprep.subr.mxu0 0.0
  %1051 = vmatpush2.msra.mxu0 0.0
  %1052 = vmatprep.subr.mxu0 0.0
  %1053 = vmatpush2.msra.mxu0 0.0
  %1054 = vmatprep.subr.mxu0 0.0
  %1055 = vmatpush2.msra.mxu0 0.0
  %1056 = vmatprep.subr.mxu0 0.0
  %1057 = vmatpush2.msra.mxu0 0.0
  %1058 = vmatprep.subr.mxu0 0.0
  %1059 = vmatpush2.msra.mxu0 0.0
  %1060 = vmatprep.subr.mxu0 0.0
  %1061 = vmatpush2.msra.mxu0 0.0
  %1062 = vmatprep.mubr.f32.mxu0 0.0
  %1063 = vmatmul.mubr.f32.gmra.mxu0 %v996
  %v1064 = vpop.f32.mrf.mxu0
  %v1065 = vadd.f32 %v993, %v1064
  %v1066 = vpop.f32.mrf.mxu0
  %1067 = vdwg.mxu0
  %vm1068 = vcmask 123904
  %v1069 = vsel %vm1068, %v1065, -inf
  %1070 = vmax.xlane.f32.xlu0 %v1069
  %v1071 = vpop.xlane.xlu0 %1070
  %v1072 = vsub.f32 %v1065, %v1071
  %v1073 = vmul.f32 %v1072, 1.442695
  %v1074 = vpow.pop %v1073
  %v1075 = vsel %vm1068, %v1074, 0.0
  %1076 = vadd.xlane.f32.xlu0 %v1075
  %v1077 = vpop.xlane.xlu0 %1076
  %v1078 = vlog2.pop %v1077
  %v1079 = vmul.f32 %v1078, 0.6931472
  %v1080 = vsub.f32 %v1072, %v1079
  %1081 = vst.msk [vmem:[%s8] sm:$0x3] %vm1068, %v1080
  %v1082 = vsel %vm1068, %v1080, -inf
  %1083 = vmax.xlane.f32.xlu0 %v1082
  %v1084 = vpop.xlane.xlu0 %1083
  %vm1085 = vcmp.eq.f32.partialorder %v1080, %v1084
  %v1086 = vsel %vm1085, %v268, 16
  %v1087 = vsel %vm1068, %v1086, 2147483647
  %v1088 = vand.u32 %v1087, 65535
  %v1089 = vshra.s32 %v1087, 16
  %v1090 = vcvt.s32.f32 %v1088
  %v1091 = vcvt.s32.f32 %v1089
  %1092 = vmin.xlane.f32.xlu0 %v1091
  %v1093 = vpop.xlane.xlu0 %1092
  %vm1094 = vcmp.eq.f32.partialorder %v1091, %v1093
  %v1095 = vsel %vm1094, %v1090, inf
  %1096 = vmin.xlane.f32.xlu0 %v1095
  %v1097 = vpop.xlane.xlu0 %1096
  %v1098 = vcvt.f32.s32 %v1097
  %v1099 = vcvt.f32.s32 %v1093
  %v1100 = vshll.u32 %v1099, 16
  %v1101 = vadd.s32 %v1100, %v1098
  %vm1102 = vcmp.eq.s32.totalorder %v268, %v1101
  %v1103 = vsel %vm1102, 1, 0
  %v1104 = vcvt.s32.f32 %v1103
  %v1105 = vld [vmem:[%s2] sm:$0xff]
  %v1106 = vld [vmem:[%s2 + $0x8] sm:$0xff]
  %vm1107 = vcmask 130048
  %v1109 = vsel %vm1107, %v1104, 0
  %1111 = vmatprep.subr.mxu0 0.0
  %1112 = vmatpush1.msra.mxu0 0.0
  %1113 = vmatprep.subr.mxu0 0.0
  %1114 = vmatpush1.msra.mxu0 0.0
  %1115 = vmatprep.subr.mxu0 0.0
  %1116 = vmatpush1.msra.mxu0 0.0
  %1117 = vmatprep.subr.mxu0 0.0
  %1118 = vmatpush1.msra.mxu0 0.0
  %1119 = vmatprep.subr.mxu0 0.0
  %1120 = vmatpush1.msra.mxu0 0.0
  %1121 = vmatprep.subr.mxu0 0.0
  %1122 = vmatpush1.msra.mxu0 0.0
  %1123 = vmatprep.subr.mxu0 0.0
  %1124 = vmatpush1.msra.mxu0 0.0
  %1125 = vmatprep.subr.mxu0 0.0
  %1126 = vmatpush1.msra.mxu0 0.0
  %1127 = vmatprep.subr.mxu0 0.0
  %1128 = vmatpush1.msra.mxu0 0.0
  %1129 = vmatprep.subr.mxu0 0.0
  %1130 = vmatpush1.msra.mxu0 0.0
  %1131 = vmatprep.subr.mxu0 0.0
  %1132 = vmatpush1.msra.mxu0 0.0
  %1133 = vmatprep.subr.mxu0 0.0
  %1134 = vmatpush1.msra.mxu0 0.0
  %1135 = vmatprep.subr.mxu0 0.0
  %1136 = vmatpush1.msra.mxu0 0.0
  %1137 = vmatprep.subr.mxu0 0.0
  %1138 = vmatpush1.msra.mxu0 0.0
  %1139 = vmatprep.subr.mxu0 0.0
  %1140 = vmatpush1.msra.mxu0 %v1106
  %1141 = vmatprep.subr.mxu0 0.0
  %1142 = vmatpush1.msra.mxu0 %v1105
  %1143 = vmatprep.subr.mxu0 0.0
  %1144 = vmatpush2.msra.mxu0 0.0
  %1145 = vmatprep.subr.mxu0 0.0
  %1146 = vmatpush2.msra.mxu0 0.0
  %1147 = vmatprep.subr.mxu0 0.0
  %1148 = vmatpush2.msra.mxu0 0.0
  %1149 = vmatprep.subr.mxu0 0.0
  %1150 = vmatpush2.msra.mxu0 0.0
  %1151 = vmatprep.subr.mxu0 0.0
  %1152 = vmatpush2.msra.mxu0 0.0
  %1153 = vmatprep.subr.mxu0 0.0
  %1154 = vmatpush2.msra.mxu0 0.0
  %1155 = vmatprep.subr.mxu0 0.0
  %1156 = vmatpush2.msra.mxu0 0.0
  %1157 = vmatprep.subr.mxu0 0.0
  %1158 = vmatpush2.msra.mxu0 0.0
  %1159 = vmatprep.subr.mxu0 0.0
  %1160 = vmatpush2.msra.mxu0 0.0
  %1161 = vmatprep.subr.mxu0 0.0
  %1162 = vmatpush2.msra.mxu0 0.0
  %1163 = vmatprep.subr.mxu0 0.0
  %1164 = vmatpush2.msra.mxu0 0.0
  %1165 = vmatprep.subr.mxu0 0.0
  %1166 = vmatpush2.msra.mxu0 0.0
  %1167 = vmatprep.subr.mxu0 0.0
  %1168 = vmatpush2.msra.mxu0 0.0
  %1169 = vmatprep.subr.mxu0 0.0
  %1170 = vmatpush2.msra.mxu0 0.0
  %1171 = vmatprep.subr.mxu0 0.0
  %1172 = vmatpush2.msra.mxu0 0.0
  %1173 = vmatprep.subr.mxu0 0.0
  %1174 = vmatpush2.msra.mxu0 0.0
  %1175 = vmatprep.mubr.f32.mxu0 0.0
  %1176 = vmatmul.mubr.f32.gmra.mxu0 %v1109
  %v1177 = vpop.f32.mrf.mxu0
  %v1178 = vadd.f32 0.0, %v1177
  %v1179 = vpop.f32.mrf.mxu0
  %1180 = vdwg.mxu0
  %1181 = vst.msk [vmem:[#allocation4] sm:$0x3] %vm33, %v1178
  %v1182 = vld [vmem:[%s0] sm:$0xff]
  %v1183 = vld [vmem:[%s0 + $0x8] sm:$0xff]
  %v1184 = vld [vmem:[#allocation4] sm:$0x3]
  %v1185 = vld [vmem:[#allocation2] sm:$0x3]
  %v1186 = vld [vmem:[%s3 + $0x20] sm:$0xff]
  %v1187 = vld [vmem:[%s3 + $0x28] sm:$0xff]
  %v1188 = vld [vmem:[%s3 + $0x30] sm:$0xff]
  %v1189 = vld [vmem:[%s3 + $0x38] sm:$0xff]
  %v1190 = vld [vmem:[%s3 + $0x41] sm:$0x1]
  %1192 = vrot.lane.b32.xlu0 %v1185, 64
  %v1193 = vpop.permute.xlu0 %1192
  %v1194 = vsel %vm46, %v1193, 0
  %1196 = vmatprep.subr.mxu0 0.0
  %1197 = vmatpush1.msra.mxu0 0.0
  %1198 = vmatprep.subr.mxu0 0.0
  %1199 = vmatpush1.msra.mxu0 0.0
  %1200 = vmatprep.subr.mxu0 0.0
  %1201 = vmatpush1.msra.mxu0 0.0
  %1202 = vmatprep.subr.mxu0 0.0
  %1203 = vmatpush1.msra.mxu0 0.0
  %1204 = vmatprep.subr.mxu0 0.0
  %1205 = vmatpush1.msra.mxu0 0.0
  %1206 = vmatprep.subr.mxu0 0.0
  %1207 = vmatpush1.msra.mxu0 0.0
  %1208 = vmatprep.subr.mxu0 0.0
  %1209 = vmatpush1.msra.mxu0 0.0
  %1210 = vmatprep.subr.mxu0 0.0
  %1211 = vmatpush1.msra.mxu0 0.0
  %1212 = vmatprep.subr.mxu0 0.0
  %1213 = vmatpush1.msra.mxu0 0.0
  %1214 = vmatprep.subr.mxu0 0.0
  %1215 = vmatpush1.msra.mxu0 0.0
  %1216 = vmatprep.subr.mxu0 0.0
  %1217 = vmatpush1.msra.mxu0 0.0
  %1218 = vmatprep.subr.mxu0 0.0
  %1219 = vmatpush1.msra.mxu0 0.0
  %1220 = vmatprep.subr.mxu0 0.0
  %1221 = vmatpush1.msra.mxu0 %v1189
  %1222 = vmatprep.subr.mxu0 0.0
  %1223 = vmatpush1.msra.mxu0 %v1188
  %1224 = vmatprep.subr.mxu0 0.0
  %1225 = vmatpush1.msra.mxu0 %v1187
  %1226 = vmatprep.subr.mxu0 0.0
  %1227 = vmatpush1.msra.mxu0 %v1186
  %1228 = vmatprep.subr.mxu0 0.0
  %1229 = vmatpush2.msra.mxu0 0.0
  %1230 = vmatprep.subr.mxu0 0.0
  %1231 = vmatpush2.msra.mxu0 0.0
  %1232 = vmatprep.subr.mxu0 0.0
  %1233 = vmatpush2.msra.mxu0 0.0
  %1234 = vmatprep.subr.mxu0 0.0
  %1235 = vmatpush2.msra.mxu0 0.0
  %1236 = vmatprep.subr.mxu0 0.0
  %1237 = vmatpush2.msra.mxu0 0.0
  %1238 = vmatprep.subr.mxu0 0.0
  %1239 = vmatpush2.msra.mxu0 0.0
  %1240 = vmatprep.subr.mxu0 0.0
  %1241 = vmatpush2.msra.mxu0 0.0
  %1242 = vmatprep.subr.mxu0 0.0
  %1243 = vmatpush2.msra.mxu0 0.0
  %1244 = vmatprep.subr.mxu0 0.0
  %1245 = vmatpush2.msra.mxu0 0.0
  %1246 = vmatprep.subr.mxu0 0.0
  %1247 = vmatpush2.msra.mxu0 0.0
  %1248 = vmatprep.subr.mxu0 0.0
  %1249 = vmatpush2.msra.mxu0 0.0
  %1250 = vmatprep.subr.mxu0 0.0
  %1251 = vmatpush2.msra.mxu0 0.0
  %1252 = vmatprep.subr.mxu0 0.0
  %1253 = vmatpush2.msra.mxu0 0.0
  %1254 = vmatprep.subr.mxu0 0.0
  %1255 = vmatpush2.msra.mxu0 0.0
  %1256 = vmatprep.subr.mxu0 0.0
  %1257 = vmatpush2.msra.mxu0 0.0
  %1258 = vmatprep.subr.mxu0 0.0
  %1259 = vmatpush2.msra.mxu0 0.0
  %1260 = vmatprep.mubr.f32.mxu0 0.0
  %1261 = vmatmul.mubr.f32.gmra.mxu0 %v1194
  %v1262 = vpop.f32.mrf.mxu0
  %v1263 = vadd.f32 0.0, %v1262
  %v1264 = vpop.f32.mrf.mxu0
  %1265 = vdwg.mxu0
  %v1266 = vld [vmem:[#allocation5] sm:$0xff]
  %v1267 = vld [vmem:[#allocation5 + $0x8] sm:$0xff]
  %v1270 = vunpack.c.l.s4 1966171168
  %v1271 = vunpack.c.0.s8 %v1270
  %v1272 = vlaneseq
  %v1273 = vshrl.u32 %v1272, 7
  %v1274 = vsub.s32 %v1271, %v1273
  %v1275 = vrot.slane %v1263, %v1274
  %v1276 = vcombine.high %v1275, %v1275
  %v1278 = vunpack.c.l.s4 1966171168
  %v1279 = vunpack.c.0.s8 %v1278
  %v1280 = vlaneseq
  %v1281 = vshrl.u32 %v1280, 7
  %v1282 = vsub.s32 %v1279, %v1281
  %v1283 = vrot.slane %v1275, %v1282
  %v1285 = vunpack.c.l.s4 1966171168
  %v1286 = vunpack.c.0.s8 %v1285
  %v1287 = vlaneseq
  %v1288 = vshrl.u32 %v1287, 7
  %v1289 = vsub.s32 %v1286, %v1288
  %v1290 = vrot.slane %v1276, %v1289
  %v1291 = vlaneseq
  %v1292 = vshrl.u32 %v1291, 7
  %v1293 = vsub.s32 0, %v1292
  %v1294 = vrot.slane %v1283, %v1293
  %v1295 = vlaneseq
  %v1296 = vshrl.u32 %v1295, 7
  %v1297 = vsub.s32 0, %v1296
  %v1298 = vrot.slane %v1290, %v1297
  %v1301 = vadd.f32 %v1266, %v1294
  %v1302 = vadd.f32 %v1267, %v1298
  %v1303 = vmax.f32 %v1301, 0.0
  %v1304 = vmax.f32 %v1302, 0.0
  %v1305 = vlaneseq
  %v1306 = vshrl.u32 %v1305, 7
  %v1307 = vsub.s32 0, %v1306
  %v1308 = vrot.slane %v1190, %v1307
  %v1309 = vmul.f32 %v1303, %v1308
  %v1310 = vmul.f32 %v1304, %v1308
  %v1311 = vsel %vm46, %v1309, 0.0
  %1312 = vadd.xlane.f32.xlu0 %v1311
  %v1313 = vpop.xlane.xlu0 %1312
  %v1314 = vsel %vm46, %v1310, 0.0
  %1315 = vadd.xlane.f32.xlu0 %v1314
  %v1316 = vpop.xlane.xlu0 %1315
  %v1319 = vlaneseq
  %v1320 = vshrl.u32 %v1319, 7
  %v1321 = vsub.s32 %v268, %v1320
  %v1322 = vrot.slane %v1313, %v1321
  %v1323 = vlaneseq
  %v1324 = vshrl.u32 %v1323, 7
  %v1325 = vsub.s32 %v268, %v1324
  %v1326 = vrot.slane %v1316, %v1325
  %v1327 = vsel %vm277, %v1326, %v1322
  %v1329 = vsel %vm280, %v1327, -inf
  %1330 = vmax.xlane.f32.xlu0 %v1329
  %v1331 = vpop.xlane.xlu0 %1330
  %v1333 = vlaneseq
  %v1334 = vshrl.u32 %v1333, 7
  %v1335 = vsub.s32 0, %v1334
  %v1336 = vrot.slane %v1331, %v1335
  %v1337 = vlaneseq
  %v1338 = vshrl.u32 %v1337, 7
  %v1339 = vsub.s32 1, %v1338
  %v1340 = vrot.slane %v1331, %v1339
  %v1343 = vsub.f32 %v1313, %v1336
  %v1344 = vsub.f32 %v1316, %v1340
  %v1345 = vmul.f32 %v1343, 1.442695
  %v1346 = vpow.pop %v1345
  %v1347 = vmul.f32 %v1344, 1.442695
  %v1348 = vpow.pop %v1347
  %1351 = vset.pattern.permute.xlu0 0
  %1352 = vperm.xlu0 %1351, %v1346
  %v1353 = vpop.permute.xlu0 %1352
  %1354 = vset.pattern.permute.xlu0 0
  %1355 = vperm.xlu0 %1354, %v1348
  %v1356 = vpop.permute.xlu0 %1355
  %v1357 = vlaneseq
  %v1358 = vshrl.u32 %v1357, 7
  %v1359 = vsub.s32 %v268, %v1358
  %v1360 = vrot.slane %v1353, %v1359
  %v1361 = vlaneseq
  %v1362 = vshrl.u32 %v1361, 7
  %v1363 = vsub.s32 %v268, %v1362
  %v1364 = vrot.slane %v1356, %v1363
  %v1365 = vsel %vm277, %v1364, %v1360
  %v1367 = vsel %vm280, %v1365, 0.0
  %1368 = vadd.xlane.f32.xlu0 %v1367
  %v1369 = vpop.xlane.xlu0 %1368
  %v1370 = vlog2.pop %v1369
  %v1371 = vmul.f32 %v1370, 0.6931472
  %v1373 = vlaneseq
  %v1374 = vshrl.u32 %v1373, 7
  %v1375 = vsub.s32 0, %v1374
  %v1376 = vrot.slane %v1371, %v1375
  %v1377 = vlaneseq
  %v1378 = vshrl.u32 %v1377, 7
  %v1379 = vsub.s32 1, %v1378
  %v1380 = vrot.slane %v1371, %v1379
  %v1383 = vsub.f32 %v1343, %v1376
  %v1384 = vsub.f32 %v1344, %v1380
  %1386 = vset.pattern.permute.xlu0 0
  %1387 = vperm.xlu0 %1386, %v1383
  %v1388 = vpop.permute.xlu0 %1387
  %1391 = vset.pattern.permute.xlu0 0
  %1392 = vperm.xlu0 %1391, %v1384
  %v1393 = vpop.permute.xlu0 %1392
  %v1395 = vmul.f32 %v1388, %v1182
  %v1396 = vmul.f32 %v1393, %v1183
  %v1397 = vsel %vm46, %v1395, 0.0
  %v1398 = vrot.slane %v1397, 4
  %v1399 = vadd.f32 %v1397, %v1398
  %v1400 = vrot.slane %v1399, 2
  %v1401 = vadd.f32 %v1399, %v1400
  %v1402 = vrot.slane %v1401, 1
  %v1403 = vadd.f32 %v1401, %v1402
  %v1404 = vsel %vm46, %v1396, 0.0
  %v1405 = vrot.slane %v1404, 4
  %v1406 = vadd.f32 %v1404, %v1405
  %v1407 = vrot.slane %v1406, 2
  %v1408 = vadd.f32 %v1406, %v1407
  %v1409 = vrot.slane %v1408, 1
  %v1410 = vadd.f32 %v1408, %v1409
  %v1411 = vld [vmem:[#allocation2] sm:$0x3]
  %v1412 = vld [vmem:[%s5] sm:$0xff]
  %v1413 = vld [vmem:[%s5 + $0x8] sm:$0xff]
  %v1414 = vld [vmem:[%s5 + $0x10] sm:$0xff]
  %v1415 = vld [vmem:[%s5 + $0x18] sm:$0xff]
  %v1416 = vld [vmem:[%s5 + $0x20] sm:$0xff]
  %v1417 = vld [vmem:[%s5 + $0x28] sm:$0xff]
  %v1418 = vld [vmem:[%s5 + $0x30] sm:$0xff]
  %v1419 = vld [vmem:[%s5 + $0x38] sm:$0xff]
  %v1420 = vld [vmem:[%s5 + $0x40] sm:$0xff]
  %v1421 = vld [vmem:[%s5 + $0x48] sm:$0xff]
  %v1422 = vld [vmem:[%s5 + $0x50] sm:$0xff]
  %v1423 = vld [vmem:[%s5 + $0x58] sm:$0xff]
  %v1424 = vld [vmem:[%s5 + $0x60] sm:$0xff]
  %v1425 = vld [vmem:[%s5 + $0x68] sm:$0xff]
  %v1426 = vld [vmem:[%s5 + $0x70] sm:$0xff]
  %v1427 = vld [vmem:[%s5 + $0x78] sm:$0xff]
  %v1428 = vld [vmem:[%s5 + $0x80] sm:$0xff]
  %v1429 = vld [vmem:[%s5 + $0x88] sm:$0xff]
  %v1430 = vld [vmem:[%s5 + $0x90] sm:$0xff]
  %v1431 = vld [vmem:[%s5 + $0x98] sm:$0xff]
  %v1432 = vld [vmem:[%s5 + $0xa0] sm:$0xff]
  %v1433 = vld [vmem:[%s5 + $0xa8] sm:$0xff]
  %v1434 = vld [vmem:[%s5 + $0xb0] sm:$0xff]
  %v1435 = vld [vmem:[%s5 + $0xb8] sm:$0xff]
  %v1436 = vld [vmem:[%s5 + $0xc0] sm:$0xff]
  %v1437 = vld [vmem:[%s5 + $0xc8] sm:$0xff]
  %v1438 = vld [vmem:[%s5 + $0xd0] sm:$0xff]
  %v1439 = vld [vmem:[%s5 + $0xd8] sm:$0xff]
  %v1440 = vld [vmem:[%s5 + $0xe0] sm:$0xff]
  %v1441 = vld [vmem:[%s5 + $0xe8] sm:$0xff]
  %v1442 = vld [vmem:[%s5 + $0xf0] sm:$0xff]
  %v1443 = vld [vmem:[%s5 + $0xf8] sm:$0xff]
  %v1444 = vld [vmem:[%s5 + $0x100] sm:$0xff]
  %v1445 = vld [vmem:[%s5 + $0x108] sm:$0xff]
  %v1446 = vld [vmem:[%s5 + $0x110] sm:$0xff]
  %v1447 = vld [vmem:[%s5 + $0x118] sm:$0xff]
  %v1449 = vsel %vm400, %v1411, 0
  %1451 = vmatprep.subr.mxu0 0.0
  %1452 = vmatpush1.msra.mxu0 0.0
  %1453 = vmatprep.subr.mxu0 0.0
  %1454 = vmatpush1.msra.mxu0 0.0
  %1455 = vmatprep.subr.mxu0 0.0
  %1456 = vmatpush1.msra.mxu0 0.0
  %1457 = vmatprep.subr.mxu0 0.0
  %1458 = vmatpush1.msra.mxu0 0.0
  %1459 = vmatprep.subr.mxu0 %v1446
  %1460 = vmatpush1.msra.mxu0 %v1445
  %1461 = vmatprep.subr.mxu0 %v1443
  %1462 = vmatpush1.msra.mxu0 %v1442
  %1463 = vmatprep.subr.mxu0 %v1440
  %1464 = vmatpush1.msra.mxu0 %v1439
  %1465 = vmatprep.subr.mxu0 %v1437
  %1466 = vmatpush1.msra.mxu0 %v1436
  %1467 = vmatprep.subr.mxu0 %v1434
  %1468 = vmatpush1.msra.mxu0 %v1433
  %1469 = vmatprep.subr.mxu0 %v1431
  %1470 = vmatpush1.msra.mxu0 %v1430
  %1471 = vmatprep.subr.mxu0 %v1428
  %1472 = vmatpush1.msra.mxu0 %v1427
  %1473 = vmatprep.subr.mxu0 %v1425
  %1474 = vmatpush1.msra.mxu0 %v1424
  %1475 = vmatprep.subr.mxu0 %v1422
  %1476 = vmatpush1.msra.mxu0 %v1421
  %1477 = vmatprep.subr.mxu0 %v1419
  %1478 = vmatpush1.msra.mxu0 %v1418
  %1479 = vmatprep.subr.mxu0 %v1416
  %1480 = vmatpush1.msra.mxu0 %v1415
  %1481 = vmatprep.subr.mxu0 %v1413
  %1482 = vmatpush1.msra.mxu0 %v1412
  %1483 = vmatprep.subr.mxu0 0.0
  %1484 = vmatpush2.msra.mxu0 0.0
  %1485 = vmatprep.subr.mxu0 0.0
  %1486 = vmatpush2.msra.mxu0 0.0
  %1487 = vmatprep.subr.mxu0 0.0
  %1488 = vmatpush2.msra.mxu0 0.0
  %1489 = vmatprep.subr.mxu0 0.0
  %1490 = vmatpush2.msra.mxu0 0.0
  %1491 = vmatprep.subr.mxu0 0.0
  %1492 = vmatpush2.msra.mxu0 0.0
  %1493 = vmatprep.subr.mxu0 0.0
  %1494 = vmatpush2.msra.mxu0 0.0
  %1495 = vmatprep.subr.mxu0 0.0
  %1496 = vmatpush2.msra.mxu0 0.0
  %1497 = vmatprep.subr.mxu0 0.0
  %1498 = vmatpush2.msra.mxu0 0.0
  %1499 = vmatprep.subr.mxu0 0.0
  %1500 = vmatpush2.msra.mxu0 0.0
  %1501 = vmatprep.subr.mxu0 0.0
  %1502 = vmatpush2.msra.mxu0 0.0
  %1503 = vmatprep.subr.mxu0 0.0
  %1504 = vmatpush2.msra.mxu0 0.0
  %1505 = vmatprep.subr.mxu0 0.0
  %1506 = vmatpush2.msra.mxu0 0.0
  %1507 = vmatprep.subr.mxu0 0.0
  %1508 = vmatpush2.msra.mxu0 0.0
  %1509 = vmatprep.subr.mxu0 0.0
  %1510 = vmatpush2.msra.mxu0 0.0
  %1511 = vmatprep.subr.mxu0 0.0
  %1512 = vmatpush2.msra.mxu0 0.0
  %1513 = vmatprep.subr.mxu0 0.0
  %1514 = vmatpush2.msra.mxu0 0.0
  %1515 = vmatprep.mubr.f32.mxu0 0.0
  %1516 = vmatmul.mubr.f32.gmra.mxu0 %v1449
  %v1517 = vpop.f32.mrf.mxu0
  %v1518 = vadd.f32 0.0, %v1517
  %v1519 = vpop.f32.mrf.mxu0
  %v1520 = vadd.f32 0.0, %v1519
  %1521 = vdwg.mxu0
  %1522 = vmatprep.subr.mxu0 0.0
  %1523 = vmatpush1.msra.mxu0 0.0
  %1524 = vmatprep.subr.mxu0 0.0
  %1525 = vmatpush1.msra.mxu0 0.0
  %1526 = vmatprep.subr.mxu0 0.0
  %1527 = vmatpush1.msra.mxu0 0.0
  %1528 = vmatprep.subr.mxu0 0.0
  %1529 = vmatpush1.msra.mxu0 0.0
  %1530 = vmatprep.subr.mxu0 0.0
  %1531 = vmatpush1.msra.mxu0 %v1447
  %1532 = vmatprep.subr.mxu0 0.0
  %1533 = vmatpush1.msra.mxu0 %v1444
  %1534 = vmatprep.subr.mxu0 0.0
  %1535 = vmatpush1.msra.mxu0 %v1441
  %1536 = vmatprep.subr.mxu0 0.0
  %1537 = vmatpush1.msra.mxu0 %v1438
  %1538 = vmatprep.subr.mxu0 0.0
  %1539 = vmatpush1.msra.mxu0 %v1435
  %1540 = vmatprep.subr.mxu0 0.0
  %1541 = vmatpush1.msra.mxu0 %v1432
  %1542 = vmatprep.subr.mxu0 0.0
  %1543 = vmatpush1.msra.mxu0 %v1429
  %1544 = vmatprep.subr.mxu0 0.0
  %1545 = vmatpush1.msra.mxu0 %v1426
  %1546 = vmatprep.subr.mxu0 0.0
  %1547 = vmatpush1.msra.mxu0 %v1423
  %1548 = vmatprep.subr.mxu0 0.0
  %1549 = vmatpush1.msra.mxu0 %v1420
  %1550 = vmatprep.subr.mxu0 0.0
  %1551 = vmatpush1.msra.mxu0 %v1417
  %1552 = vmatprep.subr.mxu0 0.0
  %1553 = vmatpush1.msra.mxu0 %v1414
  %1554 = vmatprep.subr.mxu0 0.0
  %1555 = vmatpush2.msra.mxu0 0.0
  %1556 = vmatprep.subr.mxu0 0.0
  %1557 = vmatpush2.msra.mxu0 0.0
  %1558 = vmatprep.subr.mxu0 0.0
  %1559 = vmatpush2.msra.mxu0 0.0
  %1560 = vmatprep.subr.mxu0 0.0
  %1561 = vmatpush2.msra.mxu0 0.0
  %1562 = vmatprep.subr.mxu0 0.0
  %1563 = vmatpush2.msra.mxu0 0.0
  %1564 = vmatprep.subr.mxu0 0.0
  %1565 = vmatpush2.msra.mxu0 0.0
  %1566 = vmatprep.subr.mxu0 0.0
  %1567 = vmatpush2.msra.mxu0 0.0
  %1568 = vmatprep.subr.mxu0 0.0
  %1569 = vmatpush2.msra.mxu0 0.0
  %1570 = vmatprep.subr.mxu0 0.0
  %1571 = vmatpush2.msra.mxu0 0.0
  %1572 = vmatprep.subr.mxu0 0.0
  %1573 = vmatpush2.msra.mxu0 0.0
  %1574 = vmatprep.subr.mxu0 0.0
  %1575 = vmatpush2.msra.mxu0 0.0
  %1576 = vmatprep.subr.mxu0 0.0
  %1577 = vmatpush2.msra.mxu0 0.0
  %1578 = vmatprep.subr.mxu0 0.0
  %1579 = vmatpush2.msra.mxu0 0.0
  %1580 = vmatprep.subr.mxu0 0.0
  %1581 = vmatpush2.msra.mxu0 0.0
  %1582 = vmatprep.subr.mxu0 0.0
  %1583 = vmatpush2.msra.mxu0 0.0
  %1584 = vmatprep.subr.mxu0 0.0
  %1585 = vmatpush2.msra.mxu0 0.0
  %1586 = vmatprep.mubr.f32.mxu0 0.0
  %1587 = vmatmul.mubr.f32.gmra.mxu0 %v1449
  %v1588 = vpop.f32.mrf.mxu0
  %v1589 = vadd.f32 0.0, %v1588
  %v1590 = vpop.f32.mrf.mxu0
  %1591 = vdwg.mxu0
  %v1592 = vld [vmem:[%s4] sm:$0xff]
  %v1593 = vld [vmem:[%s4 + $0x8] sm:$0xff]
  %v1594 = vld [vmem:[%s4 + $0x10] sm:$0xff]
  %v1595 = vld [vmem:[%s4 + $0x18] sm:$0xff]
  %v1596 = vld [vmem:[%s4 + $0x20] sm:$0xff]
  %v1597 = vld [vmem:[%s4 + $0x28] sm:$0xff]
  %v1598 = vld [vmem:[%s4 + $0x30] sm:$0xff]
  %v1599 = vld [vmem:[%s4 + $0x38] sm:$0xff]
  %v1602 = vsel %vm277, %v1410, %v1403
  %v1603 = vsel %vm46, %v1602, 0
  %1605 = vmatprep.subr.mxu0 0.0
  %1606 = vmatpush1.msra.mxu0 0.0
  %1607 = vmatprep.subr.mxu0 0.0
  %1608 = vmatpush1.msra.mxu0 0.0
  %1609 = vmatprep.subr.mxu0 0.0
  %1610 = vmatpush1.msra.mxu0 0.0
  %1611 = vmatprep.subr.mxu0 0.0
  %1612 = vmatpush1.msra.mxu0 0.0
  %1613 = vmatprep.subr.mxu0 0.0
  %1614 = vmatpush1.msra.mxu0 0.0
  %1615 = vmatprep.subr.mxu0 0.0
  %1616 = vmatpush1.msra.mxu0 0.0
  %1617 = vmatprep.subr.mxu0 0.0
  %1618 = vmatpush1.msra.mxu0 0.0
  %1619 = vmatprep.subr.mxu0 0.0
  %1620 = vmatpush1.msra.mxu0 0.0
  %1621 = vmatprep.subr.mxu0 0.0
  %1622 = vmatpush1.msra.mxu0 0.0
  %1623 = vmatprep.subr.mxu0 0.0
  %1624 = vmatpush1.msra.mxu0 0.0
  %1625 = vmatprep.subr.mxu0 0.0
  %1626 = vmatpush1.msra.mxu0 0.0
  %1627 = vmatprep.subr.mxu0 0.0
  %1628 = vmatpush1.msra.mxu0 0.0
  %1629 = vmatprep.subr.mxu0 0.0
  %1630 = vmatpush1.msra.mxu0 %v1599
  %1631 = vmatprep.subr.mxu0 0.0
  %1632 = vmatpush1.msra.mxu0 %v1598
  %1633 = vmatprep.subr.mxu0 0.0
  %1634 = vmatpush1.msra.mxu0 %v1597
  %1635 = vmatprep.subr.mxu0 0.0
  %1636 = vmatpush1.msra.mxu0 %v1596
  %1637 = vmatprep.subr.mxu0 0.0
  %1638 = vmatpush2.msra.mxu0 0.0
  %1639 = vmatprep.subr.mxu0 0.0
  %1640 = vmatpush2.msra.mxu0 0.0
  %1641 = vmatprep.subr.mxu0 0.0
  %1642 = vmatpush2.msra.mxu0 0.0
  %1643 = vmatprep.subr.mxu0 0.0
  %1644 = vmatpush2.msra.mxu0 0.0
  %1645 = vmatprep.subr.mxu0 0.0
  %1646 = vmatpush2.msra.mxu0 0.0
  %1647 = vmatprep.subr.mxu0 0.0
  %1648 = vmatpush2.msra.mxu0 0.0
  %1649 = vmatprep.subr.mxu0 0.0
  %1650 = vmatpush2.msra.mxu0 0.0
  %1651 = vmatprep.subr.mxu0 0.0
  %1652 = vmatpush2.msra.mxu0 0.0
  %1653 = vmatprep.subr.mxu0 0.0
  %1654 = vmatpush2.msra.mxu0 0.0
  %1655 = vmatprep.subr.mxu0 0.0
  %1656 = vmatpush2.msra.mxu0 0.0
  %1657 = vmatprep.subr.mxu0 0.0
  %1658 = vmatpush2.msra.mxu0 0.0
  %1659 = vmatprep.subr.mxu0 0.0
  %1660 = vmatpush2.msra.mxu0 0.0
  %1661 = vmatprep.subr.mxu0 0.0
  %1662 = vmatpush2.msra.mxu0 0.0
  %1663 = vmatprep.subr.mxu0 0.0
  %1664 = vmatpush2.msra.mxu0 0.0
  %1665 = vmatprep.subr.mxu0 0.0
  %1666 = vmatpush2.msra.mxu0 0.0
  %1667 = vmatprep.subr.mxu0 0.0
  %1668 = vmatpush2.msra.mxu0 0.0
  %1669 = vmatprep.mubr.f32.mxu0 0.0
  %1670 = vmatmul.mubr.f32.gmra.mxu0 %v1603
  %v1671 = vpop.f32.mrf.mxu0
  %v1672 = vadd.f32 0.0, %v1671
  %v1673 = vpop.f32.mrf.mxu0
  %1674 = vdwg.mxu0
  %v1676 = vsel %vm46, %v1184, 0
  %1678 = vmatprep.subr.mxu0 0.0
  %1679 = vmatpush1.msra.mxu0 0.0
  %1680 = vmatprep.subr.mxu0 0.0
  %1681 = vmatpush1.msra.mxu0 0.0
  %1682 = vmatprep.subr.mxu0 0.0
  %1683 = vmatpush1.msra.mxu0 0.0
  %1684 = vmatprep.subr.mxu0 0.0
  %1685 = vmatpush1.msra.mxu0 0.0
  %1686 = vmatprep.subr.mxu0 0.0
  %1687 = vmatpush1.msra.mxu0 0.0
  %1688 = vmatprep.subr.mxu0 0.0
  %1689 = vmatpush1.msra.mxu0 0.0
  %1690 = vmatprep.subr.mxu0 0.0
  %1691 = vmatpush1.msra.mxu0 0.0
  %1692 = vmatprep.subr.mxu0 0.0
  %1693 = vmatpush1.msra.mxu0 0.0
  %1694 = vmatprep.subr.mxu0 0.0
  %1695 = vmatpush1.msra.mxu0 0.0
  %1696 = vmatprep.subr.mxu0 0.0
  %1697 = vmatpush1.msra.mxu0 0.0
  %1698 = vmatprep.subr.mxu0 0.0
  %1699 = vmatpush1.msra.mxu0 0.0
  %1700 = vmatprep.subr.mxu0 0.0
  %1701 = vmatpush1.msra.mxu0 0.0
  %1702 = vmatprep.subr.mxu0 0.0
  %1703 = vmatpush1.msra.mxu0 %v1595
  %1704 = vmatprep.subr.mxu0 0.0
  %1705 = vmatpush1.msra.mxu0 %v1594
  %1706 = vmatprep.subr.mxu0 0.0
  %1707 = vmatpush1.msra.mxu0 %v1593
  %1708 = vmatprep.subr.mxu0 0.0
  %1709 = vmatpush1.msra.mxu0 %v1592
  %1710 = vmatprep.subr.mxu0 0.0
  %1711 = vmatpush2.msra.mxu0 0.0
  %1712 = vmatprep.subr.mxu0 0.0
  %1713 = vmatpush2.msra.mxu0 0.0
  %1714 = vmatprep.subr.mxu0 0.0
  %1715 = vmatpush2.msra.mxu0 0.0
  %1716 = vmatprep.subr.mxu0 0.0
  %1717 = vmatpush2.msra.mxu0 0.0
  %1718 = vmatprep.subr.mxu0 0.0
  %1719 = vmatpush2.msra.mxu0 0.0
  %1720 = vmatprep.subr.mxu0 0.0
  %1721 = vmatpush2.msra.mxu0 0.0
  %1722 = vmatprep.subr.mxu0 0.0
  %1723 = vmatpush2.msra.mxu0 0.0
  %1724 = vmatprep.subr.mxu0 0.0
  %1725 = vmatpush2.msra.mxu0 0.0
  %1726 = vmatprep.subr.mxu0 0.0
  %1727 = vmatpush2.msra.mxu0 0.0
  %1728 = vmatprep.subr.mxu0 0.0
  %1729 = vmatpush2.msra.mxu0 0.0
  %1730 = vmatprep.subr.mxu0 0.0
  %1731 = vmatpush2.msra.mxu0 0.0
  %1732 = vmatprep.subr.mxu0 0.0
  %1733 = vmatpush2.msra.mxu0 0.0
  %1734 = vmatprep.subr.mxu0 0.0
  %1735 = vmatpush2.msra.mxu0 0.0
  %1736 = vmatprep.subr.mxu0 0.0
  %1737 = vmatpush2.msra.mxu0 0.0
  %1738 = vmatprep.subr.mxu0 0.0
  %1739 = vmatpush2.msra.mxu0 0.0
  %1740 = vmatprep.subr.mxu0 0.0
  %1741 = vmatpush2.msra.mxu0 0.0
  %1742 = vmatprep.mubr.f32.mxu0 0.0
  %1743 = vmatmul.mubr.f32.gmra.mxu0 %v1676
  %v1744 = vpop.f32.mrf.mxu0
  %v1745 = vadd.f32 %v1672, %v1744
  %v1746 = vpop.f32.mrf.mxu0
  %1747 = vdwg.mxu0
  %v1748 = vadd.f32 %v1745, %v1518
  %v1749 = vld [vmem:[%s6] sm:$0x1]
  %v1750 = vlaneseq
  %v1751 = vshrl.u32 %v1750, 7
  %v1752 = vsub.s32 0, %v1751
  %v1753 = vrot.slane %v1749, %v1752
  %v1754 = vadd.f32 %v1748, %v1753
  %v1755 = vxor.u32 %v1754, 2147483648
  %v1756 = vmul.f32 %v1755, 1.442695
  %v1757 = vpow.pop %v1756
  %v1758 = vadd.f32 %v1757, 1.0
  %v1759 = vrcp.pop %v1758
  %v1760 = vmul.f32 1.0, %v1759
  %v1761 = vtanh.pop %v1754
  %v1762 = vld [vmem:[#allocation3] sm:$0x3]
  %1764 = vrot.lane.b32.xlu0 %v1762, 32
  %v1765 = vpop.permute.xlu0 %1764
  %v1767 = vmul.f32 %v1760, %v1765
  %1769 = vrot.lane.b32.xlu0 %v1761, 64
  %v1770 = vpop.permute.xlu0 %1769
  %v1772 = vmul.f32 %v1760, %v1770
  %1774 = vrot.lane.b32.xlu0 %v1772, 32
  %v1775 = vpop.permute.xlu0 %1774
  %v1777 = vadd.f32 %v1767, %v1775
  %v1778 = vtanh.pop %v1777
  %1780 = vrot.lane.b32.xlu0 %v1778, 64
  %v1781 = vpop.permute.xlu0 %1780
  %v1783 = vmul.f32 %v1760, %v1781
  %1785 = vrot.lane.b32.xlu0 %v1777, 96
  %v1786 = vpop.permute.xlu0 %1785
  %1788 = vst.msk [vmem:[#allocation3] sm:$0x3] %vm33, %v1786
  %1790 = vrot.lane.b32.xlu0 %v1783, 32
  %v1791 = vpop.permute.xlu0 %1790
  %1793 = vst.msk [vmem:[#allocation2] sm:$0x3] %vm33, %v1791
  %v1794 = vld [vmem:[%s4 + $0x40] sm:$0xff]
  %v1795 = vld [vmem:[%s4 + $0x48] sm:$0xff]
  %v1796 = vld [vmem:[%s4 + $0x50] sm:$0xff]
  %v1797 = vld [vmem:[%s4 + $0x58] sm:$0xff]
  %v1798 = vsel %vm46, %v1791, 0
  %1800 = vmatprep.subr.mxu0 0.0
  %1801 = vmatpush1.msra.mxu0 0.0
  %1802 = vmatprep.subr.mxu0 0.0
  %1803 = vmatpush1.msra.mxu0 0.0
  %1804 = vmatprep.subr.mxu0 0.0
  %1805 = vmatpush1.msra.mxu0 0.0
  %1806 = vmatprep.subr.mxu0 0.0
  %1807 = vmatpush1.msra.mxu0 0.0
  %1808 = vmatprep.subr.mxu0 0.0
  %1809 = vmatpush1.msra.mxu0 0.0
  %1810 = vmatprep.subr.mxu0 0.0
  %1811 = vmatpush1.msra.mxu0 0.0
  %1812 = vmatprep.subr.mxu0 0.0
  %1813 = vmatpush1.msra.mxu0 0.0
  %1814 = vmatprep.subr.mxu0 0.0
  %1815 = vmatpush1.msra.mxu0 0.0
  %1816 = vmatprep.subr.mxu0 0.0
  %1817 = vmatpush1.msra.mxu0 0.0
  %1818 = vmatprep.subr.mxu0 0.0
  %1819 = vmatpush1.msra.mxu0 0.0
  %1820 = vmatprep.subr.mxu0 0.0
  %1821 = vmatpush1.msra.mxu0 0.0
  %1822 = vmatprep.subr.mxu0 0.0
  %1823 = vmatpush1.msra.mxu0 0.0
  %1824 = vmatprep.subr.mxu0 0.0
  %1825 = vmatpush1.msra.mxu0 %v1797
  %1826 = vmatprep.subr.mxu0 0.0
  %1827 = vmatpush1.msra.mxu0 %v1796
  %1828 = vmatprep.subr.mxu0 0.0
  %1829 = vmatpush1.msra.mxu0 %v1795
  %1830 = vmatprep.subr.mxu0 0.0
  %1831 = vmatpush1.msra.mxu0 %v1794
  %1832 = vmatprep.subr.mxu0 0.0
  %1833 = vmatpush2.msra.mxu0 0.0
  %1834 = vmatprep.subr.mxu0 0.0
  %1835 = vmatpush2.msra.mxu0 0.0
  %1836 = vmatprep.subr.mxu0 0.0
  %1837 = vmatpush2.msra.mxu0 0.0
  %1838 = vmatprep.subr.mxu0 0.0
  %1839 = vmatpush2.msra.mxu0 0.0
  %1840 = vmatprep.subr.mxu0 0.0
  %1841 = vmatpush2.msra.mxu0 0.0
  %1842 = vmatprep.subr.mxu0 0.0
  %1843 = vmatpush2.msra.mxu0 0.0
  %1844 = vmatprep.subr.mxu0 0.0
  %1845 = vmatpush2.msra.mxu0 0.0
  %1846 = vmatprep.subr.mxu0 0.0
  %1847 = vmatpush2.msra.mxu0 0.0
  %1848 = vmatprep.subr.mxu0 0.0
  %1849 = vmatpush2.msra.mxu0 0.0
  %1850 = vmatprep.subr.mxu0 0.0
  %1851 = vmatpush2.msra.mxu0 0.0
  %1852 = vmatprep.subr.mxu0 0.0
  %1853 = vmatpush2.msra.mxu0 0.0
  %1854 = vmatprep.subr.mxu0 0.0
  %1855 = vmatpush2.msra.mxu0 0.0
  %1856 = vmatprep.subr.mxu0 0.0
  %1857 = vmatpush2.msra.mxu0 0.0
  %1858 = vmatprep.subr.mxu0 0.0
  %1859 = vmatpush2.msra.mxu0 0.0
  %1860 = vmatprep.subr.mxu0 0.0
  %1861 = vmatpush2.msra.mxu0 0.0
  %1862 = vmatprep.subr.mxu0 0.0
  %1863 = vmatpush2.msra.mxu0 0.0
  %1864 = vmatprep.mubr.f32.mxu0 0.0
  %1865 = vmatmul.mubr.f32.gmra.mxu0 %v1798
  %v1866 = vpop.f32.mrf.mxu0
  %v1867 = vadd.f32 %v1520, %v1866
  %v1868 = vpop.f32.mrf.mxu0
  %1869 = vdwg.mxu0
  %v1870 = vld [vmem:[%s6 + $0x1] sm:$0x1]
  %v1871 = vlaneseq
  %v1872 = vshrl.u32 %v1871, 7
  %v1873 = vsub.s32 0, %v1872
  %v1874 = vrot.slane %v1870, %v1873
  %v1875 = vadd.f32 %v1867, %v1874
  %v1876 = vxor.u32 %v1875, 2147483648
  %v1877 = vmul.f32 %v1876, 1.442695
  %v1878 = vpow.pop %v1877
  %v1879 = vadd.f32 %v1878, 1.0
  %v1880 = vrcp.pop %v1879
  %v1881 = vmul.f32 1.0, %v1880
  %v1882 = vtanh.pop %v1875
  %v1883 = vld [vmem:[#allocation3] sm:$0x3]
  %v1884 = vmul.f32 %v1881, %v1883
  %1886 = vrot.lane.b32.xlu0 %v1882, 64
  %v1887 = vpop.permute.xlu0 %1886
  %v1889 = vmul.f32 %v1881, %v1887
  %1891 = vrot.lane.b32.xlu0 %v1889, 32
  %v1892 = vpop.permute.xlu0 %1891
  %v1894 = vadd.f32 %v1884, %v1892
  %v1895 = vtanh.pop %v1894
  %1897 = vrot.lane.b32.xlu0 %v1895, 64
  %v1898 = vpop.permute.xlu0 %1897
  %v1900 = vmul.f32 %v1881, %v1898
  %1901 = vst.msk [vmem:[#allocation3] sm:$0x3] %vm854, %v1894
  %1903 = vrot.lane.b32.xlu0 %v1900, 64
  %v1904 = vpop.permute.xlu0 %1903
  %1906 = vst.msk [vmem:[#allocation2] sm:$0x3] %vm854, %v1904
  %v1907 = vld [vmem:[%s4 + $0x60] sm:$0xff]
  %v1908 = vld [vmem:[%s4 + $0x68] sm:$0xff]
  %v1909 = vld [vmem:[%s4 + $0x70] sm:$0xff]
  %v1910 = vld [vmem:[%s4 + $0x78] sm:$0xff]
  %1911 = vrot.lane.b32.xlu0 %v1900, 32
  %v1912 = vpop.permute.xlu0 %1911
  %v1913 = vsel %vm46, %v1912, 0
  %1915 = vmatprep.subr.mxu0 0.0
  %1916 = vmatpush1.msra.mxu0 0.0
  %1917 = vmatprep.subr.mxu0 0.0
  %1918 = vmatpush1.msra.mxu0 0.0
  %1919 = vmatprep.subr.mxu0 0.0
  %1920 = vmatpush1.msra.mxu0 0.0
  %1921 = vmatprep.subr.mxu0 0.0
  %1922 = vmatpush1.msra.mxu0 0.0
  %1923 = vmatprep.subr.mxu0 0.0
  %1924 = vmatpush1.msra.mxu0 0.0
  %1925 = vmatprep.subr.mxu0 0.0
  %1926 = vmatpush1.msra.mxu0 0.0
  %1927 = vmatprep.subr.mxu0 0.0
  %1928 = vmatpush1.msra.mxu0 0.0
  %1929 = vmatprep.subr.mxu0 0.0
  %1930 = vmatpush1.msra.mxu0 0.0
  %1931 = vmatprep.subr.mxu0 0.0
  %1932 = vmatpush1.msra.mxu0 0.0
  %1933 = vmatprep.subr.mxu0 0.0
  %1934 = vmatpush1.msra.mxu0 0.0
  %1935 = vmatprep.subr.mxu0 0.0
  %1936 = vmatpush1.msra.mxu0 0.0
  %1937 = vmatprep.subr.mxu0 0.0
  %1938 = vmatpush1.msra.mxu0 0.0
  %1939 = vmatprep.subr.mxu0 0.0
  %1940 = vmatpush1.msra.mxu0 %v1910
  %1941 = vmatprep.subr.mxu0 0.0
  %1942 = vmatpush1.msra.mxu0 %v1909
  %1943 = vmatprep.subr.mxu0 0.0
  %1944 = vmatpush1.msra.mxu0 %v1908
  %1945 = vmatprep.subr.mxu0 0.0
  %1946 = vmatpush1.msra.mxu0 %v1907
  %1947 = vmatprep.subr.mxu0 0.0
  %1948 = vmatpush2.msra.mxu0 0.0
  %1949 = vmatprep.subr.mxu0 0.0
  %1950 = vmatpush2.msra.mxu0 0.0
  %1951 = vmatprep.subr.mxu0 0.0
  %1952 = vmatpush2.msra.mxu0 0.0
  %1953 = vmatprep.subr.mxu0 0.0
  %1954 = vmatpush2.msra.mxu0 0.0
  %1955 = vmatprep.subr.mxu0 0.0
  %1956 = vmatpush2.msra.mxu0 0.0
  %1957 = vmatprep.subr.mxu0 0.0
  %1958 = vmatpush2.msra.mxu0 0.0
  %1959 = vmatprep.subr.mxu0 0.0
  %1960 = vmatpush2.msra.mxu0 0.0
  %1961 = vmatprep.subr.mxu0 0.0
  %1962 = vmatpush2.msra.mxu0 0.0
  %1963 = vmatprep.subr.mxu0 0.0
  %1964 = vmatpush2.msra.mxu0 0.0
  %1965 = vmatprep.subr.mxu0 0.0
  %1966 = vmatpush2.msra.mxu0 0.0
  %1967 = vmatprep.subr.mxu0 0.0
  %1968 = vmatpush2.msra.mxu0 0.0
  %1969 = vmatprep.subr.mxu0 0.0
  %1970 = vmatpush2.msra.mxu0 0.0
  %1971 = vmatprep.subr.mxu0 0.0
  %1972 = vmatpush2.msra.mxu0 0.0
  %1973 = vmatprep.subr.mxu0 0.0
  %1974 = vmatpush2.msra.mxu0 0.0
  %1975 = vmatprep.subr.mxu0 0.0
  %1976 = vmatpush2.msra.mxu0 0.0
  %1977 = vmatprep.subr.mxu0 0.0
  %1978 = vmatpush2.msra.mxu0 0.0
  %1979 = vmatprep.mubr.f32.mxu0 0.0
  %1980 = vmatmul.mubr.f32.gmra.mxu0 %v1913
  %v1981 = vpop.f32.mrf.mxu0
  %v1982 = vadd.f32 %v1589, %v1981
  %v1983 = vpop.f32.mrf.mxu0
  %1984 = vdwg.mxu0
  %v1985 = vld [vmem:[%s6 + $0x2] sm:$0x1]
  %v1986 = vlaneseq
  %v1987 = vshrl.u32 %v1986, 7
  %v1988 = vsub.s32 0, %v1987
  %v1989 = vrot.slane %v1985, %v1988
  %v1990 = vadd.f32 %v1982, %v1989
  %v1991 = vxor.u32 %v1990, 2147483648
  %v1992 = vmul.f32 %v1991, 1.442695
  %v1993 = vpow.pop %v1992
  %v1994 = vadd.f32 %v1993, 1.0
  %v1995 = vrcp.pop %v1994
  %v1996 = vmul.f32 1.0, %v1995
  %v1997 = vtanh.pop %v1990
  %v1998 = vld [vmem:[#allocation3] sm:$0x3]
  %2000 = vrot.lane.b32.xlu0 %v1998, 96
  %v2001 = vpop.permute.xlu0 %2000
  %v2003 = vmul.f32 %v1996, %v2001
  %2005 = vrot.lane.b32.xlu0 %v1997, 64
  %v2006 = vpop.permute.xlu0 %2005
  %v2008 = vmul.f32 %v1996, %v2006
  %2010 = vrot.lane.b32.xlu0 %v2008, 32
  %v2011 = vpop.permute.xlu0 %2010
  %v2013 = vadd.f32 %v2003, %v2011
  %v2014 = vtanh.pop %v2013
  %2016 = vrot.lane.b32.xlu0 %v2014, 64
  %v2017 = vpop.permute.xlu0 %2016
  %v2019 = vmul.f32 %v1996, %v2017
  %2021 = vrot.lane.b32.xlu0 %v2013, 32
  %v2022 = vpop.permute.xlu0 %2021
  %2024 = vst.msk [vmem:[#allocation3] sm:$0x3] %vm978, %v2022
  %2026 = vrot.lane.b32.xlu0 %v2019, 96
  %v2027 = vpop.permute.xlu0 %2026
  %2029 = vst.msk [vmem:[#allocation2] sm:$0x3] %vm978, %v2027
  %v2030 = vld [vmem:[%s7] sm:$0xff]
  %v2031 = vld [vmem:[%s7 + $0x8] sm:$0xff]
  %v2032 = vld [vmem:[%s7 + $0x10] sm:$0xff]
  %v2033 = vld [vmem:[%s7 + $0x18] sm:$0xff]
  %v2034 = vld [vmem:[%s7 + $0x20] sm:$0x1]
  %v2035 = vlaneseq
  %v2036 = vshrl.u32 %v2035, 7
  %v2037 = vsub.s32 0, %v2036
  %v2038 = vrot.slane %v2034, %v2037
  %2039 = vrot.lane.b32.xlu0 %v2019, 32
  %v2040 = vpop.permute.xlu0 %2039
  %v2041 = vsel %vm46, %v2040, 0
  %2043 = vmatprep.subr.mxu0 0.0
  %2044 = vmatpush1.msra.mxu0 0.0
  %2045 = vmatprep.subr.mxu0 0.0
  %2046 = vmatpush1.msra.mxu0 0.0
  %2047 = vmatprep.subr.mxu0 0.0
  %2048 = vmatpush1.msra.mxu0 0.0
  %2049 = vmatprep.subr.mxu0 0.0
  %2050 = vmatpush1.msra.mxu0 0.0
  %2051 = vmatprep.subr.mxu0 0.0
  %2052 = vmatpush1.msra.mxu0 0.0
  %2053 = vmatprep.subr.mxu0 0.0
  %2054 = vmatpush1.msra.mxu0 0.0
  %2055 = vmatprep.subr.mxu0 0.0
  %2056 = vmatpush1.msra.mxu0 0.0
  %2057 = vmatprep.subr.mxu0 0.0
  %2058 = vmatpush1.msra.mxu0 0.0
  %2059 = vmatprep.subr.mxu0 0.0
  %2060 = vmatpush1.msra.mxu0 0.0
  %2061 = vmatprep.subr.mxu0 0.0
  %2062 = vmatpush1.msra.mxu0 0.0
  %2063 = vmatprep.subr.mxu0 0.0
  %2064 = vmatpush1.msra.mxu0 0.0
  %2065 = vmatprep.subr.mxu0 0.0
  %2066 = vmatpush1.msra.mxu0 0.0
  %2067 = vmatprep.subr.mxu0 0.0
  %2068 = vmatpush1.msra.mxu0 %v2033
  %2069 = vmatprep.subr.mxu0 0.0
  %2070 = vmatpush1.msra.mxu0 %v2032
  %2071 = vmatprep.subr.mxu0 0.0
  %2072 = vmatpush1.msra.mxu0 %v2031
  %2073 = vmatprep.subr.mxu0 0.0
  %2074 = vmatpush1.msra.mxu0 %v2030
  %2075 = vmatprep.subr.mxu0 0.0
  %2076 = vmatpush2.msra.mxu0 0.0
  %2077 = vmatprep.subr.mxu0 0.0
  %2078 = vmatpush2.msra.mxu0 0.0
  %2079 = vmatprep.subr.mxu0 0.0
  %2080 = vmatpush2.msra.mxu0 0.0
  %2081 = vmatprep.subr.mxu0 0.0
  %2082 = vmatpush2.msra.mxu0 0.0
  %2083 = vmatprep.subr.mxu0 0.0
  %2084 = vmatpush2.msra.mxu0 0.0
  %2085 = vmatprep.subr.mxu0 0.0
  %2086 = vmatpush2.msra.mxu0 0.0
  %2087 = vmatprep.subr.mxu0 0.0
  %2088 = vmatpush2.msra.mxu0 0.0
  %2089 = vmatprep.subr.mxu0 0.0
  %2090 = vmatpush2.msra.mxu0 0.0
  %2091 = vmatprep.subr.mxu0 0.0
  %2092 = vmatpush2.msra.mxu0 0.0
  %2093 = vmatprep.subr.mxu0 0.0
  %2094 = vmatpush2.msra.mxu0 0.0
  %2095 = vmatprep.subr.mxu0 0.0
  %2096 = vmatpush2.msra.mxu0 0.0
  %2097 = vmatprep.subr.mxu0 0.0
  %2098 = vmatpush2.msra.mxu0 0.0
  %2099 = vmatprep.subr.mxu0 0.0
  %2100 = vmatpush2.msra.mxu0 0.0
  %2101 = vmatprep.subr.mxu0 0.0
  %2102 = vmatpush2.msra.mxu0 0.0
  %2103 = vmatprep.subr.mxu0 0.0
  %2104 = vmatpush2.msra.mxu0 0.0
  %2105 = vmatprep.subr.mxu0 0.0
  %2106 = vmatpush2.msra.mxu0 0.0
  %2107 = vmatprep.mubr.f32.mxu0 0.0
  %2108 = vmatmul.mubr.f32.gmra.mxu0 %v2041
  %v2109 = vpop.f32.mrf.mxu0
  %v2110 = vadd.f32 %v2038, %v2109
  %v2111 = vpop.f32.mrf.mxu0
  %2112 = vdwg.mxu0
  %v2113 = vsel %vm1068, %v2110, -inf
  %2114 = vmax.xlane.f32.xlu0 %v2113
  %v2115 = vpop.xlane.xlu0 %2114
  %v2116 = vsub.f32 %v2110, %v2115
  %v2117 = vmul.f32 %v2116, 1.442695
  %v2118 = vpow.pop %v2117
  %v2119 = vsel %vm1068, %v2118, 0.0
  %2120 = vadd.xlane.f32.xlu0 %v2119
  %v2121 = vpop.xlane.xlu0 %2120
  %v2122 = vlog2.pop %v2121
  %v2123 = vmul.f32 %v2122, 0.6931472
  %v2124 = vsub.f32 %v2116, %v2123
  %2126 = vrot.lane.b32.xlu0 %v2124, 16
  %v2127 = vpop.permute.xlu0 %2126
  %vm2129 = vcmask 255104
  %2130 = vst.msk [vmem:[%s8] sm:$0x3] %vm2129, %v2127
  %v2131 = vsel %vm1068, %v2124, -inf
  %2132 = vmax.xlane.f32.xlu0 %v2131
  %v2133 = vpop.xlane.xlu0 %2132
  %vm2134 = vcmp.eq.f32.partialorder %v2124, %v2133
  %v2135 = vsel %vm2134, %v268, 16
  %v2136 = vsel %vm1068, %v2135, 2147483647
  %v2137 = vand.u32 %v2136, 65535
  %v2138 = vshra.s32 %v2136, 16
  %v2139 = vcvt.s32.f32 %v2137
  %v2140 = vcvt.s32.f32 %v2138
  %2141 = vmin.xlane.f32.xlu0 %v2140
  %v2142 = vpop.xlane.xlu0 %2141
  %vm2143 = vcmp.eq.f32.partialorder %v2140, %v2142
  %v2144 = vsel %vm2143, %v2139, inf
  %2145 = vmin.xlane.f32.xlu0 %v2144
  %v2146 = vpop.xlane.xlu0 %2145
  %v2147 = vcvt.f32.s32 %v2146
  %v2148 = vcvt.f32.s32 %v2142
  %v2149 = vshll.u32 %v2148, 16
  %v2150 = vadd.s32 %v2149, %v2147
  %vm2151 = vcmp.eq.s32.totalorder %v268, %v2150
  %v2152 = vsel %vm2151, 1, 0
  %v2153 = vcvt.s32.f32 %v2152
  %v2154 = vld [vmem:[%s2] sm:$0xff]
  %v2155 = vld [vmem:[%s2 + $0x8] sm:$0xff]
  %v2157 = vsel %vm1107, %v2153, 0
  %2159 = vmatprep.subr.mxu0 0.0
  %2160 = vmatpush1.msra.mxu0 0.0
  %2161 = vmatprep.subr.mxu0 0.0
  %2162 = vmatpush1.msra.mxu0 0.0
  %2163 = vmatprep.subr.mxu0 0.0
  %2164 = vmatpush1.msra.mxu0 0.0
  %2165 = vmatprep.subr.mxu0 0.0
  %2166 = vmatpush1.msra.mxu0 0.0
  %2167 = vmatprep.subr.mxu0 0.0
  %2168 = vmatpush1.msra.mxu0 0.0
  %2169 = vmatprep.subr.mxu0 0.0
  %2170 = vmatpush1.msra.mxu0 0.0
  %2171 = vmatprep.subr.mxu0 0.0
  %2172 = vmatpush1.msra.mxu0 0.0
  %2173 = vmatprep.subr.mxu0 0.0
  %2174 = vmatpush1.msra.mxu0 0.0
  %2175 = vmatprep.subr.mxu0 0.0
  %2176 = vmatpush1.msra.mxu0 0.0
  %2177 = vmatprep.subr.mxu0 0.0
  %2178 = vmatpush1.msra.mxu0 0.0
  %2179 = vmatprep.subr.mxu0 0.0
  %2180 = vmatpush1.msra.mxu0 0.0
  %2181 = vmatprep.subr.mxu0 0.0
  %2182 = vmatpush1.msra.mxu0 0.0
  %2183 = vmatprep.subr.mxu0 0.0
  %2184 = vmatpush1.msra.mxu0 0.0
  %2185 = vmatprep.subr.mxu0 0.0
  %2186 = vmatpush1.msra.mxu0 0.0
  %2187 = vmatprep.subr.mxu0 0.0
  %2188 = vmatpush1.msra.mxu0 %v2155
  %2189 = vmatprep.subr.mxu0 0.0
  %2190 = vmatpush1.msra.mxu0 %v2154
  %2191 = vmatprep.subr.mxu0 0.0
  %2192 = vmatpush2.msra.mxu0 0.0
  %2193 = vmatprep.subr.mxu0 0.0
  %2194 = vmatpush2.msra.mxu0 0.0
  %2195 = vmatprep.subr.mxu0 0.0
  %2196 = vmatpush2.msra.mxu0 0.0
  %2197 = vmatprep.subr.mxu0 0.0
  %2198 = vmatpush2.msra.mxu0 0.0
  %2199 = vmatprep.subr.mxu0 0.0
  %2200 = vmatpush2.msra.mxu0 0.0
  %2201 = vmatprep.subr.mxu0 0.0
  %2202 = vmatpush2.msra.mxu0 0.0
  %2203 = vmatprep.subr.mxu0 0.0
  %2204 = vmatpush2.msra.mxu0 0.0
  %2205 = vmatprep.subr.mxu0 0.0
  %2206 = vmatpush2.msra.mxu0 0.0
  %2207 = vmatprep.subr.mxu0 0.0
  %2208 = vmatpush2.msra.mxu0 0.0
  %2209 = vmatprep.subr.mxu0 0.0
  %2210 = vmatpush2.msra.mxu0 0.0
  %2211 = vmatprep.subr.mxu0 0.0
  %2212 = vmatpush2.msra.mxu0 0.0
  %2213 = vmatprep.subr.mxu0 0.0
  %2214 = vmatpush2.msra.mxu0 0.0
  %2215 = vmatprep.subr.mxu0 0.0
  %2216 = vmatpush2.msra.mxu0 0.0
  %2217 = vmatprep.subr.mxu0 0.0
  %2218 = vmatpush2.msra.mxu0 0.0
  %2219 = vmatprep.subr.mxu0 0.0
  %2220 = vmatpush2.msra.mxu0 0.0
  %2221 = vmatprep.subr.mxu0 0.0
  %2222 = vmatpush2.msra.mxu0 0.0
  %2223 = vmatprep.mubr.f32.mxu0 0.0
  %2224 = vmatmul.mubr.f32.gmra.mxu0 %v2157
  %v2225 = vpop.f32.mrf.mxu0
  %v2226 = vadd.f32 0.0, %v2225
  %v2227 = vpop.f32.mrf.mxu0
  %2228 = vdwg.mxu0
  %2229 = vst.msk [vmem:[#allocation4] sm:$0x3] %vm33, %v2226
  %v2230 = vld [vmem:[%s0] sm:$0xff]
  %v2231 = vld [vmem:[%s0 + $0x8] sm:$0xff]
  %v2232 = vld [vmem:[#allocation4] sm:$0x3]
  %v2233 = vld [vmem:[#allocation2] sm:$0x3]
  %v2234 = vld [vmem:[%s3 + $0x20] sm:$0xff]
  %v2235 = vld [vmem:[%s3 + $0x28] sm:$0xff]
  %v2236 = vld [vmem:[%s3 + $0x30] sm:$0xff]
  %v2237 = vld [vmem:[%s3 + $0x38] sm:$0xff]
  %v2238 = vld [vmem:[%s3 + $0x41] sm:$0x1]
  %2240 = vrot.lane.b32.xlu0 %v2233, 64
  %v2241 = vpop.permute.xlu0 %2240
  %v2242 = vsel %vm46, %v2241, 0
  %2244 = vmatprep.subr.mxu0 0.0
  %2245 = vmatpush1.msra.mxu0 0.0
  %2246 = vmatprep.subr.mxu0 0.0
  %2247 = vmatpush1.msra.mxu0 0.0
  %2248 = vmatprep.subr.mxu0 0.0
  %2249 = vmatpush1.msra.mxu0 0.0
  %2250 = vmatprep.subr.mxu0 0.0
  %2251 = vmatpush1.msra.mxu0 0.0
  %2252 = vmatprep.subr.mxu0 0.0
  %2253 = vmatpush1.msra.mxu0 0.0
  %2254 = vmatprep.subr.mxu0 0.0
  %2255 = vmatpush1.msra.mxu0 0.0
  %2256 = vmatprep.subr.mxu0 0.0
  %2257 = vmatpush1.msra.mxu0 0.0
  %2258 = vmatprep.subr.mxu0 0.0
  %2259 = vmatpush1.msra.mxu0 0.0
  %2260 = vmatprep.subr.mxu0 0.0
  %2261 = vmatpush1.msra.mxu0 0.0
  %2262 = vmatprep.subr.mxu0 0.0
  %2263 = vmatpush1.msra.mxu0 0.0
  %2264 = vmatprep.subr.mxu0 0.0
  %2265 = vmatpush1.msra.mxu0 0.0
  %2266 = vmatprep.subr.mxu0 0.0
  %2267 = vmatpush1.msra.mxu0 0.0
  %2268 = vmatprep.subr.mxu0 0.0
  %2269 = vmatpush1.msra.mxu0 %v2237
  %2270 = vmatprep.subr.mxu0 0.0
  %2271 = vmatpush1.msra.mxu0 %v2236
  %2272 = vmatprep.subr.mxu0 0.0
  %2273 = vmatpush1.msra.mxu0 %v2235
  %2274 = vmatprep.subr.mxu0 0.0
  %2275 = vmatpush1.msra.mxu0 %v2234
  %2276 = vmatprep.subr.mxu0 0.0
  %2277 = vmatpush2.msra.mxu0 0.0
  %2278 = vmatprep.subr.mxu0 0.0
  %2279 = vmatpush2.msra.mxu0 0.0
  %2280 = vmatprep.subr.mxu0 0.0
  %2281 = vmatpush2.msra.mxu0 0.0
  %2282 = vmatprep.subr.mxu0 0.0
  %2283 = vmatpush2.msra.mxu0 0.0
  %2284 = vmatprep.subr.mxu0 0.0
  %2285 = vmatpush2.msra.mxu0 0.0
  %2286 = vmatprep.subr.mxu0 0.0
  %2287 = vmatpush2.msra.mxu0 0.0
  %2288 = vmatprep.subr.mxu0 0.0
  %2289 = vmatpush2.msra.mxu0 0.0
  %2290 = vmatprep.subr.mxu0 0.0
  %2291 = vmatpush2.msra.mxu0 0.0
  %2292 = vmatprep.subr.mxu0 0.0
  %2293 = vmatpush2.msra.mxu0 0.0
  %2294 = vmatprep.subr.mxu0 0.0
  %2295 = vmatpush2.msra.mxu0 0.0
  %2296 = vmatprep.subr.mxu0 0.0
  %2297 = vmatpush2.msra.mxu0 0.0
  %2298 = vmatprep.subr.mxu0 0.0
  %2299 = vmatpush2.msra.mxu0 0.0
  %2300 = vmatprep.subr.mxu0 0.0
  %2301 = vmatpush2.msra.mxu0 0.0
  %2302 = vmatprep.subr.mxu0 0.0
  %2303 = vmatpush2.msra.mxu0 0.0
  %2304 = vmatprep.subr.mxu0 0.0
  %2305 = vmatpush2.msra.mxu0 0.0
  %2306 = vmatprep.subr.mxu0 0.0
  %2307 = vmatpush2.msra.mxu0 0.0
  %2308 = vmatprep.mubr.f32.mxu0 0.0
  %2309 = vmatmul.mubr.f32.gmra.mxu0 %v2242
  %v2310 = vpop.f32.mrf.mxu0
  %v2311 = vadd.f32 0.0, %v2310
  %v2312 = vpop.f32.mrf.mxu0
  %2313 = vdwg.mxu0
  %v2314 = vld [vmem:[#allocation5] sm:$0xff]
  %v2315 = vld [vmem:[#allocation5 + $0x8] sm:$0xff]
  %v2318 = vunpack.c.l.s4 1966171168
  %v2319 = vunpack.c.0.s8 %v2318
  %v2320 = vlaneseq
  %v2321 = vshrl.u32 %v2320, 7
  %v2322 = vsub.s32 %v2319, %v2321
  %v2323 = vrot.slane %v2311, %v2322
  %v2324 = vcombine.high %v2323, %v2323
  %v2326 = vunpack.c.l.s4 1966171168
  %v2327 = vunpack.c.0.s8 %v2326
  %v2328 = vlaneseq
  %v2329 = vshrl.u32 %v2328, 7
  %v2330 = vsub.s32 %v2327, %v2329
  %v2331 = vrot.slane %v2323, %v2330
  %v2333 = vunpack.c.l.s4 1966171168
  %v2334 = vunpack.c.0.s8 %v2333
  %v2335 = vlaneseq
  %v2336 = vshrl.u32 %v2335, 7
  %v2337 = vsub.s32 %v2334, %v2336
  %v2338 = vrot.slane %v2324, %v2337
  %v2339 = vlaneseq
  %v2340 = vshrl.u32 %v2339, 7
  %v2341 = vsub.s32 0, %v2340
  %v2342 = vrot.slane %v2331, %v2341
  %v2343 = vlaneseq
  %v2344 = vshrl.u32 %v2343, 7
  %v2345 = vsub.s32 0, %v2344
  %v2346 = vrot.slane %v2338, %v2345
  %v2349 = vadd.f32 %v2314, %v2342
  %v2350 = vadd.f32 %v2315, %v2346
  %v2351 = vmax.f32 %v2349, 0.0
  %v2352 = vmax.f32 %v2350, 0.0
  %v2353 = vlaneseq
  %v2354 = vshrl.u32 %v2353, 7
  %v2355 = vsub.s32 0, %v2354
  %v2356 = vrot.slane %v2238, %v2355
  %v2357 = vmul.f32 %v2351, %v2356
  %v2358 = vmul.f32 %v2352, %v2356
  %v2359 = vsel %vm46, %v2357, 0.0
  %2360 = vadd.xlane.f32.xlu0 %v2359
  %v2361 = vpop.xlane.xlu0 %2360
  %v2362 = vsel %vm46, %v2358, 0.0
  %2363 = vadd.xlane.f32.xlu0 %v2362
  %v2364 = vpop.xlane.xlu0 %2363
  %v2367 = vlaneseq
  %v2368 = vshrl.u32 %v2367, 7
  %v2369 = vsub.s32 %v268, %v2368
  %v2370 = vrot.slane %v2361, %v2369
  %v2371 = vlaneseq
  %v2372 = vshrl.u32 %v2371, 7
  %v2373 = vsub.s32 %v268, %v2372
  %v2374 = vrot.slane %v2364, %v2373
  %v2375 = vsel %vm277, %v2374, %v2370
  %v2377 = vsel %vm280, %v2375, -inf
  %2378 = vmax.xlane.f32.xlu0 %v2377
  %v2379 = vpop.xlane.xlu0 %2378
  %v2381 = vlaneseq
  %v2382 = vshrl.u32 %v2381, 7
  %v2383 = vsub.s32 0, %v2382
  %v2384 = vrot.slane %v2379, %v2383
  %v2385 = vlaneseq
  %v2386 = vshrl.u32 %v2385, 7
  %v2387 = vsub.s32 1, %v2386
  %v2388 = vrot.slane %v2379, %v2387
  %v2391 = vsub.f32 %v2361, %v2384
  %v2392 = vsub.f32 %v2364, %v2388
  %v2393 = vmul.f32 %v2391, 1.442695
  %v2394 = vpow.pop %v2393
  %v2395 = vmul.f32 %v2392, 1.442695
  %v2396 = vpow.pop %v2395
  %2399 = vset.pattern.permute.xlu0 0
  %2400 = vperm.xlu0 %2399, %v2394
  %v2401 = vpop.permute.xlu0 %2400
  %2402 = vset.pattern.permute.xlu0 0
  %2403 = vperm.xlu0 %2402, %v2396
  %v2404 = vpop.permute.xlu0 %2403
  %v2405 = vlaneseq
  %v2406 = vshrl.u32 %v2405, 7
  %v2407 = vsub.s32 %v268, %v2406
  %v2408 = vrot.slane %v2401, %v2407
  %v2409 = vlaneseq
  %v2410 = vshrl.u32 %v2409, 7
  %v2411 = vsub.s32 %v268, %v2410
  %v2412 = vrot.slane %v2404, %v2411
  %v2413 = vsel %vm277, %v2412, %v2408
  %v2415 = vsel %vm280, %v2413, 0.0
  %2416 = vadd.xlane.f32.xlu0 %v2415
  %v2417 = vpop.xlane.xlu0 %2416
  %v2418 = vlog2.pop %v2417
  %v2419 = vmul.f32 %v2418, 0.6931472
  %v2421 = vlaneseq
  %v2422 = vshrl.u32 %v2421, 7
  %v2423 = vsub.s32 0, %v2422
  %v2424 = vrot.slane %v2419, %v2423
  %v2425 = vlaneseq
  %v2426 = vshrl.u32 %v2425, 7
  %v2427 = vsub.s32 1, %v2426
  %v2428 = vrot.slane %v2419, %v2427
  %v2431 = vsub.f32 %v2391, %v2424
  %v2432 = vsub.f32 %v2392, %v2428
  %2434 = vset.pattern.permute.xlu0 0
  %2435 = vperm.xlu0 %2434, %v2431
  %v2436 = vpop.permute.xlu0 %2435
  %2439 = vset.pattern.permute.xlu0 0
  %2440 = vperm.xlu0 %2439, %v2432
  %v2441 = vpop.permute.xlu0 %2440
  %v2443 = vmul.f32 %v2436, %v2230
  %v2444 = vmul.f32 %v2441, %v2231
  %v2445 = vsel %vm46, %v2443, 0.0
  %v2446 = vrot.slane %v2445, 4
  %v2447 = vadd.f32 %v2445, %v2446
  %v2448 = vrot.slane %v2447, 2
  %v2449 = vadd.f32 %v2447, %v2448
  %v2450 = vrot.slane %v2449, 1
  %v2451 = vadd.f32 %v2449, %v2450
  %v2452 = vsel %vm46, %v2444, 0.0
  %v2453 = vrot.slane %v2452, 4
  %v2454 = vadd.f32 %v2452, %v2453
  %v2455 = vrot.slane %v2454, 2
  %v2456 = vadd.f32 %v2454, %v2455
  %v2457 = vrot.slane %v2456, 1
  %v2458 = vadd.f32 %v2456, %v2457
  %v2459 = vld [vmem:[#allocation2] sm:$0x3]
  %v2460 = vld [vmem:[%s5] sm:$0xff]
  %v2461 = vld [vmem:[%s5 + $0x8] sm:$0xff]
  %v2462 = vld [vmem:[%s5 + $0x10] sm:$0xff]
  %v2463 = vld [vmem:[%s5 + $0x18] sm:$0xff]
  %v2464 = vld [vmem:[%s5 + $0x20] sm:$0xff]
  %v2465 = vld [vmem:[%s5 + $0x28] sm:$0xff]
  %v2466 = vld [vmem:[%s5 + $0x30] sm:$0xff]
  %v2467 = vld [vmem:[%s5 + $0x38] sm:$0xff]
  %v2468 = vld [vmem:[%s5 + $0x40] sm:$0xff]
  %v2469 = vld [vmem:[%s5 + $0x48] sm:$0xff]
  %v2470 = vld [vmem:[%s5 + $0x50] sm:$0xff]
  %v2471 = vld [vmem:[%s5 + $0x58] sm:$0xff]
  %v2472 = vld [vmem:[%s5 + $0x60] sm:$0xff]
  %v2473 = vld [vmem:[%s5 + $0x68] sm:$0xff]
  %v2474 = vld [vmem:[%s5 + $0x70] sm:$0xff]
  %v2475 = vld [vmem:[%s5 + $0x78] sm:$0xff]
  %v2476 = vld [vmem:[%s5 + $0x80] sm:$0xff]
  %v2477 = vld [vmem:[%s5 + $0x88] sm:$0xff]
  %v2478 = vld [vmem:[%s5 + $0x90] sm:$0xff]
  %v2479 = vld [vmem:[%s5 + $0x98] sm:$0xff]
  %v2480 = vld [vmem:[%s5 + $0xa0] sm:$0xff]
  %v2481 = vld [vmem:[%s5 + $0xa8] sm:$0xff]
  %v2482 = vld [vmem:[%s5 + $0xb0] sm:$0xff]
  %v2483 = vld [vmem:[%s5 + $0xb8] sm:$0xff]
  %v2484 = vld [vmem:[%s5 + $0xc0] sm:$0xff]
  %v2485 = vld [vmem:[%s5 + $0xc8] sm:$0xff]
  %v2486 = vld [vmem:[%s5 + $0xd0] sm:$0xff]
  %v2487 = vld [vmem:[%s5 + $0xd8] sm:$0xff]
  %v2488 = vld [vmem:[%s5 + $0xe0] sm:$0xff]
  %v2489 = vld [vmem:[%s5 + $0xe8] sm:$0xff]
  %v2490 = vld [vmem:[%s5 + $0xf0] sm:$0xff]
  %v2491 = vld [vmem:[%s5 + $0xf8] sm:$0xff]
  %v2492 = vld [vmem:[%s5 + $0x100] sm:$0xff]
  %v2493 = vld [vmem:[%s5 + $0x108] sm:$0xff]
  %v2494 = vld [vmem:[%s5 + $0x110] sm:$0xff]
  %v2495 = vld [vmem:[%s5 + $0x118] sm:$0xff]
  %v2497 = vsel %vm400, %v2459, 0
  %2499 = vmatprep.subr.mxu0 0.0
  %2500 = vmatpush1.msra.mxu0 0.0
  %2501 = vmatprep.subr.mxu0 0.0
  %2502 = vmatpush1.msra.mxu0 0.0
  %2503 = vmatprep.subr.mxu0 0.0
  %2504 = vmatpush1.msra.mxu0 0.0
  %2505 = vmatprep.subr.mxu0 0.0
  %2506 = vmatpush1.msra.mxu0 0.0
  %2507 = vmatprep.subr.mxu0 %v2494
  %2508 = vmatpush1.msra.mxu0 %v2493
  %2509 = vmatprep.subr.mxu0 %v2491
  %2510 = vmatpush1.msra.mxu0 %v2490
  %2511 = vmatprep.subr.mxu0 %v2488
  %2512 = vmatpush1.msra.mxu0 %v2487
  %2513 = vmatprep.subr.mxu0 %v2485
  %2514 = vmatpush1.msra.mxu0 %v2484
  %2515 = vmatprep.subr.mxu0 %v2482
  %2516 = vmatpush1.msra.mxu0 %v2481
  %2517 = vmatprep.subr.mxu0 %v2479
  %2518 = vmatpush1.msra.mxu0 %v2478
  %2519 = vmatprep.subr.mxu0 %v2476
  %2520 = vmatpush1.msra.mxu0 %v2475
  %2521 = vmatprep.subr.mxu0 %v2473
  %2522 = vmatpush1.msra.mxu0 %v2472
  %2523 = vmatprep.subr.mxu0 %v2470
  %2524 = vmatpush1.msra.mxu0 %v2469
  %2525 = vmatprep.subr.mxu0 %v2467
  %2526 = vmatpush1.msra.mxu0 %v2466
  %2527 = vmatprep.subr.mxu0 %v2464
  %2528 = vmatpush1.msra.mxu0 %v2463
  %2529 = vmatprep.subr.mxu0 %v2461
  %2530 = vmatpush1.msra.mxu0 %v2460
  %2531 = vmatprep.subr.mxu0 0.0
  %2532 = vmatpush2.msra.mxu0 0.0
  %2533 = vmatprep.subr.mxu0 0.0
  %2534 = vmatpush2.msra.mxu0 0.0
  %2535 = vmatprep.subr.mxu0 0.0
  %2536 = vmatpush2.msra.mxu0 0.0
  %2537 = vmatprep.subr.mxu0 0.0
  %2538 = vmatpush2.msra.mxu0 0.0
  %2539 = vmatprep.subr.mxu0 0.0
  %2540 = vmatpush2.msra.mxu0 0.0
  %2541 = vmatprep.subr.mxu0 0.0
  %2542 = vmatpush2.msra.mxu0 0.0
  %2543 = vmatprep.subr.mxu0 0.0
  %2544 = vmatpush2.msra.mxu0 0.0
  %2545 = vmatprep.subr.mxu0 0.0
  %2546 = vmatpush2.msra.mxu0 0.0
  %2547 = vmatprep.subr.mxu0 0.0
  %2548 = vmatpush2.msra.mxu0 0.0
  %2549 = vmatprep.subr.mxu0 0.0
  %2550 = vmatpush2.msra.mxu0 0.0
  %2551 = vmatprep.subr.mxu0 0.0
  %2552 = vmatpush2.msra.mxu0 0.0
  %2553 = vmatprep.subr.mxu0 0.0
  %2554 = vmatpush2.msra.mxu0 0.0
  %2555 = vmatprep.subr.mxu0 0.0
  %2556 = vmatpush2.msra.mxu0 0.0
  %2557 = vmatprep.subr.mxu0 0.0
  %2558 = vmatpush2.msra.mxu0 0.0
  %2559 = vmatprep.subr.mxu0 0.0
  %2560 = vmatpush2.msra.mxu0 0.0
  %2561 = vmatprep.subr.mxu0 0.0
  %2562 = vmatpush2.msra.mxu0 0.0
  %2563 = vmatprep.mubr.f32.mxu0 0.0
  %2564 = vmatmul.mubr.f32.gmra.mxu0 %v2497
  %v2565 = vpop.f32.mrf.mxu0
  %v2566 = vadd.f32 0.0, %v2565
  %v2567 = vpop.f32.mrf.mxu0
  %v2568 = vadd.f32 0.0, %v2567
  %2569 = vdwg.mxu0
  %2570 = vmatprep.subr.mxu0 0.0
  %2571 = vmatpush1.msra.mxu0 0.0
  %2572 = vmatprep.subr.mxu0 0.0
  %2573 = vmatpush1.msra.mxu0 0.0
  %2574 = vmatprep.subr.mxu0 0.0
  %2575 = vmatpush1.msra.mxu0 0.0
  %2576 = vmatprep.subr.mxu0 0.0
  %2577 = vmatpush1.msra.mxu0 0.0
  %2578 = vmatprep.subr.mxu0 0.0
  %2579 = vmatpush1.msra.mxu0 %v2495
  %2580 = vmatprep.subr.mxu0 0.0
  %2581 = vmatpush1.msra.mxu0 %v2492
  %2582 = vmatprep.subr.mxu0 0.0
  %2583 = vmatpush1.msra.mxu0 %v2489
  %2584 = vmatprep.subr.mxu0 0.0
  %2585 = vmatpush1.msra.mxu0 %v2486
  %2586 = vmatprep.subr.mxu0 0.0
  %2587 = vmatpush1.msra.mxu0 %v2483
  %2588 = vmatprep.subr.mxu0 0.0
  %2589 = vmatpush1.msra.mxu0 %v2480
  %2590 = vmatprep.subr.mxu0 0.0
  %2591 = vmatpush1.msra.mxu0 %v2477
  %2592 = vmatprep.subr.mxu0 0.0
  %2593 = vmatpush1.msra.mxu0 %v2474
  %2594 = vmatprep.subr.mxu0 0.0
  %2595 = vmatpush1.msra.mxu0 %v2471
  %2596 = vmatprep.subr.mxu0 0.0
  %2597 = vmatpush1.msra.mxu0 %v2468
  %2598 = vmatprep.subr.mxu0 0.0
  %2599 = vmatpush1.msra.mxu0 %v2465
  %2600 = vmatprep.subr.mxu0 0.0
  %2601 = vmatpush1.msra.mxu0 %v2462
  %2602 = vmatprep.subr.mxu0 0.0
  %2603 = vmatpush2.msra.mxu0 0.0
  %2604 = vmatprep.subr.mxu0 0.0
  %2605 = vmatpush2.msra.mxu0 0.0
  %2606 = vmatprep.subr.mxu0 0.0
  %2607 = vmatpush2.msra.mxu0 0.0
  %2608 = vmatprep.subr.mxu0 0.0
  %2609 = vmatpush2.msra.mxu0 0.0
  %2610 = vmatprep.subr.mxu0 0.0
  %2611 = vmatpush2.msra.mxu0 0.0
  %2612 = vmatprep.subr.mxu0 0.0
  %2613 = vmatpush2.msra.mxu0 0.0
  %2614 = vmatprep.subr.mxu0 0.0
  %2615 = vmatpush2.msra.mxu0 0.0
  %2616 = vmatprep.subr.mxu0 0.0
  %2617 = vmatpush2.msra.mxu0 0.0
  %2618 = vmatprep.subr.mxu0 0.0
  %2619 = vmatpush2.msra.mxu0 0.0
  %2620 = vmatprep.subr.mxu0 0.0
  %2621 = vmatpush2.msra.mxu0 0.0
  %2622 = vmatprep.subr.mxu0 0.0
  %2623 = vmatpush2.msra.mxu0 0.0
  %2624 = vmatprep.subr.mxu0 0.0
  %2625 = vmatpush2.msra.mxu0 0.0
  %2626 = vmatprep.subr.mxu0 0.0
  %2627 = vmatpush2.msra.mxu0 0.0
  %2628 = vmatprep.subr.mxu0 0.0
  %2629 = vmatpush2.msra.mxu0 0.0
  %2630 = vmatprep.subr.mxu0 0.0
  %2631 = vmatpush2.msra.mxu0 0.0
  %2632 = vmatprep.subr.mxu0 0.0
  %2633 = vmatpush2.msra.mxu0 0.0
  %2634 = vmatprep.mubr.f32.mxu0 0.0
  %2635 = vmatmul.mubr.f32.gmra.mxu0 %v2497
  %v2636 = vpop.f32.mrf.mxu0
  %v2637 = vadd.f32 0.0, %v2636
  %v2638 = vpop.f32.mrf.mxu0
  %2639 = vdwg.mxu0
  %v2640 = vld [vmem:[%s4] sm:$0xff]
  %v2641 = vld [vmem:[%s4 + $0x8] sm:$0xff]
  %v2642 = vld [vmem:[%s4 + $0x10] sm:$0xff]
  %v2643 = vld [vmem:[%s4 + $0x18] sm:$0xff]
  %v2644 = vld [vmem:[%s4 + $0x20] sm:$0xff]
  %v2645 = vld [vmem:[%s4 + $0x28] sm:$0xff]
  %v2646 = vld [vmem:[%s4 + $0x30] sm:$0xff]
  %v2647 = vld [vmem:[%s4 + $0x38] sm:$0xff]
  %v2650 = vsel %vm277, %v2458, %v2451
  %v2651 = vsel %vm46, %v2650, 0
  %2653 = vmatprep.subr.mxu0 0.0
  %2654 = vmatpush1.msra.mxu0 0.0
  %2655 = vmatprep.subr.mxu0 0.0
  %2656 = vmatpush1.msra.mxu0 0.0
  %2657 = vmatprep.subr.mxu0 0.0
  %2658 = vmatpush1.msra.mxu0 0.0
  %2659 = vmatprep.subr.mxu0 0.0
  %2660 = vmatpush1.msra.mxu0 0.0
  %2661 = vmatprep.subr.mxu0 0.0
  %2662 = vmatpush1.msra.mxu0 0.0
  %2663 = vmatprep.subr.mxu0 0.0
  %2664 = vmatpush1.msra.mxu0 0.0
  %2665 = vmatprep.subr.mxu0 0.0
  %2666 = vmatpush1.msra.mxu0 0.0
  %2667 = vmatprep.subr.mxu0 0.0
  %2668 = vmatpush1.msra.mxu0 0.0
  %2669 = vmatprep.subr.mxu0 0.0
  %2670 = vmatpush1.msra.mxu0 0.0
  %2671 = vmatprep.subr.mxu0 0.0
  %2672 = vmatpush1.msra.mxu0 0.0
  %2673 = vmatprep.subr.mxu0 0.0
  %2674 = vmatpush1.msra.mxu0 0.0
  %2675 = vmatprep.subr.mxu0 0.0
  %2676 = vmatpush1.msra.mxu0 0.0
  %2677 = vmatprep.subr.mxu0 0.0
  %2678 = vmatpush1.msra.mxu0 %v2647
  %2679 = vmatprep.subr.mxu0 0.0
  %2680 = vmatpush1.msra.mxu0 %v2646
  %2681 = vmatprep.subr.mxu0 0.0
  %2682 = vmatpush1.msra.mxu0 %v2645
  %2683 = vmatprep.subr.mxu0 0.0
  %2684 = vmatpush1.msra.mxu0 %v2644
  %2685 = vmatprep.subr.mxu0 0.0
  %2686 = vmatpush2.msra.mxu0 0.0
  %2687 = vmatprep.subr.mxu0 0.0
  %2688 = vmatpush2.msra.mxu0 0.0
  %2689 = vmatprep.subr.mxu0 0.0
  %2690 = vmatpush2.msra.mxu0 0.0
  %2691 = vmatprep.subr.mxu0 0.0
  %2692 = vmatpush2.msra.mxu0 0.0
  %2693 = vmatprep.subr.mxu0 0.0
  %2694 = vmatpush2.msra.mxu0 0.0
  %2695 = vmatprep.subr.mxu0 0.0
  %2696 = vmatpush2.msra.mxu0 0.0
  %2697 = vmatprep.subr.mxu0 0.0
  %2698 = vmatpush2.msra.mxu0 0.0
  %2699 = vmatprep.subr.mxu0 0.0
  %2700 = vmatpush2.msra.mxu0 0.0
  %2701 = vmatprep.subr.mxu0 0.0
  %2702 = vmatpush2.msra.mxu0 0.0
  %2703 = vmatprep.subr.mxu0 0.0
  %2704 = vmatpush2.msra.mxu0 0.0
  %2705 = vmatprep.subr.mxu0 0.0
  %2706 = vmatpush2.msra.mxu0 0.0
  %2707 = vmatprep.subr.mxu0 0.0
  %2708 = vmatpush2.msra.mxu0 0.0
  %2709 = vmatprep.subr.mxu0 0.0
  %2710 = vmatpush2.msra.mxu0 0.0
  %2711 = vmatprep.subr.mxu0 0.0
  %2712 = vmatpush2.msra.mxu0 0.0
  %2713 = vmatprep.subr.mxu0 0.0
  %2714 = vmatpush2.msra.mxu0 0.0
  %2715 = vmatprep.subr.mxu0 0.0
  %2716 = vmatpush2.msra.mxu0 0.0
  %2717 = vmatprep.mubr.f32.mxu0 0.0
  %2718 = vmatmul.mubr.f32.gmra.mxu0 %v2651
  %v2719 = vpop.f32.mrf.mxu0
  %v2720 = vadd.f32 0.0, %v2719
  %v2721 = vpop.f32.mrf.mxu0
  %2722 = vdwg.mxu0
  %v2724 = vsel %vm46, %v2232, 0
  %2726 = vmatprep.subr.mxu0 0.0
  %2727 = vmatpush1.msra.mxu0 0.0
  %2728 = vmatprep.subr.mxu0 0.0
  %2729 = vmatpush1.msra.mxu0 0.0
  %2730 = vmatprep.subr.mxu0 0.0
  %2731 = vmatpush1.msra.mxu0 0.0
  %2732 = vmatprep.subr.mxu0 0.0
  %2733 = vmatpush1.msra.mxu0 0.0
  %2734 = vmatprep.subr.mxu0 0.0
  %2735 = vmatpush1.msra.mxu0 0.0
  %2736 = vmatprep.subr.mxu0 0.0
  %2737 = vmatpush1.msra.mxu0 0.0
  %2738 = vmatprep.subr.mxu0 0.0
  %2739 = vmatpush1.msra.mxu0 0.0
  %2740 = vmatprep.subr.mxu0 0.0
  %2741 = vmatpush1.msra.mxu0 0.0
  %2742 = vmatprep.subr.mxu0 0.0
  %2743 = vmatpush1.msra.mxu0 0.0
  %2744 = vmatprep.subr.mxu0 0.0
  %2745 = vmatpush1.msra.mxu0 0.0
  %2746 = vmatprep.subr.mxu0 0.0
  %2747 = vmatpush1.msra.mxu0 0.0
  %2748 = vmatprep.subr.mxu0 0.0
  %2749 = vmatpush1.msra.mxu0 0.0
  %2750 = vmatprep.subr.mxu0 0.0
  %2751 = vmatpush1.msra.mxu0 %v2643
  %2752 = vmatprep.subr.mxu0 0.0
  %2753 = vmatpush1.msra.mxu0 %v2642
  %2754 = vmatprep.subr.mxu0 0.0
  %2755 = vmatpush1.msra.mxu0 %v2641
  %2756 = vmatprep.subr.mxu0 0.0
  %2757 = vmatpush1.msra.mxu0 %v2640
  %2758 = vmatprep.subr.mxu0 0.0
  %2759 = vmatpush2.msra.mxu0 0.0
  %2760 = vmatprep.subr.mxu0 0.0
  %2761 = vmatpush2.msra.mxu0 0.0
  %2762 = vmatprep.subr.mxu0 0.0
  %2763 = vmatpush2.msra.mxu0 0.0
  %2764 = vmatprep.subr.mxu0 0.0
  %2765 = vmatpush2.msra.mxu0 0.0
  %2766 = vmatprep.subr.mxu0 0.0
  %2767 = vmatpush2.msra.mxu0 0.0
  %2768 = vmatprep.subr.mxu0 0.0
  %2769 = vmatpush2.msra.mxu0 0.0
  %2770 = vmatprep.subr.mxu0 0.0
  %2771 = vmatpush2.msra.mxu0 0.0
  %2772 = vmatprep.subr.mxu0 0.0
  %2773 = vmatpush2.msra.mxu0 0.0
  %2774 = vmatprep.subr.mxu0 0.0
  %2775 = vmatpush2.msra.mxu0 0.0
  %2776 = vmatprep.subr.mxu0 0.0
  %2777 = vmatpush2.msra.mxu0 0.0
  %2778 = vmatprep.subr.mxu0 0.0
  %2779 = vmatpush2.msra.mxu0 0.0
  %2780 = vmatprep.subr.mxu0 0.0
  %2781 = vmatpush2.msra.mxu0 0.0
  %2782 = vmatprep.subr.mxu0 0.0
  %2783 = vmatpush2.msra.mxu0 0.0
  %2784 = vmatprep.subr.mxu0 0.0
  %2785 = vmatpush2.msra.mxu0 0.0
  %2786 = vmatprep.subr.mxu0 0.0
  %2787 = vmatpush2.msra.mxu0 0.0
  %2788 = vmatprep.subr.mxu0 0.0
  %2789 = vmatpush2.msra.mxu0 0.0
  %2790 = vmatprep.mubr.f32.mxu0 0.0
  %2791 = vmatmul.mubr.f32.gmra.mxu0 %v2724
  %v2792 = vpop.f32.mrf.mxu0
  %v2793 = vadd.f32 %v2720, %v2792
  %v2794 = vpop.f32.mrf.mxu0
  %2795 = vdwg.mxu0
  %v2796 = vadd.f32 %v2793, %v2566
  %v2797 = vld [vmem:[%s6] sm:$0x1]
  %v2798 = vlaneseq
  %v2799 = vshrl.u32 %v2798, 7
  %v2800 = vsub.s32 0, %v2799
  %v2801 = vrot.slane %v2797, %v2800
  %v2802 = vadd.f32 %v2796, %v2801
  %v2803 = vxor.u32 %v2802, 2147483648
  %v2804 = vmul.f32 %v2803, 1.442695
  %v2805 = vpow.pop %v2804
  %v2806 = vadd.f32 %v2805, 1.0
  %v2807 = vrcp.pop %v2806
  %v2808 = vmul.f32 1.0, %v2807
  %v2809 = vtanh.pop %v2802
  %v2810 = vld [vmem:[#allocation3] sm:$0x3]
  %2812 = vrot.lane.b32.xlu0 %v2810, 32
  %v2813 = vpop.permute.xlu0 %2812
  %v2815 = vmul.f32 %v2808, %v2813
  %2817 = vrot.lane.b32.xlu0 %v2809, 64
  %v2818 = vpop.permute.xlu0 %2817
  %v2820 = vmul.f32 %v2808, %v2818
  %2822 = vrot.lane.b32.xlu0 %v2820, 32
  %v2823 = vpop.permute.xlu0 %2822
  %v2825 = vadd.f32 %v2815, %v2823
  %v2826 = vtanh.pop %v2825
  %2828 = vrot.lane.b32.xlu0 %v2826, 64
  %v2829 = vpop.permute.xlu0 %2828
  %v2831 = vmul.f32 %v2808, %v2829
  %2833 = vrot.lane.b32.xlu0 %v2825, 96
  %v2834 = vpop.permute.xlu0 %2833
  %2836 = vst.msk [vmem:[#allocation3] sm:$0x3] %vm33, %v2834
  %2838 = vrot.lane.b32.xlu0 %v2831, 32
  %v2839 = vpop.permute.xlu0 %2838
  %2841 = vst.msk [vmem:[#allocation2] sm:$0x3] %vm33, %v2839
  %v2842 = vld [vmem:[%s4 + $0x40] sm:$0xff]
  %v2843 = vld [vmem:[%s4 + $0x48] sm:$0xff]
  %v2844 = vld [vmem:[%s4 + $0x50] sm:$0xff]
  %v2845 = vld [vmem:[%s4 + $0x58] sm:$0xff]
  %v2846 = vsel %vm46, %v2839, 0
  %2848 = vmatprep.subr.mxu0 0.0
  %2849 = vmatpush1.msra.mxu0 0.0
  %2850 = vmatprep.subr.mxu0 0.0
  %2851 = vmatpush1.msra.mxu0 0.0
  %2852 = vmatprep.subr.mxu0 0.0
  %2853 = vmatpush1.msra.mxu0 0.0
  %2854 = vmatprep.subr.mxu0 0.0
  %2855 = vmatpush1.msra.mxu0 0.0
  %2856 = vmatprep.subr.mxu0 0.0
  %2857 = vmatpush1.msra.mxu0 0.0
  %2858 = vmatprep.subr.mxu0 0.0
  %2859 = vmatpush1.msra.mxu0 0.0
  %2860 = vmatprep.subr.mxu0 0.0
  %2861 = vmatpush1.msra.mxu0 0.0
  %2862 = vmatprep.subr.mxu0 0.0
  %2863 = vmatpush1.msra.mxu0 0.0
  %2864 = vmatprep.subr.mxu0 0.0
  %2865 = vmatpush1.msra.mxu0 0.0
  %2866 = vmatprep.subr.mxu0 0.0
  %2867 = vmatpush1.msra.mxu0 0.0
  %2868 = vmatprep.subr.mxu0 0.0
  %2869 = vmatpush1.msra.mxu0 0.0
  %2870 = vmatprep.subr.mxu0 0.0
  %2871 = vmatpush1.msra.mxu0 0.0
  %2872 = vmatprep.subr.mxu0 0.0
  %2873 = vmatpush1.msra.mxu0 %v2845
  %2874 = vmatprep.subr.mxu0 0.0
  %2875 = vmatpush1.msra.mxu0 %v2844
  %2876 = vmatprep.subr.mxu0 0.0
  %2877 = vmatpush1.msra.mxu0 %v2843
  %2878 = vmatprep.subr.mxu0 0.0
  %2879 = vmatpush1.msra.mxu0 %v2842
  %2880 = vmatprep.subr.mxu0 0.0
  %2881 = vmatpush2.msra.mxu0 0.0
  %2882 = vmatprep.subr.mxu0 0.0
  %2883 = vmatpush2.msra.mxu0 0.0
  %2884 = vmatprep.subr.mxu0 0.0
  %2885 = vmatpush2.msra.mxu0 0.0
  %2886 = vmatprep.subr.mxu0 0.0
  %2887 = vmatpush2.msra.mxu0 0.0
  %2888 = vmatprep.subr.mxu0 0.0
  %2889 = vmatpush2.msra.mxu0 0.0
  %2890 = vmatprep.subr.mxu0 0.0
  %2891 = vmatpush2.msra.mxu0 0.0
  %2892 = vmatprep.subr.mxu0 0.0
  %2893 = vmatpush2.msra.mxu0 0.0
  %2894 = vmatprep.subr.mxu0 0.0
  %2895 = vmatpush2.msra.mxu0 0.0
  %2896 = vmatprep.subr.mxu0 0.0
  %2897 = vmatpush2.msra.mxu0 0.0
  %2898 = vmatprep.subr.mxu0 0.0
  %2899 = vmatpush2.msra.mxu0 0.0
  %2900 = vmatprep.subr.mxu0 0.0
  %2901 = vmatpush2.msra.mxu0 0.0
  %2902 = vmatprep.subr.mxu0 0.0
  %2903 = vmatpush2.msra.mxu0 0.0
  %2904 = vmatprep.subr.mxu0 0.0
  %2905 = vmatpush2.msra.mxu0 0.0
  %2906 = vmatprep.subr.mxu0 0.0
  %2907 = vmatpush2.msra.mxu0 0.0
  %2908 = vmatprep.subr.mxu0 0.0
  %2909 = vmatpush2.msra.mxu0 0.0
  %2910 = vmatprep.subr.mxu0 0.0
  %2911 = vmatpush2.msra.mxu0 0.0
  %2912 = vmatprep.mubr.f32.mxu0 0.0
  %2913 = vmatmul.mubr.f32.gmra.mxu0 %v2846
  %v2914 = vpop.f32.mrf.mxu0
  %v2915 = vadd.f32 %v2568, %v2914
  %v2916 = vpop.f32.mrf.mxu0
  %2917 = vdwg.mxu0
  %v2918 = vld [vmem:[%s6 + $0x1] sm:$0x1]
  %v2919 = vlaneseq
  %v2920 = vshrl.u32 %v2919, 7
  %v2921 = vsub.s32 0, %v2920
  %v2922 = vrot.slane %v2918, %v2921
  %v2923 = vadd.f32 %v2915, %v2922
  %v2924 = vxor.u32 %v2923, 2147483648
  %v2925 = vmul.f32 %v2924, 1.442695
  %v2926 = vpow.pop %v2925
  %v2927 = vadd.f32 %v2926, 1.0
  %v2928 = vrcp.pop %v2927
  %v2929 = vmul.f32 1.0, %v2928
  %v2930 = vtanh.pop %v2923
  %v2931 = vld [vmem:[#allocation3] sm:$0x3]
  %v2932 = vmul.f32 %v2929, %v2931
  %2934 = vrot.lane.b32.xlu0 %v2930, 64
  %v2935 = vpop.permute.xlu0 %2934
  %v2937 = vmul.f32 %v2929, %v2935
  %2939 = vrot.lane.b32.xlu0 %v2937, 32
  %v2940 = vpop.permute.xlu0 %2939
  %v2942 = vadd.f32 %v2932, %v2940
  %v2943 = vtanh.pop %v2942
  %2945 = vrot.lane.b32.xlu0 %v2943, 64
  %v2946 = vpop.permute.xlu0 %2945
  %v2948 = vmul.f32 %v2929, %v2946
  %2949 = vst.msk [vmem:[#allocation3] sm:$0x3] %vm854, %v2942
  %2951 = vrot.lane.b32.xlu0 %v2948, 64
  %v2952 = vpop.permute.xlu0 %2951
  %2954 = vst.msk [vmem:[#allocation2] sm:$0x3] %vm854, %v2952
  %v2955 = vld [vmem:[%s4 + $0x60] sm:$0xff]
  %v2956 = vld [vmem:[%s4 + $0x68] sm:$0xff]
  %v2957 = vld [vmem:[%s4 + $0x70] sm:$0xff]
  %v2958 = vld [vmem:[%s4 + $0x78] sm:$0xff]
  %2959 = vrot.lane.b32.xlu0 %v2948, 32
  %v2960 = vpop.permute.xlu0 %2959
  %v2961 = vsel %vm46, %v2960, 0
  %2963 = vmatprep.subr.mxu0 0.0
  %2964 = vmatpush1.msra.mxu0 0.0
  %2965 = vmatprep.subr.mxu0 0.0
  %2966 = vmatpush1.msra.mxu0 0.0
  %2967 = vmatprep.subr.mxu0 0.0
  %2968 = vmatpush1.msra.mxu0 0.0
  %2969 = vmatprep.subr.mxu0 0.0
  %2970 = vmatpush1.msra.mxu0 0.0
  %2971 = vmatprep.subr.mxu0 0.0
  %2972 = vmatpush1.msra.mxu0 0.0
  %2973 = vmatprep.subr.mxu0 0.0
  %2974 = vmatpush1.msra.mxu0 0.0
  %2975 = vmatprep.subr.mxu0 0.0
  %2976 = vmatpush1.msra.mxu0 0.0
  %2977 = vmatprep.subr.mxu0 0.0
  %2978 = vmatpush1.msra.mxu0 0.0
  %2979 = vmatprep.subr.mxu0 0.0
  %2980 = vmatpush1.msra.mxu0 0.0
  %2981 = vmatprep.subr.mxu0 0.0
  %2982 = vmatpush1.msra.mxu0 0.0
  %2983 = vmatprep.subr.mxu0 0.0
  %2984 = vmatpush1.msra.mxu0 0.0
  %2985 = vmatprep.subr.mxu0 0.0
  %2986 = vmatpush1.msra.mxu0 0.0
  %2987 = vmatprep.subr.mxu0 0.0
  %2988 = vmatpush1.msra.mxu0 %v2958
  %2989 = vmatprep.subr.mxu0 0.0
  %2990 = vmatpush1.msra.mxu0 %v2957
  %2991 = vmatprep.subr.mxu0 0.0
  %2992 = vmatpush1.msra.mxu0 %v2956
  %2993 = vmatprep.subr.mxu0 0.0
  %2994 = vmatpush1.msra.mxu0 %v2955
  %2995 = vmatprep.subr.mxu0 0.0
  %2996 = vmatpush2.msra.mxu0 0.0
  %2997 = vmatprep.subr.mxu0 0.0
  %2998 = vmatpush2.msra.mxu0 0.0
  %2999 = vmatprep.subr.mxu0 0.0
  %3000 = vmatpush2.msra.mxu0 0.0
  %3001 = vmatprep.subr.mxu0 0.0
  %3002 = vmatpush2.msra.mxu0 0.0
  %3003 = vmatprep.subr.mxu0 0.0
  %3004 = vmatpush2.msra.mxu0 0.0
  %3005 = vmatprep.subr.mxu0 0.0
  %3006 = vmatpush2.msra.mxu0 0.0
  %3007 = vmatprep.subr.mxu0 0.0
  %3008 = vmatpush2.msra.mxu0 0.0
  %3009 = vmatprep.subr.mxu0 0.0
  %3010 = vmatpush2.msra.mxu0 0.0
  %3011 = vmatprep.subr.mxu0 0.0
  %3012 = vmatpush2.msra.mxu0 0.0
  %3013 = vmatprep.subr.mxu0 0.0
  %3014 = vmatpush2.msra.mxu0 0.0
  %3015 = vmatprep.subr.mxu0 0.0
  %3016 = vmatpush2.msra.mxu0 0.0
  %3017 = vmatprep.subr.mxu0 0.0
  %3018 = vmatpush2.msra.mxu0 0.0
  %3019 = vmatprep.subr.mxu0 0.0
  %3020 = vmatpush2.msra.mxu0 0.0
  %3021 = vmatprep.subr.mxu0 0.0
  %3022 = vmatpush2.msra.mxu0 0.0
  %3023 = vmatprep.subr.mxu0 0.0
  %3024 = vmatpush2.msra.mxu0 0.0
  %3025 = vmatprep.subr.mxu0 0.0
  %3026 = vmatpush2.msra.mxu0 0.0
  %3027 = vmatprep.mubr.f32.mxu0 0.0
  %3028 = vmatmul.mubr.f32.gmra.mxu0 %v2961
  %v3029 = vpop.f32.mrf.mxu0
  %v3030 = vadd.f32 %v2637, %v3029
  %v3031 = vpop.f32.mrf.mxu0
  %3032 = vdwg.mxu0
  %v3033 = vld [vmem:[%s6 + $0x2] sm:$0x1]
  %v3034 = vlaneseq
  %v3035 = vshrl.u32 %v3034, 7
  %v3036 = vsub.s32 0, %v3035
  %v3037 = vrot.slane %v3033, %v3036
  %v3038 = vadd.f32 %v3030, %v3037
  %v3039 = vxor.u32 %v3038, 2147483648
  %v3040 = vmul.f32 %v3039, 1.442695
  %v3041 = vpow.pop %v3040
  %v3042 = vadd.f32 %v3041, 1.0
  %v3043 = vrcp.pop %v3042
  %v3044 = vmul.f32 1.0, %v3043
  %v3045 = vtanh.pop %v3038
  %v3046 = vld [vmem:[#allocation3] sm:$0x3]
  %3048 = vrot.lane.b32.xlu0 %v3046, 96
  %v3049 = vpop.permute.xlu0 %3048
  %v3051 = vmul.f32 %v3044, %v3049
  %3053 = vrot.lane.b32.xlu0 %v3045, 64
  %v3054 = vpop.permute.xlu0 %3053
  %v3056 = vmul.f32 %v3044, %v3054
  %3058 = vrot.lane.b32.xlu0 %v3056, 32
  %v3059 = vpop.permute.xlu0 %3058
  %v3061 = vadd.f32 %v3051, %v3059
  %v3062 = vtanh.pop %v3061
  %3064 = vrot.lane.b32.xlu0 %v3062, 64
  %v3065 = vpop.permute.xlu0 %3064
  %v3067 = vmul.f32 %v3044, %v3065
  %3069 = vrot.lane.b32.xlu0 %v3061, 32
  %v3070 = vpop.permute.xlu0 %3069
  %3072 = vst.msk [vmem:[#allocation3] sm:$0x3] %vm978, %v3070
  %3074 = vrot.lane.b32.xlu0 %v3067, 96
  %v3075 = vpop.permute.xlu0 %3074
  %3077 = vst.msk [vmem:[#allocation2] sm:$0x3] %vm978, %v3075
  %v3078 = vld [vmem:[%s7] sm:$0xff]
  %v3079 = vld [vmem:[%s7 + $0x8] sm:$0xff]
  %v3080 = vld [vmem:[%s7 + $0x10] sm:$0xff]
  %v3081 = vld [vmem:[%s7 + $0x18] sm:$0xff]
  %v3082 = vld [vmem:[%s7 + $0x20] sm:$0x1]
  %v3083 = vlaneseq
  %v3084 = vshrl.u32 %v3083, 7
  %v3085 = vsub.s32 0, %v3084
  %v3086 = vrot.slane %v3082, %v3085
  %3087 = vrot.lane.b32.xlu0 %v3067, 32
  %v3088 = vpop.permute.xlu0 %3087
  %v3089 = vsel %vm46, %v3088, 0
  %3091 = vmatprep.subr.mxu0 0.0
  %3092 = vmatpush1.msra.mxu0 0.0
  %3093 = vmatprep.subr.mxu0 0.0
  %3094 = vmatpush1.msra.mxu0 0.0
  %3095 = vmatprep.subr.mxu0 0.0
  %3096 = vmatpush1.msra.mxu0 0.0
  %3097 = vmatprep.subr.mxu0 0.0
  %3098 = vmatpush1.msra.mxu0 0.0
  %3099 = vmatprep.subr.mxu0 0.0
  %3100 = vmatpush1.msra.mxu0 0.0
  %3101 = vmatprep.subr.mxu0 0.0
  %3102 = vmatpush1.msra.mxu0 0.0
  %3103 = vmatprep.subr.mxu0 0.0
  %3104 = vmatpush1.msra.mxu0 0.0
  %3105 = vmatprep.subr.mxu0 0.0
  %3106 = vmatpush1.msra.mxu0 0.0
  %3107 = vmatprep.subr.mxu0 0.0
  %3108 = vmatpush1.msra.mxu0 0.0
  %3109 = vmatprep.subr.mxu0 0.0
  %3110 = vmatpush1.msra.mxu0 0.0
  %3111 = vmatprep.subr.mxu0 0.0
  %3112 = vmatpush1.msra.mxu0 0.0
  %3113 = vmatprep.subr.mxu0 0.0
  %3114 = vmatpush1.msra.mxu0 0.0
  %3115 = vmatprep.subr.mxu0 0.0
  %3116 = vmatpush1.msra.mxu0 %v3081
  %3117 = vmatprep.subr.mxu0 0.0
  %3118 = vmatpush1.msra.mxu0 %v3080
  %3119 = vmatprep.subr.mxu0 0.0
  %3120 = vmatpush1.msra.mxu0 %v3079
  %3121 = vmatprep.subr.mxu0 0.0
  %3122 = vmatpush1.msra.mxu0 %v3078
  %3123 = vmatprep.subr.mxu0 0.0
  %3124 = vmatpush2.msra.mxu0 0.0
  %3125 = vmatprep.subr.mxu0 0.0
  %3126 = vmatpush2.msra.mxu0 0.0
  %3127 = vmatprep.subr.mxu0 0.0
  %3128 = vmatpush2.msra.mxu0 0.0
  %3129 = vmatprep.subr.mxu0 0.0
  %3130 = vmatpush2.msra.mxu0 0.0
  %3131 = vmatprep.subr.mxu0 0.0
  %3132 = vmatpush2.msra.mxu0 0.0
  %3133 = vmatprep.subr.mxu0 0.0
  %3134 = vmatpush2.msra.mxu0 0.0
  %3135 = vmatprep.subr.mxu0 0.0
  %3136 = vmatpush2.msra.mxu0 0.0
  %3137 = vmatprep.subr.mxu0 0.0
  %3138 = vmatpush2.msra.mxu0 0.0
  %3139 = vmatprep.subr.mxu0 0.0
  %3140 = vmatpush2.msra.mxu0 0.0
  %3141 = vmatprep.subr.mxu0 0.0
  %3142 = vmatpush2.msra.mxu0 0.0
  %3143 = vmatprep.subr.mxu0 0.0
  %3144 = vmatpush2.msra.mxu0 0.0
  %3145 = vmatprep.subr.mxu0 0.0
  %3146 = vmatpush2.msra.mxu0 0.0
  %3147 = vmatprep.subr.mxu0 0.0
  %3148 = vmatpush2.msra.mxu0 0.0
  %3149 = vmatprep.subr.mxu0 0.0
  %3150 = vmatpush2.msra.mxu0 0.0
  %3151 = vmatprep.subr.mxu0 0.0
  %3152 = vmatpush2.msra.mxu0 0.0
  %3153 = vmatprep.subr.mxu0 0.0
  %3154 = vmatpush2.msra.mxu0 0.0
  %3155 = vmatprep.mubr.f32.mxu0 0.0
  %3156 = vmatmul.mubr.f32.gmra.mxu0 %v3089
  %v3157 = vpop.f32.mrf.mxu0
  %v3158 = vadd.f32 %v3086, %v3157
  %v3159 = vpop.f32.mrf.mxu0
  %3160 = vdwg.mxu0
  %v3161 = vsel %vm1068, %v3158, -inf
  %3162 = vmax.xlane.f32.xlu0 %v3161
  %v3163 = vpop.xlane.xlu0 %3162
  %v3164 = vsub.f32 %v3158, %v3163
  %v3165 = vmul.f32 %v3164, 1.442695
  %v3166 = vpow.pop %v3165
  %v3167 = vsel %vm1068, %v3166, 0.0
  %3168 = vadd.xlane.f32.xlu0 %v3167
  %v3169 = vpop.xlane.xlu0 %3168
  %v3170 = vlog2.pop %v3169
  %v3171 = vmul.f32 %v3170, 0.6931472
  %v3172 = vsub.f32 %v3164, %v3171
  %3174 = vrot.lane.b32.xlu0 %v3172, 32
  %v3175 = vpop.permute.xlu0 %3174
  %vm3177 = vcmask 386304
  %3178 = vst.msk [vmem:[%s8] sm:$0x3] %vm3177, %v3175
  %v3179 = vsel %vm1068, %v3172, -inf
  %3180 = vmax.xlane.f32.xlu0 %v3179
  %v3181 = vpop.xlane.xlu0 %3180
  %vm3182 = vcmp.eq.f32.partialorder %v3172, %v3181
  %v3183 = vsel %vm3182, %v268, 16
  %v3184 = vsel %vm1068, %v3183, 2147483647
  %v3185 = vand.u32 %v3184, 65535
  %v3186 = vshra.s32 %v3184, 16
  %v3187 = vcvt.s32.f32 %v3185
  %v3188 = vcvt.s32.f32 %v3186
  %3189 = vmin.xlane.f32.xlu0 %v3188
  %v3190 = vpop.xlane.xlu0 %3189
  %vm3191 = vcmp.eq.f32.partialorder %v3188, %v3190
  %v3192 = vsel %vm3191, %v3187, inf
  %3193 = vmin.xlane.f32.xlu0 %v3192
  %v3194 = vpop.xlane.xlu0 %3193
  %v3195 = vcvt.f32.s32 %v3194
  %v3196 = vcvt.f32.s32 %v3190
  %v3197 = vshll.u32 %v3196, 16
  %v3198 = vadd.s32 %v3197, %v3195
  %vm3199 = vcmp.eq.s32.totalorder %v268, %v3198
  %v3200 = vsel %vm3199, 1, 0
  %v3201 = vcvt.s32.f32 %v3200
  %v3202 = vld [vmem:[%s2] sm:$0xff]
  %v3203 = vld [vmem:[%s2 + $0x8] sm:$0xff]
  %v3205 = vsel %vm1107, %v3201, 0
  %3207 = vmatprep.subr.mxu0 0.0
  %3208 = vmatpush1.msra.mxu0 0.0
  %3209 = vmatprep.subr.mxu0 0.0
  %3210 = vmatpush1.msra.mxu0 0.0
  %3211 = vmatprep.subr.mxu0 0.0
  %3212 = vmatpush1.msra.mxu0 0.0
  %3213 = vmatprep.subr.mxu0 0.0
  %3214 = vmatpush1.msra.mxu0 0.0
  %3215 = vmatprep.subr.mxu0 0.0
  %3216 = vmatpush1.msra.mxu0 0.0
  %3217 = vmatprep.subr.mxu0 0.0
  %3218 = vmatpush1.msra.mxu0 0.0
  %3219 = vmatprep.subr.mxu0 0.0
  %3220 = vmatpush1.msra.mxu0 0.0
  %3221 = vmatprep.subr.mxu0 0.0
  %3222 = vmatpush1.msra.mxu0 0.0
  %3223 = vmatprep.subr.mxu0 0.0
  %3224 = vmatpush1.msra.mxu0 0.0
  %3225 = vmatprep.subr.mxu0 0.0
  %3226 = vmatpush1.msra.mxu0 0.0
  %3227 = vmatprep.subr.mxu0 0.0
  %3228 = vmatpush1.msra.mxu0 0.0
  %3229 = vmatprep.subr.mxu0 0.0
  %3230 = vmatpush1.msra.mxu0 0.0
  %3231 = vmatprep.subr.mxu0 0.0
  %3232 = vmatpush1.msra.mxu0 0.0
  %3233 = vmatprep.subr.mxu0 0.0
  %3234 = vmatpush1.msra.mxu0 0.0
  %3235 = vmatprep.subr.mxu0 0.0
  %3236 = vmatpush1.msra.mxu0 %v3203
  %3237 = vmatprep.subr.mxu0 0.0
  %3238 = vmatpush1.msra.mxu0 %v3202
  %3239 = vmatprep.subr.mxu0 0.0
  %3240 = vmatpush2.msra.mxu0 0.0
  %3241 = vmatprep.subr.mxu0 0.0
  %3242 = vmatpush2.msra.mxu0 0.0
  %3243 = vmatprep.subr.mxu0 0.0
  %3244 = vmatpush2.msra.mxu0 0.0
  %3245 = vmatprep.subr.mxu0 0.0
  %3246 = vmatpush2.msra.mxu0 0.0
  %3247 = vmatprep.subr.mxu0 0.0
  %3248 = vmatpush2.msra.mxu0 0.0
  %3249 = vmatprep.subr.mxu0 0.0
  %3250 = vmatpush2.msra.mxu0 0.0
  %3251 = vmatprep.subr.mxu0 0.0
  %3252 = vmatpush2.msra.mxu0 0.0
  %3253 = vmatprep.subr.mxu0 0.0
  %3254 = vmatpush2.msra.mxu0 0.0
  %3255 = vmatprep.subr.mxu0 0.0
  %3256 = vmatpush2.msra.mxu0 0.0
  %3257 = vmatprep.subr.mxu0 0.0
  %3258 = vmatpush2.msra.mxu0 0.0
  %3259 = vmatprep.subr.mxu0 0.0
  %3260 = vmatpush2.msra.mxu0 0.0
  %3261 = vmatprep.subr.mxu0 0.0
  %3262 = vmatpush2.msra.mxu0 0.0
  %3263 = vmatprep.subr.mxu0 0.0
  %3264 = vmatpush2.msra.mxu0 0.0
  %3265 = vmatprep.subr.mxu0 0.0
  %3266 = vmatpush2.msra.mxu0 0.0
  %3267 = vmatprep.subr.mxu0 0.0
  %3268 = vmatpush2.msra.mxu0 0.0
  %3269 = vmatprep.subr.mxu0 0.0
  %3270 = vmatpush2.msra.mxu0 0.0
  %3271 = vmatprep.mubr.f32.mxu0 0.0
  %3272 = vmatmul.mubr.f32.gmra.mxu0 %v3205
  %v3273 = vpop.f32.mrf.mxu0
  %v3274 = vadd.f32 0.0, %v3273
  %v3275 = vpop.f32.mrf.mxu0
  %3276 = vdwg.mxu0
  %3277 = vst.msk [vmem:[#allocation4] sm:$0x3] %vm33, %v3274
  %v3278 = vld [vmem:[%s0] sm:$0xff]
  %v3279 = vld [vmem:[%s0 + $0x8] sm:$0xff]
  %v3280 = vld [vmem:[#allocation4] sm:$0x3]
  %v3281 = vld [vmem:[#allocation2] sm:$0x3]
  %v3282 = vld [vmem:[%s3 + $0x20] sm:$0xff]
  %v3283 = vld [vmem:[%s3 + $0x28] sm:$0xff]
  %v3284 = vld [vmem:[%s3 + $0x30] sm:$0xff]
  %v3285 = vld [vmem:[%s3 + $0x38] sm:$0xff]
  %v3286 = vld [vmem:[%s3 + $0x41] sm:$0x1]
  %3288 = vrot.lane.b32.xlu0 %v3281, 64
  %v3289 = vpop.permute.xlu0 %3288
  %v3290 = vsel %vm46, %v3289, 0
  %3292 = vmatprep.subr.mxu0 0.0
  %3293 = vmatpush1.msra.mxu0 0.0
  %3294 = vmatprep.subr.mxu0 0.0
  %3295 = vmatpush1.msra.mxu0 0.0
  %3296 = vmatprep.subr.mxu0 0.0
  %3297 = vmatpush1.msra.mxu0 0.0
  %3298 = vmatprep.subr.mxu0 0.0
  %3299 = vmatpush1.msra.mxu0 0.0
  %3300 = vmatprep.subr.mxu0 0.0
  %3301 = vmatpush1.msra.mxu0 0.0
  %3302 = vmatprep.subr.mxu0 0.0
  %3303 = vmatpush1.msra.mxu0 0.0
  %3304 = vmatprep.subr.mxu0 0.0
  %3305 = vmatpush1.msra.mxu0 0.0
  %3306 = vmatprep.subr.mxu0 0.0
  %3307 = vmatpush1.msra.mxu0 0.0
  %3308 = vmatprep.subr.mxu0 0.0
  %3309 = vmatpush1.msra.mxu0 0.0
  %3310 = vmatprep.subr.mxu0 0.0
  %3311 = vmatpush1.msra.mxu0 0.0
  %3312 = vmatprep.subr.mxu0 0.0
  %3313 = vmatpush1.msra.mxu0 0.0
  %3314 = vmatprep.subr.mxu0 0.0
  %3315 = vmatpush1.msra.mxu0 0.0
  %3316 = vmatprep.subr.mxu0 0.0
  %3317 = vmatpush1.msra.mxu0 %v3285
  %3318 = vmatprep.subr.mxu0 0.0
  %3319 = vmatpush1.msra.mxu0 %v3284
  %3320 = vmatprep.subr.mxu0 0.0
  %3321 = vmatpush1.msra.mxu0 %v3283
  %3322 = vmatprep.subr.mxu0 0.0
  %3323 = vmatpush1.msra.mxu0 %v3282
  %3324 = vmatprep.subr.mxu0 0.0
  %3325 = vmatpush2.msra.mxu0 0.0
  %3326 = vmatprep.subr.mxu0 0.0
  %3327 = vmatpush2.msra.mxu0 0.0
  %3328 = vmatprep.subr.mxu0 0.0
  %3329 = vmatpush2.msra.mxu0 0.0
  %3330 = vmatprep.subr.mxu0 0.0
  %3331 = vmatpush2.msra.mxu0 0.0
  %3332 = vmatprep.subr.mxu0 0.0
  %3333 = vmatpush2.msra.mxu0 0.0
  %3334 = vmatprep.subr.mxu0 0.0
  %3335 = vmatpush2.msra.mxu0 0.0
  %3336 = vmatprep.subr.mxu0 0.0
  %3337 = vmatpush2.msra.mxu0 0.0
  %3338 = vmatprep.subr.mxu0 0.0
  %3339 = vmatpush2.msra.mxu0 0.0
  %3340 = vmatprep.subr.mxu0 0.0
  %3341 = vmatpush2.msra.mxu0 0.0
  %3342 = vmatprep.subr.mxu0 0.0
  %3343 = vmatpush2.msra.mxu0 0.0
  %3344 = vmatprep.subr.mxu0 0.0
  %3345 = vmatpush2.msra.mxu0 0.0
  %3346 = vmatprep.subr.mxu0 0.0
  %3347 = vmatpush2.msra.mxu0 0.0
  %3348 = vmatprep.subr.mxu0 0.0
  %3349 = vmatpush2.msra.mxu0 0.0
  %3350 = vmatprep.subr.mxu0 0.0
  %3351 = vmatpush2.msra.mxu0 0.0
  %3352 = vmatprep.subr.mxu0 0.0
  %3353 = vmatpush2.msra.mxu0 0.0
  %3354 = vmatprep.subr.mxu0 0.0
  %3355 = vmatpush2.msra.mxu0 0.0
  %3356 = vmatprep.mubr.f32.mxu0 0.0
  %3357 = vmatmul.mubr.f32.gmra.mxu0 %v3290
  %v3358 = vpop.f32.mrf.mxu0
  %v3359 = vadd.f32 0.0, %v3358
  %v3360 = vpop.f32.mrf.mxu0
  %3361 = vdwg.mxu0
  %v3362 = vld [vmem:[#allocation5] sm:$0xff]
  %v3363 = vld [vmem:[#allocation5 + $0x8] sm:$0xff]
  %v3366 = vunpack.c.l.s4 1966171168
  %v3367 = vunpack.c.0.s8 %v3366
  %v3368 = vlaneseq
  %v3369 = vshrl.u32 %v3368, 7
  %v3370 = vsub.s32 %v3367, %v3369
  %v3371 = vrot.slane %v3359, %v3370
  %v3372 = vcombine.high %v3371, %v3371
  %v3374 = vunpack.c.l.s4 1966171168
  %v3375 = vunpack.c.0.s8 %v3374
  %v3376 = vlaneseq
  %v3377 = vshrl.u32 %v3376, 7
  %v3378 = vsub.s32 %v3375, %v3377
  %v3379 = vrot.slane %v3371, %v3378
  %v3381 = vunpack.c.l.s4 1966171168
  %v3382 = vunpack.c.0.s8 %v3381
  %v3383 = vlaneseq
  %v3384 = vshrl.u32 %v3383, 7
  %v3385 = vsub.s32 %v3382, %v3384
  %v3386 = vrot.slane %v3372, %v3385
  %v3387 = vlaneseq
  %v3388 = vshrl.u32 %v3387, 7
  %v3389 = vsub.s32 0, %v3388
  %v3390 = vrot.slane %v3379, %v3389
  %v3391 = vlaneseq
  %v3392 = vshrl.u32 %v3391, 7
  %v3393 = vsub.s32 0, %v3392
  %v3394 = vrot.slane %v3386, %v3393
  %v3397 = vadd.f32 %v3362, %v3390
  %v3398 = vadd.f32 %v3363, %v3394
  %v3399 = vmax.f32 %v3397, 0.0
  %v3400 = vmax.f32 %v3398, 0.0
  %v3401 = vlaneseq
  %v3402 = vshrl.u32 %v3401, 7
  %v3403 = vsub.s32 0, %v3402
  %v3404 = vrot.slane %v3286, %v3403
  %v3405 = vmul.f32 %v3399, %v3404
  %v3406 = vmul.f32 %v3400, %v3404
  %v3407 = vsel %vm46, %v3405, 0.0
  %3408 = vadd.xlane.f32.xlu0 %v3407
  %v3409 = vpop.xlane.xlu0 %3408
  %v3410 = vsel %vm46, %v3406, 0.0
  %3411 = vadd.xlane.f32.xlu0 %v3410
  %v3412 = vpop.xlane.xlu0 %3411
  %v3415 = vlaneseq
  %v3416 = vshrl.u32 %v3415, 7
  %v3417 = vsub.s32 %v268, %v3416
  %v3418 = vrot.slane %v3409, %v3417
  %v3419 = vlaneseq
  %v3420 = vshrl.u32 %v3419, 7
  %v3421 = vsub.s32 %v268, %v3420
  %v3422 = vrot.slane %v3412, %v3421
  %v3423 = vsel %vm277, %v3422, %v3418
  %v3425 = vsel %vm280, %v3423, -inf
  %3426 = vmax.xlane.f32.xlu0 %v3425
  %v3427 = vpop.xlane.xlu0 %3426
  %v3429 = vlaneseq
  %v3430 = vshrl.u32 %v3429, 7
  %v3431 = vsub.s32 0, %v3430
  %v3432 = vrot.slane %v3427, %v3431
  %v3433 = vlaneseq
  %v3434 = vshrl.u32 %v3433, 7
  %v3435 = vsub.s32 1, %v3434
  %v3436 = vrot.slane %v3427, %v3435
  %v3439 = vsub.f32 %v3409, %v3432
  %v3440 = vsub.f32 %v3412, %v3436
  %v3441 = vmul.f32 %v3439, 1.442695
  %v3442 = vpow.pop %v3441
  %v3443 = vmul.f32 %v3440, 1.442695
  %v3444 = vpow.pop %v3443
  %3447 = vset.pattern.permute.xlu0 0
  %3448 = vperm.xlu0 %3447, %v3442
  %v3449 = vpop.permute.xlu0 %3448
  %3450 = vset.pattern.permute.xlu0 0
  %3451 = vperm.xlu0 %3450, %v3444
  %v3452 = vpop.permute.xlu0 %3451
  %v3453 = vlaneseq
  %v3454 = vshrl.u32 %v3453, 7
  %v3455 = vsub.s32 %v268, %v3454
  %v3456 = vrot.slane %v3449, %v3455
  %v3457 = vlaneseq
  %v3458 = vshrl.u32 %v3457, 7
  %v3459 = vsub.s32 %v268, %v3458
  %v3460 = vrot.slane %v3452, %v3459
  %v3461 = vsel %vm277, %v3460, %v3456
  %v3463 = vsel %vm280, %v3461, 0.0
  %3464 = vadd.xlane.f32.xlu0 %v3463
  %v3465 = vpop.xlane.xlu0 %3464
  %v3466 = vlog2.pop %v3465
  %v3467 = vmul.f32 %v3466, 0.6931472
  %v3469 = vlaneseq
  %v3470 = vshrl.u32 %v3469, 7
  %v3471 = vsub.s32 0, %v3470
  %v3472 = vrot.slane %v3467, %v3471
  %v3473 = vlaneseq
  %v3474 = vshrl.u32 %v3473, 7
  %v3475 = vsub.s32 1, %v3474
  %v3476 = vrot.slane %v3467, %v3475
  %v3479 = vsub.f32 %v3439, %v3472
  %v3480 = vsub.f32 %v3440, %v3476
  %3482 = vset.pattern.permute.xlu0 0
  %3483 = vperm.xlu0 %3482, %v3479
  %v3484 = vpop.permute.xlu0 %3483
  %3487 = vset.pattern.permute.xlu0 0
  %3488 = vperm.xlu0 %3487, %v3480
  %v3489 = vpop.permute.xlu0 %3488
  %v3491 = vmul.f32 %v3484, %v3278
  %v3492 = vmul.f32 %v3489, %v3279
  %v3493 = vsel %vm46, %v3491, 0.0
  %v3494 = vrot.slane %v3493, 4
  %v3495 = vadd.f32 %v3493, %v3494
  %v3496 = vrot.slane %v3495, 2
  %v3497 = vadd.f32 %v3495, %v3496
  %v3498 = vrot.slane %v3497, 1
  %v3499 = vadd.f32 %v3497, %v3498
  %v3500 = vsel %vm46, %v3492, 0.0
  %v3501 = vrot.slane %v3500, 4
  %v3502 = vadd.f32 %v3500, %v3501
  %v3503 = vrot.slane %v3502, 2
  %v3504 = vadd.f32 %v3502, %v3503
  %v3505 = vrot.slane %v3504, 1
  %v3506 = vadd.f32 %v3504, %v3505
  %v3507 = vld [vmem:[#allocation2] sm:$0x3]
  %v3508 = vld [vmem:[%s5] sm:$0xff]
  %v3509 = vld [vmem:[%s5 + $0x8] sm:$0xff]
  %v3510 = vld [vmem:[%s5 + $0x10] sm:$0xff]
  %v3511 = vld [vmem:[%s5 + $0x18] sm:$0xff]
  %v3512 = vld [vmem:[%s5 + $0x20] sm:$0xff]
  %v3513 = vld [vmem:[%s5 + $0x28] sm:$0xff]
  %v3514 = vld [vmem:[%s5 + $0x30] sm:$0xff]
  %v3515 = vld [vmem:[%s5 + $0x38] sm:$0xff]
  %v3516 = vld [vmem:[%s5 + $0x40] sm:$0xff]
  %v3517 = vld [vmem:[%s5 + $0x48] sm:$0xff]
  %v3518 = vld [vmem:[%s5 + $0x50] sm:$0xff]
  %v3519 = vld [vmem:[%s5 + $0x58] sm:$0xff]
  %v3520 = vld [vmem:[%s5 + $0x60] sm:$0xff]
  %v3521 = vld [vmem:[%s5 + $0x68] sm:$0xff]
  %v3522 = vld [vmem:[%s5 + $0x70] sm:$0xff]
  %v3523 = vld [vmem:[%s5 + $0x78] sm:$0xff]
  %v3524 = vld [vmem:[%s5 + $0x80] sm:$0xff]
  %v3525 = vld [vmem:[%s5 + $0x88] sm:$0xff]
  %v3526 = vld [vmem:[%s5 + $0x90] sm:$0xff]
  %v3527 = vld [vmem:[%s5 + $0x98] sm:$0xff]
  %v3528 = vld [vmem:[%s5 + $0xa0] sm:$0xff]
  %v3529 = vld [vmem:[%s5 + $0xa8] sm:$0xff]
  %v3530 = vld [vmem:[%s5 + $0xb0] sm:$0xff]
  %v3531 = vld [vmem:[%s5 + $0xb8] sm:$0xff]
  %v3532 = vld [vmem:[%s5 + $0xc0] sm:$0xff]
  %v3533 = vld [vmem:[%s5 + $0xc8] sm:$0xff]
  %v3534 = vld [vmem:[%s5 + $0xd0] sm:$0xff]
  %v3535 = vld [vmem:[%s5 + $0xd8] sm:$0xff]
  %v3536 = vld [vmem:[%s5 + $0xe0] sm:$0xff]
  %v3537 = vld [vmem:[%s5 + $0xe8] sm:$0xff]
  %v3538 = vld [vmem:[%s5 + $0xf0] sm:$0xff]
  %v3539 = vld [vmem:[%s5 + $0xf8] sm:$0xff]
  %v3540 = vld [vmem:[%s5 + $0x100] sm:$0xff]
  %v3541 = vld [vmem:[%s5 + $0x108] sm:$0xff]
  %v3542 = vld [vmem:[%s5 + $0x110] sm:$0xff]
  %v3543 = vld [vmem:[%s5 + $0x118] sm:$0xff]
  %v3545 = vsel %vm400, %v3507, 0
  %3547 = vmatprep.subr.mxu0 0.0
  %3548 = vmatpush1.msra.mxu0 0.0
  %3549 = vmatprep.subr.mxu0 0.0
  %3550 = vmatpush1.msra.mxu0 0.0
  %3551 = vmatprep.subr.mxu0 0.0
  %3552 = vmatpush1.msra.mxu0 0.0
  %3553 = vmatprep.subr.mxu0 0.0
  %3554 = vmatpush1.msra.mxu0 0.0
  %3555 = vmatprep.subr.mxu0 %v3542
  %3556 = vmatpush1.msra.mxu0 %v3541
  %3557 = vmatprep.subr.mxu0 %v3539
  %3558 = vmatpush1.msra.mxu0 %v3538
  %3559 = vmatprep.subr.mxu0 %v3536
  %3560 = vmatpush1.msra.mxu0 %v3535
  %3561 = vmatprep.subr.mxu0 %v3533
  %3562 = vmatpush1.msra.mxu0 %v3532
  %3563 = vmatprep.subr.mxu0 %v3530
  %3564 = vmatpush1.msra.mxu0 %v3529
  %3565 = vmatprep.subr.mxu0 %v3527
  %3566 = vmatpush1.msra.mxu0 %v3526
  %3567 = vmatprep.subr.mxu0 %v3524
  %3568 = vmatpush1.msra.mxu0 %v3523
  %3569 = vmatprep.subr.mxu0 %v3521
  %3570 = vmatpush1.msra.mxu0 %v3520
  %3571 = vmatprep.subr.mxu0 %v3518
  %3572 = vmatpush1.msra.mxu0 %v3517
  %3573 = vmatprep.subr.mxu0 %v3515
  %3574 = vmatpush1.msra.mxu0 %v3514
  %3575 = vmatprep.subr.mxu0 %v3512
  %3576 = vmatpush1.msra.mxu0 %v3511
  %3577 = vmatprep.subr.mxu0 %v3509
  %3578 = vmatpush1.msra.mxu0 %v3508
  %3579 = vmatprep.subr.mxu0 0.0
  %3580 = vmatpush2.msra.mxu0 0.0
  %3581 = vmatprep.subr.mxu0 0.0
  %3582 = vmatpush2.msra.mxu0 0.0
  %3583 = vmatprep.subr.mxu0 0.0
  %3584 = vmatpush2.msra.mxu0 0.0
  %3585 = vmatprep.subr.mxu0 0.0
  %3586 = vmatpush2.msra.mxu0 0.0
  %3587 = vmatprep.subr.mxu0 0.0
  %3588 = vmatpush2.msra.mxu0 0.0
  %3589 = vmatprep.subr.mxu0 0.0
  %3590 = vmatpush2.msra.mxu0 0.0
  %3591 = vmatprep.subr.mxu0 0.0
  %3592 = vmatpush2.msra.mxu0 0.0
  %3593 = vmatprep.subr.mxu0 0.0
  %3594 = vmatpush2.msra.mxu0 0.0
  %3595 = vmatprep.subr.mxu0 0.0
  %3596 = vmatpush2.msra.mxu0 0.0
  %3597 = vmatprep.subr.mxu0 0.0
  %3598 = vmatpush2.msra.mxu0 0.0
  %3599 = vmatprep.subr.mxu0 0.0
  %3600 = vmatpush2.msra.mxu0 0.0
  %3601 = vmatprep.subr.mxu0 0.0
  %3602 = vmatpush2.msra.mxu0 0.0
  %3603 = vmatprep.subr.mxu0 0.0
  %3604 = vmatpush2.msra.mxu0 0.0
  %3605 = vmatprep.subr.mxu0 0.0
  %3606 = vmatpush2.msra.mxu0 0.0
  %3607 = vmatprep.subr.mxu0 0.0
  %3608 = vmatpush2.msra.mxu0 0.0
  %3609 = vmatprep.subr.mxu0 0.0
  %3610 = vmatpush2.msra.mxu0 0.0
  %3611 = vmatprep.mubr.f32.mxu0 0.0
  %3612 = vmatmul.mubr.f32.gmra.mxu0 %v3545
  %v3613 = vpop.f32.mrf.mxu0
  %v3614 = vadd.f32 0.0, %v3613
  %v3615 = vpop.f32.mrf.mxu0
  %v3616 = vadd.f32 0.0, %v3615
  %3617 = vdwg.mxu0
  %3618 = vmatprep.subr.mxu0 0.0
  %3619 = vmatpush1.msra.mxu0 0.0
  %3620 = vmatprep.subr.mxu0 0.0
  %3621 = vmatpush1.msra.mxu0 0.0
  %3622 = vmatprep.subr.mxu0 0.0
  %3623 = vmatpush1.msra.mxu0 0.0
  %3624 = vmatprep.subr.mxu0 0.0
  %3625 = vmatpush1.msra.mxu0 0.0
  %3626 = vmatprep.subr.mxu0 0.0
  %3627 = vmatpush1.msra.mxu0 %v3543
  %3628 = vmatprep.subr.mxu0 0.0
  %3629 = vmatpush1.msra.mxu0 %v3540
  %3630 = vmatprep.subr.mxu0 0.0
  %3631 = vmatpush1.msra.mxu0 %v3537
  %3632 = vmatprep.subr.mxu0 0.0
  %3633 = vmatpush1.msra.mxu0 %v3534
  %3634 = vmatprep.subr.mxu0 0.0
  %3635 = vmatpush1.msra.mxu0 %v3531
  %3636 = vmatprep.subr.mxu0 0.0
  %3637 = vmatpush1.msra.mxu0 %v3528
  %3638 = vmatprep.subr.mxu0 0.0
  %3639 = vmatpush1.msra.mxu0 %v3525
  %3640 = vmatprep.subr.mxu0 0.0
  %3641 = vmatpush1.msra.mxu0 %v3522
  %3642 = vmatprep.subr.mxu0 0.0
  %3643 = vmatpush1.msra.mxu0 %v3519
  %3644 = vmatprep.subr.mxu0 0.0
  %3645 = vmatpush1.msra.mxu0 %v3516
  %3646 = vmatprep.subr.mxu0 0.0
  %3647 = vmatpush1.msra.mxu0 %v3513
  %3648 = vmatprep.subr.mxu0 0.0
  %3649 = vmatpush1.msra.mxu0 %v3510
  %3650 = vmatprep.subr.mxu0 0.0
  %3651 = vmatpush2.msra.mxu0 0.0
  %3652 = vmatprep.subr.mxu0 0.0
  %3653 = vmatpush2.msra.mxu0 0.0
  %3654 = vmatprep.subr.mxu0 0.0
  %3655 = vmatpush2.msra.mxu0 0.0
  %3656 = vmatprep.subr.mxu0 0.0
  %3657 = vmatpush2.msra.mxu0 0.0
  %3658 = vmatprep.subr.mxu0 0.0
  %3659 = vmatpush2.msra.mxu0 0.0
  %3660 = vmatprep.subr.mxu0 0.0
  %3661 = vmatpush2.msra.mxu0 0.0
  %3662 = vmatprep.subr.mxu0 0.0
  %3663 = vmatpush2.msra.mxu0 0.0
  %3664 = vmatprep.subr.mxu0 0.0
  %3665 = vmatpush2.msra.mxu0 0.0
  %3666 = vmatprep.subr.mxu0 0.0
  %3667 = vmatpush2.msra.mxu0 0.0
  %3668 = vmatprep.subr.mxu0 0.0
  %3669 = vmatpush2.msra.mxu0 0.0
  %3670 = vmatprep.subr.mxu0 0.0
  %3671 = vmatpush2.msra.mxu0 0.0
  %3672 = vmatprep.subr.mxu0 0.0
  %3673 = vmatpush2.msra.mxu0 0.0
  %3674 = vmatprep.subr.mxu0 0.0
  %3675 = vmatpush2.msra.mxu0 0.0
  %3676 = vmatprep.subr.mxu0 0.0
  %3677 = vmatpush2.msra.mxu0 0.0
  %3678 = vmatprep.subr.mxu0 0.0
  %3679 = vmatpush2.msra.mxu0 0.0
  %3680 = vmatprep.subr.mxu0 0.0
  %3681 = vmatpush2.msra.mxu0 0.0
  %3682 = vmatprep.mubr.f32.mxu0 0.0
  %3683 = vmatmul.mubr.f32.gmra.mxu0 %v3545
  %v3684 = vpop.f32.mrf.mxu0
  %v3685 = vadd.f32 0.0, %v3684
  %v3686 = vpop.f32.mrf.mxu0
  %3687 = vdwg.mxu0
  %v3688 = vld [vmem:[%s4] sm:$0xff]
  %v3689 = vld [vmem:[%s4 + $0x8] sm:$0xff]
  %v3690 = vld [vmem:[%s4 + $0x10] sm:$0xff]
  %v3691 = vld [vmem:[%s4 + $0x18] sm:$0xff]
  %v3692 = vld [vmem:[%s4 + $0x20] sm:$0xff]
  %v3693 = vld [vmem:[%s4 + $0x28] sm:$0xff]
  %v3694 = vld [vmem:[%s4 + $0x30] sm:$0xff]
  %v3695 = vld [vmem:[%s4 + $0x38] sm:$0xff]
  %v3698 = vsel %vm277, %v3506, %v3499
  %v3699 = vsel %vm46, %v3698, 0
  %3701 = vmatprep.subr.mxu0 0.0
  %3702 = vmatpush1.msra.mxu0 0.0
  %3703 = vmatprep.subr.mxu0 0.0
  %3704 = vmatpush1.msra.mxu0 0.0
  %3705 = vmatprep.subr.mxu0 0.0
  %3706 = vmatpush1.msra.mxu0 0.0
  %3707 = vmatprep.subr.mxu0 0.0
  %3708 = vmatpush1.msra.mxu0 0.0
  %3709 = vmatprep.subr.mxu0 0.0
  %3710 = vmatpush1.msra.mxu0 0.0
  %3711 = vmatprep.subr.mxu0 0.0
  %3712 = vmatpush1.msra.mxu0 0.0
  %3713 = vmatprep.subr.mxu0 0.0
  %3714 = vmatpush1.msra.mxu0 0.0
  %3715 = vmatprep.subr.mxu0 0.0
  %3716 = vmatpush1.msra.mxu0 0.0
  %3717 = vmatprep.subr.mxu0 0.0
  %3718 = vmatpush1.msra.mxu0 0.0
  %3719 = vmatprep.subr.mxu0 0.0
  %3720 = vmatpush1.msra.mxu0 0.0
  %3721 = vmatprep.subr.mxu0 0.0
  %3722 = vmatpush1.msra.mxu0 0.0
  %3723 = vmatprep.subr.mxu0 0.0
  %3724 = vmatpush1.msra.mxu0 0.0
  %3725 = vmatprep.subr.mxu0 0.0
  %3726 = vmatpush1.msra.mxu0 %v3695
  %3727 = vmatprep.subr.mxu0 0.0
  %3728 = vmatpush1.msra.mxu0 %v3694
  %3729 = vmatprep.subr.mxu0 0.0
  %3730 = vmatpush1.msra.mxu0 %v3693
  %3731 = vmatprep.subr.mxu0 0.0
  %3732 = vmatpush1.msra.mxu0 %v3692
  %3733 = vmatprep.subr.mxu0 0.0
  %3734 = vmatpush2.msra.mxu0 0.0
  %3735 = vmatprep.subr.mxu0 0.0
  %3736 = vmatpush2.msra.mxu0 0.0
  %3737 = vmatprep.subr.mxu0 0.0
  %3738 = vmatpush2.msra.mxu0 0.0
  %3739 = vmatprep.subr.mxu0 0.0
  %3740 = vmatpush2.msra.mxu0 0.0
  %3741 = vmatprep.subr.mxu0 0.0
  %3742 = vmatpush2.msra.mxu0 0.0
  %3743 = vmatprep.subr.mxu0 0.0
  %3744 = vmatpush2.msra.mxu0 0.0
  %3745 = vmatprep.subr.mxu0 0.0
  %3746 = vmatpush2.msra.mxu0 0.0
  %3747 = vmatprep.subr.mxu0 0.0
  %3748 = vmatpush2.msra.mxu0 0.0
  %3749 = vmatprep.subr.mxu0 0.0
  %3750 = vmatpush2.msra.mxu0 0.0
  %3751 = vmatprep.subr.mxu0 0.0
  %3752 = vmatpush2.msra.mxu0 0.0
  %3753 = vmatprep.subr.mxu0 0.0
  %3754 = vmatpush2.msra.mxu0 0.0
  %3755 = vmatprep.subr.mxu0 0.0
  %3756 = vmatpush2.msra.mxu0 0.0
  %3757 = vmatprep.subr.mxu0 0.0
  %3758 = vmatpush2.msra.mxu0 0.0
  %3759 = vmatprep.subr.mxu0 0.0
  %3760 = vmatpush2.msra.mxu0 0.0
  %3761 = vmatprep.subr.mxu0 0.0
  %3762 = vmatpush2.msra.mxu0 0.0
  %3763 = vmatprep.subr.mxu0 0.0
  %3764 = vmatpush2.msra.mxu0 0.0
  %3765 = vmatprep.mubr.f32.mxu0 0.0
  %3766 = vmatmul.mubr.f32.gmra.mxu0 %v3699
  %v3767 = vpop.f32.mrf.mxu0
  %v3768 = vadd.f32 0.0, %v3767
  %v3769 = vpop.f32.mrf.mxu0
  %3770 = vdwg.mxu0
  %v3772 = vsel %vm46, %v3280, 0
  %3774 = vmatprep.subr.mxu0 0.0
  %3775 = vmatpush1.msra.mxu0 0.0
  %3776 = vmatprep.subr.mxu0 0.0
  %3777 = vmatpush1.msra.mxu0 0.0
  %3778 = vmatprep.subr.mxu0 0.0
  %3779 = vmatpush1.msra.mxu0 0.0
  %3780 = vmatprep.subr.mxu0 0.0
  %3781 = vmatpush1.msra.mxu0 0.0
  %3782 = vmatprep.subr.mxu0 0.0
  %3783 = vmatpush1.msra.mxu0 0.0
  %3784 = vmatprep.subr.mxu0 0.0
  %3785 = vmatpush1.msra.mxu0 0.0
  %3786 = vmatprep.subr.mxu0 0.0
  %3787 = vmatpush1.msra.mxu0 0.0
  %3788 = vmatprep.subr.mxu0 0.0
  %3789 = vmatpush1.msra.mxu0 0.0
  %3790 = vmatprep.subr.mxu0 0.0
  %3791 = vmatpush1.msra.mxu0 0.0
  %3792 = vmatprep.subr.mxu0 0.0
  %3793 = vmatpush1.msra.mxu0 0.0
  %3794 = vmatprep.subr.mxu0 0.0
  %3795 = vmatpush1.msra.mxu0 0.0
  %3796 = vmatprep.subr.mxu0 0.0
  %3797 = vmatpush1.msra.mxu0 0.0
  %3798 = vmatprep.subr.mxu0 0.0
  %3799 = vmatpush1.msra.mxu0 %v3691
  %3800 = vmatprep.subr.mxu0 0.0
  %3801 = vmatpush1.msra.mxu0 %v3690
  %3802 = vmatprep.subr.mxu0 0.0
  %3803 = vmatpush1.msra.mxu0 %v3689
  %3804 = vmatprep.subr.mxu0 0.0
  %3805 = vmatpush1.msra.mxu0 %v3688
  %3806 = vmatprep.subr.mxu0 0.0
  %3807 = vmatpush2.msra.mxu0 0.0
  %3808 = vmatprep.subr.mxu0 0.0
  %3809 = vmatpush2.msra.mxu0 0.0
  %3810 = vmatprep.subr.mxu0 0.0
  %3811 = vmatpush2.msra.mxu0 0.0
  %3812 = vmatprep.subr.mxu0 0.0
  %3813 = vmatpush2.msra.mxu0 0.0
  %3814 = vmatprep.subr.mxu0 0.0
  %3815 = vmatpush2.msra.mxu0 0.0
  %3816 = vmatprep.subr.mxu0 0.0
  %3817 = vmatpush2.msra.mxu0 0.0
  %3818 = vmatprep.subr.mxu0 0.0
  %3819 = vmatpush2.msra.mxu0 0.0
  %3820 = vmatprep.subr.mxu0 0.0
  %3821 = vmatpush2.msra.mxu0 0.0
  %3822 = vmatprep.subr.mxu0 0.0
  %3823 = vmatpush2.msra.mxu0 0.0
  %3824 = vmatprep.subr.mxu0 0.0
  %3825 = vmatpush2.msra.mxu0 0.0
  %3826 = vmatprep.subr.mxu0 0.0
  %3827 = vmatpush2.msra.mxu0 0.0
  %3828 = vmatprep.subr.mxu0 0.0
  %3829 = vmatpush2.msra.mxu0 0.0
  %3830 = vmatprep.subr.mxu0 0.0
  %3831 = vmatpush2.msra.mxu0 0.0
  %3832 = vmatprep.subr.mxu0 0.0
  %3833 = vmatpush2.msra.mxu0 0.0
  %3834 = vmatprep.subr.mxu0 0.0
  %3835 = vmatpush2.msra.mxu0 0.0
  %3836 = vmatprep.subr.mxu0 0.0
  %3837 = vmatpush2.msra.mxu0 0.0
  %3838 = vmatprep.mubr.f32.mxu0 0.0
  %3839 = vmatmul.mubr.f32.gmra.mxu0 %v3772
  %v3840 = vpop.f32.mrf.mxu0
  %v3841 = vadd.f32 %v3768, %v3840
  %v3842 = vpop.f32.mrf.mxu0
  %3843 = vdwg.mxu0
  %v3844 = vadd.f32 %v3841, %v3614
  %v3845 = vld [vmem:[%s6] sm:$0x1]
  %v3846 = vlaneseq
  %v3847 = vshrl.u32 %v3846, 7
  %v3848 = vsub.s32 0, %v3847
  %v3849 = vrot.slane %v3845, %v3848
  %v3850 = vadd.f32 %v3844, %v3849
  %v3851 = vxor.u32 %v3850, 2147483648
  %v3852 = vmul.f32 %v3851, 1.442695
  %v3853 = vpow.pop %v3852
  %v3854 = vadd.f32 %v3853, 1.0
  %v3855 = vrcp.pop %v3854
  %v3856 = vmul.f32 1.0, %v3855
  %v3857 = vtanh.pop %v3850
  %v3858 = vld [vmem:[#allocation3] sm:$0x3]
  %3860 = vrot.lane.b32.xlu0 %v3858, 32
  %v3861 = vpop.permute.xlu0 %3860
  %v3863 = vmul.f32 %v3856, %v3861
  %3865 = vrot.lane.b32.xlu0 %v3857, 64
  %v3866 = vpop.permute.xlu0 %3865
  %v3868 = vmul.f32 %v3856, %v3866
  %3870 = vrot.lane.b32.xlu0 %v3868, 32
  %v3871 = vpop.permute.xlu0 %3870
  %v3873 = vadd.f32 %v3863, %v3871
  %v3874 = vtanh.pop %v3873
  %3876 = vrot.lane.b32.xlu0 %v3874, 64
  %v3877 = vpop.permute.xlu0 %3876
  %v3879 = vmul.f32 %v3856, %v3877
  %3881 = vrot.lane.b32.xlu0 %v3873, 96
  %v3882 = vpop.permute.xlu0 %3881
  %3884 = vst.msk [vmem:[#allocation3] sm:$0x3] %vm33, %v3882
  %3886 = vrot.lane.b32.xlu0 %v3879, 32
  %v3887 = vpop.permute.xlu0 %3886
  %3889 = vst.msk [vmem:[#allocation2] sm:$0x3] %vm33, %v3887
  %v3890 = vld [vmem:[%s4 + $0x40] sm:$0xff]
  %v3891 = vld [vmem:[%s4 + $0x48] sm:$0xff]
  %v3892 = vld [vmem:[%s4 + $0x50] sm:$0xff]
  %v3893 = vld [vmem:[%s4 + $0x58] sm:$0xff]
  %v3894 = vsel %vm46, %v3887, 0
  %3896 = vmatprep.subr.mxu0 0.0
  %3897 = vmatpush1.msra.mxu0 0.0
  %3898 = vmatprep.subr.mxu0 0.0
  %3899 = vmatpush1.msra.mxu0 0.0
  %3900 = vmatprep.subr.mxu0 0.0
  %3901 = vmatpush1.msra.mxu0 0.0
  %3902 = vmatprep.subr.mxu0 0.0
  %3903 = vmatpush1.msra.mxu0 0.0
  %3904 = vmatprep.subr.mxu0 0.0
  %3905 = vmatpush1.msra.mxu0 0.0
  %3906 = vmatprep.subr.mxu0 0.0
  %3907 = vmatpush1.msra.mxu0 0.0
  %3908 = vmatprep.subr.mxu0 0.0
  %3909 = vmatpush1.msra.mxu0 0.0
  %3910 = vmatprep.subr.mxu0 0.0
  %3911 = vmatpush1.msra.mxu0 0.0
  %3912 = vmatprep.subr.mxu0 0.0
  %3913 = vmatpush1.msra.mxu0 0.0
  %3914 = vmatprep.subr.mxu0 0.0
  %3915 = vmatpush1.msra.mxu0 0.0
  %3916 = vmatprep.subr.mxu0 0.0
  %3917 = vmatpush1.msra.mxu0 0.0
  %3918 = vmatprep.subr.mxu0 0.0
  %3919 = vmatpush1.msra.mxu0 0.0
  %3920 = vmatprep.subr.mxu0 0.0
  %3921 = vmatpush1.msra.mxu0 %v3893
  %3922 = vmatprep.subr.mxu0 0.0
  %3923 = vmatpush1.msra.mxu0 %v3892
  %3924 = vmatprep.subr.mxu0 0.0
  %3925 = vmatpush1.msra.mxu0 %v3891
  %3926 = vmatprep.subr.mxu0 0.0
  %3927 = vmatpush1.msra.mxu0 %v3890
  %3928 = vmatprep.subr.mxu0 0.0
  %3929 = vmatpush2.msra.mxu0 0.0
  %3930 = vmatprep.subr.mxu0 0.0
  %3931 = vmatpush2.msra.mxu0 0.0
  %3932 = vmatprep.subr.mxu0 0.0
  %3933 = vmatpush2.msra.mxu0 0.0
  %3934 = vmatprep.subr.mxu0 0.0
  %3935 = vmatpush2.msra.mxu0 0.0
  %3936 = vmatprep.subr.mxu0 0.0
  %3937 = vmatpush2.msra.mxu0 0.0
  %3938 = vmatprep.subr.mxu0 0.0
  %3939 = vmatpush2.msra.mxu0 0.0
  %3940 = vmatprep.subr.mxu0 0.0
  %3941 = vmatpush2.msra.mxu0 0.0
  %3942 = vmatprep.subr.mxu0 0.0
  %3943 = vmatpush2.msra.mxu0 0.0
  %3944 = vmatprep.subr.mxu0 0.0
  %3945 = vmatpush2.msra.mxu0 0.0
  %3946 = vmatprep.subr.mxu0 0.0
  %3947 = vmatpush2.msra.mxu0 0.0
  %3948 = vmatprep.subr.mxu0 0.0
  %3949 = vmatpush2.msra.mxu0 0.0
  %3950 = vmatprep.subr.mxu0 0.0
  %3951 = vmatpush2.msra.mxu0 0.0
  %3952 = vmatprep.subr.mxu0 0.0
  %3953 = vmatpush2.msra.mxu0 0.0
  %3954 = vmatprep.subr.mxu0 0.0
  %3955 = vmatpush2.msra.mxu0 0.0
  %3956 = vmatprep.subr.mxu0 0.0
  %3957 = vmatpush2.msra.mxu0 0.0
  %3958 = vmatprep.subr.mxu0 0.0
  %3959 = vmatpush2.msra.mxu0 0.0
  %3960 = vmatprep.mubr.f32.mxu0 0.0
  %3961 = vmatmul.mubr.f32.gmra.mxu0 %v3894
  %v3962 = vpop.f32.mrf.mxu0
  %v3963 = vadd.f32 %v3616, %v3962
  %v3964 = vpop.f32.mrf.mxu0
  %3965 = vdwg.mxu0
  %v3966 = vld [vmem:[%s6 + $0x1] sm:$0x1]
  %v3967 = vlaneseq
  %v3968 = vshrl.u32 %v3967, 7
  %v3969 = vsub.s32 0, %v3968
  %v3970 = vrot.slane %v3966, %v3969
  %v3971 = vadd.f32 %v3963, %v3970
  %v3972 = vxor.u32 %v3971, 2147483648
  %v3973 = vmul.f32 %v3972, 1.442695
  %v3974 = vpow.pop %v3973
  %v3975 = vadd.f32 %v3974, 1.0
  %v3976 = vrcp.pop %v3975
  %v3977 = vmul.f32 1.0, %v3976
  %v3978 = vtanh.pop %v3971
  %v3979 = vld [vmem:[#allocation3] sm:$0x3]
  %v3980 = vmul.f32 %v3977, %v3979
  %3982 = vrot.lane.b32.xlu0 %v3978, 64
  %v3983 = vpop.permute.xlu0 %3982
  %v3985 = vmul.f32 %v3977, %v3983
  %3987 = vrot.lane.b32.xlu0 %v3985, 32
  %v3988 = vpop.permute.xlu0 %3987
  %v3990 = vadd.f32 %v3980, %v3988
  %v3991 = vtanh.pop %v3990
  %3993 = vrot.lane.b32.xlu0 %v3991, 64
  %v3994 = vpop.permute.xlu0 %3993
  %v3996 = vmul.f32 %v3977, %v3994
  %3997 = vst.msk [vmem:[#allocation3] sm:$0x3] %vm854, %v3990
  %3999 = vrot.lane.b32.xlu0 %v3996, 64
  %v4000 = vpop.permute.xlu0 %3999
  %4002 = vst.msk [vmem:[#allocation2] sm:$0x3] %vm854, %v4000
  %v4003 = vld [vmem:[%s4 + $0x60] sm:$0xff]
  %v4004 = vld [vmem:[%s4 + $0x68] sm:$0xff]
  %v4005 = vld [vmem:[%s4 + $0x70] sm:$0xff]
  %v4006 = vld [vmem:[%s4 + $0x78] sm:$0xff]
  %4007 = vrot.lane.b32.xlu0 %v3996, 32
  %v4008 = vpop.permute.xlu0 %4007
  %v4009 = vsel %vm46, %v4008, 0
  %4011 = vmatprep.subr.mxu0 0.0
  %4012 = vmatpush1.msra.mxu0 0.0
  %4013 = vmatprep.subr.mxu0 0.0
  %4014 = vmatpush1.msra.mxu0 0.0
  %4015 = vmatprep.subr.mxu0 0.0
  %4016 = vmatpush1.msra.mxu0 0.0
  %4017 = vmatprep.subr.mxu0 0.0
  %4018 = vmatpush1.msra.mxu0 0.0
  %4019 = vmatprep.subr.mxu0 0.0
  %4020 = vmatpush1.msra.mxu0 0.0
  %4021 = vmatprep.subr.mxu0 0.0
  %4022 = vmatpush1.msra.mxu0 0.0
  %4023 = vmatprep.subr.mxu0 0.0
  %4024 = vmatpush1.msra.mxu0 0.0
  %4025 = vmatprep.subr.mxu0 0.0
  %4026 = vmatpush1.msra.mxu0 0.0
  %4027 = vmatprep.subr.mxu0 0.0
  %4028 = vmatpush1.msra.mxu0 0.0
  %4029 = vmatprep.subr.mxu0 0.0
  %4030 = vmatpush1.msra.mxu0 0.0
  %4031 = vmatprep.subr.mxu0 0.0
  %4032 = vmatpush1.msra.mxu0 0.0
  %4033 = vmatprep.subr.mxu0 0.0
  %4034 = vmatpush1.msra.mxu0 0.0
  %4035 = vmatprep.subr.mxu0 0.0
  %4036 = vmatpush1.msra.mxu0 %v4006
  %4037 = vmatprep.subr.mxu0 0.0
  %4038 = vmatpush1.msra.mxu0 %v4005
  %4039 = vmatprep.subr.mxu0 0.0
  %4040 = vmatpush1.msra.mxu0 %v4004
  %4041 = vmatprep.subr.mxu0 0.0
  %4042 = vmatpush1.msra.mxu0 %v4003
  %4043 = vmatprep.subr.mxu0 0.0
  %4044 = vmatpush2.msra.mxu0 0.0
  %4045 = vmatprep.subr.mxu0 0.0
  %4046 = vmatpush2.msra.mxu0 0.0
  %4047 = vmatprep.subr.mxu0 0.0
  %4048 = vmatpush2.msra.mxu0 0.0
  %4049 = vmatprep.subr.mxu0 0.0
  %4050 = vmatpush2.msra.mxu0 0.0
  %4051 = vmatprep.subr.mxu0 0.0
  %4052 = vmatpush2.msra.mxu0 0.0
  %4053 = vmatprep.subr.mxu0 0.0
  %4054 = vmatpush2.msra.mxu0 0.0
  %4055 = vmatprep.subr.mxu0 0.0
  %4056 = vmatpush2.msra.mxu0 0.0
  %4057 = vmatprep.subr.mxu0 0.0
  %4058 = vmatpush2.msra.mxu0 0.0
  %4059 = vmatprep.subr.mxu0 0.0
  %4060 = vmatpush2.msra.mxu0 0.0
  %4061 = vmatprep.subr.mxu0 0.0
  %4062 = vmatpush2.msra.mxu0 0.0
  %4063 = vmatprep.subr.mxu0 0.0
  %4064 = vmatpush2.msra.mxu0 0.0
  %4065 = vmatprep.subr.mxu0 0.0
  %4066 = vmatpush2.msra.mxu0 0.0
  %4067 = vmatprep.subr.mxu0 0.0
  %4068 = vmatpush2.msra.mxu0 0.0
  %4069 = vmatprep.subr.mxu0 0.0
  %4070 = vmatpush2.msra.mxu0 0.0
  %4071 = vmatprep.subr.mxu0 0.0
  %4072 = vmatpush2.msra.mxu0 0.0
  %4073 = vmatprep.subr.mxu0 0.0
  %4074 = vmatpush2.msra.mxu0 0.0
  %4075 = vmatprep.mubr.f32.mxu0 0.0
  %4076 = vmatmul.mubr.f32.gmra.mxu0 %v4009
  %v4077 = vpop.f32.mrf.mxu0
  %v4078 = vadd.f32 %v3685, %v4077
  %v4079 = vpop.f32.mrf.mxu0
  %4080 = vdwg.mxu0
  %v4081 = vld [vmem:[%s6 + $0x2] sm:$0x1]
  %v4082 = vlaneseq
  %v4083 = vshrl.u32 %v4082, 7
  %v4084 = vsub.s32 0, %v4083
  %v4085 = vrot.slane %v4081, %v4084
  %v4086 = vadd.f32 %v4078, %v4085
  %v4087 = vxor.u32 %v4086, 2147483648
  %v4088 = vmul.f32 %v4087, 1.442695
  %v4089 = vpow.pop %v4088
  %v4090 = vadd.f32 %v4089, 1.0
  %v4091 = vrcp.pop %v4090
  %v4092 = vmul.f32 1.0, %v4091
  %v4093 = vtanh.pop %v4086
  %v4094 = vld [vmem:[#allocation3] sm:$0x3]
  %4096 = vrot.lane.b32.xlu0 %v4094, 96
  %v4097 = vpop.permute.xlu0 %4096
  %v4099 = vmul.f32 %v4092, %v4097
  %4101 = vrot.lane.b32.xlu0 %v4093, 64
  %v4102 = vpop.permute.xlu0 %4101
  %v4104 = vmul.f32 %v4092, %v4102
  %4106 = vrot.lane.b32.xlu0 %v4104, 32
  %v4107 = vpop.permute.xlu0 %4106
  %v4109 = vadd.f32 %v4099, %v4107
  %v4110 = vtanh.pop %v4109
  %4112 = vrot.lane.b32.xlu0 %v4110, 64
  %v4113 = vpop.permute.xlu0 %4112
  %v4115 = vmul.f32 %v4092, %v4113
  %4117 = vrot.lane.b32.xlu0 %v4109, 32
  %v4118 = vpop.permute.xlu0 %4117
  %4120 = vst.msk [vmem:[#allocation3] sm:$0x3] %vm978, %v4118
  %4122 = vrot.lane.b32.xlu0 %v4115, 96
  %v4123 = vpop.permute.xlu0 %4122
  %4125 = vst.msk [vmem:[#allocation2] sm:$0x3] %vm978, %v4123
  %v4126 = vld [vmem:[%s7] sm:$0xff]
  %v4127 = vld [vmem:[%s7 + $0x8] sm:$0xff]
  %v4128 = vld [vmem:[%s7 + $0x10] sm:$0xff]
  %v4129 = vld [vmem:[%s7 + $0x18] sm:$0xff]
  %v4130 = vld [vmem:[%s7 + $0x20] sm:$0x1]
  %v4131 = vlaneseq
  %v4132 = vshrl.u32 %v4131, 7
  %v4133 = vsub.s32 0, %v4132
  %v4134 = vrot.slane %v4130, %v4133
  %4135 = vrot.lane.b32.xlu0 %v4115, 32
  %v4136 = vpop.permute.xlu0 %4135
  %v4137 = vsel %vm46, %v4136, 0
  %4139 = vmatprep.subr.mxu0 0.0
  %4140 = vmatpush1.msra.mxu0 0.0
  %4141 = vmatprep.subr.mxu0 0.0
  %4142 = vmatpush1.msra.mxu0 0.0
  %4143 = vmatprep.subr.mxu0 0.0
  %4144 = vmatpush1.msra.mxu0 0.0
  %4145 = vmatprep.subr.mxu0 0.0
  %4146 = vmatpush1.msra.mxu0 0.0
  %4147 = vmatprep.subr.mxu0 0.0
  %4148 = vmatpush1.msra.mxu0 0.0
  %4149 = vmatprep.subr.mxu0 0.0
  %4150 = vmatpush1.msra.mxu0 0.0
  %4151 = vmatprep.subr.mxu0 0.0
  %4152 = vmatpush1.msra.mxu0 0.0
  %4153 = vmatprep.subr.mxu0 0.0
  %4154 = vmatpush1.msra.mxu0 0.0
  %4155 = vmatprep.subr.mxu0 0.0
  %4156 = vmatpush1.msra.mxu0 0.0
  %4157 = vmatprep.subr.mxu0 0.0
  %4158 = vmatpush1.msra.mxu0 0.0
  %4159 = vmatprep.subr.mxu0 0.0
  %4160 = vmatpush1.msra.mxu0 0.0
  %4161 = vmatprep.subr.mxu0 0.0
  %4162 = vmatpush1.msra.mxu0 0.0
  %4163 = vmatprep.subr.mxu0 0.0
  %4164 = vmatpush1.msra.mxu0 %v4129
  %4165 = vmatprep.subr.mxu0 0.0
  %4166 = vmatpush1.msra.mxu0 %v4128
  %4167 = vmatprep.subr.mxu0 0.0
  %4168 = vmatpush1.msra.mxu0 %v4127
  %4169 = vmatprep.subr.mxu0 0.0
  %4170 = vmatpush1.msra.mxu0 %v4126
  %4171 = vmatprep.subr.mxu0 0.0
  %4172 = vmatpush2.msra.mxu0 0.0
  %4173 = vmatprep.subr.mxu0 0.0
  %4174 = vmatpush2.msra.mxu0 0.0
  %4175 = vmatprep.subr.mxu0 0.0
  %4176 = vmatpush2.msra.mxu0 0.0
  %4177 = vmatprep.subr.mxu0 0.0
  %4178 = vmatpush2.msra.mxu0 0.0
  %4179 = vmatprep.subr.mxu0 0.0
  %4180 = vmatpush2.msra.mxu0 0.0
  %4181 = vmatprep.subr.mxu0 0.0
  %4182 = vmatpush2.msra.mxu0 0.0
  %4183 = vmatprep.subr.mxu0 0.0
  %4184 = vmatpush2.msra.mxu0 0.0
  %4185 = vmatprep.subr.mxu0 0.0
  %4186 = vmatpush2.msra.mxu0 0.0
  %4187 = vmatprep.subr.mxu0 0.0
  %4188 = vmatpush2.msra.mxu0 0.0
  %4189 = vmatprep.subr.mxu0 0.0
  %4190 = vmatpush2.msra.mxu0 0.0
  %4191 = vmatprep.subr.mxu0 0.0
  %4192 = vmatpush2.msra.mxu0 0.0
  %4193 = vmatprep.subr.mxu0 0.0
  %4194 = vmatpush2.msra.mxu0 0.0
  %4195 = vmatprep.subr.mxu0 0.0
  %4196 = vmatpush2.msra.mxu0 0.0
  %4197 = vmatprep.subr.mxu0 0.0
  %4198 = vmatpush2.msra.mxu0 0.0
  %4199 = vmatprep.subr.mxu0 0.0
  %4200 = vmatpush2.msra.mxu0 0.0
  %4201 = vmatprep.subr.mxu0 0.0
  %4202 = vmatpush2.msra.mxu0 0.0
  %4203 = vmatprep.mubr.f32.mxu0 0.0
  %4204 = vmatmul.mubr.f32.gmra.mxu0 %v4137
  %v4205 = vpop.f32.mrf.mxu0
  %v4206 = vadd.f32 %v4134, %v4205
  %v4207 = vpop.f32.mrf.mxu0
  %4208 = vdwg.mxu0
  %v4209 = vsel %vm1068, %v4206, -inf
  %4210 = vmax.xlane.f32.xlu0 %v4209
  %v4211 = vpop.xlane.xlu0 %4210
  %v4212 = vsub.f32 %v4206, %v4211
  %v4213 = vmul.f32 %v4212, 1.442695
  %v4214 = vpow.pop %v4213
  %v4215 = vsel %vm1068, %v4214, 0.0
  %4216 = vadd.xlane.f32.xlu0 %v4215
  %v4217 = vpop.xlane.xlu0 %4216
  %v4218 = vlog2.pop %v4217
  %v4219 = vmul.f32 %v4218, 0.6931472
  %v4220 = vsub.f32 %v4212, %v4219
  %4222 = vrot.lane.b32.xlu0 %v4220, 48
  %v4223 = vpop.permute.xlu0 %4222
  %vm4225 = vcmask 517504
  %4226 = vst.msk [vmem:[%s8] sm:$0x3] %vm4225, %v4223
  %v4227 = vsel %vm1068, %v4220, -inf
  %4228 = vmax.xlane.f32.xlu0 %v4227
  %v4229 = vpop.xlane.xlu0 %4228
  %vm4230 = vcmp.eq.f32.partialorder %v4220, %v4229
  %v4231 = vsel %vm4230, %v268, 16
  %v4232 = vsel %vm1068, %v4231, 2147483647
  %v4233 = vand.u32 %v4232, 65535
  %v4234 = vshra.s32 %v4232, 16
  %v4235 = vcvt.s32.f32 %v4233
  %v4236 = vcvt.s32.f32 %v4234
  %4237 = vmin.xlane.f32.xlu0 %v4236
  %v4238 = vpop.xlane.xlu0 %4237
  %vm4239 = vcmp.eq.f32.partialorder %v4236, %v4238
  %v4240 = vsel %vm4239, %v4235, inf
  %4241 = vmin.xlane.f32.xlu0 %v4240
  %v4242 = vpop.xlane.xlu0 %4241
  %v4243 = vcvt.f32.s32 %v4242
  %v4244 = vcvt.f32.s32 %v4238
  %v4245 = vshll.u32 %v4244, 16
  %v4246 = vadd.s32 %v4245, %v4243
  %vm4247 = vcmp.eq.s32.totalorder %v268, %v4246
  %v4248 = vsel %vm4247, 1, 0
  %v4249 = vcvt.s32.f32 %v4248
  %v4250 = vld [vmem:[%s2] sm:$0xff]
  %v4251 = vld [vmem:[%s2 + $0x8] sm:$0xff]
  %v4253 = vsel %vm1107, %v4249, 0
  %4255 = vmatprep.subr.mxu0 0.0
  %4256 = vmatpush1.msra.mxu0 0.0
  %4257 = vmatprep.subr.mxu0 0.0
  %4258 = vmatpush1.msra.mxu0 0.0
  %4259 = vmatprep.subr.mxu0 0.0
  %4260 = vmatpush1.msra.mxu0 0.0
  %4261 = vmatprep.subr.mxu0 0.0
  %4262 = vmatpush1.msra.mxu0 0.0
  %4263 = vmatprep.subr.mxu0 0.0
  %4264 = vmatpush1.msra.mxu0 0.0
  %4265 = vmatprep.subr.mxu0 0.0
  %4266 = vmatpush1.msra.mxu0 0.0
  %4267 = vmatprep.subr.mxu0 0.0
  %4268 = vmatpush1.msra.mxu0 0.0
  %4269 = vmatprep.subr.mxu0 0.0
  %4270 = vmatpush1.msra.mxu0 0.0
  %4271 = vmatprep.subr.mxu0 0.0
  %4272 = vmatpush1.msra.mxu0 0.0
  %4273 = vmatprep.subr.mxu0 0.0
  %4274 = vmatpush1.msra.mxu0 0.0
  %4275 = vmatprep.subr.mxu0 0.0
  %4276 = vmatpush1.msra.mxu0 0.0
  %4277 = vmatprep.subr.mxu0 0.0
  %4278 = vmatpush1.msra.mxu0 0.0
  %4279 = vmatprep.subr.mxu0 0.0
  %4280 = vmatpush1.msra.mxu0 0.0
  %4281 = vmatprep.subr.mxu0 0.0
  %4282 = vmatpush1.msra.mxu0 0.0
  %4283 = vmatprep.subr.mxu0 0.0
  %4284 = vmatpush1.msra.mxu0 %v4251
  %4285 = vmatprep.subr.mxu0 0.0
  %4286 = vmatpush1.msra.mxu0 %v4250
  %4287 = vmatprep.subr.mxu0 0.0
  %4288 = vmatpush2.msra.mxu0 0.0
  %4289 = vmatprep.subr.mxu0 0.0
  %4290 = vmatpush2.msra.mxu0 0.0
  %4291 = vmatprep.subr.mxu0 0.0
  %4292 = vmatpush2.msra.mxu0 0.0
  %4293 = vmatprep.subr.mxu0 0.0
  %4294 = vmatpush2.msra.mxu0 0.0
  %4295 = vmatprep.subr.mxu0 0.0
  %4296 = vmatpush2.msra.mxu0 0.0
  %4297 = vmatprep.subr.mxu0 0.0
  %4298 = vmatpush2.msra.mxu0 0.0
  %4299 = vmatprep.subr.mxu0 0.0
  %4300 = vmatpush2.msra.mxu0 0.0
  %4301 = vmatprep.subr.mxu0 0.0
  %4302 = vmatpush2.msra.mxu0 0.0
  %4303 = vmatprep.subr.mxu0 0.0
  %4304 = vmatpush2.msra.mxu0 0.0
  %4305 = vmatprep.subr.mxu0 0.0
  %4306 = vmatpush2.msra.mxu0 0.0
  %4307 = vmatprep.subr.mxu0 0.0
  %4308 = vmatpush2.msra.mxu0 0.0
  %4309 = vmatprep.subr.mxu0 0.0
  %4310 = vmatpush2.msra.mxu0 0.0
  %4311 = vmatprep.subr.mxu0 0.0
  %4312 = vmatpush2.msra.mxu0 0.0
  %4313 = vmatprep.subr.mxu0 0.0
  %4314 = vmatpush2.msra.mxu0 0.0
  %4315 = vmatprep.subr.mxu0 0.0
  %4316 = vmatpush2.msra.mxu0 0.0
  %4317 = vmatprep.subr.mxu0 0.0
  %4318 = vmatpush2.msra.mxu0 0.0
  %4319 = vmatprep.mubr.f32.mxu0 0.0
  %4320 = vmatmul.mubr.f32.gmra.mxu0 %v4253
  %v4321 = vpop.f32.mrf.mxu0
  %v4322 = vadd.f32 0.0, %v4321
  %v4323 = vpop.f32.mrf.mxu0
  %4324 = vdwg.mxu0
  %4325 = vst.msk [vmem:[#allocation4] sm:$0x3] %vm33, %v4322
  %v4326 = vld [vmem:[%s0] sm:$0xff]
  %v4327 = vld [vmem:[%s0 + $0x8] sm:$0xff]
  %v4328 = vld [vmem:[#allocation4] sm:$0x3]
  %v4329 = vld [vmem:[#allocation2] sm:$0x3]
  %v4330 = vld [vmem:[%s3 + $0x20] sm:$0xff]
  %v4331 = vld [vmem:[%s3 + $0x28] sm:$0xff]
  %v4332 = vld [vmem:[%s3 + $0x30] sm:$0xff]
  %v4333 = vld [vmem:[%s3 + $0x38] sm:$0xff]
  %v4334 = vld [vmem:[%s3 + $0x41] sm:$0x1]
  %4336 = vrot.lane.b32.xlu0 %v4329, 64
  %v4337 = vpop.permute.xlu0 %4336
  %v4338 = vsel %vm46, %v4337, 0
  %4340 = vmatprep.subr.mxu0 0.0
  %4341 = vmatpush1.msra.mxu0 0.0
  %4342 = vmatprep.subr.mxu0 0.0
  %4343 = vmatpush1.msra.mxu0 0.0
  %4344 = vmatprep.subr.mxu0 0.0
  %4345 = vmatpush1.msra.mxu0 0.0
  %4346 = vmatprep.subr.mxu0 0.0
  %4347 = vmatpush1.msra.mxu0 0.0
  %4348 = vmatprep.subr.mxu0 0.0
  %4349 = vmatpush1.msra.mxu0 0.0
  %4350 = vmatprep.subr.mxu0 0.0
  %4351 = vmatpush1.msra.mxu0 0.0
  %4352 = vmatprep.subr.mxu0 0.0
  %4353 = vmatpush1.msra.mxu0 0.0
  %4354 = vmatprep.subr.mxu0 0.0
  %4355 = vmatpush1.msra.mxu0 0.0
  %4356 = vmatprep.subr.mxu0 0.0
  %4357 = vmatpush1.msra.mxu0 0.0
  %4358 = vmatprep.subr.mxu0 0.0
  %4359 = vmatpush1.msra.mxu0 0.0
  %4360 = vmatprep.subr.mxu0 0.0
  %4361 = vmatpush1.msra.mxu0 0.0
  %4362 = vmatprep.subr.mxu0 0.0
  %4363 = vmatpush1.msra.mxu0 0.0
  %4364 = vmatprep.subr.mxu0 0.0
  %4365 = vmatpush1.msra.mxu0 %v4333
  %4366 = vmatprep.subr.mxu0 0.0
  %4367 = vmatpush1.msra.mxu0 %v4332
  %4368 = vmatprep.subr.mxu0 0.0
  %4369 = vmatpush1.msra.mxu0 %v4331
  %4370 = vmatprep.subr.mxu0 0.0
  %4371 = vmatpush1.msra.mxu0 %v4330
  %4372 = vmatprep.subr.mxu0 0.0
  %4373 = vmatpush2.msra.mxu0 0.0
  %4374 = vmatprep.subr.mxu0 0.0
  %4375 = vmatpush2.msra.mxu0 0.0
  %4376 = vmatprep.subr.mxu0 0.0
  %4377 = vmatpush2.msra.mxu0 0.0
  %4378 = vmatprep.subr.mxu0 0.0
  %4379 = vmatpush2.msra.mxu0 0.0
  %4380 = vmatprep.subr.mxu0 0.0
  %4381 = vmatpush2.msra.mxu0 0.0
  %4382 = vmatprep.subr.mxu0 0.0
  %4383 = vmatpush2.msra.mxu0 0.0
  %4384 = vmatprep.subr.mxu0 0.0
  %4385 = vmatpush2.msra.mxu0 0.0
  %4386 = vmatprep.subr.mxu0 0.0
  %4387 = vmatpush2.msra.mxu0 0.0
  %4388 = vmatprep.subr.mxu0 0.0
  %4389 = vmatpush2.msra.mxu0 0.0
  %4390 = vmatprep.subr.mxu0 0.0
  %4391 = vmatpush2.msra.mxu0 0.0
  %4392 = vmatprep.subr.mxu0 0.0
  %4393 = vmatpush2.msra.mxu0 0.0
  %4394 = vmatprep.subr.mxu0 0.0
  %4395 = vmatpush2.msra.mxu0 0.0
  %4396 = vmatprep.subr.mxu0 0.0
  %4397 = vmatpush2.msra.mxu0 0.0
  %4398 = vmatprep.subr.mxu0 0.0
  %4399 = vmatpush2.msra.mxu0 0.0
  %4400 = vmatprep.subr.mxu0 0.0
  %4401 = vmatpush2.msra.mxu0 0.0
  %4402 = vmatprep.subr.mxu0 0.0
  %4403 = vmatpush2.msra.mxu0 0.0
  %4404 = vmatprep.mubr.f32.mxu0 0.0
  %4405 = vmatmul.mubr.f32.gmra.mxu0 %v4338
  %v4406 = vpop.f32.mrf.mxu0
  %v4407 = vadd.f32 0.0, %v4406
  %v4408 = vpop.f32.mrf.mxu0
  %4409 = vdwg.mxu0
  %v4410 = vld [vmem:[#allocation5] sm:$0xff]
  %v4411 = vld [vmem:[#allocation5 + $0x8] sm:$0xff]
  %v4414 = vunpack.c.l.s4 1966171168
  %v4415 = vunpack.c.0.s8 %v4414
  %v4416 = vlaneseq
  %v4417 = vshrl.u32 %v4416, 7
  %v4418 = vsub.s32 %v4415, %v4417
  %v4419 = vrot.slane %v4407, %v4418
  %v4420 = vcombine.high %v4419, %v4419
  %v4422 = vunpack.c.l.s4 1966171168
  %v4423 = vunpack.c.0.s8 %v4422
  %v4424 = vlaneseq
  %v4425 = vshrl.u32 %v4424, 7
  %v4426 = vsub.s32 %v4423, %v4425
  %v4427 = vrot.slane %v4419, %v4426
  %v4429 = vunpack.c.l.s4 1966171168
  %v4430 = vunpack.c.0.s8 %v4429
  %v4431 = vlaneseq
  %v4432 = vshrl.u32 %v4431, 7
  %v4433 = vsub.s32 %v4430, %v4432
  %v4434 = vrot.slane %v4420, %v4433
  %v4435 = vlaneseq
  %v4436 = vshrl.u32 %v4435, 7
  %v4437 = vsub.s32 0, %v4436
  %v4438 = vrot.slane %v4427, %v4437
  %v4439 = vlaneseq
  %v4440 = vshrl.u32 %v4439, 7
  %v4441 = vsub.s32 0, %v4440
  %v4442 = vrot.slane %v4434, %v4441
  %v4445 = vadd.f32 %v4410, %v4438
  %v4446 = vadd.f32 %v4411, %v4442
  %v4447 = vmax.f32 %v4445, 0.0
  %v4448 = vmax.f32 %v4446, 0.0
  %v4449 = vlaneseq
  %v4450 = vshrl.u32 %v4449, 7
  %v4451 = vsub.s32 0, %v4450
  %v4452 = vrot.slane %v4334, %v4451
  %v4453 = vmul.f32 %v4447, %v4452
  %v4454 = vmul.f32 %v4448, %v4452
  %v4455 = vsel %vm46, %v4453, 0.0
  %4456 = vadd.xlane.f32.xlu0 %v4455
  %v4457 = vpop.xlane.xlu0 %4456
  %v4458 = vsel %vm46, %v4454, 0.0
  %4459 = vadd.xlane.f32.xlu0 %v4458
  %v4460 = vpop.xlane.xlu0 %4459
  %v4463 = vlaneseq
  %v4464 = vshrl.u32 %v4463, 7
  %v4465 = vsub.s32 %v268, %v4464
  %v4466 = vrot.slane %v4457, %v4465
  %v4467 = vlaneseq
  %v4468 = vshrl.u32 %v4467, 7
  %v4469 = vsub.s32 %v268, %v4468
  %v4470 = vrot.slane %v4460, %v4469
  %v4471 = vsel %vm277, %v4470, %v4466
  %v4473 = vsel %vm280, %v4471, -inf
  %4474 = vmax.xlane.f32.xlu0 %v4473
  %v4475 = vpop.xlane.xlu0 %4474
  %v4477 = vlaneseq
  %v4478 = vshrl.u32 %v4477, 7
  %v4479 = vsub.s32 0, %v4478
  %v4480 = vrot.slane %v4475, %v4479
  %v4481 = vlaneseq
  %v4482 = vshrl.u32 %v4481, 7
  %v4483 = vsub.s32 1, %v4482
  %v4484 = vrot.slane %v4475, %v4483
  %v4487 = vsub.f32 %v4457, %v4480
  %v4488 = vsub.f32 %v4460, %v4484
  %v4489 = vmul.f32 %v4487, 1.442695
  %v4490 = vpow.pop %v4489
  %v4491 = vmul.f32 %v4488, 1.442695
  %v4492 = vpow.pop %v4491
  %4495 = vset.pattern.permute.xlu0 0
  %4496 = vperm.xlu0 %4495, %v4490
  %v4497 = vpop.permute.xlu0 %4496
  %4498 = vset.pattern.permute.xlu0 0
  %4499 = vperm.xlu0 %4498, %v4492
  %v4500 = vpop.permute.xlu0 %4499
  %v4501 = vlaneseq
  %v4502 = vshrl.u32 %v4501, 7
  %v4503 = vsub.s32 %v268, %v4502
  %v4504 = vrot.slane %v4497, %v4503
  %v4505 = vlaneseq
  %v4506 = vshrl.u32 %v4505, 7
  %v4507 = vsub.s32 %v268, %v4506
  %v4508 = vrot.slane %v4500, %v4507
  %v4509 = vsel %vm277, %v4508, %v4504
  %v4511 = vsel %vm280, %v4509, 0.0
  %4512 = vadd.xlane.f32.xlu0 %v4511
  %v4513 = vpop.xlane.xlu0 %4512
  %v4514 = vlog2.pop %v4513
  %v4515 = vmul.f32 %v4514, 0.6931472
  %v4517 = vlaneseq
  %v4518 = vshrl.u32 %v4517, 7
  %v4519 = vsub.s32 0, %v4518
  %v4520 = vrot.slane %v4515, %v4519
  %v4521 = vlaneseq
  %v4522 = vshrl.u32 %v4521, 7
  %v4523 = vsub.s32 1, %v4522
  %v4524 = vrot.slane %v4515, %v4523
  %v4527 = vsub.f32 %v4487, %v4520
  %v4528 = vsub.f32 %v4488, %v4524
  %4530 = vset.pattern.permute.xlu0 0
  %4531 = vperm.xlu0 %4530, %v4527
  %v4532 = vpop.permute.xlu0 %4531
  %4535 = vset.pattern.permute.xlu0 0
  %4536 = vperm.xlu0 %4535, %v4528
  %v4537 = vpop.permute.xlu0 %4536
  %v4539 = vmul.f32 %v4532, %v4326
  %v4540 = vmul.f32 %v4537, %v4327
  %v4541 = vsel %vm46, %v4539, 0.0
  %v4542 = vrot.slane %v4541, 4
  %v4543 = vadd.f32 %v4541, %v4542
  %v4544 = vrot.slane %v4543, 2
  %v4545 = vadd.f32 %v4543, %v4544
  %v4546 = vrot.slane %v4545, 1
  %v4547 = vadd.f32 %v4545, %v4546
  %v4548 = vsel %vm46, %v4540, 0.0
  %v4549 = vrot.slane %v4548, 4
  %v4550 = vadd.f32 %v4548, %v4549
  %v4551 = vrot.slane %v4550, 2
  %v4552 = vadd.f32 %v4550, %v4551
  %v4553 = vrot.slane %v4552, 1
  %v4554 = vadd.f32 %v4552, %v4553
  %v4555 = vld [vmem:[#allocation2] sm:$0x3]
  %v4556 = vld [vmem:[%s5] sm:$0xff]
  %v4557 = vld [vmem:[%s5 + $0x8] sm:$0xff]
  %v4558 = vld [vmem:[%s5 + $0x10] sm:$0xff]
  %v4559 = vld [vmem:[%s5 + $0x18] sm:$0xff]
  %v4560 = vld [vmem:[%s5 + $0x20] sm:$0xff]
  %v4561 = vld [vmem:[%s5 + $0x28] sm:$0xff]
  %v4562 = vld [vmem:[%s5 + $0x30] sm:$0xff]
  %v4563 = vld [vmem:[%s5 + $0x38] sm:$0xff]
  %v4564 = vld [vmem:[%s5 + $0x40] sm:$0xff]
  %v4565 = vld [vmem:[%s5 + $0x48] sm:$0xff]
  %v4566 = vld [vmem:[%s5 + $0x50] sm:$0xff]
  %v4567 = vld [vmem:[%s5 + $0x58] sm:$0xff]
  %v4568 = vld [vmem:[%s5 + $0x60] sm:$0xff]
  %v4569 = vld [vmem:[%s5 + $0x68] sm:$0xff]
  %v4570 = vld [vmem:[%s5 + $0x70] sm:$0xff]
  %v4571 = vld [vmem:[%s5 + $0x78] sm:$0xff]
  %v4572 = vld [vmem:[%s5 + $0x80] sm:$0xff]
  %v4573 = vld [vmem:[%s5 + $0x88] sm:$0xff]
  %v4574 = vld [vmem:[%s5 + $0x90] sm:$0xff]
  %v4575 = vld [vmem:[%s5 + $0x98] sm:$0xff]
  %v4576 = vld [vmem:[%s5 + $0xa0] sm:$0xff]
  %v4577 = vld [vmem:[%s5 + $0xa8] sm:$0xff]
  %v4578 = vld [vmem:[%s5 + $0xb0] sm:$0xff]
  %v4579 = vld [vmem:[%s5 + $0xb8] sm:$0xff]
  %v4580 = vld [vmem:[%s5 + $0xc0] sm:$0xff]
  %v4581 = vld [vmem:[%s5 + $0xc8] sm:$0xff]
  %v4582 = vld [vmem:[%s5 + $0xd0] sm:$0xff]
  %v4583 = vld [vmem:[%s5 + $0xd8] sm:$0xff]
  %v4584 = vld [vmem:[%s5 + $0xe0] sm:$0xff]
  %v4585 = vld [vmem:[%s5 + $0xe8] sm:$0xff]
  %v4586 = vld [vmem:[%s5 + $0xf0] sm:$0xff]
  %v4587 = vld [vmem:[%s5 + $0xf8] sm:$0xff]
  %v4588 = vld [vmem:[%s5 + $0x100] sm:$0xff]
  %v4589 = vld [vmem:[%s5 + $0x108] sm:$0xff]
  %v4590 = vld [vmem:[%s5 + $0x110] sm:$0xff]
  %v4591 = vld [vmem:[%s5 + $0x118] sm:$0xff]
  %v4593 = vsel %vm400, %v4555, 0
  %4595 = vmatprep.subr.mxu0 0.0
  %4596 = vmatpush1.msra.mxu0 0.0
  %4597 = vmatprep.subr.mxu0 0.0
  %4598 = vmatpush1.msra.mxu0 0.0
  %4599 = vmatprep.subr.mxu0 0.0
  %4600 = vmatpush1.msra.mxu0 0.0
  %4601 = vmatprep.subr.mxu0 0.0
  %4602 = vmatpush1.msra.mxu0 0.0
  %4603 = vmatprep.subr.mxu0 %v4590
  %4604 = vmatpush1.msra.mxu0 %v4589
  %4605 = vmatprep.subr.mxu0 %v4587
  %4606 = vmatpush1.msra.mxu0 %v4586
  %4607 = vmatprep.subr.mxu0 %v4584
  %4608 = vmatpush1.msra.mxu0 %v4583
  %4609 = vmatprep.subr.mxu0 %v4581
  %4610 = vmatpush1.msra.mxu0 %v4580
  %4611 = vmatprep.subr.mxu0 %v4578
  %4612 = vmatpush1.msra.mxu0 %v4577
  %4613 = vmatprep.subr.mxu0 %v4575
  %4614 = vmatpush1.msra.mxu0 %v4574
  %4615 = vmatprep.subr.mxu0 %v4572
  %4616 = vmatpush1.msra.mxu0 %v4571
  %4617 = vmatprep.subr.mxu0 %v4569
  %4618 = vmatpush1.msra.mxu0 %v4568
  %4619 = vmatprep.subr.mxu0 %v4566
  %4620 = vmatpush1.msra.mxu0 %v4565
  %4621 = vmatprep.subr.mxu0 %v4563
  %4622 = vmatpush1.msra.mxu0 %v4562
  %4623 = vmatprep.subr.mxu0 %v4560
  %4624 = vmatpush1.msra.mxu0 %v4559
  %4625 = vmatprep.subr.mxu0 %v4557
  %4626 = vmatpush1.msra.mxu0 %v4556
  %4627 = vmatprep.subr.mxu0 0.0
  %4628 = vmatpush2.msra.mxu0 0.0
  %4629 = vmatprep.subr.mxu0 0.0
  %4630 = vmatpush2.msra.mxu0 0.0
  %4631 = vmatprep.subr.mxu0 0.0
  %4632 = vmatpush2.msra.mxu0 0.0
  %4633 = vmatprep.subr.mxu0 0.0
  %4634 = vmatpush2.msra.mxu0 0.0
  %4635 = vmatprep.subr.mxu0 0.0
  %4636 = vmatpush2.msra.mxu0 0.0
  %4637 = vmatprep.subr.mxu0 0.0
  %4638 = vmatpush2.msra.mxu0 0.0
  %4639 = vmatprep.subr.mxu0 0.0
  %4640 = vmatpush2.msra.mxu0 0.0
  %4641 = vmatprep.subr.mxu0 0.0
  %4642 = vmatpush2.msra.mxu0 0.0
  %4643 = vmatprep.subr.mxu0 0.0
  %4644 = vmatpush2.msra.mxu0 0.0
  %4645 = vmatprep.subr.mxu0 0.0
  %4646 = vmatpush2.msra.mxu0 0.0
  %4647 = vmatprep.subr.mxu0 0.0
  %4648 = vmatpush2.msra.mxu0 0.0
  %4649 = vmatprep.subr.mxu0 0.0
  %4650 = vmatpush2.msra.mxu0 0.0
  %4651 = vmatprep.subr.mxu0 0.0
  %4652 = vmatpush2.msra.mxu0 0.0
  %4653 = vmatprep.subr.mxu0 0.0
  %4654 = vmatpush2.msra.mxu0 0.0
  %4655 = vmatprep.subr.mxu0 0.0
  %4656 = vmatpush2.msra.mxu0 0.0
  %4657 = vmatprep.subr.mxu0 0.0
  %4658 = vmatpush2.msra.mxu0 0.0
  %4659 = vmatprep.mubr.f32.mxu0 0.0
  %4660 = vmatmul.mubr.f32.gmra.mxu0 %v4593
  %v4661 = vpop.f32.mrf.mxu0
  %v4662 = vadd.f32 0.0, %v4661
  %v4663 = vpop.f32.mrf.mxu0
  %v4664 = vadd.f32 0.0, %v4663
  %4665 = vdwg.mxu0
  %4666 = vmatprep.subr.mxu0 0.0
  %4667 = vmatpush1.msra.mxu0 0.0
  %4668 = vmatprep.subr.mxu0 0.0
  %4669 = vmatpush1.msra.mxu0 0.0
  %4670 = vmatprep.subr.mxu0 0.0
  %4671 = vmatpush1.msra.mxu0 0.0
  %4672 = vmatprep.subr.mxu0 0.0
  %4673 = vmatpush1.msra.mxu0 0.0
  %4674 = vmatprep.subr.mxu0 0.0
  %4675 = vmatpush1.msra.mxu0 %v4591
  %4676 = vmatprep.subr.mxu0 0.0
  %4677 = vmatpush1.msra.mxu0 %v4588
  %4678 = vmatprep.subr.mxu0 0.0
  %4679 = vmatpush1.msra.mxu0 %v4585
  %4680 = vmatprep.subr.mxu0 0.0
  %4681 = vmatpush1.msra.mxu0 %v4582
  %4682 = vmatprep.subr.mxu0 0.0
  %4683 = vmatpush1.msra.mxu0 %v4579
  %4684 = vmatprep.subr.mxu0 0.0
  %4685 = vmatpush1.msra.mxu0 %v4576
  %4686 = vmatprep.subr.mxu0 0.0
  %4687 = vmatpush1.msra.mxu0 %v4573
  %4688 = vmatprep.subr.mxu0 0.0
  %4689 = vmatpush1.msra.mxu0 %v4570
  %4690 = vmatprep.subr.mxu0 0.0
  %4691 = vmatpush1.msra.mxu0 %v4567
  %4692 = vmatprep.subr.mxu0 0.0
  %4693 = vmatpush1.msra.mxu0 %v4564
  %4694 = vmatprep.subr.mxu0 0.0
  %4695 = vmatpush1.msra.mxu0 %v4561
  %4696 = vmatprep.subr.mxu0 0.0
  %4697 = vmatpush1.msra.mxu0 %v4558
  %4698 = vmatprep.subr.mxu0 0.0
  %4699 = vmatpush2.msra.mxu0 0.0
  %4700 = vmatprep.subr.mxu0 0.0
  %4701 = vmatpush2.msra.mxu0 0.0
  %4702 = vmatprep.subr.mxu0 0.0
  %4703 = vmatpush2.msra.mxu0 0.0
  %4704 = vmatprep.subr.mxu0 0.0
  %4705 = vmatpush2.msra.mxu0 0.0
  %4706 = vmatprep.subr.mxu0 0.0
  %4707 = vmatpush2.msra.mxu0 0.0
  %4708 = vmatprep.subr.mxu0 0.0
  %4709 = vmatpush2.msra.mxu0 0.0
  %4710 = vmatprep.subr.mxu0 0.0
  %4711 = vmatpush2.msra.mxu0 0.0
  %4712 = vmatprep.subr.mxu0 0.0
  %4713 = vmatpush2.msra.mxu0 0.0
  %4714 = vmatprep.subr.mxu0 0.0
  %4715 = vmatpush2.msra.mxu0 0.0
  %4716 = vmatprep.subr.mxu0 0.0
  %4717 = vmatpush2.msra.mxu0 0.0
  %4718 = vmatprep.subr.mxu0 0.0
  %4719 = vmatpush2.msra.mxu0 0.0
  %4720 = vmatprep.subr.mxu0 0.0
  %4721 = vmatpush2.msra.mxu0 0.0
  %4722 = vmatprep.subr.mxu0 0.0
  %4723 = vmatpush2.msra.mxu0 0.0
  %4724 = vmatprep.subr.mxu0 0.0
  %4725 = vmatpush2.msra.mxu0 0.0
  %4726 = vmatprep.subr.mxu0 0.0
  %4727 = vmatpush2.msra.mxu0 0.0
  %4728 = vmatprep.subr.mxu0 0.0
  %4729 = vmatpush2.msra.mxu0 0.0
  %4730 = vmatprep.mubr.f32.mxu0 0.0
  %4731 = vmatmul.mubr.f32.gmra.mxu0 %v4593
  %v4732 = vpop.f32.mrf.mxu0
  %v4733 = vadd.f32 0.0, %v4732
  %v4734 = vpop.f32.mrf.mxu0
  %4735 = vdwg.mxu0
  %v4736 = vld [vmem:[%s4] sm:$0xff]
  %v4737 = vld [vmem:[%s4 + $0x8] sm:$0xff]
  %v4738 = vld [vmem:[%s4 + $0x10] sm:$0xff]
  %v4739 = vld [vmem:[%s4 + $0x18] sm:$0xff]
  %v4740 = vld [vmem:[%s4 + $0x20] sm:$0xff]
  %v4741 = vld [vmem:[%s4 + $0x28] sm:$0xff]
  %v4742 = vld [vmem:[%s4 + $0x30] sm:$0xff]
  %v4743 = vld [vmem:[%s4 + $0x38] sm:$0xff]
  %v4746 = vsel %vm277, %v4554, %v4547
  %v4747 = vsel %vm46, %v4746, 0
  %4749 = vmatprep.subr.mxu0 0.0
  %4750 = vmatpush1.msra.mxu0 0.0
  %4751 = vmatprep.subr.mxu0 0.0
  %4752 = vmatpush1.msra.mxu0 0.0
  %4753 = vmatprep.subr.mxu0 0.0
  %4754 = vmatpush1.msra.mxu0 0.0
  %4755 = vmatprep.subr.mxu0 0.0
  %4756 = vmatpush1.msra.mxu0 0.0
  %4757 = vmatprep.subr.mxu0 0.0
  %4758 = vmatpush1.msra.mxu0 0.0
  %4759 = vmatprep.subr.mxu0 0.0
  %4760 = vmatpush1.msra.mxu0 0.0
  %4761 = vmatprep.subr.mxu0 0.0
  %4762 = vmatpush1.msra.mxu0 0.0
  %4763 = vmatprep.subr.mxu0 0.0
  %4764 = vmatpush1.msra.mxu0 0.0
  %4765 = vmatprep.subr.mxu0 0.0
  %4766 = vmatpush1.msra.mxu0 0.0
  %4767 = vmatprep.subr.mxu0 0.0
  %4768 = vmatpush1.msra.mxu0 0.0
  %4769 = vmatprep.subr.mxu0 0.0
  %4770 = vmatpush1.msra.mxu0 0.0
  %4771 = vmatprep.subr.mxu0 0.0
  %4772 = vmatpush1.msra.mxu0 0.0
  %4773 = vmatprep.subr.mxu0 0.0
  %4774 = vmatpush1.msra.mxu0 %v4743
  %4775 = vmatprep.subr.mxu0 0.0
  %4776 = vmatpush1.msra.mxu0 %v4742
  %4777 = vmatprep.subr.mxu0 0.0
  %4778 = vmatpush1.msra.mxu0 %v4741
  %4779 = vmatprep.subr.mxu0 0.0
  %4780 = vmatpush1.msra.mxu0 %v4740
  %4781 = vmatprep.subr.mxu0 0.0
  %4782 = vmatpush2.msra.mxu0 0.0
  %4783 = vmatprep.subr.mxu0 0.0
  %4784 = vmatpush2.msra.mxu0 0.0
  %4785 = vmatprep.subr.mxu0 0.0
  %4786 = vmatpush2.msra.mxu0 0.0
  %4787 = vmatprep.subr.mxu0 0.0
  %4788 = vmatpush2.msra.mxu0 0.0
  %4789 = vmatprep.subr.mxu0 0.0
  %4790 = vmatpush2.msra.mxu0 0.0
  %4791 = vmatprep.subr.mxu0 0.0
  %4792 = vmatpush2.msra.mxu0 0.0
  %4793 = vmatprep.subr.mxu0 0.0
  %4794 = vmatpush2.msra.mxu0 0.0
  %4795 = vmatprep.subr.mxu0 0.0
  %4796 = vmatpush2.msra.mxu0 0.0
  %4797 = vmatprep.subr.mxu0 0.0
  %4798 = vmatpush2.msra.mxu0 0.0
  %4799 = vmatprep.subr.mxu0 0.0
  %4800 = vmatpush2.msra.mxu0 0.0
  %4801 = vmatprep.subr.mxu0 0.0
  %4802 = vmatpush2.msra.mxu0 0.0
  %4803 = vmatprep.subr.mxu0 0.0
  %4804 = vmatpush2.msra.mxu0 0.0
  %4805 = vmatprep.subr.mxu0 0.0
  %4806 = vmatpush2.msra.mxu0 0.0
  %4807 = vmatprep.subr.mxu0 0.0
  %4808 = vmatpush2.msra.mxu0 0.0
  %4809 = vmatprep.subr.mxu0 0.0
  %4810 = vmatpush2.msra.mxu0 0.0
  %4811 = vmatprep.subr.mxu0 0.0
  %4812 = vmatpush2.msra.mxu0 0.0
  %4813 = vmatprep.mubr.f32.mxu0 0.0
  %4814 = vmatmul.mubr.f32.gmra.mxu0 %v4747
  %v4815 = vpop.f32.mrf.mxu0
  %v4816 = vadd.f32 0.0, %v4815
  %v4817 = vpop.f32.mrf.mxu0
  %4818 = vdwg.mxu0
  %v4820 = vsel %vm46, %v4328, 0
  %4822 = vmatprep.subr.mxu0 0.0
  %4823 = vmatpush1.msra.mxu0 0.0
  %4824 = vmatprep.subr.mxu0 0.0
  %4825 = vmatpush1.msra.mxu0 0.0
  %4826 = vmatprep.subr.mxu0 0.0
  %4827 = vmatpush1.msra.mxu0 0.0
  %4828 = vmatprep.subr.mxu0 0.0
  %4829 = vmatpush1.msra.mxu0 0.0
  %4830 = vmatprep.subr.mxu0 0.0
  %4831 = vmatpush1.msra.mxu0 0.0
  %4832 = vmatprep.subr.mxu0 0.0
  %4833 = vmatpush1.msra.mxu0 0.0
  %4834 = vmatprep.subr.mxu0 0.0
  %4835 = vmatpush1.msra.mxu0 0.0
  %4836 = vmatprep.subr.mxu0 0.0
  %4837 = vmatpush1.msra.mxu0 0.0
  %4838 = vmatprep.subr.mxu0 0.0
  %4839 = vmatpush1.msra.mxu0 0.0
  %4840 = vmatprep.subr.mxu0 0.0
  %4841 = vmatpush1.msra.mxu0 0.0
  %4842 = vmatprep.subr.mxu0 0.0
  %4843 = vmatpush1.msra.mxu0 0.0
  %4844 = vmatprep.subr.mxu0 0.0
  %4845 = vmatpush1.msra.mxu0 0.0
  %4846 = vmatprep.subr.mxu0 0.0
  %4847 = vmatpush1.msra.mxu0 %v4739
  %4848 = vmatprep.subr.mxu0 0.0
  %4849 = vmatpush1.msra.mxu0 %v4738
  %4850 = vmatprep.subr.mxu0 0.0
  %4851 = vmatpush1.msra.mxu0 %v4737
  %4852 = vmatprep.subr.mxu0 0.0
  %4853 = vmatpush1.msra.mxu0 %v4736
  %4854 = vmatprep.subr.mxu0 0.0
  %4855 = vmatpush2.msra.mxu0 0.0
  %4856 = vmatprep.subr.mxu0 0.0
  %4857 = vmatpush2.msra.mxu0 0.0
  %4858 = vmatprep.subr.mxu0 0.0
  %4859 = vmatpush2.msra.mxu0 0.0
  %4860 = vmatprep.subr.mxu0 0.0
  %4861 = vmatpush2.msra.mxu0 0.0
  %4862 = vmatprep.subr.mxu0 0.0
  %4863 = vmatpush2.msra.mxu0 0.0
  %4864 = vmatprep.subr.mxu0 0.0
  %4865 = vmatpush2.msra.mxu0 0.0
  %4866 = vmatprep.subr.mxu0 0.0
  %4867 = vmatpush2.msra.mxu0 0.0
  %4868 = vmatprep.subr.mxu0 0.0
  %4869 = vmatpush2.msra.mxu0 0.0
  %4870 = vmatprep.subr.mxu0 0.0
  %4871 = vmatpush2.msra.mxu0 0.0
  %4872 = vmatprep.subr.mxu0 0.0
  %4873 = vmatpush2.msra.mxu0 0.0
  %4874 = vmatprep.subr.mxu0 0.0
  %4875 = vmatpush2.msra.mxu0 0.0
  %4876 = vmatprep.subr.mxu0 0.0
  %4877 = vmatpush2.msra.mxu0 0.0
  %4878 = vmatprep.subr.mxu0 0.0
  %4879 = vmatpush2.msra.mxu0 0.0
  %4880 = vmatprep.subr.mxu0 0.0
  %4881 = vmatpush2.msra.mxu0 0.0
  %4882 = vmatprep.subr.mxu0 0.0
  %4883 = vmatpush2.msra.mxu0 0.0
  %4884 = vmatprep.subr.mxu0 0.0
  %4885 = vmatpush2.msra.mxu0 0.0
  %4886 = vmatprep.mubr.f32.mxu0 0.0
  %4887 = vmatmul.mubr.f32.gmra.mxu0 %v4820
  %v4888 = vpop.f32.mrf.mxu0
  %v4889 = vadd.f32 %v4816, %v4888
  %v4890 = vpop.f32.mrf.mxu0
  %4891 = vdwg.mxu0
  %v4892 = vadd.f32 %v4889, %v4662
  %v4893 = vld [vmem:[%s6] sm:$0x1]
  %v4894 = vlaneseq
  %v4895 = vshrl.u32 %v4894, 7
  %v4896 = vsub.s32 0, %v4895
  %v4897 = vrot.slane %v4893, %v4896
  %v4898 = vadd.f32 %v4892, %v4897
  %v4899 = vxor.u32 %v4898, 2147483648
  %v4900 = vmul.f32 %v4899, 1.442695
  %v4901 = vpow.pop %v4900
  %v4902 = vadd.f32 %v4901, 1.0
  %v4903 = vrcp.pop %v4902
  %v4904 = vmul.f32 1.0, %v4903
  %v4905 = vtanh.pop %v4898
  %v4906 = vld [vmem:[#allocation3] sm:$0x3]
  %4908 = vrot.lane.b32.xlu0 %v4906, 32
  %v4909 = vpop.permute.xlu0 %4908
  %v4911 = vmul.f32 %v4904, %v4909
  %4913 = vrot.lane.b32.xlu0 %v4905, 64
  %v4914 = vpop.permute.xlu0 %4913
  %v4916 = vmul.f32 %v4904, %v4914
  %4918 = vrot.lane.b32.xlu0 %v4916, 32
  %v4919 = vpop.permute.xlu0 %4918
  %v4921 = vadd.f32 %v4911, %v4919
  %v4922 = vtanh.pop %v4921
  %4924 = vrot.lane.b32.xlu0 %v4922, 64
  %v4925 = vpop.permute.xlu0 %4924
  %v4927 = vmul.f32 %v4904, %v4925
  %4929 = vrot.lane.b32.xlu0 %v4921, 96
  %v4930 = vpop.permute.xlu0 %4929
  %4932 = vst.msk [vmem:[#allocation3] sm:$0x3] %vm33, %v4930
  %4934 = vrot.lane.b32.xlu0 %v4927, 32
  %v4935 = vpop.permute.xlu0 %4934
  %4937 = vst.msk [vmem:[#allocation2] sm:$0x3] %vm33, %v4935
  %v4938 = vld [vmem:[%s4 + $0x40] sm:$0xff]
  %v4939 = vld [vmem:[%s4 + $0x48] sm:$0xff]
  %v4940 = vld [vmem:[%s4 + $0x50] sm:$0xff]
  %v4941 = vld [vmem:[%s4 + $0x58] sm:$0xff]
  %v4942 = vsel %vm46, %v4935, 0
  %4944 = vmatprep.subr.mxu0 0.0
  %4945 = vmatpush1.msra.mxu0 0.0
  %4946 = vmatprep.subr.mxu0 0.0
  %4947 = vmatpush1.msra.mxu0 0.0
  %4948 = vmatprep.subr.mxu0 0.0
  %4949 = vmatpush1.msra.mxu0 0.0
  %4950 = vmatprep.subr.mxu0 0.0
  %4951 = vmatpush1.msra.mxu0 0.0
  %4952 = vmatprep.subr.mxu0 0.0
  %4953 = vmatpush1.msra.mxu0 0.0
  %4954 = vmatprep.subr.mxu0 0.0
  %4955 = vmatpush1.msra.mxu0 0.0
  %4956 = vmatprep.subr.mxu0 0.0
  %4957 = vmatpush1.msra.mxu0 0.0
  %4958 = vmatprep.subr.mxu0 0.0
  %4959 = vmatpush1.msra.mxu0 0.0
  %4960 = vmatprep.subr.mxu0 0.0
  %4961 = vmatpush1.msra.mxu0 0.0
  %4962 = vmatprep.subr.mxu0 0.0
  %4963 = vmatpush1.msra.mxu0 0.0
  %4964 = vmatprep.subr.mxu0 0.0
  %4965 = vmatpush1.msra.mxu0 0.0
  %4966 = vmatprep.subr.mxu0 0.0
  %4967 = vmatpush1.msra.mxu0 0.0
  %4968 = vmatprep.subr.mxu0 0.0
  %4969 = vmatpush1.msra.mxu0 %v4941
  %4970 = vmatprep.subr.mxu0 0.0
  %4971 = vmatpush1.msra.mxu0 %v4940
  %4972 = vmatprep.subr.mxu0 0.0
  %4973 = vmatpush1.msra.mxu0 %v4939
  %4974 = vmatprep.subr.mxu0 0.0
  %4975 = vmatpush1.msra.mxu0 %v4938
  %4976 = vmatprep.subr.mxu0 0.0
  %4977 = vmatpush2.msra.mxu0 0.0
  %4978 = vmatprep.subr.mxu0 0.0
  %4979 = vmatpush2.msra.mxu0 0.0
  %4980 = vmatprep.subr.mxu0 0.0
  %4981 = vmatpush2.msra.mxu0 0.0
  %4982 = vmatprep.subr.mxu0 0.0
  %4983 = vmatpush2.msra.mxu0 0.0
  %4984 = vmatprep.subr.mxu0 0.0
  %4985 = vmatpush2.msra.mxu0 0.0
  %4986 = vmatprep.subr.mxu0 0.0
  %4987 = vmatpush2.msra.mxu0 0.0
  %4988 = vmatprep.subr.mxu0 0.0
  %4989 = vmatpush2.msra.mxu0 0.0
  %4990 = vmatprep.subr.mxu0 0.0
  %4991 = vmatpush2.msra.mxu0 0.0
  %4992 = vmatprep.subr.mxu0 0.0
  %4993 = vmatpush2.msra.mxu0 0.0
  %4994 = vmatprep.subr.mxu0 0.0
  %4995 = vmatpush2.msra.mxu0 0.0
  %4996 = vmatprep.subr.mxu0 0.0
  %4997 = vmatpush2.msra.mxu0 0.0
  %4998 = vmatprep.subr.mxu0 0.0
  %4999 = vmatpush2.msra.mxu0 0.0
  %5000 = vmatprep.subr.mxu0 0.0
  %5001 = vmatpush2.msra.mxu0 0.0
  %5002 = vmatprep.subr.mxu0 0.0
  %5003 = vmatpush2.msra.mxu0 0.0
  %5004 = vmatprep.subr.mxu0 0.0
  %5005 = vmatpush2.msra.mxu0 0.0
  %5006 = vmatprep.subr.mxu0 0.0
  %5007 = vmatpush2.msra.mxu0 0.0
  %5008 = vmatprep.mubr.f32.mxu0 0.0
  %5009 = vmatmul.mubr.f32.gmra.mxu0 %v4942
  %v5010 = vpop.f32.mrf.mxu0
  %v5011 = vadd.f32 %v4664, %v5010
  %v5012 = vpop.f32.mrf.mxu0
  %5013 = vdwg.mxu0
  %v5014 = vld [vmem:[%s6 + $0x1] sm:$0x1]
  %v5015 = vlaneseq
  %v5016 = vshrl.u32 %v5015, 7
  %v5017 = vsub.s32 0, %v5016
  %v5018 = vrot.slane %v5014, %v5017
  %v5019 = vadd.f32 %v5011, %v5018
  %v5020 = vxor.u32 %v5019, 2147483648
  %v5021 = vmul.f32 %v5020, 1.442695
  %v5022 = vpow.pop %v5021
  %v5023 = vadd.f32 %v5022, 1.0
  %v5024 = vrcp.pop %v5023
  %v5025 = vmul.f32 1.0, %v5024
  %v5026 = vtanh.pop %v5019
  %v5027 = vld [vmem:[#allocation3] sm:$0x3]
  %v5028 = vmul.f32 %v5025, %v5027
  %5030 = vrot.lane.b32.xlu0 %v5026, 64
  %v5031 = vpop.permute.xlu0 %5030
  %v5033 = vmul.f32 %v5025, %v5031
  %5035 = vrot.lane.b32.xlu0 %v5033, 32
  %v5036 = vpop.permute.xlu0 %5035
  %v5038 = vadd.f32 %v5028, %v5036
  %v5039 = vtanh.pop %v5038
  %5041 = vrot.lane.b32.xlu0 %v5039, 64
  %v5042 = vpop.permute.xlu0 %5041
  %v5044 = vmul.f32 %v5025, %v5042
  %5045 = vst.msk [vmem:[#allocation3] sm:$0x3] %vm854, %v5038
  %5047 = vrot.lane.b32.xlu0 %v5044, 64
  %v5048 = vpop.permute.xlu0 %5047
  %5050 = vst.msk [vmem:[#allocation2] sm:$0x3] %vm854, %v5048
  %v5051 = vld [vmem:[%s4 + $0x60] sm:$0xff]
  %v5052 = vld [vmem:[%s4 + $0x68] sm:$0xff]
  %v5053 = vld [vmem:[%s4 + $0x70] sm:$0xff]
  %v5054 = vld [vmem:[%s4 + $0x78] sm:$0xff]
  %5055 = vrot.lane.b32.xlu0 %v5044, 32
  %v5056 = vpop.permute.xlu0 %5055
  %v5057 = vsel %vm46, %v5056, 0
  %5059 = vmatprep.subr.mxu0 0.0
  %5060 = vmatpush1.msra.mxu0 0.0
  %5061 = vmatprep.subr.mxu0 0.0
  %5062 = vmatpush1.msra.mxu0 0.0
  %5063 = vmatprep.subr.mxu0 0.0
  %5064 = vmatpush1.msra.mxu0 0.0
  %5065 = vmatprep.subr.mxu0 0.0
  %5066 = vmatpush1.msra.mxu0 0.0
  %5067 = vmatprep.subr.mxu0 0.0
  %5068 = vmatpush1.msra.mxu0 0.0
  %5069 = vmatprep.subr.mxu0 0.0
  %5070 = vmatpush1.msra.mxu0 0.0
  %5071 = vmatprep.subr.mxu0 0.0
  %5072 = vmatpush1.msra.mxu0 0.0
  %5073 = vmatprep.subr.mxu0 0.0
  %5074 = vmatpush1.msra.mxu0 0.0
  %5075 = vmatprep.subr.mxu0 0.0
  %5076 = vmatpush1.msra.mxu0 0.0
  %5077 = vmatprep.subr.mxu0 0.0
  %5078 = vmatpush1.msra.mxu0 0.0
  %5079 = vmatprep.subr.mxu0 0.0
  %5080 = vmatpush1.msra.mxu0 0.0
  %5081 = vmatprep.subr.mxu0 0.0
  %5082 = vmatpush1.msra.mxu0 0.0
  %5083 = vmatprep.subr.mxu0 0.0
  %5084 = vmatpush1.msra.mxu0 %v5054
  %5085 = vmatprep.subr.mxu0 0.0
  %5086 = vmatpush1.msra.mxu0 %v5053
  %5087 = vmatprep.subr.mxu0 0.0
  %5088 = vmatpush1.msra.mxu0 %v5052
  %5089 = vmatprep.subr.mxu0 0.0
  %5090 = vmatpush1.msra.mxu0 %v5051
  %5091 = vmatprep.subr.mxu0 0.0
  %5092 = vmatpush2.msra.mxu0 0.0
  %5093 = vmatprep.subr.mxu0 0.0
  %5094 = vmatpush2.msra.mxu0 0.0
  %5095 = vmatprep.subr.mxu0 0.0
  %5096 = vmatpush2.msra.mxu0 0.0
  %5097 = vmatprep.subr.mxu0 0.0
  %5098 = vmatpush2.msra.mxu0 0.0
  %5099 = vmatprep.subr.mxu0 0.0
  %5100 = vmatpush2.msra.mxu0 0.0
  %5101 = vmatprep.subr.mxu0 0.0
  %5102 = vmatpush2.msra.mxu0 0.0
  %5103 = vmatprep.subr.mxu0 0.0
  %5104 = vmatpush2.msra.mxu0 0.0
  %5105 = vmatprep.subr.mxu0 0.0
  %5106 = vmatpush2.msra.mxu0 0.0
  %5107 = vmatprep.subr.mxu0 0.0
  %5108 = vmatpush2.msra.mxu0 0.0
  %5109 = vmatprep.subr.mxu0 0.0
  %5110 = vmatpush2.msra.mxu0 0.0
  %5111 = vmatprep.subr.mxu0 0.0
  %5112 = vmatpush2.msra.mxu0 0.0
  %5113 = vmatprep.subr.mxu0 0.0
  %5114 = vmatpush2.msra.mxu0 0.0
  %5115 = vmatprep.subr.mxu0 0.0
  %5116 = vmatpush2.msra.mxu0 0.0
  %5117 = vmatprep.subr.mxu0 0.0
  %5118 = vmatpush2.msra.mxu0 0.0
  %5119 = vmatprep.subr.mxu0 0.0
  %5120 = vmatpush2.msra.mxu0 0.0
  %5121 = vmatprep.subr.mxu0 0.0
  %5122 = vmatpush2.msra.mxu0 0.0
  %5123 = vmatprep.mubr.f32.mxu0 0.0
  %5124 = vmatmul.mubr.f32.gmra.mxu0 %v5057
  %v5125 = vpop.f32.mrf.mxu0
  %v5126 = vadd.f32 %v4733, %v5125
  %v5127 = vpop.f32.mrf.mxu0
  %5128 = vdwg.mxu0
  %v5129 = vld [vmem:[%s6 + $0x2] sm:$0x1]
  %v5130 = vlaneseq
  %v5131 = vshrl.u32 %v5130, 7
  %v5132 = vsub.s32 0, %v5131
  %v5133 = vrot.slane %v5129, %v5132
  %v5134 = vadd.f32 %v5126, %v5133
  %v5135 = vxor.u32 %v5134, 2147483648
  %v5136 = vmul.f32 %v5135, 1.442695
  %v5137 = vpow.pop %v5136
  %v5138 = vadd.f32 %v5137, 1.0
  %v5139 = vrcp.pop %v5138
  %v5140 = vmul.f32 1.0, %v5139
  %v5141 = vtanh.pop %v5134
  %v5142 = vld [vmem:[#allocation3] sm:$0x3]
  %5144 = vrot.lane.b32.xlu0 %v5142, 96
  %v5145 = vpop.permute.xlu0 %5144
  %v5147 = vmul.f32 %v5140, %v5145
  %5149 = vrot.lane.b32.xlu0 %v5141, 64
  %v5150 = vpop.permute.xlu0 %5149
  %v5152 = vmul.f32 %v5140, %v5150
  %5154 = vrot.lane.b32.xlu0 %v5152, 32
  %v5155 = vpop.permute.xlu0 %5154
  %v5157 = vadd.f32 %v5147, %v5155
  %v5158 = vtanh.pop %v5157
  %5160 = vrot.lane.b32.xlu0 %v5158, 64
  %v5161 = vpop.permute.xlu0 %5160
  %v5163 = vmul.f32 %v5140, %v5161
  %5165 = vrot.lane.b32.xlu0 %v5157, 32
  %v5166 = vpop.permute.xlu0 %5165
  %5168 = vst.msk [vmem:[#allocation3] sm:$0x3] %vm978, %v5166
  %5170 = vrot.lane.b32.xlu0 %v5163, 96
  %v5171 = vpop.permute.xlu0 %5170
  %5173 = vst.msk [vmem:[#allocation2] sm:$0x3] %vm978, %v5171
  %v5174 = vld [vmem:[%s7] sm:$0xff]
  %v5175 = vld [vmem:[%s7 + $0x8] sm:$0xff]
  %v5176 = vld [vmem:[%s7 + $0x10] sm:$0xff]
  %v5177 = vld [vmem:[%s7 + $0x18] sm:$0xff]
  %v5178 = vld [vmem:[%s7 + $0x20] sm:$0x1]
  %v5179 = vlaneseq
  %v5180 = vshrl.u32 %v5179, 7
  %v5181 = vsub.s32 0, %v5180
  %v5182 = vrot.slane %v5178, %v5181
  %5183 = vrot.lane.b32.xlu0 %v5163, 32
  %v5184 = vpop.permute.xlu0 %5183
  %v5185 = vsel %vm46, %v5184, 0
  %5187 = vmatprep.subr.mxu0 0.0
  %5188 = vmatpush1.msra.mxu0 0.0
  %5189 = vmatprep.subr.mxu0 0.0
  %5190 = vmatpush1.msra.mxu0 0.0
  %5191 = vmatprep.subr.mxu0 0.0
  %5192 = vmatpush1.msra.mxu0 0.0
  %5193 = vmatprep.subr.mxu0 0.0
  %5194 = vmatpush1.msra.mxu0 0.0
  %5195 = vmatprep.subr.mxu0 0.0
  %5196 = vmatpush1.msra.mxu0 0.0
  %5197 = vmatprep.subr.mxu0 0.0
  %5198 = vmatpush1.msra.mxu0 0.0
  %5199 = vmatprep.subr.mxu0 0.0
  %5200 = vmatpush1.msra.mxu0 0.0
  %5201 = vmatprep.subr.mxu0 0.0
  %5202 = vmatpush1.msra.mxu0 0.0
  %5203 = vmatprep.subr.mxu0 0.0
  %5204 = vmatpush1.msra.mxu0 0.0
  %5205 = vmatprep.subr.mxu0 0.0
  %5206 = vmatpush1.msra.mxu0 0.0
  %5207 = vmatprep.subr.mxu0 0.0
  %5208 = vmatpush1.msra.mxu0 0.0
  %5209 = vmatprep.subr.mxu0 0.0
  %5210 = vmatpush1.msra.mxu0 0.0
  %5211 = vmatprep.subr.mxu0 0.0
  %5212 = vmatpush1.msra.mxu0 %v5177
  %5213 = vmatprep.subr.mxu0 0.0
  %5214 = vmatpush1.msra.mxu0 %v5176
  %5215 = vmatprep.subr.mxu0 0.0
  %5216 = vmatpush1.msra.mxu0 %v5175
  %5217 = vmatprep.subr.mxu0 0.0
  %5218 = vmatpush1.msra.mxu0 %v5174
  %5219 = vmatprep.subr.mxu0 0.0
  %5220 = vmatpush2.msra.mxu0 0.0
  %5221 = vmatprep.subr.mxu0 0.0
  %5222 = vmatpush2.msra.mxu0 0.0
  %5223 = vmatprep.subr.mxu0 0.0
  %5224 = vmatpush2.msra.mxu0 0.0
  %5225 = vmatprep.subr.mxu0 0.0
  %5226 = vmatpush2.msra.mxu0 0.0
  %5227 = vmatprep.subr.mxu0 0.0
  %5228 = vmatpush2.msra.mxu0 0.0
  %5229 = vmatprep.subr.mxu0 0.0
  %5230 = vmatpush2.msra.mxu0 0.0
  %5231 = vmatprep.subr.mxu0 0.0
  %5232 = vmatpush2.msra.mxu0 0.0
  %5233 = vmatprep.subr.mxu0 0.0
  %5234 = vmatpush2.msra.mxu0 0.0
  %5235 = vmatprep.subr.mxu0 0.0
  %5236 = vmatpush2.msra.mxu0 0.0
  %5237 = vmatprep.subr.mxu0 0.0
  %5238 = vmatpush2.msra.mxu0 0.0
  %5239 = vmatprep.subr.mxu0 0.0
  %5240 = vmatpush2.msra.mxu0 0.0
  %5241 = vmatprep.subr.mxu0 0.0
  %5242 = vmatpush2.msra.mxu0 0.0
  %5243 = vmatprep.subr.mxu0 0.0
  %5244 = vmatpush2.msra.mxu0 0.0
  %5245 = vmatprep.subr.mxu0 0.0
  %5246 = vmatpush2.msra.mxu0 0.0
  %5247 = vmatprep.subr.mxu0 0.0
  %5248 = vmatpush2.msra.mxu0 0.0
  %5249 = vmatprep.subr.mxu0 0.0
  %5250 = vmatpush2.msra.mxu0 0.0
  %5251 = vmatprep.mubr.f32.mxu0 0.0
  %5252 = vmatmul.mubr.f32.gmra.mxu0 %v5185
  %v5253 = vpop.f32.mrf.mxu0
  %v5254 = vadd.f32 %v5182, %v5253
  %v5255 = vpop.f32.mrf.mxu0
  %5256 = vdwg.mxu0
  %v5257 = vsel %vm1068, %v5254, -inf
  %5258 = vmax.xlane.f32.xlu0 %v5257
  %v5259 = vpop.xlane.xlu0 %5258
  %v5260 = vsub.f32 %v5254, %v5259
  %v5261 = vmul.f32 %v5260, 1.442695
  %v5262 = vpow.pop %v5261
  %v5263 = vsel %vm1068, %v5262, 0.0
  %5264 = vadd.xlane.f32.xlu0 %v5263
  %v5265 = vpop.xlane.xlu0 %5264
  %v5266 = vlog2.pop %v5265
  %v5267 = vmul.f32 %v5266, 0.6931472
  %v5268 = vsub.f32 %v5260, %v5267
  %5270 = vrot.lane.b32.xlu0 %v5268, 64
  %v5271 = vpop.permute.xlu0 %5270
  %vm5273 = vcmask 648704
  %5274 = vst.msk [vmem:[%s8] sm:$0x3] %vm5273, %v5271
  %v5275 = vsel %vm1068, %v5268, -inf
  %5276 = vmax.xlane.f32.xlu0 %v5275
  %v5277 = vpop.xlane.xlu0 %5276
  %vm5278 = vcmp.eq.f32.partialorder %v5268, %v5277
  %v5279 = vsel %vm5278, %v268, 16
  %v5280 = vsel %vm1068, %v5279, 2147483647
  %v5281 = vand.u32 %v5280, 65535
  %v5282 = vshra.s32 %v5280, 16
  %v5283 = vcvt.s32.f32 %v5281
  %v5284 = vcvt.s32.f32 %v5282
  %5285 = vmin.xlane.f32.xlu0 %v5284
  %v5286 = vpop.xlane.xlu0 %5285
  %vm5287 = vcmp.eq.f32.partialorder %v5284, %v5286
  %v5288 = vsel %vm5287, %v5283, inf
  %5289 = vmin.xlane.f32.xlu0 %v5288
  %v5290 = vpop.xlane.xlu0 %5289
  %v5291 = vcvt.f32.s32 %v5290
  %v5292 = vcvt.f32.s32 %v5286
  %v5293 = vshll.u32 %v5292, 16
  %v5294 = vadd.s32 %v5293, %v5291
  %vm5295 = vcmp.eq.s32.totalorder %v268, %v5294
  %v5296 = vsel %vm5295, 1, 0
  %v5297 = vcvt.s32.f32 %v5296
  %v5298 = vld [vmem:[%s2] sm:$0xff]
  %v5299 = vld [vmem:[%s2 + $0x8] sm:$0xff]
  %v5301 = vsel %vm1107, %v5297, 0
  %5303 = vmatprep.subr.mxu0 0.0
  %5304 = vmatpush1.msra.mxu0 0.0
  %5305 = vmatprep.subr.mxu0 0.0
  %5306 = vmatpush1.msra.mxu0 0.0
  %5307 = vmatprep.subr.mxu0 0.0
  %5308 = vmatpush1.msra.mxu0 0.0
  %5309 = vmatprep.subr.mxu0 0.0
  %5310 = vmatpush1.msra.mxu0 0.0
  %5311 = vmatprep.subr.mxu0 0.0
  %5312 = vmatpush1.msra.mxu0 0.0
  %5313 = vmatprep.subr.mxu0 0.0
  %5314 = vmatpush1.msra.mxu0 0.0
  %5315 = vmatprep.subr.mxu0 0.0
  %5316 = vmatpush1.msra.mxu0 0.0
  %5317 = vmatprep.subr.mxu0 0.0
  %5318 = vmatpush1.msra.mxu0 0.0
  %5319 = vmatprep.subr.mxu0 0.0
  %5320 = vmatpush1.msra.mxu0 0.0
  %5321 = vmatprep.subr.mxu0 0.0
  %5322 = vmatpush1.msra.mxu0 0.0
  %5323 = vmatprep.subr.mxu0 0.0
  %5324 = vmatpush1.msra.mxu0 0.0
  %5325 = vmatprep.subr.mxu0 0.0
  %5326 = vmatpush1.msra.mxu0 0.0
  %5327 = vmatprep.subr.mxu0 0.0
  %5328 = vmatpush1.msra.mxu0 0.0
  %5329 = vmatprep.subr.mxu0 0.0
  %5330 = vmatpush1.msra.mxu0 0.0
  %5331 = vmatprep.subr.mxu0 0.0
  %5332 = vmatpush1.msra.mxu0 %v5299
  %5333 = vmatprep.subr.mxu0 0.0
  %5334 = vmatpush1.msra.mxu0 %v5298
  %5335 = vmatprep.subr.mxu0 0.0
  %5336 = vmatpush2.msra.mxu0 0.0
  %5337 = vmatprep.subr.mxu0 0.0
  %5338 = vmatpush2.msra.mxu0 0.0
  %5339 = vmatprep.subr.mxu0 0.0
  %5340 = vmatpush2.msra.mxu0 0.0
  %5341 = vmatprep.subr.mxu0 0.0
  %5342 = vmatpush2.msra.mxu0 0.0
  %5343 = vmatprep.subr.mxu0 0.0
  %5344 = vmatpush2.msra.mxu0 0.0
  %5345 = vmatprep.subr.mxu0 0.0
  %5346 = vmatpush2.msra.mxu0 0.0
  %5347 = vmatprep.subr.mxu0 0.0
  %5348 = vmatpush2.msra.mxu0 0.0
  %5349 = vmatprep.subr.mxu0 0.0
  %5350 = vmatpush2.msra.mxu0 0.0
  %5351 = vmatprep.subr.mxu0 0.0
  %5352 = vmatpush2.msra.mxu0 0.0
  %5353 = vmatprep.subr.mxu0 0.0
  %5354 = vmatpush2.msra.mxu0 0.0
  %5355 = vmatprep.subr.mxu0 0.0
  %5356 = vmatpush2.msra.mxu0 0.0
  %5357 = vmatprep.subr.mxu0 0.0
  %5358 = vmatpush2.msra.mxu0 0.0
  %5359 = vmatprep.subr.mxu0 0.0
  %5360 = vmatpush2.msra.mxu0 0.0
  %5361 = vmatprep.subr.mxu0 0.0
  %5362 = vmatpush2.msra.mxu0 0.0
  %5363 = vmatprep.subr.mxu0 0.0
  %5364 = vmatpush2.msra.mxu0 0.0
  %5365 = vmatprep.subr.mxu0 0.0
  %5366 = vmatpush2.msra.mxu0 0.0
  %5367 = vmatprep.mubr.f32.mxu0 0.0
  %5368 = vmatmul.mubr.f32.gmra.mxu0 %v5301
  %v5369 = vpop.f32.mrf.mxu0
  %v5370 = vadd.f32 0.0, %v5369
  %v5371 = vpop.f32.mrf.mxu0
  %5372 = vdwg.mxu0
  %5373 = vst.msk [vmem:[#allocation4] sm:$0x3] %vm33, %v5370
  %v5374 = vld [vmem:[%s0] sm:$0xff]
  %v5375 = vld [vmem:[%s0 + $0x8] sm:$0xff]
  %v5376 = vld [vmem:[#allocation4] sm:$0x3]
  %v5377 = vld [vmem:[#allocation2] sm:$0x3]
  %v5378 = vld [vmem:[%s3 + $0x20] sm:$0xff]
  %v5379 = vld [vmem:[%s3 + $0x28] sm:$0xff]
  %v5380 = vld [vmem:[%s3 + $0x30] sm:$0xff]
  %v5381 = vld [vmem:[%s3 + $0x38] sm:$0xff]
  %v5382 = vld [vmem:[%s3 + $0x41] sm:$0x1]
  %5384 = vrot.lane.b32.xlu0 %v5377, 64
  %v5385 = vpop.permute.xlu0 %5384
  %v5386 = vsel %vm46, %v5385, 0
  %5388 = vmatprep.subr.mxu0 0.0
  %5389 = vmatpush1.msra.mxu0 0.0
  %5390 = vmatprep.subr.mxu0 0.0
  %5391 = vmatpush1.msra.mxu0 0.0
  %5392 = vmatprep.subr.mxu0 0.0
  %5393 = vmatpush1.msra.mxu0 0.0
  %5394 = vmatprep.subr.mxu0 0.0
  %5395 = vmatpush1.msra.mxu0 0.0
  %5396 = vmatprep.subr.mxu0 0.0
  %5397 = vmatpush1.msra.mxu0 0.0
  %5398 = vmatprep.subr.mxu0 0.0
  %5399 = vmatpush1.msra.mxu0 0.0
  %5400 = vmatprep.subr.mxu0 0.0
  %5401 = vmatpush1.msra.mxu0 0.0
  %5402 = vmatprep.subr.mxu0 0.0
  %5403 = vmatpush1.msra.mxu0 0.0
  %5404 = vmatprep.subr.mxu0 0.0
  %5405 = vmatpush1.msra.mxu0 0.0
  %5406 = vmatprep.subr.mxu0 0.0
  %5407 = vmatpush1.msra.mxu0 0.0
  %5408 = vmatprep.subr.mxu0 0.0
  %5409 = vmatpush1.msra.mxu0 0.0
  %5410 = vmatprep.subr.mxu0 0.0
  %5411 = vmatpush1.msra.mxu0 0.0
  %5412 = vmatprep.subr.mxu0 0.0
  %5413 = vmatpush1.msra.mxu0 %v5381
  %5414 = vmatprep.subr.mxu0 0.0
  %5415 = vmatpush1.msra.mxu0 %v5380
  %5416 = vmatprep.subr.mxu0 0.0
  %5417 = vmatpush1.msra.mxu0 %v5379
  %5418 = vmatprep.subr.mxu0 0.0
  %5419 = vmatpush1.msra.mxu0 %v5378
  %5420 = vmatprep.subr.mxu0 0.0
  %5421 = vmatpush2.msra.mxu0 0.0
  %5422 = vmatprep.subr.mxu0 0.0
  %5423 = vmatpush2.msra.mxu0 0.0
  %5424 = vmatprep.subr.mxu0 0.0
  %5425 = vmatpush2.msra.mxu0 0.0
  %5426 = vmatprep.subr.mxu0 0.0
  %5427 = vmatpush2.msra.mxu0 0.0
  %5428 = vmatprep.subr.mxu0 0.0
  %5429 = vmatpush2.msra.mxu0 0.0
  %5430 = vmatprep.subr.mxu0 0.0
  %5431 = vmatpush2.msra.mxu0 0.0
  %5432 = vmatprep.subr.mxu0 0.0
  %5433 = vmatpush2.msra.mxu0 0.0
  %5434 = vmatprep.subr.mxu0 0.0
  %5435 = vmatpush2.msra.mxu0 0.0
  %5436 = vmatprep.subr.mxu0 0.0
  %5437 = vmatpush2.msra.mxu0 0.0
  %5438 = vmatprep.subr.mxu0 0.0
  %5439 = vmatpush2.msra.mxu0 0.0
  %5440 = vmatprep.subr.mxu0 0.0
  %5441 = vmatpush2.msra.mxu0 0.0
  %5442 = vmatprep.subr.mxu0 0.0
  %5443 = vmatpush2.msra.mxu0 0.0
  %5444 = vmatprep.subr.mxu0 0.0
  %5445 = vmatpush2.msra.mxu0 0.0
  %5446 = vmatprep.subr.mxu0 0.0
  %5447 = vmatpush2.msra.mxu0 0.0
  %5448 = vmatprep.subr.mxu0 0.0
  %5449 = vmatpush2.msra.mxu0 0.0
  %5450 = vmatprep.subr.mxu0 0.0
  %5451 = vmatpush2.msra.mxu0 0.0
  %5452 = vmatprep.mubr.f32.mxu0 0.0
  %5453 = vmatmul.mubr.f32.gmra.mxu0 %v5386
  %v5454 = vpop.f32.mrf.mxu0
  %v5455 = vadd.f32 0.0, %v5454
  %v5456 = vpop.f32.mrf.mxu0
  %5457 = vdwg.mxu0
  %v5458 = vld [vmem:[#allocation5] sm:$0xff]
  %v5459 = vld [vmem:[#allocation5 + $0x8] sm:$0xff]
  %v5462 = vunpack.c.l.s4 1966171168
  %v5463 = vunpack.c.0.s8 %v5462
  %v5464 = vlaneseq
  %v5465 = vshrl.u32 %v5464, 7
  %v5466 = vsub.s32 %v5463, %v5465
  %v5467 = vrot.slane %v5455, %v5466
  %v5468 = vcombine.high %v5467, %v5467
  %v5470 = vunpack.c.l.s4 1966171168
  %v5471 = vunpack.c.0.s8 %v5470
  %v5472 = vlaneseq
  %v5473 = vshrl.u32 %v5472, 7
  %v5474 = vsub.s32 %v5471, %v5473
  %v5475 = vrot.slane %v5467, %v5474
  %v5477 = vunpack.c.l.s4 1966171168
  %v5478 = vunpack.c.0.s8 %v5477
  %v5479 = vlaneseq
  %v5480 = vshrl.u32 %v5479, 7
  %v5481 = vsub.s32 %v5478, %v5480
  %v5482 = vrot.slane %v5468, %v5481
  %v5483 = vlaneseq
  %v5484 = vshrl.u32 %v5483, 7
  %v5485 = vsub.s32 0, %v5484
  %v5486 = vrot.slane %v5475, %v5485
  %v5487 = vlaneseq
  %v5488 = vshrl.u32 %v5487, 7
  %v5489 = vsub.s32 0, %v5488
  %v5490 = vrot.slane %v5482, %v5489
  %v5493 = vadd.f32 %v5458, %v5486
  %v5494 = vadd.f32 %v5459, %v5490
  %v5495 = vmax.f32 %v5493, 0.0
  %v5496 = vmax.f32 %v5494, 0.0
  %v5497 = vlaneseq
  %v5498 = vshrl.u32 %v5497, 7
  %v5499 = vsub.s32 0, %v5498
  %v5500 = vrot.slane %v5382, %v5499
  %v5501 = vmul.f32 %v5495, %v5500
  %v5502 = vmul.f32 %v5496, %v5500
  %v5503 = vsel %vm46, %v5501, 0.0
  %5504 = vadd.xlane.f32.xlu0 %v5503
  %v5505 = vpop.xlane.xlu0 %5504
  %v5506 = vsel %vm46, %v5502, 0.0
  %5507 = vadd.xlane.f32.xlu0 %v5506
  %v5508 = vpop.xlane.xlu0 %5507
  %v5511 = vlaneseq
  %v5512 = vshrl.u32 %v5511, 7
  %v5513 = vsub.s32 %v268, %v5512
  %v5514 = vrot.slane %v5505, %v5513
  %v5515 = vlaneseq
  %v5516 = vshrl.u32 %v5515, 7
  %v5517 = vsub.s32 %v268, %v5516
  %v5518 = vrot.slane %v5508, %v5517
  %v5519 = vsel %vm277, %v5518, %v5514
  %v5521 = vsel %vm280, %v5519, -inf
  %5522 = vmax.xlane.f32.xlu0 %v5521
  %v5523 = vpop.xlane.xlu0 %5522
  %v5525 = vlaneseq
  %v5526 = vshrl.u32 %v5525, 7
  %v5527 = vsub.s32 0, %v5526
  %v5528 = vrot.slane %v5523, %v5527
  %v5529 = vlaneseq
  %v5530 = vshrl.u32 %v5529, 7
  %v5531 = vsub.s32 1, %v5530
  %v5532 = vrot.slane %v5523, %v5531
  %v5535 = vsub.f32 %v5505, %v5528
  %v5536 = vsub.f32 %v5508, %v5532
  %v5537 = vmul.f32 %v5535, 1.442695
  %v5538 = vpow.pop %v5537
  %v5539 = vmul.f32 %v5536, 1.442695
  %v5540 = vpow.pop %v5539
  %5543 = vset.pattern.permute.xlu0 0
  %5544 = vperm.xlu0 %5543, %v5538
  %v5545 = vpop.permute.xlu0 %5544
  %5546 = vset.pattern.permute.xlu0 0
  %5547 = vperm.xlu0 %5546, %v5540
  %v5548 = vpop.permute.xlu0 %5547
  %v5549 = vlaneseq
  %v5550 = vshrl.u32 %v5549, 7
  %v5551 = vsub.s32 %v268, %v5550
  %v5552 = vrot.slane %v5545, %v5551
  %v5553 = vlaneseq
  %v5554 = vshrl.u32 %v5553, 7
  %v5555 = vsub.s32 %v268, %v5554
  %v5556 = vrot.slane %v5548, %v5555
  %v5557 = vsel %vm277, %v5556, %v5552
  %v5559 = vsel %vm280, %v5557, 0.0
  %5560 = vadd.xlane.f32.xlu0 %v5559
  %v5561 = vpop.xlane.xlu0 %5560
  %v5562 = vlog2.pop %v5561
  %v5563 = vmul.f32 %v5562, 0.6931472
  %v5565 = vlaneseq
  %v5566 = vshrl.u32 %v5565, 7
  %v5567 = vsub.s32 0, %v5566
  %v5568 = vrot.slane %v5563, %v5567
  %v5569 = vlaneseq
  %v5570 = vshrl.u32 %v5569, 7
  %v5571 = vsub.s32 1, %v5570
  %v5572 = vrot.slane %v5563, %v5571
  %v5575 = vsub.f32 %v5535, %v5568
  %v5576 = vsub.f32 %v5536, %v5572
  %5578 = vset.pattern.permute.xlu0 0
  %5579 = vperm.xlu0 %5578, %v5575
  %v5580 = vpop.permute.xlu0 %5579
  %5583 = vset.pattern.permute.xlu0 0
  %5584 = vperm.xlu0 %5583, %v5576
  %v5585 = vpop.permute.xlu0 %5584
  %v5587 = vmul.f32 %v5580, %v5374
  %v5588 = vmul.f32 %v5585, %v5375
  %v5589 = vsel %vm46, %v5587, 0.0
  %v5590 = vrot.slane %v5589, 4
  %v5591 = vadd.f32 %v5589, %v5590
  %v5592 = vrot.slane %v5591, 2
  %v5593 = vadd.f32 %v5591, %v5592
  %v5594 = vrot.slane %v5593, 1
  %v5595 = vadd.f32 %v5593, %v5594
  %v5596 = vsel %vm46, %v5588, 0.0
  %v5597 = vrot.slane %v5596, 4
  %v5598 = vadd.f32 %v5596, %v5597
  %v5599 = vrot.slane %v5598, 2
  %v5600 = vadd.f32 %v5598, %v5599
  %v5601 = vrot.slane %v5600, 1
  %v5602 = vadd.f32 %v5600, %v5601
  %v5603 = vld [vmem:[#allocation2] sm:$0x3]
  %v5604 = vld [vmem:[%s5] sm:$0xff]
  %v5605 = vld [vmem:[%s5 + $0x8] sm:$0xff]
  %v5606 = vld [vmem:[%s5 + $0x10] sm:$0xff]
  %v5607 = vld [vmem:[%s5 + $0x18] sm:$0xff]
  %v5608 = vld [vmem:[%s5 + $0x20] sm:$0xff]
  %v5609 = vld [vmem:[%s5 + $0x28] sm:$0xff]
  %v5610 = vld [vmem:[%s5 + $0x30] sm:$0xff]
  %v5611 = vld [vmem:[%s5 + $0x38] sm:$0xff]
  %v5612 = vld [vmem:[%s5 + $0x40] sm:$0xff]
  %v5613 = vld [vmem:[%s5 + $0x48] sm:$0xff]
  %v5614 = vld [vmem:[%s5 + $0x50] sm:$0xff]
  %v5615 = vld [vmem:[%s5 + $0x58] sm:$0xff]
  %v5616 = vld [vmem:[%s5 + $0x60] sm:$0xff]
  %v5617 = vld [vmem:[%s5 + $0x68] sm:$0xff]
  %v5618 = vld [vmem:[%s5 + $0x70] sm:$0xff]
  %v5619 = vld [vmem:[%s5 + $0x78] sm:$0xff]
  %v5620 = vld [vmem:[%s5 + $0x80] sm:$0xff]
  %v5621 = vld [vmem:[%s5 + $0x88] sm:$0xff]
  %v5622 = vld [vmem:[%s5 + $0x90] sm:$0xff]
  %v5623 = vld [vmem:[%s5 + $0x98] sm:$0xff]
  %v5624 = vld [vmem:[%s5 + $0xa0] sm:$0xff]
  %v5625 = vld [vmem:[%s5 + $0xa8] sm:$0xff]
  %v5626 = vld [vmem:[%s5 + $0xb0] sm:$0xff]
  %v5627 = vld [vmem:[%s5 + $0xb8] sm:$0xff]
  %v5628 = vld [vmem:[%s5 + $0xc0] sm:$0xff]
  %v5629 = vld [vmem:[%s5 + $0xc8] sm:$0xff]
  %v5630 = vld [vmem:[%s5 + $0xd0] sm:$0xff]
  %v5631 = vld [vmem:[%s5 + $0xd8] sm:$0xff]
  %v5632 = vld [vmem:[%s5 + $0xe0] sm:$0xff]
  %v5633 = vld [vmem:[%s5 + $0xe8] sm:$0xff]
  %v5634 = vld [vmem:[%s5 + $0xf0] sm:$0xff]
  %v5635 = vld [vmem:[%s5 + $0xf8] sm:$0xff]
  %v5636 = vld [vmem:[%s5 + $0x100] sm:$0xff]
  %v5637 = vld [vmem:[%s5 + $0x108] sm:$0xff]
  %v5638 = vld [vmem:[%s5 + $0x110] sm:$0xff]
  %v5639 = vld [vmem:[%s5 + $0x118] sm:$0xff]
  %v5641 = vsel %vm400, %v5603, 0
  %5643 = vmatprep.subr.mxu0 0.0
  %5644 = vmatpush1.msra.mxu0 0.0
  %5645 = vmatprep.subr.mxu0 0.0
  %5646 = vmatpush1.msra.mxu0 0.0
  %5647 = vmatprep.subr.mxu0 0.0
  %5648 = vmatpush1.msra.mxu0 0.0
  %5649 = vmatprep.subr.mxu0 0.0
  %5650 = vmatpush1.msra.mxu0 0.0
  %5651 = vmatprep.subr.mxu0 %v5638
  %5652 = vmatpush1.msra.mxu0 %v5637
  %5653 = vmatprep.subr.mxu0 %v5635
  %5654 = vmatpush1.msra.mxu0 %v5634
  %5655 = vmatprep.subr.mxu0 %v5632
  %5656 = vmatpush1.msra.mxu0 %v5631
  %5657 = vmatprep.subr.mxu0 %v5629
  %5658 = vmatpush1.msra.mxu0 %v5628
  %5659 = vmatprep.subr.mxu0 %v5626
  %5660 = vmatpush1.msra.mxu0 %v5625
  %5661 = vmatprep.subr.mxu0 %v5623
  %5662 = vmatpush1.msra.mxu0 %v5622
  %5663 = vmatprep.subr.mxu0 %v5620
  %5664 = vmatpush1.msra.mxu0 %v5619
  %5665 = vmatprep.subr.mxu0 %v5617
  %5666 = vmatpush1.msra.mxu0 %v5616
  %5667 = vmatprep.subr.mxu0 %v5614
  %5668 = vmatpush1.msra.mxu0 %v5613
  %5669 = vmatprep.subr.mxu0 %v5611
  %5670 = vmatpush1.msra.mxu0 %v5610
  %5671 = vmatprep.subr.mxu0 %v5608
  %5672 = vmatpush1.msra.mxu0 %v5607
  %5673 = vmatprep.subr.mxu0 %v5605
  %5674 = vmatpush1.msra.mxu0 %v5604
  %5675 = vmatprep.subr.mxu0 0.0
  %5676 = vmatpush2.msra.mxu0 0.0
  %5677 = vmatprep.subr.mxu0 0.0
  %5678 = vmatpush2.msra.mxu0 0.0
  %5679 = vmatprep.subr.mxu0 0.0
  %5680 = vmatpush2.msra.mxu0 0.0
  %5681 = vmatprep.subr.mxu0 0.0
  %5682 = vmatpush2.msra.mxu0 0.0
  %5683 = vmatprep.subr.mxu0 0.0
  %5684 = vmatpush2.msra.mxu0 0.0
  %5685 = vmatprep.subr.mxu0 0.0
  %5686 = vmatpush2.msra.mxu0 0.0
  %5687 = vmatprep.subr.mxu0 0.0
  %5688 = vmatpush2.msra.mxu0 0.0
  %5689 = vmatprep.subr.mxu0 0.0
  %5690 = vmatpush2.msra.mxu0 0.0
  %5691 = vmatprep.subr.mxu0 0.0
  %5692 = vmatpush2.msra.mxu0 0.0
  %5693 = vmatprep.subr.mxu0 0.0
  %5694 = vmatpush2.msra.mxu0 0.0
  %5695 = vmatprep.subr.mxu0 0.0
  %5696 = vmatpush2.msra.mxu0 0.0
  %5697 = vmatprep.subr.mxu0 0.0
  %5698 = vmatpush2.msra.mxu0 0.0
  %5699 = vmatprep.subr.mxu0 0.0
  %5700 = vmatpush2.msra.mxu0 0.0
  %5701 = vmatprep.subr.mxu0 0.0
  %5702 = vmatpush2.msra.mxu0 0.0
  %5703 = vmatprep.subr.mxu0 0.0
  %5704 = vmatpush2.msra.mxu0 0.0
  %5705 = vmatprep.subr.mxu0 0.0
  %5706 = vmatpush2.msra.mxu0 0.0
  %5707 = vmatprep.mubr.f32.mxu0 0.0
  %5708 = vmatmul.mubr.f32.gmra.mxu0 %v5641
  %v5709 = vpop.f32.mrf.mxu0
  %v5710 = vadd.f32 0.0, %v5709
  %v5711 = vpop.f32.mrf.mxu0
  %v5712 = vadd.f32 0.0, %v5711
  %5713 = vdwg.mxu0
  %5714 = vmatprep.subr.mxu0 0.0
  %5715 = vmatpush1.msra.mxu0 0.0
  %5716 = vmatprep.subr.mxu0 0.0
  %5717 = vmatpush1.msra.mxu0 0.0
  %5718 = vmatprep.subr.mxu0 0.0
  %5719 = vmatpush1.msra.mxu0 0.0
  %5720 = vmatprep.subr.mxu0 0.0
  %5721 = vmatpush1.msra.mxu0 0.0
  %5722 = vmatprep.subr.mxu0 0.0
  %5723 = vmatpush1.msra.mxu0 %v5639
  %5724 = vmatprep.subr.mxu0 0.0
  %5725 = vmatpush1.msra.mxu0 %v5636
  %5726 = vmatprep.subr.mxu0 0.0
  %5727 = vmatpush1.msra.mxu0 %v5633
  %5728 = vmatprep.subr.mxu0 0.0
  %5729 = vmatpush1.msra.mxu0 %v5630
  %5730 = vmatprep.subr.mxu0 0.0
  %5731 = vmatpush1.msra.mxu0 %v5627
  %5732 = vmatprep.subr.mxu0 0.0
  %5733 = vmatpush1.msra.mxu0 %v5624
  %5734 = vmatprep.subr.mxu0 0.0
  %5735 = vmatpush1.msra.mxu0 %v5621
  %5736 = vmatprep.subr.mxu0 0.0
  %5737 = vmatpush1.msra.mxu0 %v5618
  %5738 = vmatprep.subr.mxu0 0.0
  %5739 = vmatpush1.msra.mxu0 %v5615
  %5740 = vmatprep.subr.mxu0 0.0
  %5741 = vmatpush1.msra.mxu0 %v5612
  %5742 = vmatprep.subr.mxu0 0.0
  %5743 = vmatpush1.msra.mxu0 %v5609
  %5744 = vmatprep.subr.mxu0 0.0
  %5745 = vmatpush1.msra.mxu0 %v5606
  %5746 = vmatprep.subr.mxu0 0.0
  %5747 = vmatpush2.msra.mxu0 0.0
  %5748 = vmatprep.subr.mxu0 0.0
  %5749 = vmatpush2.msra.mxu0 0.0
  %5750 = vmatprep.subr.mxu0 0.0
  %5751 = vmatpush2.msra.mxu0 0.0
  %5752 = vmatprep.subr.mxu0 0.0
  %5753 = vmatpush2.msra.mxu0 0.0
  %5754 = vmatprep.subr.mxu0 0.0
  %5755 = vmatpush2.msra.mxu0 0.0
  %5756 = vmatprep.subr.mxu0 0.0
  %5757 = vmatpush2.msra.mxu0 0.0
  %5758 = vmatprep.subr.mxu0 0.0
  %5759 = vmatpush2.msra.mxu0 0.0
  %5760 = vmatprep.subr.mxu0 0.0
  %5761 = vmatpush2.msra.mxu0 0.0
  %5762 = vmatprep.subr.mxu0 0.0
  %5763 = vmatpush2.msra.mxu0 0.0
  %5764 = vmatprep.subr.mxu0 0.0
  %5765 = vmatpush2.msra.mxu0 0.0
  %5766 = vmatprep.subr.mxu0 0.0
  %5767 = vmatpush2.msra.mxu0 0.0
  %5768 = vmatprep.subr.mxu0 0.0
  %5769 = vmatpush2.msra.mxu0 0.0
  %5770 = vmatprep.subr.mxu0 0.0
  %5771 = vmatpush2.msra.mxu0 0.0
  %5772 = vmatprep.subr.mxu0 0.0
  %5773 = vmatpush2.msra.mxu0 0.0
  %5774 = vmatprep.subr.mxu0 0.0
  %5775 = vmatpush2.msra.mxu0 0.0
  %5776 = vmatprep.subr.mxu0 0.0
  %5777 = vmatpush2.msra.mxu0 0.0
  %5778 = vmatprep.mubr.f32.mxu0 0.0
  %5779 = vmatmul.mubr.f32.gmra.mxu0 %v5641
  %v5780 = vpop.f32.mrf.mxu0
  %v5781 = vadd.f32 0.0, %v5780
  %v5782 = vpop.f32.mrf.mxu0
  %5783 = vdwg.mxu0
  %v5784 = vld [vmem:[%s4] sm:$0xff]
  %v5785 = vld [vmem:[%s4 + $0x8] sm:$0xff]
  %v5786 = vld [vmem:[%s4 + $0x10] sm:$0xff]
  %v5787 = vld [vmem:[%s4 + $0x18] sm:$0xff]
  %v5788 = vld [vmem:[%s4 + $0x20] sm:$0xff]
  %v5789 = vld [vmem:[%s4 + $0x28] sm:$0xff]
  %v5790 = vld [vmem:[%s4 + $0x30] sm:$0xff]
  %v5791 = vld [vmem:[%s4 + $0x38] sm:$0xff]
  %v5794 = vsel %vm277, %v5602, %v5595
  %v5795 = vsel %vm46, %v5794, 0
  %5797 = vmatprep.subr.mxu0 0.0
  %5798 = vmatpush1.msra.mxu0 0.0
  %5799 = vmatprep.subr.mxu0 0.0
  %5800 = vmatpush1.msra.mxu0 0.0
  %5801 = vmatprep.subr.mxu0 0.0
  %5802 = vmatpush1.msra.mxu0 0.0
  %5803 = vmatprep.subr.mxu0 0.0
  %5804 = vmatpush1.msra.mxu0 0.0
  %5805 = vmatprep.subr.mxu0 0.0
  %5806 = vmatpush1.msra.mxu0 0.0
  %5807 = vmatprep.subr.mxu0 0.0
  %5808 = vmatpush1.msra.mxu0 0.0
  %5809 = vmatprep.subr.mxu0 0.0
  %5810 = vmatpush1.msra.mxu0 0.0
  %5811 = vmatprep.subr.mxu0 0.0
  %5812 = vmatpush1.msra.mxu0 0.0
  %5813 = vmatprep.subr.mxu0 0.0
  %5814 = vmatpush1.msra.mxu0 0.0
  %5815 = vmatprep.subr.mxu0 0.0
  %5816 = vmatpush1.msra.mxu0 0.0
  %5817 = vmatprep.subr.mxu0 0.0
  %5818 = vmatpush1.msra.mxu0 0.0
  %5819 = vmatprep.subr.mxu0 0.0
  %5820 = vmatpush1.msra.mxu0 0.0
  %5821 = vmatprep.subr.mxu0 0.0
  %5822 = vmatpush1.msra.mxu0 %v5791
  %5823 = vmatprep.subr.mxu0 0.0
  %5824 = vmatpush1.msra.mxu0 %v5790
  %5825 = vmatprep.subr.mxu0 0.0
  %5826 = vmatpush1.msra.mxu0 %v5789
  %5827 = vmatprep.subr.mxu0 0.0
  %5828 = vmatpush1.msra.mxu0 %v5788
  %5829 = vmatprep.subr.mxu0 0.0
  %5830 = vmatpush2.msra.mxu0 0.0
  %5831 = vmatprep.subr.mxu0 0.0
  %5832 = vmatpush2.msra.mxu0 0.0
  %5833 = vmatprep.subr.mxu0 0.0
  %5834 = vmatpush2.msra.mxu0 0.0
  %5835 = vmatprep.subr.mxu0 0.0
  %5836 = vmatpush2.msra.mxu0 0.0
  %5837 = vmatprep.subr.mxu0 0.0
  %5838 = vmatpush2.msra.mxu0 0.0
  %5839 = vmatprep.subr.mxu0 0.0
  %5840 = vmatpush2.msra.mxu0 0.0
  %5841 = vmatprep.subr.mxu0 0.0
  %5842 = vmatpush2.msra.mxu0 0.0
  %5843 = vmatprep.subr.mxu0 0.0
  %5844 = vmatpush2.msra.mxu0 0.0
  %5845 = vmatprep.subr.mxu0 0.0
  %5846 = vmatpush2.msra.mxu0 0.0
  %5847 = vmatprep.subr.mxu0 0.0
  %5848 = vmatpush2.msra.mxu0 0.0
  %5849 = vmatprep.subr.mxu0 0.0
  %5850 = vmatpush2.msra.mxu0 0.0
  %5851 = vmatprep.subr.mxu0 0.0
  %5852 = vmatpush2.msra.mxu0 0.0
  %5853 = vmatprep.subr.mxu0 0.0
  %5854 = vmatpush2.msra.mxu0 0.0
  %5855 = vmatprep.subr.mxu0 0.0
  %5856 = vmatpush2.msra.mxu0 0.0
  %5857 = vmatprep.subr.mxu0 0.0
  %5858 = vmatpush2.msra.mxu0 0.0
  %5859 = vmatprep.subr.mxu0 0.0
  %5860 = vmatpush2.msra.mxu0 0.0
  %5861 = vmatprep.mubr.f32.mxu0 0.0
  %5862 = vmatmul.mubr.f32.gmra.mxu0 %v5795
  %v5863 = vpop.f32.mrf.mxu0
  %v5864 = vadd.f32 0.0, %v5863
  %v5865 = vpop.f32.mrf.mxu0
  %5866 = vdwg.mxu0
  %v5868 = vsel %vm46, %v5376, 0
  %5870 = vmatprep.subr.mxu0 0.0
  %5871 = vmatpush1.msra.mxu0 0.0
  %5872 = vmatprep.subr.mxu0 0.0
  %5873 = vmatpush1.msra.mxu0 0.0
  %5874 = vmatprep.subr.mxu0 0.0
  %5875 = vmatpush1.msra.mxu0 0.0
  %5876 = vmatprep.subr.mxu0 0.0
  %5877 = vmatpush1.msra.mxu0 0.0
  %5878 = vmatprep.subr.mxu0 0.0
  %5879 = vmatpush1.msra.mxu0 0.0
  %5880 = vmatprep.subr.mxu0 0.0
  %5881 = vmatpush1.msra.mxu0 0.0
  %5882 = vmatprep.subr.mxu0 0.0
  %5883 = vmatpush1.msra.mxu0 0.0
  %5884 = vmatprep.subr.mxu0 0.0
  %5885 = vmatpush1.msra.mxu0 0.0
  %5886 = vmatprep.subr.mxu0 0.0
  %5887 = vmatpush1.msra.mxu0 0.0
  %5888 = vmatprep.subr.mxu0 0.0
  %5889 = vmatpush1.msra.mxu0 0.0
  %5890 = vmatprep.subr.mxu0 0.0
  %5891 = vmatpush1.msra.mxu0 0.0
  %5892 = vmatprep.subr.mxu0 0.0
  %5893 = vmatpush1.msra.mxu0 0.0
  %5894 = vmatprep.subr.mxu0 0.0
  %5895 = vmatpush1.msra.mxu0 %v5787
  %5896 = vmatprep.subr.mxu0 0.0
  %5897 = vmatpush1.msra.mxu0 %v5786
  %5898 = vmatprep.subr.mxu0 0.0
  %5899 = vmatpush1.msra.mxu0 %v5785
  %5900 = vmatprep.subr.mxu0 0.0
  %5901 = vmatpush1.msra.mxu0 %v5784
  %5902 = vmatprep.subr.mxu0 0.0
  %5903 = vmatpush2.msra.mxu0 0.0
  %5904 = vmatprep.subr.mxu0 0.0
  %5905 = vmatpush2.msra.mxu0 0.0
  %5906 = vmatprep.subr.mxu0 0.0
  %5907 = vmatpush2.msra.mxu0 0.0
  %5908 = vmatprep.subr.mxu0 0.0
  %5909 = vmatpush2.msra.mxu0 0.0
  %5910 = vmatprep.subr.mxu0 0.0
  %5911 = vmatpush2.msra.mxu0 0.0
  %5912 = vmatprep.subr.mxu0 0.0
  %5913 = vmatpush2.msra.mxu0 0.0
  %5914 = vmatprep.subr.mxu0 0.0
  %5915 = vmatpush2.msra.mxu0 0.0
  %5916 = vmatprep.subr.mxu0 0.0
  %5917 = vmatpush2.msra.mxu0 0.0
  %5918 = vmatprep.subr.mxu0 0.0
  %5919 = vmatpush2.msra.mxu0 0.0
  %5920 = vmatprep.subr.mxu0 0.0
  %5921 = vmatpush2.msra.mxu0 0.0
  %5922 = vmatprep.subr.mxu0 0.0
  %5923 = vmatpush2.msra.mxu0 0.0
  %5924 = vmatprep.subr.mxu0 0.0
  %5925 = vmatpush2.msra.mxu0 0.0
  %5926 = vmatprep.subr.mxu0 0.0
  %5927 = vmatpush2.msra.mxu0 0.0
  %5928 = vmatprep.subr.mxu0 0.0
  %5929 = vmatpush2.msra.mxu0 0.0
  %5930 = vmatprep.subr.mxu0 0.0
  %5931 = vmatpush2.msra.mxu0 0.0
  %5932 = vmatprep.subr.mxu0 0.0
  %5933 = vmatpush2.msra.mxu0 0.0
  %5934 = vmatprep.mubr.f32.mxu0 0.0
  %5935 = vmatmul.mubr.f32.gmra.mxu0 %v5868
  %v5936 = vpop.f32.mrf.mxu0
  %v5937 = vadd.f32 %v5864, %v5936
  %v5938 = vpop.f32.mrf.mxu0
  %5939 = vdwg.mxu0
  %v5940 = vadd.f32 %v5937, %v5710
  %v5941 = vld [vmem:[%s6] sm:$0x1]
  %v5942 = vlaneseq
  %v5943 = vshrl.u32 %v5942, 7
  %v5944 = vsub.s32 0, %v5943
  %v5945 = vrot.slane %v5941, %v5944
  %v5946 = vadd.f32 %v5940, %v5945
  %v5947 = vxor.u32 %v5946, 2147483648
  %v5948 = vmul.f32 %v5947, 1.442695
  %v5949 = vpow.pop %v5948
  %v5950 = vadd.f32 %v5949, 1.0
  %v5951 = vrcp.pop %v5950
  %v5952 = vmul.f32 1.0, %v5951
  %v5953 = vtanh.pop %v5946
  %v5954 = vld [vmem:[#allocation3] sm:$0x3]
  %5956 = vrot.lane.b32.xlu0 %v5954, 32
  %v5957 = vpop.permute.xlu0 %5956
  %v5959 = vmul.f32 %v5952, %v5957
  %5961 = vrot.lane.b32.xlu0 %v5953, 64
  %v5962 = vpop.permute.xlu0 %5961
  %v5964 = vmul.f32 %v5952, %v5962
  %5966 = vrot.lane.b32.xlu0 %v5964, 32
  %v5967 = vpop.permute.xlu0 %5966
  %v5969 = vadd.f32 %v5959, %v5967
  %v5970 = vtanh.pop %v5969
  %5972 = vrot.lane.b32.xlu0 %v5970, 64
  %v5973 = vpop.permute.xlu0 %5972
  %v5975 = vmul.f32 %v5952, %v5973
  %5977 = vrot.lane.b32.xlu0 %v5969, 96
  %v5978 = vpop.permute.xlu0 %5977
  %5980 = vst.msk [vmem:[#allocation3] sm:$0x3] %vm33, %v5978
  %5982 = vrot.lane.b32.xlu0 %v5975, 32
  %v5983 = vpop.permute.xlu0 %5982
  %5985 = vst.msk [vmem:[#allocation2] sm:$0x3] %vm33, %v5983
  %v5986 = vld [vmem:[%s4 + $0x40] sm:$0xff]
  %v5987 = vld [vmem:[%s4 + $0x48] sm:$0xff]
  %v5988 = vld [vmem:[%s4 + $0x50] sm:$0xff]
  %v5989 = vld [vmem:[%s4 + $0x58] sm:$0xff]
  %v5990 = vsel %vm46, %v5983, 0
  %5992 = vmatprep.subr.mxu0 0.0
  %5993 = vmatpush1.msra.mxu0 0.0
  %5994 = vmatprep.subr.mxu0 0.0
  %5995 = vmatpush1.msra.mxu0 0.0
  %5996 = vmatprep.subr.mxu0 0.0
  %5997 = vmatpush1.msra.mxu0 0.0
  %5998 = vmatprep.subr.mxu0 0.0
  %5999 = vmatpush1.msra.mxu0 0.0
  %6000 = vmatprep.subr.mxu0 0.0
  %6001 = vmatpush1.msra.mxu0 0.0
  %6002 = vmatprep.subr.mxu0 0.0
  %6003 = vmatpush1.msra.mxu0 0.0
  %6004 = vmatprep.subr.mxu0 0.0
  %6005 = vmatpush1.msra.mxu0 0.0
  %6006 = vmatprep.subr.mxu0 0.0
  %6007 = vmatpush1.msra.mxu0 0.0
  %6008 = vmatprep.subr.mxu0 0.0
  %6009 = vmatpush1.msra.mxu0 0.0
  %6010 = vmatprep.subr.mxu0 0.0
  %6011 = vmatpush1.msra.mxu0 0.0
  %6012 = vmatprep.subr.mxu0 0.0
  %6013 = vmatpush1.msra.mxu0 0.0
  %6014 = vmatprep.subr.mxu0 0.0
  %6015 = vmatpush1.msra.mxu0 0.0
  %6016 = vmatprep.subr.mxu0 0.0
  %6017 = vmatpush1.msra.mxu0 %v5989
  %6018 = vmatprep.subr.mxu0 0.0
  %6019 = vmatpush1.msra.mxu0 %v5988
  %6020 = vmatprep.subr.mxu0 0.0
  %6021 = vmatpush1.msra.mxu0 %v5987
  %6022 = vmatprep.subr.mxu0 0.0
  %6023 = vmatpush1.msra.mxu0 %v5986
  %6024 = vmatprep.subr.mxu0 0.0
  %6025 = vmatpush2.msra.mxu0 0.0
  %6026 = vmatprep.subr.mxu0 0.0
  %6027 = vmatpush2.msra.mxu0 0.0
  %6028 = vmatprep.subr.mxu0 0.0
  %6029 = vmatpush2.msra.mxu0 0.0
  %6030 = vmatprep.subr.mxu0 0.0
  %6031 = vmatpush2.msra.mxu0 0.0
  %6032 = vmatprep.subr.mxu0 0.0
  %6033 = vmatpush2.msra.mxu0 0.0
  %6034 = vmatprep.subr.mxu0 0.0
  %6035 = vmatpush2.msra.mxu0 0.0
  %6036 = vmatprep.subr.mxu0 0.0
  %6037 = vmatpush2.msra.mxu0 0.0
  %6038 = vmatprep.subr.mxu0 0.0
  %6039 = vmatpush2.msra.mxu0 0.0
  %6040 = vmatprep.subr.mxu0 0.0
  %6041 = vmatpush2.msra.mxu0 0.0
  %6042 = vmatprep.subr.mxu0 0.0
  %6043 = vmatpush2.msra.mxu0 0.0
  %6044 = vmatprep.subr.mxu0 0.0
  %6045 = vmatpush2.msra.mxu0 0.0
  %6046 = vmatprep.subr.mxu0 0.0
  %6047 = vmatpush2.msra.mxu0 0.0
  %6048 = vmatprep.subr.mxu0 0.0
  %6049 = vmatpush2.msra.mxu0 0.0
  %6050 = vmatprep.subr.mxu0 0.0
  %6051 = vmatpush2.msra.mxu0 0.0
  %6052 = vmatprep.subr.mxu0 0.0
  %6053 = vmatpush2.msra.mxu0 0.0
  %6054 = vmatprep.subr.mxu0 0.0
  %6055 = vmatpush2.msra.mxu0 0.0
  %6056 = vmatprep.mubr.f32.mxu0 0.0
  %6057 = vmatmul.mubr.f32.gmra.mxu0 %v5990
  %v6058 = vpop.f32.mrf.mxu0
  %v6059 = vadd.f32 %v5712, %v6058
  %v6060 = vpop.f32.mrf.mxu0
  %6061 = vdwg.mxu0
  %v6062 = vld [vmem:[%s6 + $0x1] sm:$0x1]
  %v6063 = vlaneseq
  %v6064 = vshrl.u32 %v6063, 7
  %v6065 = vsub.s32 0, %v6064
  %v6066 = vrot.slane %v6062, %v6065
  %v6067 = vadd.f32 %v6059, %v6066
  %v6068 = vxor.u32 %v6067, 2147483648
  %v6069 = vmul.f32 %v6068, 1.442695
  %v6070 = vpow.pop %v6069
  %v6071 = vadd.f32 %v6070, 1.0
  %v6072 = vrcp.pop %v6071
  %v6073 = vmul.f32 1.0, %v6072
  %v6074 = vtanh.pop %v6067
  %v6075 = vld [vmem:[#allocation3] sm:$0x3]
  %v6076 = vmul.f32 %v6073, %v6075
  %6078 = vrot.lane.b32.xlu0 %v6074, 64
  %v6079 = vpop.permute.xlu0 %6078
  %v6081 = vmul.f32 %v6073, %v6079
  %6083 = vrot.lane.b32.xlu0 %v6081, 32
  %v6084 = vpop.permute.xlu0 %6083
  %v6086 = vadd.f32 %v6076, %v6084
  %v6087 = vtanh.pop %v6086
  %6089 = vrot.lane.b32.xlu0 %v6087, 64
  %v6090 = vpop.permute.xlu0 %6089
  %v6092 = vmul.f32 %v6073, %v6090
  %6093 = vst.msk [vmem:[#allocation3] sm:$0x3] %vm854, %v6086
  %6095 = vrot.lane.b32.xlu0 %v6092, 64
  %v6096 = vpop.permute.xlu0 %6095
  %6098 = vst.msk [vmem:[#allocation2] sm:$0x3] %vm854, %v6096
  %v6099 = vld [vmem:[%s4 + $0x60] sm:$0xff]
  %v6100 = vld [vmem:[%s4 + $0x68] sm:$0xff]
  %v6101 = vld [vmem:[%s4 + $0x70] sm:$0xff]
  %v6102 = vld [vmem:[%s4 + $0x78] sm:$0xff]
  %6103 = vrot.lane.b32.xlu0 %v6092, 32
  %v6104 = vpop.permute.xlu0 %6103
  %v6105 = vsel %vm46, %v6104, 0
  %6107 = vmatprep.subr.mxu0 0.0
  %6108 = vmatpush1.msra.mxu0 0.0
  %6109 = vmatprep.subr.mxu0 0.0
  %6110 = vmatpush1.msra.mxu0 0.0
  %6111 = vmatprep.subr.mxu0 0.0
  %6112 = vmatpush1.msra.mxu0 0.0
  %6113 = vmatprep.subr.mxu0 0.0
  %6114 = vmatpush1.msra.mxu0 0.0
  %6115 = vmatprep.subr.mxu0 0.0
  %6116 = vmatpush1.msra.mxu0 0.0
  %6117 = vmatprep.subr.mxu0 0.0
  %6118 = vmatpush1.msra.mxu0 0.0
  %6119 = vmatprep.subr.mxu0 0.0
  %6120 = vmatpush1.msra.mxu0 0.0
  %6121 = vmatprep.subr.mxu0 0.0
  %6122 = vmatpush1.msra.mxu0 0.0
  %6123 = vmatprep.subr.mxu0 0.0
  %6124 = vmatpush1.msra.mxu0 0.0
  %6125 = vmatprep.subr.mxu0 0.0
  %6126 = vmatpush1.msra.mxu0 0.0
  %6127 = vmatprep.subr.mxu0 0.0
  %6128 = vmatpush1.msra.mxu0 0.0
  %6129 = vmatprep.subr.mxu0 0.0
  %6130 = vmatpush1.msra.mxu0 0.0
  %6131 = vmatprep.subr.mxu0 0.0
  %6132 = vmatpush1.msra.mxu0 %v6102
  %6133 = vmatprep.subr.mxu0 0.0
  %6134 = vmatpush1.msra.mxu0 %v6101
  %6135 = vmatprep.subr.mxu0 0.0
  %6136 = vmatpush1.msra.mxu0 %v6100
  %6137 = vmatprep.subr.mxu0 0.0
  %6138 = vmatpush1.msra.mxu0 %v6099
  %6139 = vmatprep.subr.mxu0 0.0
  %6140 = vmatpush2.msra.mxu0 0.0
  %6141 = vmatprep.subr.mxu0 0.0
  %6142 = vmatpush2.msra.mxu0 0.0
  %6143 = vmatprep.subr.mxu0 0.0
  %6144 = vmatpush2.msra.mxu0 0.0
  %6145 = vmatprep.subr.mxu0 0.0
  %6146 = vmatpush2.msra.mxu0 0.0
  %6147 = vmatprep.subr.mxu0 0.0
  %6148 = vmatpush2.msra.mxu0 0.0
  %6149 = vmatprep.subr.mxu0 0.0
  %6150 = vmatpush2.msra.mxu0 0.0
  %6151 = vmatprep.subr.mxu0 0.0
  %6152 = vmatpush2.msra.mxu0 0.0
  %6153 = vmatprep.subr.mxu0 0.0
  %6154 = vmatpush2.msra.mxu0 0.0
  %6155 = vmatprep.subr.mxu0 0.0
  %6156 = vmatpush2.msra.mxu0 0.0
  %6157 = vmatprep.subr.mxu0 0.0
  %6158 = vmatpush2.msra.mxu0 0.0
  %6159 = vmatprep.subr.mxu0 0.0
  %6160 = vmatpush2.msra.mxu0 0.0
  %6161 = vmatprep.subr.mxu0 0.0
  %6162 = vmatpush2.msra.mxu0 0.0
  %6163 = vmatprep.subr.mxu0 0.0
  %6164 = vmatpush2.msra.mxu0 0.0
  %6165 = vmatprep.subr.mxu0 0.0
  %6166 = vmatpush2.msra.mxu0 0.0
  %6167 = vmatprep.subr.mxu0 0.0
  %6168 = vmatpush2.msra.mxu0 0.0
  %6169 = vmatprep.subr.mxu0 0.0
  %6170 = vmatpush2.msra.mxu0 0.0
  %6171 = vmatprep.mubr.f32.mxu0 0.0
  %6172 = vmatmul.mubr.f32.gmra.mxu0 %v6105
  %v6173 = vpop.f32.mrf.mxu0
  %v6174 = vadd.f32 %v5781, %v6173
  %v6175 = vpop.f32.mrf.mxu0
  %6176 = vdwg.mxu0
  %v6177 = vld [vmem:[%s6 + $0x2] sm:$0x1]
  %v6178 = vlaneseq
  %v6179 = vshrl.u32 %v6178, 7
  %v6180 = vsub.s32 0, %v6179
  %v6181 = vrot.slane %v6177, %v6180
  %v6182 = vadd.f32 %v6174, %v6181
  %v6183 = vxor.u32 %v6182, 2147483648
  %v6184 = vmul.f32 %v6183, 1.442695
  %v6185 = vpow.pop %v6184
  %v6186 = vadd.f32 %v6185, 1.0
  %v6187 = vrcp.pop %v6186
  %v6188 = vmul.f32 1.0, %v6187
  %v6189 = vtanh.pop %v6182
  %v6190 = vld [vmem:[#allocation3] sm:$0x3]
  %6192 = vrot.lane.b32.xlu0 %v6190, 96
  %v6193 = vpop.permute.xlu0 %6192
  %v6195 = vmul.f32 %v6188, %v6193
  %6197 = vrot.lane.b32.xlu0 %v6189, 64
  %v6198 = vpop.permute.xlu0 %6197
  %v6200 = vmul.f32 %v6188, %v6198
  %6202 = vrot.lane.b32.xlu0 %v6200, 32
  %v6203 = vpop.permute.xlu0 %6202
  %v6205 = vadd.f32 %v6195, %v6203
  %v6206 = vtanh.pop %v6205
  %6208 = vrot.lane.b32.xlu0 %v6206, 64
  %v6209 = vpop.permute.xlu0 %6208
  %v6211 = vmul.f32 %v6188, %v6209
  %6213 = vrot.lane.b32.xlu0 %v6205, 32
  %v6214 = vpop.permute.xlu0 %6213
  %6216 = vst.msk [vmem:[#allocation3] sm:$0x3] %vm978, %v6214
  %6218 = vrot.lane.b32.xlu0 %v6211, 96
  %v6219 = vpop.permute.xlu0 %6218
  %6221 = vst.msk [vmem:[#allocation2] sm:$0x3] %vm978, %v6219
  %v6222 = vld [vmem:[%s7] sm:$0xff]
  %v6223 = vld [vmem:[%s7 + $0x8] sm:$0xff]
  %v6224 = vld [vmem:[%s7 + $0x10] sm:$0xff]
  %v6225 = vld [vmem:[%s7 + $0x18] sm:$0xff]
  %v6226 = vld [vmem:[%s7 + $0x20] sm:$0x1]
  %v6227 = vlaneseq
  %v6228 = vshrl.u32 %v6227, 7
  %v6229 = vsub.s32 0, %v6228
  %v6230 = vrot.slane %v6226, %v6229
  %6231 = vrot.lane.b32.xlu0 %v6211, 32
  %v6232 = vpop.permute.xlu0 %6231
  %v6233 = vsel %vm46, %v6232, 0
  %6235 = vmatprep.subr.mxu0 0.0
  %6236 = vmatpush1.msra.mxu0 0.0
  %6237 = vmatprep.subr.mxu0 0.0
  %6238 = vmatpush1.msra.mxu0 0.0
  %6239 = vmatprep.subr.mxu0 0.0
  %6240 = vmatpush1.msra.mxu0 0.0
  %6241 = vmatprep.subr.mxu0 0.0
  %6242 = vmatpush1.msra.mxu0 0.0
  %6243 = vmatprep.subr.mxu0 0.0
  %6244 = vmatpush1.msra.mxu0 0.0
  %6245 = vmatprep.subr.mxu0 0.0
  %6246 = vmatpush1.msra.mxu0 0.0
  %6247 = vmatprep.subr.mxu0 0.0
  %6248 = vmatpush1.msra.mxu0 0.0
  %6249 = vmatprep.subr.mxu0 0.0
  %6250 = vmatpush1.msra.mxu0 0.0
  %6251 = vmatprep.subr.mxu0 0.0
  %6252 = vmatpush1.msra.mxu0 0.0
  %6253 = vmatprep.subr.mxu0 0.0
  %6254 = vmatpush1.msra.mxu0 0.0
  %6255 = vmatprep.subr.mxu0 0.0
  %6256 = vmatpush1.msra.mxu0 0.0
  %6257 = vmatprep.subr.mxu0 0.0
  %6258 = vmatpush1.msra.mxu0 0.0
  %6259 = vmatprep.subr.mxu0 0.0
  %6260 = vmatpush1.msra.mxu0 %v6225
  %6261 = vmatprep.subr.mxu0 0.0
  %6262 = vmatpush1.msra.mxu0 %v6224
  %6263 = vmatprep.subr.mxu0 0.0
  %6264 = vmatpush1.msra.mxu0 %v6223
  %6265 = vmatprep.subr.mxu0 0.0
  %6266 = vmatpush1.msra.mxu0 %v6222
  %6267 = vmatprep.subr.mxu0 0.0
  %6268 = vmatpush2.msra.mxu0 0.0
  %6269 = vmatprep.subr.mxu0 0.0
  %6270 = vmatpush2.msra.mxu0 0.0
  %6271 = vmatprep.subr.mxu0 0.0
  %6272 = vmatpush2.msra.mxu0 0.0
  %6273 = vmatprep.subr.mxu0 0.0
  %6274 = vmatpush2.msra.mxu0 0.0
  %6275 = vmatprep.subr.mxu0 0.0
  %6276 = vmatpush2.msra.mxu0 0.0
  %6277 = vmatprep.subr.mxu0 0.0
  %6278 = vmatpush2.msra.mxu0 0.0
  %6279 = vmatprep.subr.mxu0 0.0
  %6280 = vmatpush2.msra.mxu0 0.0
  %6281 = vmatprep.subr.mxu0 0.0
  %6282 = vmatpush2.msra.mxu0 0.0
  %6283 = vmatprep.subr.mxu0 0.0
  %6284 = vmatpush2.msra.mxu0 0.0
  %6285 = vmatprep.subr.mxu0 0.0
  %6286 = vmatpush2.msra.mxu0 0.0
  %6287 = vmatprep.subr.mxu0 0.0
  %6288 = vmatpush2.msra.mxu0 0.0
  %6289 = vmatprep.subr.mxu0 0.0
  %6290 = vmatpush2.msra.mxu0 0.0
  %6291 = vmatprep.subr.mxu0 0.0
  %6292 = vmatpush2.msra.mxu0 0.0
  %6293 = vmatprep.subr.mxu0 0.0
  %6294 = vmatpush2.msra.mxu0 0.0
  %6295 = vmatprep.subr.mxu0 0.0
  %6296 = vmatpush2.msra.mxu0 0.0
  %6297 = vmatprep.subr.mxu0 0.0
  %6298 = vmatpush2.msra.mxu0 0.0
  %6299 = vmatprep.mubr.f32.mxu0 0.0
  %6300 = vmatmul.mubr.f32.gmra.mxu0 %v6233
  %v6301 = vpop.f32.mrf.mxu0
  %v6302 = vadd.f32 %v6230, %v6301
  %v6303 = vpop.f32.mrf.mxu0
  %6304 = vdwg.mxu0
  %v6305 = vsel %vm1068, %v6302, -inf
  %6306 = vmax.xlane.f32.xlu0 %v6305
  %v6307 = vpop.xlane.xlu0 %6306
  %v6308 = vsub.f32 %v6302, %v6307
  %v6309 = vmul.f32 %v6308, 1.442695
  %v6310 = vpow.pop %v6309
  %v6311 = vsel %vm1068, %v6310, 0.0
  %6312 = vadd.xlane.f32.xlu0 %v6311
  %v6313 = vpop.xlane.xlu0 %6312
  %v6314 = vlog2.pop %v6313
  %v6315 = vmul.f32 %v6314, 0.6931472
  %v6316 = vsub.f32 %v6308, %v6315
  %6318 = vrot.lane.b32.xlu0 %v6316, 80
  %v6319 = vpop.permute.xlu0 %6318
  %vm6321 = vcmask 779904
  %6322 = vst.msk [vmem:[%s8] sm:$0x3] %vm6321, %v6319
  %v6323 = vsel %vm1068, %v6316, -inf
  %6324 = vmax.xlane.f32.xlu0 %v6323
  %v6325 = vpop.xlane.xlu0 %6324
  %vm6326 = vcmp.eq.f32.partialorder %v6316, %v6325
  %v6327 = vsel %vm6326, %v268, 16
  %v6328 = vsel %vm1068, %v6327, 2147483647
  %v6329 = vand.u32 %v6328, 65535
  %v6330 = vshra.s32 %v6328, 16
  %v6331 = vcvt.s32.f32 %v6329
  %v6332 = vcvt.s32.f32 %v6330
  %6333 = vmin.xlane.f32.xlu0 %v6332
  %v6334 = vpop.xlane.xlu0 %6333
  %vm6335 = vcmp.eq.f32.partialorder %v6332, %v6334
  %v6336 = vsel %vm6335, %v6331, inf
  %6337 = vmin.xlane.f32.xlu0 %v6336
  %v6338 = vpop.xlane.xlu0 %6337
  %v6339 = vcvt.f32.s32 %v6338
  %v6340 = vcvt.f32.s32 %v6334
  %v6341 = vshll.u32 %v6340, 16
  %v6342 = vadd.s32 %v6341, %v6339
  %vm6343 = vcmp.eq.s32.totalorder %v268, %v6342
  %v6344 = vsel %vm6343, 1, 0
  %v6345 = vcvt.s32.f32 %v6344
  %v6346 = vld [vmem:[%s2] sm:$0xff]
  %v6347 = vld [vmem:[%s2 + $0x8] sm:$0xff]
  %v6349 = vsel %vm1107, %v6345, 0
  %6351 = vmatprep.subr.mxu0 0.0
  %6352 = vmatpush1.msra.mxu0 0.0
  %6353 = vmatprep.subr.mxu0 0.0
  %6354 = vmatpush1.msra.mxu0 0.0
  %6355 = vmatprep.subr.mxu0 0.0
  %6356 = vmatpush1.msra.mxu0 0.0
  %6357 = vmatprep.subr.mxu0 0.0
  %6358 = vmatpush1.msra.mxu0 0.0
  %6359 = vmatprep.subr.mxu0 0.0
  %6360 = vmatpush1.msra.mxu0 0.0
  %6361 = vmatprep.subr.mxu0 0.0
  %6362 = vmatpush1.msra.mxu0 0.0
  %6363 = vmatprep.subr.mxu0 0.0
  %6364 = vmatpush1.msra.mxu0 0.0
  %6365 = vmatprep.subr.mxu0 0.0
  %6366 = vmatpush1.msra.mxu0 0.0
  %6367 = vmatprep.subr.mxu0 0.0
  %6368 = vmatpush1.msra.mxu0 0.0
  %6369 = vmatprep.subr.mxu0 0.0
  %6370 = vmatpush1.msra.mxu0 0.0
  %6371 = vmatprep.subr.mxu0 0.0
  %6372 = vmatpush1.msra.mxu0 0.0
  %6373 = vmatprep.subr.mxu0 0.0
  %6374 = vmatpush1.msra.mxu0 0.0
  %6375 = vmatprep.subr.mxu0 0.0
  %6376 = vmatpush1.msra.mxu0 0.0
  %6377 = vmatprep.subr.mxu0 0.0
  %6378 = vmatpush1.msra.mxu0 0.0
  %6379 = vmatprep.subr.mxu0 0.0
  %6380 = vmatpush1.msra.mxu0 %v6347
  %6381 = vmatprep.subr.mxu0 0.0
  %6382 = vmatpush1.msra.mxu0 %v6346
  %6383 = vmatprep.subr.mxu0 0.0
  %6384 = vmatpush2.msra.mxu0 0.0
  %6385 = vmatprep.subr.mxu0 0.0
  %6386 = vmatpush2.msra.mxu0 0.0
  %6387 = vmatprep.subr.mxu0 0.0
  %6388 = vmatpush2.msra.mxu0 0.0
  %6389 = vmatprep.subr.mxu0 0.0
  %6390 = vmatpush2.msra.mxu0 0.0
  %6391 = vmatprep.subr.mxu0 0.0
  %6392 = vmatpush2.msra.mxu0 0.0
  %6393 = vmatprep.subr.mxu0 0.0
  %6394 = vmatpush2.msra.mxu0 0.0
  %6395 = vmatprep.subr.mxu0 0.0
  %6396 = vmatpush2.msra.mxu0 0.0
  %6397 = vmatprep.subr.mxu0 0.0
  %6398 = vmatpush2.msra.mxu0 0.0
  %6399 = vmatprep.subr.mxu0 0.0
  %6400 = vmatpush2.msra.mxu0 0.0
  %6401 = vmatprep.subr.mxu0 0.0
  %6402 = vmatpush2.msra.mxu0 0.0
  %6403 = vmatprep.subr.mxu0 0.0
  %6404 = vmatpush2.msra.mxu0 0.0
  %6405 = vmatprep.subr.mxu0 0.0
  %6406 = vmatpush2.msra.mxu0 0.0
  %6407 = vmatprep.subr.mxu0 0.0
  %6408 = vmatpush2.msra.mxu0 0.0
  %6409 = vmatprep.subr.mxu0 0.0
  %6410 = vmatpush2.msra.mxu0 0.0
  %6411 = vmatprep.subr.mxu0 0.0
  %6412 = vmatpush2.msra.mxu0 0.0
  %6413 = vmatprep.subr.mxu0 0.0
  %6414 = vmatpush2.msra.mxu0 0.0
  %6415 = vmatprep.mubr.f32.mxu0 0.0
  %6416 = vmatmul.mubr.f32.gmra.mxu0 %v6349
  %v6417 = vpop.f32.mrf.mxu0
  %v6418 = vadd.f32 0.0, %v6417
  %v6419 = vpop.f32.mrf.mxu0
  %6420 = vdwg.mxu0
  %6421 = vst.msk [vmem:[#allocation4] sm:$0x3] %vm33, %v6418
  %v6422 = vld [vmem:[%s0] sm:$0xff]
  %v6423 = vld [vmem:[%s0 + $0x8] sm:$0xff]
  %v6424 = vld [vmem:[#allocation4] sm:$0x3]
  %v6425 = vld [vmem:[#allocation2] sm:$0x3]
  %v6426 = vld [vmem:[%s3 + $0x20] sm:$0xff]
  %v6427 = vld [vmem:[%s3 + $0x28] sm:$0xff]
  %v6428 = vld [vmem:[%s3 + $0x30] sm:$0xff]
  %v6429 = vld [vmem:[%s3 + $0x38] sm:$0xff]
  %v6430 = vld [vmem:[%s3 + $0x41] sm:$0x1]
  %6432 = vrot.lane.b32.xlu0 %v6425, 64
  %v6433 = vpop.permute.xlu0 %6432
  %v6434 = vsel %vm46, %v6433, 0
  %6436 = vmatprep.subr.mxu0 0.0
  %6437 = vmatpush1.msra.mxu0 0.0
  %6438 = vmatprep.subr.mxu0 0.0
  %6439 = vmatpush1.msra.mxu0 0.0
  %6440 = vmatprep.subr.mxu0 0.0
  %6441 = vmatpush1.msra.mxu0 0.0
  %6442 = vmatprep.subr.mxu0 0.0
  %6443 = vmatpush1.msra.mxu0 0.0
  %6444 = vmatprep.subr.mxu0 0.0
  %6445 = vmatpush1.msra.mxu0 0.0
  %6446 = vmatprep.subr.mxu0 0.0
  %6447 = vmatpush1.msra.mxu0 0.0
  %6448 = vmatprep.subr.mxu0 0.0
  %6449 = vmatpush1.msra.mxu0 0.0
  %6450 = vmatprep.subr.mxu0 0.0
  %6451 = vmatpush1.msra.mxu0 0.0
  %6452 = vmatprep.subr.mxu0 0.0
  %6453 = vmatpush1.msra.mxu0 0.0
  %6454 = vmatprep.subr.mxu0 0.0
  %6455 = vmatpush1.msra.mxu0 0.0
  %6456 = vmatprep.subr.mxu0 0.0
  %6457 = vmatpush1.msra.mxu0 0.0
  %6458 = vmatprep.subr.mxu0 0.0
  %6459 = vmatpush1.msra.mxu0 0.0
  %6460 = vmatprep.subr.mxu0 0.0
  %6461 = vmatpush1.msra.mxu0 %v6429
  %6462 = vmatprep.subr.mxu0 0.0
  %6463 = vmatpush1.msra.mxu0 %v6428
  %6464 = vmatprep.subr.mxu0 0.0
  %6465 = vmatpush1.msra.mxu0 %v6427
  %6466 = vmatprep.subr.mxu0 0.0
  %6467 = vmatpush1.msra.mxu0 %v6426
  %6468 = vmatprep.subr.mxu0 0.0
  %6469 = vmatpush2.msra.mxu0 0.0
  %6470 = vmatprep.subr.mxu0 0.0
  %6471 = vmatpush2.msra.mxu0 0.0
  %6472 = vmatprep.subr.mxu0 0.0
  %6473 = vmatpush2.msra.mxu0 0.0
  %6474 = vmatprep.subr.mxu0 0.0
  %6475 = vmatpush2.msra.mxu0 0.0
  %6476 = vmatprep.subr.mxu0 0.0
  %6477 = vmatpush2.msra.mxu0 0.0
  %6478 = vmatprep.subr.mxu0 0.0
  %6479 = vmatpush2.msra.mxu0 0.0
  %6480 = vmatprep.subr.mxu0 0.0
  %6481 = vmatpush2.msra.mxu0 0.0
  %6482 = vmatprep.subr.mxu0 0.0
  %6483 = vmatpush2.msra.mxu0 0.0
  %6484 = vmatprep.subr.mxu0 0.0
  %6485 = vmatpush2.msra.mxu0 0.0
  %6486 = vmatprep.subr.mxu0 0.0
  %6487 = vmatpush2.msra.mxu0 0.0
  %6488 = vmatprep.subr.mxu0 0.0
  %6489 = vmatpush2.msra.mxu0 0.0
  %6490 = vmatprep.subr.mxu0 0.0
  %6491 = vmatpush2.msra.mxu0 0.0
  %6492 = vmatprep.subr.mxu0 0.0
  %6493 = vmatpush2.msra.mxu0 0.0
  %6494 = vmatprep.subr.mxu0 0.0
  %6495 = vmatpush2.msra.mxu0 0.0
  %6496 = vmatprep.subr.mxu0 0.0
  %6497 = vmatpush2.msra.mxu0 0.0
  %6498 = vmatprep.subr.mxu0 0.0
  %6499 = vmatpush2.msra.mxu0 0.0
  %6500 = vmatprep.mubr.f32.mxu0 0.0
  %6501 = vmatmul.mubr.f32.gmra.mxu0 %v6434
  %v6502 = vpop.f32.mrf.mxu0
  %v6503 = vadd.f32 0.0, %v6502
  %v6504 = vpop.f32.mrf.mxu0
  %6505 = vdwg.mxu0
  %v6506 = vld [vmem:[#allocation5] sm:$0xff]
  %v6507 = vld [vmem:[#allocation5 + $0x8] sm:$0xff]
  %v6510 = vunpack.c.l.s4 1966171168
  %v6511 = vunpack.c.0.s8 %v6510
  %v6512 = vlaneseq
  %v6513 = vshrl.u32 %v6512, 7
  %v6514 = vsub.s32 %v6511, %v6513
  %v6515 = vrot.slane %v6503, %v6514
  %v6516 = vcombine.high %v6515, %v6515
  %v6518 = vunpack.c.l.s4 1966171168
  %v6519 = vunpack.c.0.s8 %v6518
  %v6520 = vlaneseq
  %v6521 = vshrl.u32 %v6520, 7
  %v6522 = vsub.s32 %v6519, %v6521
  %v6523 = vrot.slane %v6515, %v6522
  %v6525 = vunpack.c.l.s4 1966171168
  %v6526 = vunpack.c.0.s8 %v6525
  %v6527 = vlaneseq
  %v6528 = vshrl.u32 %v6527, 7
  %v6529 = vsub.s32 %v6526, %v6528
  %v6530 = vrot.slane %v6516, %v6529
  %v6531 = vlaneseq
  %v6532 = vshrl.u32 %v6531, 7
  %v6533 = vsub.s32 0, %v6532
  %v6534 = vrot.slane %v6523, %v6533
  %v6535 = vlaneseq
  %v6536 = vshrl.u32 %v6535, 7
  %v6537 = vsub.s32 0, %v6536
  %v6538 = vrot.slane %v6530, %v6537
  %v6541 = vadd.f32 %v6506, %v6534
  %v6542 = vadd.f32 %v6507, %v6538
  %v6543 = vmax.f32 %v6541, 0.0
  %v6544 = vmax.f32 %v6542, 0.0
  %v6545 = vlaneseq
  %v6546 = vshrl.u32 %v6545, 7
  %v6547 = vsub.s32 0, %v6546
  %v6548 = vrot.slane %v6430, %v6547
  %v6549 = vmul.f32 %v6543, %v6548
  %v6550 = vmul.f32 %v6544, %v6548
  %v6551 = vsel %vm46, %v6549, 0.0
  %6552 = vadd.xlane.f32.xlu0 %v6551
  %v6553 = vpop.xlane.xlu0 %6552
  %v6554 = vsel %vm46, %v6550, 0.0
  %6555 = vadd.xlane.f32.xlu0 %v6554
  %v6556 = vpop.xlane.xlu0 %6555
  %v6559 = vlaneseq
  %v6560 = vshrl.u32 %v6559, 7
  %v6561 = vsub.s32 %v268, %v6560
  %v6562 = vrot.slane %v6553, %v6561
  %v6563 = vlaneseq
  %v6564 = vshrl.u32 %v6563, 7
  %v6565 = vsub.s32 %v268, %v6564
  %v6566 = vrot.slane %v6556, %v6565
  %v6567 = vsel %vm277, %v6566, %v6562
  %v6569 = vsel %vm280, %v6567, -inf
  %6570 = vmax.xlane.f32.xlu0 %v6569
  %v6571 = vpop.xlane.xlu0 %6570
  %v6573 = vlaneseq
  %v6574 = vshrl.u32 %v6573, 7
  %v6575 = vsub.s32 0, %v6574
  %v6576 = vrot.slane %v6571, %v6575
  %v6577 = vlaneseq
  %v6578 = vshrl.u32 %v6577, 7
  %v6579 = vsub.s32 1, %v6578
  %v6580 = vrot.slane %v6571, %v6579
  %v6583 = vsub.f32 %v6553, %v6576
  %v6584 = vsub.f32 %v6556, %v6580
  %v6585 = vmul.f32 %v6583, 1.442695
  %v6586 = vpow.pop %v6585
  %v6587 = vmul.f32 %v6584, 1.442695
  %v6588 = vpow.pop %v6587
  %6591 = vset.pattern.permute.xlu0 0
  %6592 = vperm.xlu0 %6591, %v6586
  %v6593 = vpop.permute.xlu0 %6592
  %6594 = vset.pattern.permute.xlu0 0
  %6595 = vperm.xlu0 %6594, %v6588
  %v6596 = vpop.permute.xlu0 %6595
  %v6597 = vlaneseq
  %v6598 = vshrl.u32 %v6597, 7
  %v6599 = vsub.s32 %v268, %v6598
  %v6600 = vrot.slane %v6593, %v6599
  %v6601 = vlaneseq
  %v6602 = vshrl.u32 %v6601, 7
  %v6603 = vsub.s32 %v268, %v6602
  %v6604 = vrot.slane %v6596, %v6603
  %v6605 = vsel %vm277, %v6604, %v6600
  %v6607 = vsel %vm280, %v6605, 0.0
  %6608 = vadd.xlane.f32.xlu0 %v6607
  %v6609 = vpop.xlane.xlu0 %6608
  %v6610 = vlog2.pop %v6609
  %v6611 = vmul.f32 %v6610, 0.6931472
  %v6613 = vlaneseq
  %v6614 = vshrl.u32 %v6613, 7
  %v6615 = vsub.s32 0, %v6614
  %v6616 = vrot.slane %v6611, %v6615
  %v6617 = vlaneseq
  %v6618 = vshrl.u32 %v6617, 7
  %v6619 = vsub.s32 1, %v6618
  %v6620 = vrot.slane %v6611, %v6619
  %v6623 = vsub.f32 %v6583, %v6616
  %v6624 = vsub.f32 %v6584, %v6620
  %6626 = vset.pattern.permute.xlu0 0
  %6627 = vperm.xlu0 %6626, %v6623
  %v6628 = vpop.permute.xlu0 %6627
  %6631 = vset.pattern.permute.xlu0 0
  %6632 = vperm.xlu0 %6631, %v6624
  %v6633 = vpop.permute.xlu0 %6632
  %v6635 = vmul.f32 %v6628, %v6422
  %v6636 = vmul.f32 %v6633, %v6423
  %v6637 = vsel %vm46, %v6635, 0.0
  %v6638 = vrot.slane %v6637, 4
  %v6639 = vadd.f32 %v6637, %v6638
  %v6640 = vrot.slane %v6639, 2
  %v6641 = vadd.f32 %v6639, %v6640
  %v6642 = vrot.slane %v6641, 1
  %v6643 = vadd.f32 %v6641, %v6642
  %v6644 = vsel %vm46, %v6636, 0.0
  %v6645 = vrot.slane %v6644, 4
  %v6646 = vadd.f32 %v6644, %v6645
  %v6647 = vrot.slane %v6646, 2
  %v6648 = vadd.f32 %v6646, %v6647
  %v6649 = vrot.slane %v6648, 1
  %v6650 = vadd.f32 %v6648, %v6649
  %v6651 = vld [vmem:[#allocation2] sm:$0x3]
  %v6652 = vld [vmem:[%s5] sm:$0xff]
  %v6653 = vld [vmem:[%s5 + $0x8] sm:$0xff]
  %v6654 = vld [vmem:[%s5 + $0x10] sm:$0xff]
  %v6655 = vld [vmem:[%s5 + $0x18] sm:$0xff]
  %v6656 = vld [vmem:[%s5 + $0x20] sm:$0xff]
  %v6657 = vld [vmem:[%s5 + $0x28] sm:$0xff]
  %v6658 = vld [vmem:[%s5 + $0x30] sm:$0xff]
  %v6659 = vld [vmem:[%s5 + $0x38] sm:$0xff]
  %v6660 = vld [vmem:[%s5 + $0x40] sm:$0xff]
  %v6661 = vld [vmem:[%s5 + $0x48] sm:$0xff]
  %v6662 = vld [vmem:[%s5 + $0x50] sm:$0xff]
  %v6663 = vld [vmem:[%s5 + $0x58] sm:$0xff]
  %v6664 = vld [vmem:[%s5 + $0x60] sm:$0xff]
  %v6665 = vld [vmem:[%s5 + $0x68] sm:$0xff]
  %v6666 = vld [vmem:[%s5 + $0x70] sm:$0xff]
  %v6667 = vld [vmem:[%s5 + $0x78] sm:$0xff]
  %v6668 = vld [vmem:[%s5 + $0x80] sm:$0xff]
  %v6669 = vld [vmem:[%s5 + $0x88] sm:$0xff]
  %v6670 = vld [vmem:[%s5 + $0x90] sm:$0xff]
  %v6671 = vld [vmem:[%s5 + $0x98] sm:$0xff]
  %v6672 = vld [vmem:[%s5 + $0xa0] sm:$0xff]
  %v6673 = vld [vmem:[%s5 + $0xa8] sm:$0xff]
  %v6674 = vld [vmem:[%s5 + $0xb0] sm:$0xff]
  %v6675 = vld [vmem:[%s5 + $0xb8] sm:$0xff]
  %v6676 = vld [vmem:[%s5 + $0xc0] sm:$0xff]
  %v6677 = vld [vmem:[%s5 + $0xc8] sm:$0xff]
  %v6678 = vld [vmem:[%s5 + $0xd0] sm:$0xff]
  %v6679 = vld [vmem:[%s5 + $0xd8] sm:$0xff]
  %v6680 = vld [vmem:[%s5 + $0xe0] sm:$0xff]
  %v6681 = vld [vmem:[%s5 + $0xe8] sm:$0xff]
  %v6682 = vld [vmem:[%s5 + $0xf0] sm:$0xff]
  %v6683 = vld [vmem:[%s5 + $0xf8] sm:$0xff]
  %v6684 = vld [vmem:[%s5 + $0x100] sm:$0xff]
  %v6685 = vld [vmem:[%s5 + $0x108] sm:$0xff]
  %v6686 = vld [vmem:[%s5 + $0x110] sm:$0xff]
  %v6687 = vld [vmem:[%s5 + $0x118] sm:$0xff]
  %v6689 = vsel %vm400, %v6651, 0
  %6691 = vmatprep.subr.mxu0 0.0
  %6692 = vmatpush1.msra.mxu0 0.0
  %6693 = vmatprep.subr.mxu0 0.0
  %6694 = vmatpush1.msra.mxu0 0.0
  %6695 = vmatprep.subr.mxu0 0.0
  %6696 = vmatpush1.msra.mxu0 0.0
  %6697 = vmatprep.subr.mxu0 0.0
  %6698 = vmatpush1.msra.mxu0 0.0
  %6699 = vmatprep.subr.mxu0 %v6686
  %6700 = vmatpush1.msra.mxu0 %v6685
  %6701 = vmatprep.subr.mxu0 %v6683
  %6702 = vmatpush1.msra.mxu0 %v6682
  %6703 = vmatprep.subr.mxu0 %v6680
  %6704 = vmatpush1.msra.mxu0 %v6679
  %6705 = vmatprep.subr.mxu0 %v6677
  %6706 = vmatpush1.msra.mxu0 %v6676
  %6707 = vmatprep.subr.mxu0 %v6674
  %6708 = vmatpush1.msra.mxu0 %v6673
  %6709 = vmatprep.subr.mxu0 %v6671
  %6710 = vmatpush1.msra.mxu0 %v6670
  %6711 = vmatprep.subr.mxu0 %v6668
  %6712 = vmatpush1.msra.mxu0 %v6667
  %6713 = vmatprep.subr.mxu0 %v6665
  %6714 = vmatpush1.msra.mxu0 %v6664
  %6715 = vmatprep.subr.mxu0 %v6662
  %6716 = vmatpush1.msra.mxu0 %v6661
  %6717 = vmatprep.subr.mxu0 %v6659
  %6718 = vmatpush1.msra.mxu0 %v6658
  %6719 = vmatprep.subr.mxu0 %v6656
  %6720 = vmatpush1.msra.mxu0 %v6655
  %6721 = vmatprep.subr.mxu0 %v6653
  %6722 = vmatpush1.msra.mxu0 %v6652
  %6723 = vmatprep.subr.mxu0 0.0
  %6724 = vmatpush2.msra.mxu0 0.0
  %6725 = vmatprep.subr.mxu0 0.0
  %6726 = vmatpush2.msra.mxu0 0.0
  %6727 = vmatprep.subr.mxu0 0.0
  %6728 = vmatpush2.msra.mxu0 0.0
  %6729 = vmatprep.subr.mxu0 0.0
  %6730 = vmatpush2.msra.mxu0 0.0
  %6731 = vmatprep.subr.mxu0 0.0
  %6732 = vmatpush2.msra.mxu0 0.0
  %6733 = vmatprep.subr.mxu0 0.0
  %6734 = vmatpush2.msra.mxu0 0.0
  %6735 = vmatprep.subr.mxu0 0.0
  %6736 = vmatpush2.msra.mxu0 0.0
  %6737 = vmatprep.subr.mxu0 0.0
  %6738 = vmatpush2.msra.mxu0 0.0
  %6739 = vmatprep.subr.mxu0 0.0
  %6740 = vmatpush2.msra.mxu0 0.0
  %6741 = vmatprep.subr.mxu0 0.0
  %6742 = vmatpush2.msra.mxu0 0.0
  %6743 = vmatprep.subr.mxu0 0.0
  %6744 = vmatpush2.msra.mxu0 0.0
  %6745 = vmatprep.subr.mxu0 0.0
  %6746 = vmatpush2.msra.mxu0 0.0
  %6747 = vmatprep.subr.mxu0 0.0
  %6748 = vmatpush2.msra.mxu0 0.0
  %6749 = vmatprep.subr.mxu0 0.0
  %6750 = vmatpush2.msra.mxu0 0.0
  %6751 = vmatprep.subr.mxu0 0.0
  %6752 = vmatpush2.msra.mxu0 0.0
  %6753 = vmatprep.subr.mxu0 0.0
  %6754 = vmatpush2.msra.mxu0 0.0
  %6755 = vmatprep.mubr.f32.mxu0 0.0
  %6756 = vmatmul.mubr.f32.gmra.mxu0 %v6689
  %v6757 = vpop.f32.mrf.mxu0
  %v6758 = vadd.f32 0.0, %v6757
  %v6759 = vpop.f32.mrf.mxu0
  %v6760 = vadd.f32 0.0, %v6759
  %6761 = vdwg.mxu0
  %6762 = vmatprep.subr.mxu0 0.0
  %6763 = vmatpush1.msra.mxu0 0.0
  %6764 = vmatprep.subr.mxu0 0.0
  %6765 = vmatpush1.msra.mxu0 0.0
  %6766 = vmatprep.subr.mxu0 0.0
  %6767 = vmatpush1.msra.mxu0 0.0
  %6768 = vmatprep.subr.mxu0 0.0
  %6769 = vmatpush1.msra.mxu0 0.0
  %6770 = vmatprep.subr.mxu0 0.0
  %6771 = vmatpush1.msra.mxu0 %v6687
  %6772 = vmatprep.subr.mxu0 0.0
  %6773 = vmatpush1.msra.mxu0 %v6684
  %6774 = vmatprep.subr.mxu0 0.0
  %6775 = vmatpush1.msra.mxu0 %v6681
  %6776 = vmatprep.subr.mxu0 0.0
  %6777 = vmatpush1.msra.mxu0 %v6678
  %6778 = vmatprep.subr.mxu0 0.0
  %6779 = vmatpush1.msra.mxu0 %v6675
  %6780 = vmatprep.subr.mxu0 0.0
  %6781 = vmatpush1.msra.mxu0 %v6672
  %6782 = vmatprep.subr.mxu0 0.0
  %6783 = vmatpush1.msra.mxu0 %v6669
  %6784 = vmatprep.subr.mxu0 0.0
  %6785 = vmatpush1.msra.mxu0 %v6666
  %6786 = vmatprep.subr.mxu0 0.0
  %6787 = vmatpush1.msra.mxu0 %v6663
  %6788 = vmatprep.subr.mxu0 0.0
  %6789 = vmatpush1.msra.mxu0 %v6660
  %6790 = vmatprep.subr.mxu0 0.0
  %6791 = vmatpush1.msra.mxu0 %v6657
  %6792 = vmatprep.subr.mxu0 0.0
  %6793 = vmatpush1.msra.mxu0 %v6654
  %6794 = vmatprep.subr.mxu0 0.0
  %6795 = vmatpush2.msra.mxu0 0.0
  %6796 = vmatprep.subr.mxu0 0.0
  %6797 = vmatpush2.msra.mxu0 0.0
  %6798 = vmatprep.subr.mxu0 0.0
  %6799 = vmatpush2.msra.mxu0 0.0
  %6800 = vmatprep.subr.mxu0 0.0
  %6801 = vmatpush2.msra.mxu0 0.0
  %6802 = vmatprep.subr.mxu0 0.0
  %6803 = vmatpush2.msra.mxu0 0.0
  %6804 = vmatprep.subr.mxu0 0.0
  %6805 = vmatpush2.msra.mxu0 0.0
  %6806 = vmatprep.subr.mxu0 0.0
  %6807 = vmatpush2.msra.mxu0 0.0
  %6808 = vmatprep.subr.mxu0 0.0
  %6809 = vmatpush2.msra.mxu0 0.0
  %6810 = vmatprep.subr.mxu0 0.0
  %6811 = vmatpush2.msra.mxu0 0.0
  %6812 = vmatprep.subr.mxu0 0.0
  %6813 = vmatpush2.msra.mxu0 0.0
  %6814 = vmatprep.subr.mxu0 0.0
  %6815 = vmatpush2.msra.mxu0 0.0
  %6816 = vmatprep.subr.mxu0 0.0
  %6817 = vmatpush2.msra.mxu0 0.0
  %6818 = vmatprep.subr.mxu0 0.0
  %6819 = vmatpush2.msra.mxu0 0.0
  %6820 = vmatprep.subr.mxu0 0.0
  %6821 = vmatpush2.msra.mxu0 0.0
  %6822 = vmatprep.subr.mxu0 0.0
  %6823 = vmatpush2.msra.mxu0 0.0
  %6824 = vmatprep.subr.mxu0 0.0
  %6825 = vmatpush2.msra.mxu0 0.0
  %6826 = vmatprep.mubr.f32.mxu0 0.0
  %6827 = vmatmul.mubr.f32.gmra.mxu0 %v6689
  %v6828 = vpop.f32.mrf.mxu0
  %v6829 = vadd.f32 0.0, %v6828
  %v6830 = vpop.f32.mrf.mxu0
  %6831 = vdwg.mxu0
  %v6832 = vld [vmem:[%s4] sm:$0xff]
  %v6833 = vld [vmem:[%s4 + $0x8] sm:$0xff]
  %v6834 = vld [vmem:[%s4 + $0x10] sm:$0xff]
  %v6835 = vld [vmem:[%s4 + $0x18] sm:$0xff]
  %v6836 = vld [vmem:[%s4 + $0x20] sm:$0xff]
  %v6837 = vld [vmem:[%s4 + $0x28] sm:$0xff]
  %v6838 = vld [vmem:[%s4 + $0x30] sm:$0xff]
  %v6839 = vld [vmem:[%s4 + $0x38] sm:$0xff]
  %v6842 = vsel %vm277, %v6650, %v6643
  %v6843 = vsel %vm46, %v6842, 0
  %6845 = vmatprep.subr.mxu0 0.0
  %6846 = vmatpush1.msra.mxu0 0.0
  %6847 = vmatprep.subr.mxu0 0.0
  %6848 = vmatpush1.msra.mxu0 0.0
  %6849 = vmatprep.subr.mxu0 0.0
  %6850 = vmatpush1.msra.mxu0 0.0
  %6851 = vmatprep.subr.mxu0 0.0
  %6852 = vmatpush1.msra.mxu0 0.0
  %6853 = vmatprep.subr.mxu0 0.0
  %6854 = vmatpush1.msra.mxu0 0.0
  %6855 = vmatprep.subr.mxu0 0.0
  %6856 = vmatpush1.msra.mxu0 0.0
  %6857 = vmatprep.subr.mxu0 0.0
  %6858 = vmatpush1.msra.mxu0 0.0
  %6859 = vmatprep.subr.mxu0 0.0
  %6860 = vmatpush1.msra.mxu0 0.0
  %6861 = vmatprep.subr.mxu0 0.0
  %6862 = vmatpush1.msra.mxu0 0.0
  %6863 = vmatprep.subr.mxu0 0.0
  %6864 = vmatpush1.msra.mxu0 0.0
  %6865 = vmatprep.subr.mxu0 0.0
  %6866 = vmatpush1.msra.mxu0 0.0
  %6867 = vmatprep.subr.mxu0 0.0
  %6868 = vmatpush1.msra.mxu0 0.0
  %6869 = vmatprep.subr.mxu0 0.0
  %6870 = vmatpush1.msra.mxu0 %v6839
  %6871 = vmatprep.subr.mxu0 0.0
  %6872 = vmatpush1.msra.mxu0 %v6838
  %6873 = vmatprep.subr.mxu0 0.0
  %6874 = vmatpush1.msra.mxu0 %v6837
  %6875 = vmatprep.subr.mxu0 0.0
  %6876 = vmatpush1.msra.mxu0 %v6836
  %6877 = vmatprep.subr.mxu0 0.0
  %6878 = vmatpush2.msra.mxu0 0.0
  %6879 = vmatprep.subr.mxu0 0.0
  %6880 = vmatpush2.msra.mxu0 0.0
  %6881 = vmatprep.subr.mxu0 0.0
  %6882 = vmatpush2.msra.mxu0 0.0
  %6883 = vmatprep.subr.mxu0 0.0
  %6884 = vmatpush2.msra.mxu0 0.0
  %6885 = vmatprep.subr.mxu0 0.0
  %6886 = vmatpush2.msra.mxu0 0.0
  %6887 = vmatprep.subr.mxu0 0.0
  %6888 = vmatpush2.msra.mxu0 0.0
  %6889 = vmatprep.subr.mxu0 0.0
  %6890 = vmatpush2.msra.mxu0 0.0
  %6891 = vmatprep.subr.mxu0 0.0
  %6892 = vmatpush2.msra.mxu0 0.0
  %6893 = vmatprep.subr.mxu0 0.0
  %6894 = vmatpush2.msra.mxu0 0.0
  %6895 = vmatprep.subr.mxu0 0.0
  %6896 = vmatpush2.msra.mxu0 0.0
  %6897 = vmatprep.subr.mxu0 0.0
  %6898 = vmatpush2.msra.mxu0 0.0
  %6899 = vmatprep.subr.mxu0 0.0
  %6900 = vmatpush2.msra.mxu0 0.0
  %6901 = vmatprep.subr.mxu0 0.0
  %6902 = vmatpush2.msra.mxu0 0.0
  %6903 = vmatprep.subr.mxu0 0.0
  %6904 = vmatpush2.msra.mxu0 0.0
  %6905 = vmatprep.subr.mxu0 0.0
  %6906 = vmatpush2.msra.mxu0 0.0
  %6907 = vmatprep.subr.mxu0 0.0
  %6908 = vmatpush2.msra.mxu0 0.0
  %6909 = vmatprep.mubr.f32.mxu0 0.0
  %6910 = vmatmul.mubr.f32.gmra.mxu0 %v6843
  %v6911 = vpop.f32.mrf.mxu0
  %v6912 = vadd.f32 0.0, %v6911
  %v6913 = vpop.f32.mrf.mxu0
  %6914 = vdwg.mxu0
  %v6916 = vsel %vm46, %v6424, 0
  %6918 = vmatprep.subr.mxu0 0.0
  %6919 = vmatpush1.msra.mxu0 0.0
  %6920 = vmatprep.subr.mxu0 0.0
  %6921 = vmatpush1.msra.mxu0 0.0
  %6922 = vmatprep.subr.mxu0 0.0
  %6923 = vmatpush1.msra.mxu0 0.0
  %6924 = vmatprep.subr.mxu0 0.0
  %6925 = vmatpush1.msra.mxu0 0.0
  %6926 = vmatprep.subr.mxu0 0.0
  %6927 = vmatpush1.msra.mxu0 0.0
  %6928 = vmatprep.subr.mxu0 0.0
  %6929 = vmatpush1.msra.mxu0 0.0
  %6930 = vmatprep.subr.mxu0 0.0
  %6931 = vmatpush1.msra.mxu0 0.0
  %6932 = vmatprep.subr.mxu0 0.0
  %6933 = vmatpush1.msra.mxu0 0.0
  %6934 = vmatprep.subr.mxu0 0.0
  %6935 = vmatpush1.msra.mxu0 0.0
  %6936 = vmatprep.subr.mxu0 0.0
  %6937 = vmatpush1.msra.mxu0 0.0
  %6938 = vmatprep.subr.mxu0 0.0
  %6939 = vmatpush1.msra.mxu0 0.0
  %6940 = vmatprep.subr.mxu0 0.0
  %6941 = vmatpush1.msra.mxu0 0.0
  %6942 = vmatprep.subr.mxu0 0.0
  %6943 = vmatpush1.msra.mxu0 %v6835
  %6944 = vmatprep.subr.mxu0 0.0
  %6945 = vmatpush1.msra.mxu0 %v6834
  %6946 = vmatprep.subr.mxu0 0.0
  %6947 = vmatpush1.msra.mxu0 %v6833
  %6948 = vmatprep.subr.mxu0 0.0
  %6949 = vmatpush1.msra.mxu0 %v6832
  %6950 = vmatprep.subr.mxu0 0.0
  %6951 = vmatpush2.msra.mxu0 0.0
  %6952 = vmatprep.subr.mxu0 0.0
  %6953 = vmatpush2.msra.mxu0 0.0
  %6954 = vmatprep.subr.mxu0 0.0
  %6955 = vmatpush2.msra.mxu0 0.0
  %6956 = vmatprep.subr.mxu0 0.0
  %6957 = vmatpush2.msra.mxu0 0.0
  %6958 = vmatprep.subr.mxu0 0.0
  %6959 = vmatpush2.msra.mxu0 0.0
  %6960 = vmatprep.subr.mxu0 0.0
  %6961 = vmatpush2.msra.mxu0 0.0
  %6962 = vmatprep.subr.mxu0 0.0
  %6963 = vmatpush2.msra.mxu0 0.0
  %6964 = vmatprep.subr.mxu0 0.0
  %6965 = vmatpush2.msra.mxu0 0.0
  %6966 = vmatprep.subr.mxu0 0.0
  %6967 = vmatpush2.msra.mxu0 0.0
  %6968 = vmatprep.subr.mxu0 0.0
  %6969 = vmatpush2.msra.mxu0 0.0
  %6970 = vmatprep.subr.mxu0 0.0
  %6971 = vmatpush2.msra.mxu0 0.0
  %6972 = vmatprep.subr.mxu0 0.0
  %6973 = vmatpush2.msra.mxu0 0.0
  %6974 = vmatprep.subr.mxu0 0.0
  %6975 = vmatpush2.msra.mxu0 0.0
  %6976 = vmatprep.subr.mxu0 0.0
  %6977 = vmatpush2.msra.mxu0 0.0
  %6978 = vmatprep.subr.mxu0 0.0
  %6979 = vmatpush2.msra.mxu0 0.0
  %6980 = vmatprep.subr.mxu0 0.0
  %6981 = vmatpush2.msra.mxu0 0.0
  %6982 = vmatprep.mubr.f32.mxu0 0.0
  %6983 = vmatmul.mubr.f32.gmra.mxu0 %v6916
  %v6984 = vpop.f32.mrf.mxu0
  %v6985 = vadd.f32 %v6912, %v6984
  %v6986 = vpop.f32.mrf.mxu0
  %6987 = vdwg.mxu0
  %v6988 = vadd.f32 %v6985, %v6758
  %v6989 = vld [vmem:[%s6] sm:$0x1]
  %v6990 = vlaneseq
  %v6991 = vshrl.u32 %v6990, 7
  %v6992 = vsub.s32 0, %v6991
  %v6993 = vrot.slane %v6989, %v6992
  %v6994 = vadd.f32 %v6988, %v6993
  %v6995 = vxor.u32 %v6994, 2147483648
  %v6996 = vmul.f32 %v6995, 1.442695
  %v6997 = vpow.pop %v6996
  %v6998 = vadd.f32 %v6997, 1.0
  %v6999 = vrcp.pop %v6998
  %v7000 = vmul.f32 1.0, %v6999
  %v7001 = vtanh.pop %v6994
  %v7002 = vld [vmem:[#allocation3] sm:$0x3]
  %7004 = vrot.lane.b32.xlu0 %v7002, 32
  %v7005 = vpop.permute.xlu0 %7004
  %v7007 = vmul.f32 %v7000, %v7005
  %7009 = vrot.lane.b32.xlu0 %v7001, 64
  %v7010 = vpop.permute.xlu0 %7009
  %v7012 = vmul.f32 %v7000, %v7010
  %7014 = vrot.lane.b32.xlu0 %v7012, 32
  %v7015 = vpop.permute.xlu0 %7014
  %v7017 = vadd.f32 %v7007, %v7015
  %v7018 = vtanh.pop %v7017
  %7020 = vrot.lane.b32.xlu0 %v7018, 64
  %v7021 = vpop.permute.xlu0 %7020
  %v7023 = vmul.f32 %v7000, %v7021
  %7025 = vrot.lane.b32.xlu0 %v7017, 96
  %v7026 = vpop.permute.xlu0 %7025
  %7028 = vst.msk [vmem:[#allocation3] sm:$0x3] %vm33, %v7026
  %7030 = vrot.lane.b32.xlu0 %v7023, 32
  %v7031 = vpop.permute.xlu0 %7030
  %7033 = vst.msk [vmem:[#allocation2] sm:$0x3] %vm33, %v7031
  %v7034 = vld [vmem:[%s4 + $0x40] sm:$0xff]
  %v7035 = vld [vmem:[%s4 + $0x48] sm:$0xff]
  %v7036 = vld [vmem:[%s4 + $0x50] sm:$0xff]
  %v7037 = vld [vmem:[%s4 + $0x58] sm:$0xff]
  %v7038 = vsel %vm46, %v7031, 0
  %7040 = vmatprep.subr.mxu0 0.0
  %7041 = vmatpush1.msra.mxu0 0.0
  %7042 = vmatprep.subr.mxu0 0.0
  %7043 = vmatpush1.msra.mxu0 0.0
  %7044 = vmatprep.subr.mxu0 0.0
  %7045 = vmatpush1.msra.mxu0 0.0
  %7046 = vmatprep.subr.mxu0 0.0
  %7047 = vmatpush1.msra.mxu0 0.0
  %7048 = vmatprep.subr.mxu0 0.0
  %7049 = vmatpush1.msra.mxu0 0.0
  %7050 = vmatprep.subr.mxu0 0.0
  %7051 = vmatpush1.msra.mxu0 0.0
  %7052 = vmatprep.subr.mxu0 0.0
  %7053 = vmatpush1.msra.mxu0 0.0
  %7054 = vmatprep.subr.mxu0 0.0
  %7055 = vmatpush1.msra.mxu0 0.0
  %7056 = vmatprep.subr.mxu0 0.0
  %7057 = vmatpush1.msra.mxu0 0.0
  %7058 = vmatprep.subr.mxu0 0.0
  %7059 = vmatpush1.msra.mxu0 0.0
  %7060 = vmatprep.subr.mxu0 0.0
  %7061 = vmatpush1.msra.mxu0 0.0
  %7062 = vmatprep.subr.mxu0 0.0
  %7063 = vmatpush1.msra.mxu0 0.0
  %7064 = vmatprep.subr.mxu0 0.0
  %7065 = vmatpush1.msra.mxu0 %v7037
  %7066 = vmatprep.subr.mxu0 0.0
  %7067 = vmatpush1.msra.mxu0 %v7036
  %7068 = vmatprep.subr.mxu0 0.0
  %7069 = vmatpush1.msra.mxu0 %v7035
  %7070 = vmatprep.subr.mxu0 0.0
  %7071 = vmatpush1.msra.mxu0 %v7034
  %7072 = vmatprep.subr.mxu0 0.0
  %7073 = vmatpush2.msra.mxu0 0.0
  %7074 = vmatprep.subr.mxu0 0.0
  %7075 = vmatpush2.msra.mxu0 0.0
  %7076 = vmatprep.subr.mxu0 0.0
  %7077 = vmatpush2.msra.mxu0 0.0
  %7078 = vmatprep.subr.mxu0 0.0
  %7079 = vmatpush2.msra.mxu0 0.0
  %7080 = vmatprep.subr.mxu0 0.0
  %7081 = vmatpush2.msra.mxu0 0.0
  %7082 = vmatprep.subr.mxu0 0.0
  %7083 = vmatpush2.msra.mxu0 0.0
  %7084 = vmatprep.subr.mxu0 0.0
  %7085 = vmatpush2.msra.mxu0 0.0
  %7086 = vmatprep.subr.mxu0 0.0
  %7087 = vmatpush2.msra.mxu0 0.0
  %7088 = vmatprep.subr.mxu0 0.0
  %7089 = vmatpush2.msra.mxu0 0.0
  %7090 = vmatprep.subr.mxu0 0.0
  %7091 = vmatpush2.msra.mxu0 0.0
  %7092 = vmatprep.subr.mxu0 0.0
  %7093 = vmatpush2.msra.mxu0 0.0
  %7094 = vmatprep.subr.mxu0 0.0
  %7095 = vmatpush2.msra.mxu0 0.0
  %7096 = vmatprep.subr.mxu0 0.0
  %7097 = vmatpush2.msra.mxu0 0.0
  %7098 = vmatprep.subr.mxu0 0.0
  %7099 = vmatpush2.msra.mxu0 0.0
  %7100 = vmatprep.subr.mxu0 0.0
  %7101 = vmatpush2.msra.mxu0 0.0
  %7102 = vmatprep.subr.mxu0 0.0
  %7103 = vmatpush2.msra.mxu0 0.0
  %7104 = vmatprep.mubr.f32.mxu0 0.0
  %7105 = vmatmul.mubr.f32.gmra.mxu0 %v7038
  %v7106 = vpop.f32.mrf.mxu0
  %v7107 = vadd.f32 %v6760, %v7106
  %v7108 = vpop.f32.mrf.mxu0
  %7109 = vdwg.mxu0
  %v7110 = vld [vmem:[%s6 + $0x1] sm:$0x1]
  %v7111 = vlaneseq
  %v7112 = vshrl.u32 %v7111, 7
  %v7113 = vsub.s32 0, %v7112
  %v7114 = vrot.slane %v7110, %v7113
  %v7115 = vadd.f32 %v7107, %v7114
  %v7116 = vxor.u32 %v7115, 2147483648
  %v7117 = vmul.f32 %v7116, 1.442695
  %v7118 = vpow.pop %v7117
  %v7119 = vadd.f32 %v7118, 1.0
  %v7120 = vrcp.pop %v7119
  %v7121 = vmul.f32 1.0, %v7120
  %v7122 = vtanh.pop %v7115
  %v7123 = vld [vmem:[#allocation3] sm:$0x3]
  %v7124 = vmul.f32 %v7121, %v7123
  %7126 = vrot.lane.b32.xlu0 %v7122, 64
  %v7127 = vpop.permute.xlu0 %7126
  %v7129 = vmul.f32 %v7121, %v7127
  %7131 = vrot.lane.b32.xlu0 %v7129, 32
  %v7132 = vpop.permute.xlu0 %7131
  %v7134 = vadd.f32 %v7124, %v7132
  %v7135 = vtanh.pop %v7134
  %7137 = vrot.lane.b32.xlu0 %v7135, 64
  %v7138 = vpop.permute.xlu0 %7137
  %v7140 = vmul.f32 %v7121, %v7138
  %7141 = vst.msk [vmem:[#allocation3] sm:$0x3] %vm854, %v7134
  %7143 = vrot.lane.b32.xlu0 %v7140, 64
  %v7144 = vpop.permute.xlu0 %7143
  %7146 = vst.msk [vmem:[#allocation2] sm:$0x3] %vm854, %v7144
  %v7147 = vld [vmem:[%s4 + $0x60] sm:$0xff]
  %v7148 = vld [vmem:[%s4 + $0x68] sm:$0xff]
  %v7149 = vld [vmem:[%s4 + $0x70] sm:$0xff]
  %v7150 = vld [vmem:[%s4 + $0x78] sm:$0xff]
  %7151 = vrot.lane.b32.xlu0 %v7140, 32
  %v7152 = vpop.permute.xlu0 %7151
  %v7153 = vsel %vm46, %v7152, 0
  %7155 = vmatprep.subr.mxu0 0.0
  %7156 = vmatpush1.msra.mxu0 0.0
  %7157 = vmatprep.subr.mxu0 0.0
  %7158 = vmatpush1.msra.mxu0 0.0
  %7159 = vmatprep.subr.mxu0 0.0
  %7160 = vmatpush1.msra.mxu0 0.0
  %7161 = vmatprep.subr.mxu0 0.0
  %7162 = vmatpush1.msra.mxu0 0.0
  %7163 = vmatprep.subr.mxu0 0.0
  %7164 = vmatpush1.msra.mxu0 0.0
  %7165 = vmatprep.subr.mxu0 0.0
  %7166 = vmatpush1.msra.mxu0 0.0
  %7167 = vmatprep.subr.mxu0 0.0
  %7168 = vmatpush1.msra.mxu0 0.0
  %7169 = vmatprep.subr.mxu0 0.0
  %7170 = vmatpush1.msra.mxu0 0.0
  %7171 = vmatprep.subr.mxu0 0.0
  %7172 = vmatpush1.msra.mxu0 0.0
  %7173 = vmatprep.subr.mxu0 0.0
  %7174 = vmatpush1.msra.mxu0 0.0
  %7175 = vmatprep.subr.mxu0 0.0
  %7176 = vmatpush1.msra.mxu0 0.0
  %7177 = vmatprep.subr.mxu0 0.0
  %7178 = vmatpush1.msra.mxu0 0.0
  %7179 = vmatprep.subr.mxu0 0.0
  %7180 = vmatpush1.msra.mxu0 %v7150
  %7181 = vmatprep.subr.mxu0 0.0
  %7182 = vmatpush1.msra.mxu0 %v7149
  %7183 = vmatprep.subr.mxu0 0.0
  %7184 = vmatpush1.msra.mxu0 %v7148
  %7185 = vmatprep.subr.mxu0 0.0
  %7186 = vmatpush1.msra.mxu0 %v7147
  %7187 = vmatprep.subr.mxu0 0.0
  %7188 = vmatpush2.msra.mxu0 0.0
  %7189 = vmatprep.subr.mxu0 0.0
  %7190 = vmatpush2.msra.mxu0 0.0
  %7191 = vmatprep.subr.mxu0 0.0
  %7192 = vmatpush2.msra.mxu0 0.0
  %7193 = vmatprep.subr.mxu0 0.0
  %7194 = vmatpush2.msra.mxu0 0.0
  %7195 = vmatprep.subr.mxu0 0.0
  %7196 = vmatpush2.msra.mxu0 0.0
  %7197 = vmatprep.subr.mxu0 0.0
  %7198 = vmatpush2.msra.mxu0 0.0
  %7199 = vmatprep.subr.mxu0 0.0
  %7200 = vmatpush2.msra.mxu0 0.0
  %7201 = vmatprep.subr.mxu0 0.0
  %7202 = vmatpush2.msra.mxu0 0.0
  %7203 = vmatprep.subr.mxu0 0.0
  %7204 = vmatpush2.msra.mxu0 0.0
  %7205 = vmatprep.subr.mxu0 0.0
  %7206 = vmatpush2.msra.mxu0 0.0
  %7207 = vmatprep.subr.mxu0 0.0
  %7208 = vmatpush2.msra.mxu0 0.0
  %7209 = vmatprep.subr.mxu0 0.0
  %7210 = vmatpush2.msra.mxu0 0.0
  %7211 = vmatprep.subr.mxu0 0.0
  %7212 = vmatpush2.msra.mxu0 0.0
  %7213 = vmatprep.subr.mxu0 0.0
  %7214 = vmatpush2.msra.mxu0 0.0
  %7215 = vmatprep.subr.mxu0 0.0
  %7216 = vmatpush2.msra.mxu0 0.0
  %7217 = vmatprep.subr.mxu0 0.0
  %7218 = vmatpush2.msra.mxu0 0.0
  %7219 = vmatprep.mubr.f32.mxu0 0.0
  %7220 = vmatmul.mubr.f32.gmra.mxu0 %v7153
  %v7221 = vpop.f32.mrf.mxu0
  %v7222 = vadd.f32 %v6829, %v7221
  %v7223 = vpop.f32.mrf.mxu0
  %7224 = vdwg.mxu0
  %v7225 = vld [vmem:[%s6 + $0x2] sm:$0x1]
  %v7226 = vlaneseq
  %v7227 = vshrl.u32 %v7226, 7
  %v7228 = vsub.s32 0, %v7227
  %v7229 = vrot.slane %v7225, %v7228
  %v7230 = vadd.f32 %v7222, %v7229
  %v7231 = vxor.u32 %v7230, 2147483648
  %v7232 = vmul.f32 %v7231, 1.442695
  %v7233 = vpow.pop %v7232
  %v7234 = vadd.f32 %v7233, 1.0
  %v7235 = vrcp.pop %v7234
  %v7236 = vmul.f32 1.0, %v7235
  %v7237 = vtanh.pop %v7230
  %v7238 = vld [vmem:[#allocation3] sm:$0x3]
  %7240 = vrot.lane.b32.xlu0 %v7238, 96
  %v7241 = vpop.permute.xlu0 %7240
  %v7243 = vmul.f32 %v7236, %v7241
  %7245 = vrot.lane.b32.xlu0 %v7237, 64
  %v7246 = vpop.permute.xlu0 %7245
  %v7248 = vmul.f32 %v7236, %v7246
  %7250 = vrot.lane.b32.xlu0 %v7248, 32
  %v7251 = vpop.permute.xlu0 %7250
  %v7253 = vadd.f32 %v7243, %v7251
  %v7254 = vtanh.pop %v7253
  %7256 = vrot.lane.b32.xlu0 %v7254, 64
  %v7257 = vpop.permute.xlu0 %7256
  %v7259 = vmul.f32 %v7236, %v7257
  %7261 = vrot.lane.b32.xlu0 %v7253, 32
  %v7262 = vpop.permute.xlu0 %7261
  %7264 = vst.msk [vmem:[#allocation3] sm:$0x3] %vm978, %v7262
  %7266 = vrot.lane.b32.xlu0 %v7259, 96
  %v7267 = vpop.permute.xlu0 %7266
  %7269 = vst.msk [vmem:[#allocation2] sm:$0x3] %vm978, %v7267
  %v7270 = vld [vmem:[%s7] sm:$0xff]
  %v7271 = vld [vmem:[%s7 + $0x8] sm:$0xff]
  %v7272 = vld [vmem:[%s7 + $0x10] sm:$0xff]
  %v7273 = vld [vmem:[%s7 + $0x18] sm:$0xff]
  %v7274 = vld [vmem:[%s7 + $0x20] sm:$0x1]
  %v7275 = vlaneseq
  %v7276 = vshrl.u32 %v7275, 7
  %v7277 = vsub.s32 0, %v7276
  %v7278 = vrot.slane %v7274, %v7277
  %7279 = vrot.lane.b32.xlu0 %v7259, 32
  %v7280 = vpop.permute.xlu0 %7279
  %v7281 = vsel %vm46, %v7280, 0
  %7283 = vmatprep.subr.mxu0 0.0
  %7284 = vmatpush1.msra.mxu0 0.0
  %7285 = vmatprep.subr.mxu0 0.0
  %7286 = vmatpush1.msra.mxu0 0.0
  %7287 = vmatprep.subr.mxu0 0.0
  %7288 = vmatpush1.msra.mxu0 0.0
  %7289 = vmatprep.subr.mxu0 0.0
  %7290 = vmatpush1.msra.mxu0 0.0
  %7291 = vmatprep.subr.mxu0 0.0
  %7292 = vmatpush1.msra.mxu0 0.0
  %7293 = vmatprep.subr.mxu0 0.0
  %7294 = vmatpush1.msra.mxu0 0.0
  %7295 = vmatprep.subr.mxu0 0.0
  %7296 = vmatpush1.msra.mxu0 0.0
  %7297 = vmatprep.subr.mxu0 0.0
  %7298 = vmatpush1.msra.mxu0 0.0
  %7299 = vmatprep.subr.mxu0 0.0
  %7300 = vmatpush1.msra.mxu0 0.0
  %7301 = vmatprep.subr.mxu0 0.0
  %7302 = vmatpush1.msra.mxu0 0.0
  %7303 = vmatprep.subr.mxu0 0.0
  %7304 = vmatpush1.msra.mxu0 0.0
  %7305 = vmatprep.subr.mxu0 0.0
  %7306 = vmatpush1.msra.mxu0 0.0
  %7307 = vmatprep.subr.mxu0 0.0
  %7308 = vmatpush1.msra.mxu0 %v7273
  %7309 = vmatprep.subr.mxu0 0.0
  %7310 = vmatpush1.msra.mxu0 %v7272
  %7311 = vmatprep.subr.mxu0 0.0
  %7312 = vmatpush1.msra.mxu0 %v7271
  %7313 = vmatprep.subr.mxu0 0.0
  %7314 = vmatpush1.msra.mxu0 %v7270
  %7315 = vmatprep.subr.mxu0 0.0
  %7316 = vmatpush2.msra.mxu0 0.0
  %7317 = vmatprep.subr.mxu0 0.0
  %7318 = vmatpush2.msra.mxu0 0.0
  %7319 = vmatprep.subr.mxu0 0.0
  %7320 = vmatpush2.msra.mxu0 0.0
  %7321 = vmatprep.subr.mxu0 0.0
  %7322 = vmatpush2.msra.mxu0 0.0
  %7323 = vmatprep.subr.mxu0 0.0
  %7324 = vmatpush2.msra.mxu0 0.0
  %7325 = vmatprep.subr.mxu0 0.0
  %7326 = vmatpush2.msra.mxu0 0.0
  %7327 = vmatprep.subr.mxu0 0.0
  %7328 = vmatpush2.msra.mxu0 0.0
  %7329 = vmatprep.subr.mxu0 0.0
  %7330 = vmatpush2.msra.mxu0 0.0
  %7331 = vmatprep.subr.mxu0 0.0
  %7332 = vmatpush2.msra.mxu0 0.0
  %7333 = vmatprep.subr.mxu0 0.0
  %7334 = vmatpush2.msra.mxu0 0.0
  %7335 = vmatprep.subr.mxu0 0.0
  %7336 = vmatpush2.msra.mxu0 0.0
  %7337 = vmatprep.subr.mxu0 0.0
  %7338 = vmatpush2.msra.mxu0 0.0
  %7339 = vmatprep.subr.mxu0 0.0
  %7340 = vmatpush2.msra.mxu0 0.0
  %7341 = vmatprep.subr.mxu0 0.0
  %7342 = vmatpush2.msra.mxu0 0.0
  %7343 = vmatprep.subr.mxu0 0.0
  %7344 = vmatpush2.msra.mxu0 0.0
  %7345 = vmatprep.subr.mxu0 0.0
  %7346 = vmatpush2.msra.mxu0 0.0
  %7347 = vmatprep.mubr.f32.mxu0 0.0
  %7348 = vmatmul.mubr.f32.gmra.mxu0 %v7281
  %v7349 = vpop.f32.mrf.mxu0
  %v7350 = vadd.f32 %v7278, %v7349
  %v7351 = vpop.f32.mrf.mxu0
  %7352 = vdwg.mxu0
  %v7353 = vsel %vm1068, %v7350, -inf
  %7354 = vmax.xlane.f32.xlu0 %v7353
  %v7355 = vpop.xlane.xlu0 %7354
  %v7356 = vsub.f32 %v7350, %v7355
  %v7357 = vmul.f32 %v7356, 1.442695
  %v7358 = vpow.pop %v7357
  %v7359 = vsel %vm1068, %v7358, 0.0
  %7360 = vadd.xlane.f32.xlu0 %v7359
  %v7361 = vpop.xlane.xlu0 %7360
  %v7362 = vlog2.pop %v7361
  %v7363 = vmul.f32 %v7362, 0.6931472
  %v7364 = vsub.f32 %v7356, %v7363
  %7366 = vrot.lane.b32.xlu0 %v7364, 96
  %v7367 = vpop.permute.xlu0 %7366
  %vm7369 = vcmask 911104
  %7370 = vst.msk [vmem:[%s8] sm:$0x3] %vm7369, %v7367
  %v7371 = vsel %vm1068, %v7364, -inf
  %7372 = vmax.xlane.f32.xlu0 %v7371
  %v7373 = vpop.xlane.xlu0 %7372
  %vm7374 = vcmp.eq.f32.partialorder %v7364, %v7373
  %v7375 = vsel %vm7374, %v268, 16
  %v7376 = vsel %vm1068, %v7375, 2147483647
  %v7377 = vand.u32 %v7376, 65535
  %v7378 = vshra.s32 %v7376, 16
  %v7379 = vcvt.s32.f32 %v7377
  %v7380 = vcvt.s32.f32 %v7378
  %7381 = vmin.xlane.f32.xlu0 %v7380
  %v7382 = vpop.xlane.xlu0 %7381
  %vm7383 = vcmp.eq.f32.partialorder %v7380, %v7382
  %v7384 = vsel %vm7383, %v7379, inf
  %7385 = vmin.xlane.f32.xlu0 %v7384
  %v7386 = vpop.xlane.xlu0 %7385
  %v7387 = vcvt.f32.s32 %v7386
  %v7388 = vcvt.f32.s32 %v7382
  %v7389 = vshll.u32 %v7388, 16
  %v7390 = vadd.s32 %v7389, %v7387
  %vm7391 = vcmp.eq.s32.totalorder %v268, %v7390
  %v7392 = vsel %vm7391, 1, 0
  %v7393 = vcvt.s32.f32 %v7392
  %v7394 = vld [vmem:[%s2] sm:$0xff]
  %v7395 = vld [vmem:[%s2 + $0x8] sm:$0xff]
  %v7397 = vsel %vm1107, %v7393, 0
  %7399 = vmatprep.subr.mxu0 0.0
  %7400 = vmatpush1.msra.mxu0 0.0
  %7401 = vmatprep.subr.mxu0 0.0
  %7402 = vmatpush1.msra.mxu0 0.0
  %7403 = vmatprep.subr.mxu0 0.0
  %7404 = vmatpush1.msra.mxu0 0.0
  %7405 = vmatprep.subr.mxu0 0.0
  %7406 = vmatpush1.msra.mxu0 0.0
  %7407 = vmatprep.subr.mxu0 0.0
  %7408 = vmatpush1.msra.mxu0 0.0
  %7409 = vmatprep.subr.mxu0 0.0
  %7410 = vmatpush1.msra.mxu0 0.0
  %7411 = vmatprep.subr.mxu0 0.0
  %7412 = vmatpush1.msra.mxu0 0.0
  %7413 = vmatprep.subr.mxu0 0.0
  %7414 = vmatpush1.msra.mxu0 0.0
  %7415 = vmatprep.subr.mxu0 0.0
  %7416 = vmatpush1.msra.mxu0 0.0
  %7417 = vmatprep.subr.mxu0 0.0
  %7418 = vmatpush1.msra.mxu0 0.0
  %7419 = vmatprep.subr.mxu0 0.0
  %7420 = vmatpush1.msra.mxu0 0.0
  %7421 = vmatprep.subr.mxu0 0.0
  %7422 = vmatpush1.msra.mxu0 0.0
  %7423 = vmatprep.subr.mxu0 0.0
  %7424 = vmatpush1.msra.mxu0 0.0
  %7425 = vmatprep.subr.mxu0 0.0
  %7426 = vmatpush1.msra.mxu0 0.0
  %7427 = vmatprep.subr.mxu0 0.0
  %7428 = vmatpush1.msra.mxu0 %v7395
  %7429 = vmatprep.subr.mxu0 0.0
  %7430 = vmatpush1.msra.mxu0 %v7394
  %7431 = vmatprep.subr.mxu0 0.0
  %7432 = vmatpush2.msra.mxu0 0.0
  %7433 = vmatprep.subr.mxu0 0.0
  %7434 = vmatpush2.msra.mxu0 0.0
  %7435 = vmatprep.subr.mxu0 0.0
  %7436 = vmatpush2.msra.mxu0 0.0
  %7437 = vmatprep.subr.mxu0 0.0
  %7438 = vmatpush2.msra.mxu0 0.0
  %7439 = vmatprep.subr.mxu0 0.0
  %7440 = vmatpush2.msra.mxu0 0.0
  %7441 = vmatprep.subr.mxu0 0.0
  %7442 = vmatpush2.msra.mxu0 0.0
  %7443 = vmatprep.subr.mxu0 0.0
  %7444 = vmatpush2.msra.mxu0 0.0
  %7445 = vmatprep.subr.mxu0 0.0
  %7446 = vmatpush2.msra.mxu0 0.0
  %7447 = vmatprep.subr.mxu0 0.0
  %7448 = vmatpush2.msra.mxu0 0.0
  %7449 = vmatprep.subr.mxu0 0.0
  %7450 = vmatpush2.msra.mxu0 0.0
  %7451 = vmatprep.subr.mxu0 0.0
  %7452 = vmatpush2.msra.mxu0 0.0
  %7453 = vmatprep.subr.mxu0 0.0
  %7454 = vmatpush2.msra.mxu0 0.0
  %7455 = vmatprep.subr.mxu0 0.0
  %7456 = vmatpush2.msra.mxu0 0.0
  %7457 = vmatprep.subr.mxu0 0.0
  %7458 = vmatpush2.msra.mxu0 0.0
  %7459 = vmatprep.subr.mxu0 0.0
  %7460 = vmatpush2.msra.mxu0 0.0
  %7461 = vmatprep.subr.mxu0 0.0
  %7462 = vmatpush2.msra.mxu0 0.0
  %7463 = vmatprep.mubr.f32.mxu0 0.0
  %7464 = vmatmul.mubr.f32.gmra.mxu0 %v7397
  %v7465 = vpop.f32.mrf.mxu0
  %v7466 = vadd.f32 0.0, %v7465
  %v7467 = vpop.f32.mrf.mxu0
  %7468 = vdwg.mxu0
  %7469 = vst.msk [vmem:[#allocation4] sm:$0x3] %vm33, %v7466
  %v7470 = vld [vmem:[%s0] sm:$0xff]
  %v7471 = vld [vmem:[%s0 + $0x8] sm:$0xff]
  %v7472 = vld [vmem:[#allocation4] sm:$0x3]
  %v7473 = vld [vmem:[#allocation2] sm:$0x3]
  %v7474 = vld [vmem:[%s3 + $0x20] sm:$0xff]
  %v7475 = vld [vmem:[%s3 + $0x28] sm:$0xff]
  %v7476 = vld [vmem:[%s3 + $0x30] sm:$0xff]
  %v7477 = vld [vmem:[%s3 + $0x38] sm:$0xff]
  %v7478 = vld [vmem:[%s3 + $0x41] sm:$0x1]
  %7480 = vrot.lane.b32.xlu0 %v7473, 64
  %v7481 = vpop.permute.xlu0 %7480
  %v7482 = vsel %vm46, %v7481, 0
  %7484 = vmatprep.subr.mxu0 0.0
  %7485 = vmatpush1.msra.mxu0 0.0
  %7486 = vmatprep.subr.mxu0 0.0
  %7487 = vmatpush1.msra.mxu0 0.0
  %7488 = vmatprep.subr.mxu0 0.0
  %7489 = vmatpush1.msra.mxu0 0.0
  %7490 = vmatprep.subr.mxu0 0.0
  %7491 = vmatpush1.msra.mxu0 0.0
  %7492 = vmatprep.subr.mxu0 0.0
  %7493 = vmatpush1.msra.mxu0 0.0
  %7494 = vmatprep.subr.mxu0 0.0
  %7495 = vmatpush1.msra.mxu0 0.0
  %7496 = vmatprep.subr.mxu0 0.0
  %7497 = vmatpush1.msra.mxu0 0.0
  %7498 = vmatprep.subr.mxu0 0.0
  %7499 = vmatpush1.msra.mxu0 0.0
  %7500 = vmatprep.subr.mxu0 0.0
  %7501 = vmatpush1.msra.mxu0 0.0
  %7502 = vmatprep.subr.mxu0 0.0
  %7503 = vmatpush1.msra.mxu0 0.0
  %7504 = vmatprep.subr.mxu0 0.0
  %7505 = vmatpush1.msra.mxu0 0.0
  %7506 = vmatprep.subr.mxu0 0.0
  %7507 = vmatpush1.msra.mxu0 0.0
  %7508 = vmatprep.subr.mxu0 0.0
  %7509 = vmatpush1.msra.mxu0 %v7477
  %7510 = vmatprep.subr.mxu0 0.0
  %7511 = vmatpush1.msra.mxu0 %v7476
  %7512 = vmatprep.subr.mxu0 0.0
  %7513 = vmatpush1.msra.mxu0 %v7475
  %7514 = vmatprep.subr.mxu0 0.0
  %7515 = vmatpush1.msra.mxu0 %v7474
  %7516 = vmatprep.subr.mxu0 0.0
  %7517 = vmatpush2.msra.mxu0 0.0
  %7518 = vmatprep.subr.mxu0 0.0
  %7519 = vmatpush2.msra.mxu0 0.0
  %7520 = vmatprep.subr.mxu0 0.0
  %7521 = vmatpush2.msra.mxu0 0.0
  %7522 = vmatprep.subr.mxu0 0.0
  %7523 = vmatpush2.msra.mxu0 0.0
  %7524 = vmatprep.subr.mxu0 0.0
  %7525 = vmatpush2.msra.mxu0 0.0
  %7526 = vmatprep.subr.mxu0 0.0
  %7527 = vmatpush2.msra.mxu0 0.0
  %7528 = vmatprep.subr.mxu0 0.0
  %7529 = vmatpush2.msra.mxu0 0.0
  %7530 = vmatprep.subr.mxu0 0.0
  %7531 = vmatpush2.msra.mxu0 0.0
  %7532 = vmatprep.subr.mxu0 0.0
  %7533 = vmatpush2.msra.mxu0 0.0
  %7534 = vmatprep.subr.mxu0 0.0
  %7535 = vmatpush2.msra.mxu0 0.0
  %7536 = vmatprep.subr.mxu0 0.0
  %7537 = vmatpush2.msra.mxu0 0.0
  %7538 = vmatprep.subr.mxu0 0.0
  %7539 = vmatpush2.msra.mxu0 0.0
  %7540 = vmatprep.subr.mxu0 0.0
  %7541 = vmatpush2.msra.mxu0 0.0
  %7542 = vmatprep.subr.mxu0 0.0
  %7543 = vmatpush2.msra.mxu0 0.0
  %7544 = vmatprep.subr.mxu0 0.0
  %7545 = vmatpush2.msra.mxu0 0.0
  %7546 = vmatprep.subr.mxu0 0.0
  %7547 = vmatpush2.msra.mxu0 0.0
  %7548 = vmatprep.mubr.f32.mxu0 0.0
  %7549 = vmatmul.mubr.f32.gmra.mxu0 %v7482
  %v7550 = vpop.f32.mrf.mxu0
  %v7551 = vadd.f32 0.0, %v7550
  %v7552 = vpop.f32.mrf.mxu0
  %7553 = vdwg.mxu0
  %v7554 = vld [vmem:[#allocation5] sm:$0xff]
  %v7555 = vld [vmem:[#allocation5 + $0x8] sm:$0xff]
  %v7558 = vunpack.c.l.s4 1966171168
  %v7559 = vunpack.c.0.s8 %v7558
  %v7560 = vlaneseq
  %v7561 = vshrl.u32 %v7560, 7
  %v7562 = vsub.s32 %v7559, %v7561
  %v7563 = vrot.slane %v7551, %v7562
  %v7564 = vcombine.high %v7563, %v7563
  %v7566 = vunpack.c.l.s4 1966171168
  %v7567 = vunpack.c.0.s8 %v7566
  %v7568 = vlaneseq
  %v7569 = vshrl.u32 %v7568, 7
  %v7570 = vsub.s32 %v7567, %v7569
  %v7571 = vrot.slane %v7563, %v7570
  %v7573 = vunpack.c.l.s4 1966171168
  %v7574 = vunpack.c.0.s8 %v7573
  %v7575 = vlaneseq
  %v7576 = vshrl.u32 %v7575, 7
  %v7577 = vsub.s32 %v7574, %v7576
  %v7578 = vrot.slane %v7564, %v7577
  %v7579 = vlaneseq
  %v7580 = vshrl.u32 %v7579, 7
  %v7581 = vsub.s32 0, %v7580
  %v7582 = vrot.slane %v7571, %v7581
  %v7583 = vlaneseq
  %v7584 = vshrl.u32 %v7583, 7
  %v7585 = vsub.s32 0, %v7584
  %v7586 = vrot.slane %v7578, %v7585
  %v7589 = vadd.f32 %v7554, %v7582
  %v7590 = vadd.f32 %v7555, %v7586
  %v7591 = vmax.f32 %v7589, 0.0
  %v7592 = vmax.f32 %v7590, 0.0
  %v7593 = vlaneseq
  %v7594 = vshrl.u32 %v7593, 7
  %v7595 = vsub.s32 0, %v7594
  %v7596 = vrot.slane %v7478, %v7595
  %v7597 = vmul.f32 %v7591, %v7596
  %v7598 = vmul.f32 %v7592, %v7596
  %v7599 = vsel %vm46, %v7597, 0.0
  %7600 = vadd.xlane.f32.xlu0 %v7599
  %v7601 = vpop.xlane.xlu0 %7600
  %v7602 = vsel %vm46, %v7598, 0.0
  %7603 = vadd.xlane.f32.xlu0 %v7602
  %v7604 = vpop.xlane.xlu0 %7603
  %v7607 = vlaneseq
  %v7608 = vshrl.u32 %v7607, 7
  %v7609 = vsub.s32 %v268, %v7608
  %v7610 = vrot.slane %v7601, %v7609
  %v7611 = vlaneseq
  %v7612 = vshrl.u32 %v7611, 7
  %v7613 = vsub.s32 %v268, %v7612
  %v7614 = vrot.slane %v7604, %v7613
  %v7615 = vsel %vm277, %v7614, %v7610
  %v7617 = vsel %vm280, %v7615, -inf
  %7618 = vmax.xlane.f32.xlu0 %v7617
  %v7619 = vpop.xlane.xlu0 %7618
  %v7621 = vlaneseq
  %v7622 = vshrl.u32 %v7621, 7
  %v7623 = vsub.s32 0, %v7622
  %v7624 = vrot.slane %v7619, %v7623
  %v7625 = vlaneseq
  %v7626 = vshrl.u32 %v7625, 7
  %v7627 = vsub.s32 1, %v7626
  %v7628 = vrot.slane %v7619, %v7627
  %v7631 = vsub.f32 %v7601, %v7624
  %v7632 = vsub.f32 %v7604, %v7628
  %v7633 = vmul.f32 %v7631, 1.442695
  %v7634 = vpow.pop %v7633
  %v7635 = vmul.f32 %v7632, 1.442695
  %v7636 = vpow.pop %v7635
  %7639 = vset.pattern.permute.xlu0 0
  %7640 = vperm.xlu0 %7639, %v7634
  %v7641 = vpop.permute.xlu0 %7640
  %7642 = vset.pattern.permute.xlu0 0
  %7643 = vperm.xlu0 %7642, %v7636
  %v7644 = vpop.permute.xlu0 %7643
  %v7645 = vlaneseq
  %v7646 = vshrl.u32 %v7645, 7
  %v7647 = vsub.s32 %v268, %v7646
  %v7648 = vrot.slane %v7641, %v7647
  %v7649 = vlaneseq
  %v7650 = vshrl.u32 %v7649, 7
  %v7651 = vsub.s32 %v268, %v7650
  %v7652 = vrot.slane %v7644, %v7651
  %v7653 = vsel %vm277, %v7652, %v7648
  %v7655 = vsel %vm280, %v7653, 0.0
  %7656 = vadd.xlane.f32.xlu0 %v7655
  %v7657 = vpop.xlane.xlu0 %7656
  %v7658 = vlog2.pop %v7657
  %v7659 = vmul.f32 %v7658, 0.6931472
  %v7661 = vlaneseq
  %v7662 = vshrl.u32 %v7661, 7
  %v7663 = vsub.s32 0, %v7662
  %v7664 = vrot.slane %v7659, %v7663
  %v7665 = vlaneseq
  %v7666 = vshrl.u32 %v7665, 7
  %v7667 = vsub.s32 1, %v7666
  %v7668 = vrot.slane %v7659, %v7667
  %v7671 = vsub.f32 %v7631, %v7664
  %v7672 = vsub.f32 %v7632, %v7668
  %7674 = vset.pattern.permute.xlu0 0
  %7675 = vperm.xlu0 %7674, %v7671
  %v7676 = vpop.permute.xlu0 %7675
  %7679 = vset.pattern.permute.xlu0 0
  %7680 = vperm.xlu0 %7679, %v7672
  %v7681 = vpop.permute.xlu0 %7680
  %v7683 = vmul.f32 %v7676, %v7470
  %v7684 = vmul.f32 %v7681, %v7471
  %v7685 = vsel %vm46, %v7683, 0.0
  %v7686 = vrot.slane %v7685, 4
  %v7687 = vadd.f32 %v7685, %v7686
  %v7688 = vrot.slane %v7687, 2
  %v7689 = vadd.f32 %v7687, %v7688
  %v7690 = vrot.slane %v7689, 1
  %v7691 = vadd.f32 %v7689, %v7690
  %v7692 = vsel %vm46, %v7684, 0.0
  %v7693 = vrot.slane %v7692, 4
  %v7694 = vadd.f32 %v7692, %v7693
  %v7695 = vrot.slane %v7694, 2
  %v7696 = vadd.f32 %v7694, %v7695
  %v7697 = vrot.slane %v7696, 1
  %v7698 = vadd.f32 %v7696, %v7697
  %v7699 = vld [vmem:[#allocation2] sm:$0x3]
  %v7700 = vld [vmem:[%s5] sm:$0xff]
  %v7701 = vld [vmem:[%s5 + $0x8] sm:$0xff]
  %v7702 = vld [vmem:[%s5 + $0x10] sm:$0xff]
  %v7703 = vld [vmem:[%s5 + $0x18] sm:$0xff]
  %v7704 = vld [vmem:[%s5 + $0x20] sm:$0xff]
  %v7705 = vld [vmem:[%s5 + $0x28] sm:$0xff]
  %v7706 = vld [vmem:[%s5 + $0x30] sm:$0xff]
  %v7707 = vld [vmem:[%s5 + $0x38] sm:$0xff]
  %v7708 = vld [vmem:[%s5 + $0x40] sm:$0xff]
  %v7709 = vld [vmem:[%s5 + $0x48] sm:$0xff]
  %v7710 = vld [vmem:[%s5 + $0x50] sm:$0xff]
  %v7711 = vld [vmem:[%s5 + $0x58] sm:$0xff]
  %v7712 = vld [vmem:[%s5 + $0x60] sm:$0xff]
  %v7713 = vld [vmem:[%s5 + $0x68] sm:$0xff]
  %v7714 = vld [vmem:[%s5 + $0x70] sm:$0xff]
  %v7715 = vld [vmem:[%s5 + $0x78] sm:$0xff]
  %v7716 = vld [vmem:[%s5 + $0x80] sm:$0xff]
  %v7717 = vld [vmem:[%s5 + $0x88] sm:$0xff]
  %v7718 = vld [vmem:[%s5 + $0x90] sm:$0xff]
  %v7719 = vld [vmem:[%s5 + $0x98] sm:$0xff]
  %v7720 = vld [vmem:[%s5 + $0xa0] sm:$0xff]
  %v7721 = vld [vmem:[%s5 + $0xa8] sm:$0xff]
  %v7722 = vld [vmem:[%s5 + $0xb0] sm:$0xff]
  %v7723 = vld [vmem:[%s5 + $0xb8] sm:$0xff]
  %v7724 = vld [vmem:[%s5 + $0xc0] sm:$0xff]
  %v7725 = vld [vmem:[%s5 + $0xc8] sm:$0xff]
  %v7726 = vld [vmem:[%s5 + $0xd0] sm:$0xff]
  %v7727 = vld [vmem:[%s5 + $0xd8] sm:$0xff]
  %v7728 = vld [vmem:[%s5 + $0xe0] sm:$0xff]
  %v7729 = vld [vmem:[%s5 + $0xe8] sm:$0xff]
  %v7730 = vld [vmem:[%s5 + $0xf0] sm:$0xff]
  %v7731 = vld [vmem:[%s5 + $0xf8] sm:$0xff]
  %v7732 = vld [vmem:[%s5 + $0x100] sm:$0xff]
  %v7733 = vld [vmem:[%s5 + $0x108] sm:$0xff]
  %v7734 = vld [vmem:[%s5 + $0x110] sm:$0xff]
  %v7735 = vld [vmem:[%s5 + $0x118] sm:$0xff]
  %v7737 = vsel %vm400, %v7699, 0
  %7739 = vmatprep.subr.mxu0 0.0
  %7740 = vmatpush1.msra.mxu0 0.0
  %7741 = vmatprep.subr.mxu0 0.0
  %7742 = vmatpush1.msra.mxu0 0.0
  %7743 = vmatprep.subr.mxu0 0.0
  %7744 = vmatpush1.msra.mxu0 0.0
  %7745 = vmatprep.subr.mxu0 0.0
  %7746 = vmatpush1.msra.mxu0 0.0
  %7747 = vmatprep.subr.mxu0 %v7734
  %7748 = vmatpush1.msra.mxu0 %v7733
  %7749 = vmatprep.subr.mxu0 %v7731
  %7750 = vmatpush1.msra.mxu0 %v7730
  %7751 = vmatprep.subr.mxu0 %v7728
  %7752 = vmatpush1.msra.mxu0 %v7727
  %7753 = vmatprep.subr.mxu0 %v7725
  %7754 = vmatpush1.msra.mxu0 %v7724
  %7755 = vmatprep.subr.mxu0 %v7722
  %7756 = vmatpush1.msra.mxu0 %v7721
  %7757 = vmatprep.subr.mxu0 %v7719
  %7758 = vmatpush1.msra.mxu0 %v7718
  %7759 = vmatprep.subr.mxu0 %v7716
  %7760 = vmatpush1.msra.mxu0 %v7715
  %7761 = vmatprep.subr.mxu0 %v7713
  %7762 = vmatpush1.msra.mxu0 %v7712
  %7763 = vmatprep.subr.mxu0 %v7710
  %7764 = vmatpush1.msra.mxu0 %v7709
  %7765 = vmatprep.subr.mxu0 %v7707
  %7766 = vmatpush1.msra.mxu0 %v7706
  %7767 = vmatprep.subr.mxu0 %v7704
  %7768 = vmatpush1.msra.mxu0 %v7703
  %7769 = vmatprep.subr.mxu0 %v7701
  %7770 = vmatpush1.msra.mxu0 %v7700
  %7771 = vmatprep.subr.mxu0 0.0
  %7772 = vmatpush2.msra.mxu0 0.0
  %7773 = vmatprep.subr.mxu0 0.0
  %7774 = vmatpush2.msra.mxu0 0.0
  %7775 = vmatprep.subr.mxu0 0.0
  %7776 = vmatpush2.msra.mxu0 0.0
  %7777 = vmatprep.subr.mxu0 0.0
  %7778 = vmatpush2.msra.mxu0 0.0
  %7779 = vmatprep.subr.mxu0 0.0
  %7780 = vmatpush2.msra.mxu0 0.0
  %7781 = vmatprep.subr.mxu0 0.0
  %7782 = vmatpush2.msra.mxu0 0.0
  %7783 = vmatprep.subr.mxu0 0.0
  %7784 = vmatpush2.msra.mxu0 0.0
  %7785 = vmatprep.subr.mxu0 0.0
  %7786 = vmatpush2.msra.mxu0 0.0
  %7787 = vmatprep.subr.mxu0 0.0
  %7788 = vmatpush2.msra.mxu0 0.0
  %7789 = vmatprep.subr.mxu0 0.0
  %7790 = vmatpush2.msra.mxu0 0.0
  %7791 = vmatprep.subr.mxu0 0.0
  %7792 = vmatpush2.msra.mxu0 0.0
  %7793 = vmatprep.subr.mxu0 0.0
  %7794 = vmatpush2.msra.mxu0 0.0
  %7795 = vmatprep.subr.mxu0 0.0
  %7796 = vmatpush2.msra.mxu0 0.0
  %7797 = vmatprep.subr.mxu0 0.0
  %7798 = vmatpush2.msra.mxu0 0.0
  %7799 = vmatprep.subr.mxu0 0.0
  %7800 = vmatpush2.msra.mxu0 0.0
  %7801 = vmatprep.subr.mxu0 0.0
  %7802 = vmatpush2.msra.mxu0 0.0
  %7803 = vmatprep.mubr.f32.mxu0 0.0
  %7804 = vmatmul.mubr.f32.gmra.mxu0 %v7737
  %v7805 = vpop.f32.mrf.mxu0
  %v7806 = vadd.f32 0.0, %v7805
  %v7807 = vpop.f32.mrf.mxu0
  %v7808 = vadd.f32 0.0, %v7807
  %7809 = vdwg.mxu0
  %7810 = vmatprep.subr.mxu0 0.0
  %7811 = vmatpush1.msra.mxu0 0.0
  %7812 = vmatprep.subr.mxu0 0.0
  %7813 = vmatpush1.msra.mxu0 0.0
  %7814 = vmatprep.subr.mxu0 0.0
  %7815 = vmatpush1.msra.mxu0 0.0
  %7816 = vmatprep.subr.mxu0 0.0
  %7817 = vmatpush1.msra.mxu0 0.0
  %7818 = vmatprep.subr.mxu0 0.0
  %7819 = vmatpush1.msra.mxu0 %v7735
  %7820 = vmatprep.subr.mxu0 0.0
  %7821 = vmatpush1.msra.mxu0 %v7732
  %7822 = vmatprep.subr.mxu0 0.0
  %7823 = vmatpush1.msra.mxu0 %v7729
  %7824 = vmatprep.subr.mxu0 0.0
  %7825 = vmatpush1.msra.mxu0 %v7726
  %7826 = vmatprep.subr.mxu0 0.0
  %7827 = vmatpush1.msra.mxu0 %v7723
  %7828 = vmatprep.subr.mxu0 0.0
  %7829 = vmatpush1.msra.mxu0 %v7720
  %7830 = vmatprep.subr.mxu0 0.0
  %7831 = vmatpush1.msra.mxu0 %v7717
  %7832 = vmatprep.subr.mxu0 0.0
  %7833 = vmatpush1.msra.mxu0 %v7714
  %7834 = vmatprep.subr.mxu0 0.0
  %7835 = vmatpush1.msra.mxu0 %v7711
  %7836 = vmatprep.subr.mxu0 0.0
  %7837 = vmatpush1.msra.mxu0 %v7708
  %7838 = vmatprep.subr.mxu0 0.0
  %7839 = vmatpush1.msra.mxu0 %v7705
  %7840 = vmatprep.subr.mxu0 0.0
  %7841 = vmatpush1.msra.mxu0 %v7702
  %7842 = vmatprep.subr.mxu0 0.0
  %7843 = vmatpush2.msra.mxu0 0.0
  %7844 = vmatprep.subr.mxu0 0.0
  %7845 = vmatpush2.msra.mxu0 0.0
  %7846 = vmatprep.subr.mxu0 0.0
  %7847 = vmatpush2.msra.mxu0 0.0
  %7848 = vmatprep.subr.mxu0 0.0
  %7849 = vmatpush2.msra.mxu0 0.0
  %7850 = vmatprep.subr.mxu0 0.0
  %7851 = vmatpush2.msra.mxu0 0.0
  %7852 = vmatprep.subr.mxu0 0.0
  %7853 = vmatpush2.msra.mxu0 0.0
  %7854 = vmatprep.subr.mxu0 0.0
  %7855 = vmatpush2.msra.mxu0 0.0
  %7856 = vmatprep.subr.mxu0 0.0
  %7857 = vmatpush2.msra.mxu0 0.0
  %7858 = vmatprep.subr.mxu0 0.0
  %7859 = vmatpush2.msra.mxu0 0.0
  %7860 = vmatprep.subr.mxu0 0.0
  %7861 = vmatpush2.msra.mxu0 0.0
  %7862 = vmatprep.subr.mxu0 0.0
  %7863 = vmatpush2.msra.mxu0 0.0
  %7864 = vmatprep.subr.mxu0 0.0
  %7865 = vmatpush2.msra.mxu0 0.0
  %7866 = vmatprep.subr.mxu0 0.0
  %7867 = vmatpush2.msra.mxu0 0.0
  %7868 = vmatprep.subr.mxu0 0.0
  %7869 = vmatpush2.msra.mxu0 0.0
  %7870 = vmatprep.subr.mxu0 0.0
  %7871 = vmatpush2.msra.mxu0 0.0
  %7872 = vmatprep.subr.mxu0 0.0
  %7873 = vmatpush2.msra.mxu0 0.0
  %7874 = vmatprep.mubr.f32.mxu0 0.0
  %7875 = vmatmul.mubr.f32.gmra.mxu0 %v7737
  %v7876 = vpop.f32.mrf.mxu0
  %v7877 = vadd.f32 0.0, %v7876
  %v7878 = vpop.f32.mrf.mxu0
  %7879 = vdwg.mxu0
  %v7880 = vld [vmem:[%s4] sm:$0xff]
  %v7881 = vld [vmem:[%s4 + $0x8] sm:$0xff]
  %v7882 = vld [vmem:[%s4 + $0x10] sm:$0xff]
  %v7883 = vld [vmem:[%s4 + $0x18] sm:$0xff]
  %v7884 = vld [vmem:[%s4 + $0x20] sm:$0xff]
  %v7885 = vld [vmem:[%s4 + $0x28] sm:$0xff]
  %v7886 = vld [vmem:[%s4 + $0x30] sm:$0xff]
  %v7887 = vld [vmem:[%s4 + $0x38] sm:$0xff]
  %v7890 = vsel %vm277, %v7698, %v7691
  %v7891 = vsel %vm46, %v7890, 0
  %7893 = vmatprep.subr.mxu0 0.0
  %7894 = vmatpush1.msra.mxu0 0.0
  %7895 = vmatprep.subr.mxu0 0.0
  %7896 = vmatpush1.msra.mxu0 0.0
  %7897 = vmatprep.subr.mxu0 0.0
  %7898 = vmatpush1.msra.mxu0 0.0
  %7899 = vmatprep.subr.mxu0 0.0
  %7900 = vmatpush1.msra.mxu0 0.0
  %7901 = vmatprep.subr.mxu0 0.0
  %7902 = vmatpush1.msra.mxu0 0.0
  %7903 = vmatprep.subr.mxu0 0.0
  %7904 = vmatpush1.msra.mxu0 0.0
  %7905 = vmatprep.subr.mxu0 0.0
  %7906 = vmatpush1.msra.mxu0 0.0
  %7907 = vmatprep.subr.mxu0 0.0
  %7908 = vmatpush1.msra.mxu0 0.0
  %7909 = vmatprep.subr.mxu0 0.0
  %7910 = vmatpush1.msra.mxu0 0.0
  %7911 = vmatprep.subr.mxu0 0.0
  %7912 = vmatpush1.msra.mxu0 0.0
  %7913 = vmatprep.subr.mxu0 0.0
  %7914 = vmatpush1.msra.mxu0 0.0
  %7915 = vmatprep.subr.mxu0 0.0
  %7916 = vmatpush1.msra.mxu0 0.0
  %7917 = vmatprep.subr.mxu0 0.0
  %7918 = vmatpush1.msra.mxu0 %v7887
  %7919 = vmatprep.subr.mxu0 0.0
  %7920 = vmatpush1.msra.mxu0 %v7886
  %7921 = vmatprep.subr.mxu0 0.0
  %7922 = vmatpush1.msra.mxu0 %v7885
  %7923 = vmatprep.subr.mxu0 0.0
  %7924 = vmatpush1.msra.mxu0 %v7884
  %7925 = vmatprep.subr.mxu0 0.0
  %7926 = vmatpush2.msra.mxu0 0.0
  %7927 = vmatprep.subr.mxu0 0.0
  %7928 = vmatpush2.msra.mxu0 0.0
  %7929 = vmatprep.subr.mxu0 0.0
  %7930 = vmatpush2.msra.mxu0 0.0
  %7931 = vmatprep.subr.mxu0 0.0
  %7932 = vmatpush2.msra.mxu0 0.0
  %7933 = vmatprep.subr.mxu0 0.0
  %7934 = vmatpush2.msra.mxu0 0.0
  %7935 = vmatprep.subr.mxu0 0.0
  %7936 = vmatpush2.msra.mxu0 0.0
  %7937 = vmatprep.subr.mxu0 0.0
  %7938 = vmatpush2.msra.mxu0 0.0
  %7939 = vmatprep.subr.mxu0 0.0
  %7940 = vmatpush2.msra.mxu0 0.0
  %7941 = vmatprep.subr.mxu0 0.0
  %7942 = vmatpush2.msra.mxu0 0.0
  %7943 = vmatprep.subr.mxu0 0.0
  %7944 = vmatpush2.msra.mxu0 0.0
  %7945 = vmatprep.subr.mxu0 0.0
  %7946 = vmatpush2.msra.mxu0 0.0
  %7947 = vmatprep.subr.mxu0 0.0
  %7948 = vmatpush2.msra.mxu0 0.0
  %7949 = vmatprep.subr.mxu0 0.0
  %7950 = vmatpush2.msra.mxu0 0.0
  %7951 = vmatprep.subr.mxu0 0.0
  %7952 = vmatpush2.msra.mxu0 0.0
  %7953 = vmatprep.subr.mxu0 0.0
  %7954 = vmatpush2.msra.mxu0 0.0
  %7955 = vmatprep.subr.mxu0 0.0
  %7956 = vmatpush2.msra.mxu0 0.0
  %7957 = vmatprep.mubr.f32.mxu0 0.0
  %7958 = vmatmul.mubr.f32.gmra.mxu0 %v7891
  %v7959 = vpop.f32.mrf.mxu0
  %v7960 = vadd.f32 0.0, %v7959
  %v7961 = vpop.f32.mrf.mxu0
  %7962 = vdwg.mxu0
  %v7964 = vsel %vm46, %v7472, 0
  %7966 = vmatprep.subr.mxu0 0.0
  %7967 = vmatpush1.msra.mxu0 0.0
  %7968 = vmatprep.subr.mxu0 0.0
  %7969 = vmatpush1.msra.mxu0 0.0
  %7970 = vmatprep.subr.mxu0 0.0
  %7971 = vmatpush1.msra.mxu0 0.0
  %7972 = vmatprep.subr.mxu0 0.0
  %7973 = vmatpush1.msra.mxu0 0.0
  %7974 = vmatprep.subr.mxu0 0.0
  %7975 = vmatpush1.msra.mxu0 0.0
  %7976 = vmatprep.subr.mxu0 0.0
  %7977 = vmatpush1.msra.mxu0 0.0
  %7978 = vmatprep.subr.mxu0 0.0
  %7979 = vmatpush1.msra.mxu0 0.0
  %7980 = vmatprep.subr.mxu0 0.0
  %7981 = vmatpush1.msra.mxu0 0.0
  %7982 = vmatprep.subr.mxu0 0.0
  %7983 = vmatpush1.msra.mxu0 0.0
  %7984 = vmatprep.subr.mxu0 0.0
  %7985 = vmatpush1.msra.mxu0 0.0
  %7986 = vmatprep.subr.mxu0 0.0
  %7987 = vmatpush1.msra.mxu0 0.0
  %7988 = vmatprep.subr.mxu0 0.0
  %7989 = vmatpush1.msra.mxu0 0.0
  %7990 = vmatprep.subr.mxu0 0.0
  %7991 = vmatpush1.msra.mxu0 %v7883
  %7992 = vmatprep.subr.mxu0 0.0
  %7993 = vmatpush1.msra.mxu0 %v7882
  %7994 = vmatprep.subr.mxu0 0.0
  %7995 = vmatpush1.msra.mxu0 %v7881
  %7996 = vmatprep.subr.mxu0 0.0
  %7997 = vmatpush1.msra.mxu0 %v7880
  %7998 = vmatprep.subr.mxu0 0.0
  %7999 = vmatpush2.msra.mxu0 0.0
  %8000 = vmatprep.subr.mxu0 0.0
  %8001 = vmatpush2.msra.mxu0 0.0
  %8002 = vmatprep.subr.mxu0 0.0
  %8003 = vmatpush2.msra.mxu0 0.0
  %8004 = vmatprep.subr.mxu0 0.0
  %8005 = vmatpush2.msra.mxu0 0.0
  %8006 = vmatprep.subr.mxu0 0.0
  %8007 = vmatpush2.msra.mxu0 0.0
  %8008 = vmatprep.subr.mxu0 0.0
  %8009 = vmatpush2.msra.mxu0 0.0
  %8010 = vmatprep.subr.mxu0 0.0
  %8011 = vmatpush2.msra.mxu0 0.0
  %8012 = vmatprep.subr.mxu0 0.0
  %8013 = vmatpush2.msra.mxu0 0.0
  %8014 = vmatprep.subr.mxu0 0.0
  %8015 = vmatpush2.msra.mxu0 0.0
  %8016 = vmatprep.subr.mxu0 0.0
  %8017 = vmatpush2.msra.mxu0 0.0
  %8018 = vmatprep.subr.mxu0 0.0
  %8019 = vmatpush2.msra.mxu0 0.0
  %8020 = vmatprep.subr.mxu0 0.0
  %8021 = vmatpush2.msra.mxu0 0.0
  %8022 = vmatprep.subr.mxu0 0.0
  %8023 = vmatpush2.msra.mxu0 0.0
  %8024 = vmatprep.subr.mxu0 0.0
  %8025 = vmatpush2.msra.mxu0 0.0
  %8026 = vmatprep.subr.mxu0 0.0
  %8027 = vmatpush2.msra.mxu0 0.0
  %8028 = vmatprep.subr.mxu0 0.0
  %8029 = vmatpush2.msra.mxu0 0.0
  %8030 = vmatprep.mubr.f32.mxu0 0.0
  %8031 = vmatmul.mubr.f32.gmra.mxu0 %v7964
  %v8032 = vpop.f32.mrf.mxu0
  %v8033 = vadd.f32 %v7960, %v8032
  %v8034 = vpop.f32.mrf.mxu0
  %8035 = vdwg.mxu0
  %v8036 = vadd.f32 %v8033, %v7806
  %v8037 = vld [vmem:[%s6] sm:$0x1]
  %v8038 = vlaneseq
  %v8039 = vshrl.u32 %v8038, 7
  %v8040 = vsub.s32 0, %v8039
  %v8041 = vrot.slane %v8037, %v8040
  %v8042 = vadd.f32 %v8036, %v8041
  %v8043 = vxor.u32 %v8042, 2147483648
  %v8044 = vmul.f32 %v8043, 1.442695
  %v8045 = vpow.pop %v8044
  %v8046 = vadd.f32 %v8045, 1.0
  %v8047 = vrcp.pop %v8046
  %v8048 = vmul.f32 1.0, %v8047
  %v8049 = vtanh.pop %v8042
  %v8050 = vld [vmem:[#allocation3] sm:$0x3]
  %8052 = vrot.lane.b32.xlu0 %v8050, 32
  %v8053 = vpop.permute.xlu0 %8052
  %v8055 = vmul.f32 %v8048, %v8053
  %8057 = vrot.lane.b32.xlu0 %v8049, 64
  %v8058 = vpop.permute.xlu0 %8057
  %v8060 = vmul.f32 %v8048, %v8058
  %8062 = vrot.lane.b32.xlu0 %v8060, 32
  %v8063 = vpop.permute.xlu0 %8062
  %v8065 = vadd.f32 %v8055, %v8063
  %v8066 = vtanh.pop %v8065
  %8068 = vrot.lane.b32.xlu0 %v8066, 64
  %v8069 = vpop.permute.xlu0 %8068
  %v8071 = vmul.f32 %v8048, %v8069
  %8073 = vrot.lane.b32.xlu0 %v8065, 96
  %v8074 = vpop.permute.xlu0 %8073
  %8076 = vst.msk [vmem:[#allocation3] sm:$0x3] %vm33, %v8074
  %8078 = vrot.lane.b32.xlu0 %v8071, 32
  %v8079 = vpop.permute.xlu0 %8078
  %8081 = vst.msk [vmem:[#allocation2] sm:$0x3] %vm33, %v8079
  %v8082 = vld [vmem:[%s4 + $0x40] sm:$0xff]
  %v8083 = vld [vmem:[%s4 + $0x48] sm:$0xff]
  %v8084 = vld [vmem:[%s4 + $0x50] sm:$0xff]
  %v8085 = vld [vmem:[%s4 + $0x58] sm:$0xff]
  %v8086 = vsel %vm46, %v8079, 0
  %8088 = vmatprep.subr.mxu0 0.0
  %8089 = vmatpush1.msra.mxu0 0.0
  %8090 = vmatprep.subr.mxu0 0.0
  %8091 = vmatpush1.msra.mxu0 0.0
  %8092 = vmatprep.subr.mxu0 0.0
  %8093 = vmatpush1.msra.mxu0 0.0
  %8094 = vmatprep.subr.mxu0 0.0
  %8095 = vmatpush1.msra.mxu0 0.0
  %8096 = vmatprep.subr.mxu0 0.0
  %8097 = vmatpush1.msra.mxu0 0.0
  %8098 = vmatprep.subr.mxu0 0.0
  %8099 = vmatpush1.msra.mxu0 0.0
  %8100 = vmatprep.subr.mxu0 0.0
  %8101 = vmatpush1.msra.mxu0 0.0
  %8102 = vmatprep.subr.mxu0 0.0
  %8103 = vmatpush1.msra.mxu0 0.0
  %8104 = vmatprep.subr.mxu0 0.0
  %8105 = vmatpush1.msra.mxu0 0.0
  %8106 = vmatprep.subr.mxu0 0.0
  %8107 = vmatpush1.msra.mxu0 0.0
  %8108 = vmatprep.subr.mxu0 0.0
  %8109 = vmatpush1.msra.mxu0 0.0
  %8110 = vmatprep.subr.mxu0 0.0
  %8111 = vmatpush1.msra.mxu0 0.0
  %8112 = vmatprep.subr.mxu0 0.0
  %8113 = vmatpush1.msra.mxu0 %v8085
  %8114 = vmatprep.subr.mxu0 0.0
  %8115 = vmatpush1.msra.mxu0 %v8084
  %8116 = vmatprep.subr.mxu0 0.0
  %8117 = vmatpush1.msra.mxu0 %v8083
  %8118 = vmatprep.subr.mxu0 0.0
  %8119 = vmatpush1.msra.mxu0 %v8082
  %8120 = vmatprep.subr.mxu0 0.0
  %8121 = vmatpush2.msra.mxu0 0.0
  %8122 = vmatprep.subr.mxu0 0.0
  %8123 = vmatpush2.msra.mxu0 0.0
  %8124 = vmatprep.subr.mxu0 0.0
  %8125 = vmatpush2.msra.mxu0 0.0
  %8126 = vmatprep.subr.mxu0 0.0
  %8127 = vmatpush2.msra.mxu0 0.0
  %8128 = vmatprep.subr.mxu0 0.0
  %8129 = vmatpush2.msra.mxu0 0.0
  %8130 = vmatprep.subr.mxu0 0.0
  %8131 = vmatpush2.msra.mxu0 0.0
  %8132 = vmatprep.subr.mxu0 0.0
  %8133 = vmatpush2.msra.mxu0 0.0
  %8134 = vmatprep.subr.mxu0 0.0
  %8135 = vmatpush2.msra.mxu0 0.0
  %8136 = vmatprep.subr.mxu0 0.0
  %8137 = vmatpush2.msra.mxu0 0.0
  %8138 = vmatprep.subr.mxu0 0.0
  %8139 = vmatpush2.msra.mxu0 0.0
  %8140 = vmatprep.subr.mxu0 0.0
  %8141 = vmatpush2.msra.mxu0 0.0
  %8142 = vmatprep.subr.mxu0 0.0
  %8143 = vmatpush2.msra.mxu0 0.0
  %8144 = vmatprep.subr.mxu0 0.0
  %8145 = vmatpush2.msra.mxu0 0.0
  %8146 = vmatprep.subr.mxu0 0.0
  %8147 = vmatpush2.msra.mxu0 0.0
  %8148 = vmatprep.subr.mxu0 0.0
  %8149 = vmatpush2.msra.mxu0 0.0
  %8150 = vmatprep.subr.mxu0 0.0
  %8151 = vmatpush2.msra.mxu0 0.0
  %8152 = vmatprep.mubr.f32.mxu0 0.0
  %8153 = vmatmul.mubr.f32.gmra.mxu0 %v8086
  %v8154 = vpop.f32.mrf.mxu0
  %v8155 = vadd.f32 %v7808, %v8154
  %v8156 = vpop.f32.mrf.mxu0
  %8157 = vdwg.mxu0
  %v8158 = vld [vmem:[%s6 + $0x1] sm:$0x1]
  %v8159 = vlaneseq
  %v8160 = vshrl.u32 %v8159, 7
  %v8161 = vsub.s32 0, %v8160
  %v8162 = vrot.slane %v8158, %v8161
  %v8163 = vadd.f32 %v8155, %v8162
  %v8164 = vxor.u32 %v8163, 2147483648
  %v8165 = vmul.f32 %v8164, 1.442695
  %v8166 = vpow.pop %v8165
  %v8167 = vadd.f32 %v8166, 1.0
  %v8168 = vrcp.pop %v8167
  %v8169 = vmul.f32 1.0, %v8168
  %v8170 = vtanh.pop %v8163
  %v8171 = vld [vmem:[#allocation3] sm:$0x3]
  %v8172 = vmul.f32 %v8169, %v8171
  %8174 = vrot.lane.b32.xlu0 %v8170, 64
  %v8175 = vpop.permute.xlu0 %8174
  %v8177 = vmul.f32 %v8169, %v8175
  %8179 = vrot.lane.b32.xlu0 %v8177, 32
  %v8180 = vpop.permute.xlu0 %8179
  %v8182 = vadd.f32 %v8172, %v8180
  %v8183 = vtanh.pop %v8182
  %8185 = vrot.lane.b32.xlu0 %v8183, 64
  %v8186 = vpop.permute.xlu0 %8185
  %v8188 = vmul.f32 %v8169, %v8186
  %8189 = vst.msk [vmem:[#allocation3] sm:$0x3] %vm854, %v8182
  %8191 = vrot.lane.b32.xlu0 %v8188, 64
  %v8192 = vpop.permute.xlu0 %8191
  %8194 = vst.msk [vmem:[#allocation2] sm:$0x3] %vm854, %v8192
  %v8195 = vld [vmem:[%s4 + $0x60] sm:$0xff]
  %v8196 = vld [vmem:[%s4 + $0x68] sm:$0xff]
  %v8197 = vld [vmem:[%s4 + $0x70] sm:$0xff]
  %v8198 = vld [vmem:[%s4 + $0x78] sm:$0xff]
  %8199 = vrot.lane.b32.xlu0 %v8188, 32
  %v8200 = vpop.permute.xlu0 %8199
  %v8201 = vsel %vm46, %v8200, 0
  %8203 = vmatprep.subr.mxu0 0.0
  %8204 = vmatpush1.msra.mxu0 0.0
  %8205 = vmatprep.subr.mxu0 0.0
  %8206 = vmatpush1.msra.mxu0 0.0
  %8207 = vmatprep.subr.mxu0 0.0
  %8208 = vmatpush1.msra.mxu0 0.0
  %8209 = vmatprep.subr.mxu0 0.0
  %8210 = vmatpush1.msra.mxu0 0.0
  %8211 = vmatprep.subr.mxu0 0.0
  %8212 = vmatpush1.msra.mxu0 0.0
  %8213 = vmatprep.subr.mxu0 0.0
  %8214 = vmatpush1.msra.mxu0 0.0
  %8215 = vmatprep.subr.mxu0 0.0
  %8216 = vmatpush1.msra.mxu0 0.0
  %8217 = vmatprep.subr.mxu0 0.0
  %8218 = vmatpush1.msra.mxu0 0.0
  %8219 = vmatprep.subr.mxu0 0.0
  %8220 = vmatpush1.msra.mxu0 0.0
  %8221 = vmatprep.subr.mxu0 0.0
  %8222 = vmatpush1.msra.mxu0 0.0
  %8223 = vmatprep.subr.mxu0 0.0
  %8224 = vmatpush1.msra.mxu0 0.0
  %8225 = vmatprep.subr.mxu0 0.0
  %8226 = vmatpush1.msra.mxu0 0.0
  %8227 = vmatprep.subr.mxu0 0.0
  %8228 = vmatpush1.msra.mxu0 %v8198
  %8229 = vmatprep.subr.mxu0 0.0
  %8230 = vmatpush1.msra.mxu0 %v8197
  %8231 = vmatprep.subr.mxu0 0.0
  %8232 = vmatpush1.msra.mxu0 %v8196
  %8233 = vmatprep.subr.mxu0 0.0
  %8234 = vmatpush1.msra.mxu0 %v8195
  %8235 = vmatprep.subr.mxu0 0.0
  %8236 = vmatpush2.msra.mxu0 0.0
  %8237 = vmatprep.subr.mxu0 0.0
  %8238 = vmatpush2.msra.mxu0 0.0
  %8239 = vmatprep.subr.mxu0 0.0
  %8240 = vmatpush2.msra.mxu0 0.0
  %8241 = vmatprep.subr.mxu0 0.0
  %8242 = vmatpush2.msra.mxu0 0.0
  %8243 = vmatprep.subr.mxu0 0.0
  %8244 = vmatpush2.msra.mxu0 0.0
  %8245 = vmatprep.subr.mxu0 0.0
  %8246 = vmatpush2.msra.mxu0 0.0
  %8247 = vmatprep.subr.mxu0 0.0
  %8248 = vmatpush2.msra.mxu0 0.0
  %8249 = vmatprep.subr.mxu0 0.0
  %8250 = vmatpush2.msra.mxu0 0.0
  %8251 = vmatprep.subr.mxu0 0.0
  %8252 = vmatpush2.msra.mxu0 0.0
  %8253 = vmatprep.subr.mxu0 0.0
  %8254 = vmatpush2.msra.mxu0 0.0
  %8255 = vmatprep.subr.mxu0 0.0
  %8256 = vmatpush2.msra.mxu0 0.0
  %8257 = vmatprep.subr.mxu0 0.0
  %8258 = vmatpush2.msra.mxu0 0.0
  %8259 = vmatprep.subr.mxu0 0.0
  %8260 = vmatpush2.msra.mxu0 0.0
  %8261 = vmatprep.subr.mxu0 0.0
  %8262 = vmatpush2.msra.mxu0 0.0
  %8263 = vmatprep.subr.mxu0 0.0
  %8264 = vmatpush2.msra.mxu0 0.0
  %8265 = vmatprep.subr.mxu0 0.0
  %8266 = vmatpush2.msra.mxu0 0.0
  %8267 = vmatprep.mubr.f32.mxu0 0.0
  %8268 = vmatmul.mubr.f32.gmra.mxu0 %v8201
  %v8269 = vpop.f32.mrf.mxu0
  %v8270 = vadd.f32 %v7877, %v8269
  %v8271 = vpop.f32.mrf.mxu0
  %8272 = vdwg.mxu0
  %v8273 = vld [vmem:[%s6 + $0x2] sm:$0x1]
  %v8274 = vlaneseq
  %v8275 = vshrl.u32 %v8274, 7
  %v8276 = vsub.s32 0, %v8275
  %v8277 = vrot.slane %v8273, %v8276
  %v8278 = vadd.f32 %v8270, %v8277
  %v8279 = vxor.u32 %v8278, 2147483648
  %v8280 = vmul.f32 %v8279, 1.442695
  %v8281 = vpow.pop %v8280
  %v8282 = vadd.f32 %v8281, 1.0
  %v8283 = vrcp.pop %v8282
  %v8284 = vmul.f32 1.0, %v8283
  %v8285 = vtanh.pop %v8278
  %v8286 = vld [vmem:[#allocation3] sm:$0x3]
  %8288 = vrot.lane.b32.xlu0 %v8286, 96
  %v8289 = vpop.permute.xlu0 %8288
  %v8291 = vmul.f32 %v8284, %v8289
  %8293 = vrot.lane.b32.xlu0 %v8285, 64
  %v8294 = vpop.permute.xlu0 %8293
  %v8296 = vmul.f32 %v8284, %v8294
  %8298 = vrot.lane.b32.xlu0 %v8296, 32
  %v8299 = vpop.permute.xlu0 %8298
  %v8301 = vadd.f32 %v8291, %v8299
  %v8302 = vtanh.pop %v8301
  %8304 = vrot.lane.b32.xlu0 %v8302, 64
  %v8305 = vpop.permute.xlu0 %8304
  %v8307 = vmul.f32 %v8284, %v8305
  %8309 = vrot.lane.b32.xlu0 %v8301, 32
  %v8310 = vpop.permute.xlu0 %8309
  %8312 = vst.msk [vmem:[#allocation3] sm:$0x3] %vm978, %v8310
  %8314 = vrot.lane.b32.xlu0 %v8307, 96
  %v8315 = vpop.permute.xlu0 %8314
  %8317 = vst.msk [vmem:[#allocation2] sm:$0x3] %vm978, %v8315
  %v8318 = vld [vmem:[%s7] sm:$0xff]
  %v8319 = vld [vmem:[%s7 + $0x8] sm:$0xff]
  %v8320 = vld [vmem:[%s7 + $0x10] sm:$0xff]
  %v8321 = vld [vmem:[%s7 + $0x18] sm:$0xff]
  %v8322 = vld [vmem:[%s7 + $0x20] sm:$0x1]
  %v8323 = vlaneseq
  %v8324 = vshrl.u32 %v8323, 7
  %v8325 = vsub.s32 0, %v8324
  %v8326 = vrot.slane %v8322, %v8325
  %8327 = vrot.lane.b32.xlu0 %v8307, 32
  %v8328 = vpop.permute.xlu0 %8327
  %v8329 = vsel %vm46, %v8328, 0
  %8331 = vmatprep.subr.mxu0 0.0
  %8332 = vmatpush1.msra.mxu0 0.0
  %8333 = vmatprep.subr.mxu0 0.0
  %8334 = vmatpush1.msra.mxu0 0.0
  %8335 = vmatprep.subr.mxu0 0.0
  %8336 = vmatpush1.msra.mxu0 0.0
  %8337 = vmatprep.subr.mxu0 0.0
  %8338 = vmatpush1.msra.mxu0 0.0
  %8339 = vmatprep.subr.mxu0 0.0
  %8340 = vmatpush1.msra.mxu0 0.0
  %8341 = vmatprep.subr.mxu0 0.0
  %8342 = vmatpush1.msra.mxu0 0.0
  %8343 = vmatprep.subr.mxu0 0.0
  %8344 = vmatpush1.msra.mxu0 0.0
  %8345 = vmatprep.subr.mxu0 0.0
  %8346 = vmatpush1.msra.mxu0 0.0
  %8347 = vmatprep.subr.mxu0 0.0
  %8348 = vmatpush1.msra.mxu0 0.0
  %8349 = vmatprep.subr.mxu0 0.0
  %8350 = vmatpush1.msra.mxu0 0.0
  %8351 = vmatprep.subr.mxu0 0.0
  %8352 = vmatpush1.msra.mxu0 0.0
  %8353 = vmatprep.subr.mxu0 0.0
  %8354 = vmatpush1.msra.mxu0 0.0
  %8355 = vmatprep.subr.mxu0 0.0
  %8356 = vmatpush1.msra.mxu0 %v8321
  %8357 = vmatprep.subr.mxu0 0.0
  %8358 = vmatpush1.msra.mxu0 %v8320
  %8359 = vmatprep.subr.mxu0 0.0
  %8360 = vmatpush1.msra.mxu0 %v8319
  %8361 = vmatprep.subr.mxu0 0.0
  %8362 = vmatpush1.msra.mxu0 %v8318
  %8363 = vmatprep.subr.mxu0 0.0
  %8364 = vmatpush2.msra.mxu0 0.0
  %8365 = vmatprep.subr.mxu0 0.0
  %8366 = vmatpush2.msra.mxu0 0.0
  %8367 = vmatprep.subr.mxu0 0.0
  %8368 = vmatpush2.msra.mxu0 0.0
  %8369 = vmatprep.subr.mxu0 0.0
  %8370 = vmatpush2.msra.mxu0 0.0
  %8371 = vmatprep.subr.mxu0 0.0
  %8372 = vmatpush2.msra.mxu0 0.0
  %8373 = vmatprep.subr.mxu0 0.0
  %8374 = vmatpush2.msra.mxu0 0.0
  %8375 = vmatprep.subr.mxu0 0.0
  %8376 = vmatpush2.msra.mxu0 0.0
  %8377 = vmatprep.subr.mxu0 0.0
  %8378 = vmatpush2.msra.mxu0 0.0
  %8379 = vmatprep.subr.mxu0 0.0
  %8380 = vmatpush2.msra.mxu0 0.0
  %8381 = vmatprep.subr.mxu0 0.0
  %8382 = vmatpush2.msra.mxu0 0.0
  %8383 = vmatprep.subr.mxu0 0.0
  %8384 = vmatpush2.msra.mxu0 0.0
  %8385 = vmatprep.subr.mxu0 0.0
  %8386 = vmatpush2.msra.mxu0 0.0
  %8387 = vmatprep.subr.mxu0 0.0
  %8388 = vmatpush2.msra.mxu0 0.0
  %8389 = vmatprep.subr.mxu0 0.0
  %8390 = vmatpush2.msra.mxu0 0.0
  %8391 = vmatprep.subr.mxu0 0.0
  %8392 = vmatpush2.msra.mxu0 0.0
  %8393 = vmatprep.subr.mxu0 0.0
  %8394 = vmatpush2.msra.mxu0 0.0
  %8395 = vmatprep.mubr.f32.mxu0 0.0
  %8396 = vmatmul.mubr.f32.gmra.mxu0 %v8329
  %v8397 = vpop.f32.mrf.mxu0
  %v8398 = vadd.f32 %v8326, %v8397
  %v8399 = vpop.f32.mrf.mxu0
  %8400 = vdwg.mxu0
  %v8401 = vsel %vm1068, %v8398, -inf
  %8402 = vmax.xlane.f32.xlu0 %v8401
  %v8403 = vpop.xlane.xlu0 %8402
  %v8404 = vsub.f32 %v8398, %v8403
  %v8405 = vmul.f32 %v8404, 1.442695
  %v8406 = vpow.pop %v8405
  %v8407 = vsel %vm1068, %v8406, 0.0
  %8408 = vadd.xlane.f32.xlu0 %v8407
  %v8409 = vpop.xlane.xlu0 %8408
  %v8410 = vlog2.pop %v8409
  %v8411 = vmul.f32 %v8410, 0.6931472
  %v8412 = vsub.f32 %v8404, %v8411
  %8414 = vrot.lane.b32.xlu0 %v8412, 112
  %v8415 = vpop.permute.xlu0 %8414
  %vm8417 = vcmask 1042304
  %8418 = vst.msk [vmem:[%s8] sm:$0x3] %vm8417, %v8415
  %v8419 = vsel %vm1068, %v8412, -inf
  %8420 = vmax.xlane.f32.xlu0 %v8419
  %v8421 = vpop.xlane.xlu0 %8420
  %vm8422 = vcmp.eq.f32.partialorder %v8412, %v8421
  %v8423 = vsel %vm8422, %v268, 16
  %v8424 = vsel %vm1068, %v8423, 2147483647
  %v8425 = vand.u32 %v8424, 65535
  %v8426 = vshra.s32 %v8424, 16
  %v8427 = vcvt.s32.f32 %v8425
  %v8428 = vcvt.s32.f32 %v8426
  %8429 = vmin.xlane.f32.xlu0 %v8428
  %v8430 = vpop.xlane.xlu0 %8429
  %vm8431 = vcmp.eq.f32.partialorder %v8428, %v8430
  %v8432 = vsel %vm8431, %v8427, inf
  %8433 = vmin.xlane.f32.xlu0 %v8432
  %v8434 = vpop.xlane.xlu0 %8433
  %v8435 = vcvt.f32.s32 %v8434
  %v8436 = vcvt.f32.s32 %v8430
  %v8437 = vshll.u32 %v8436, 16
  %v8438 = vadd.s32 %v8437, %v8435
  %vm8439 = vcmp.eq.s32.totalorder %v268, %v8438
  %v8440 = vsel %vm8439, 1, 0
  %v8441 = vcvt.s32.f32 %v8440
  %v8442 = vld [vmem:[%s2] sm:$0xff]
  %v8443 = vld [vmem:[%s2 + $0x8] sm:$0xff]
  %v8445 = vsel %vm1107, %v8441, 0
  %8447 = vmatprep.subr.mxu0 0.0
  %8448 = vmatpush1.msra.mxu0 0.0
  %8449 = vmatprep.subr.mxu0 0.0
  %8450 = vmatpush1.msra.mxu0 0.0
  %8451 = vmatprep.subr.mxu0 0.0
  %8452 = vmatpush1.msra.mxu0 0.0
  %8453 = vmatprep.subr.mxu0 0.0
  %8454 = vmatpush1.msra.mxu0 0.0
  %8455 = vmatprep.subr.mxu0 0.0
  %8456 = vmatpush1.msra.mxu0 0.0
  %8457 = vmatprep.subr.mxu0 0.0
  %8458 = vmatpush1.msra.mxu0 0.0
  %8459 = vmatprep.subr.mxu0 0.0
  %8460 = vmatpush1.msra.mxu0 0.0
  %8461 = vmatprep.subr.mxu0 0.0
  %8462 = vmatpush1.msra.mxu0 0.0
  %8463 = vmatprep.subr.mxu0 0.0
  %8464 = vmatpush1.msra.mxu0 0.0
  %8465 = vmatprep.subr.mxu0 0.0
  %8466 = vmatpush1.msra.mxu0 0.0
  %8467 = vmatprep.subr.mxu0 0.0
  %8468 = vmatpush1.msra.mxu0 0.0
  %8469 = vmatprep.subr.mxu0 0.0
  %8470 = vmatpush1.msra.mxu0 0.0
  %8471 = vmatprep.subr.mxu0 0.0
  %8472 = vmatpush1.msra.mxu0 0.0
  %8473 = vmatprep.subr.mxu0 0.0
  %8474 = vmatpush1.msra.mxu0 0.0
  %8475 = vmatprep.subr.mxu0 0.0
  %8476 = vmatpush1.msra.mxu0 %v8443
  %8477 = vmatprep.subr.mxu0 0.0
  %8478 = vmatpush1.msra.mxu0 %v8442
  %8479 = vmatprep.subr.mxu0 0.0
  %8480 = vmatpush2.msra.mxu0 0.0
  %8481 = vmatprep.subr.mxu0 0.0
  %8482 = vmatpush2.msra.mxu0 0.0
  %8483 = vmatprep.subr.mxu0 0.0
  %8484 = vmatpush2.msra.mxu0 0.0
  %8485 = vmatprep.subr.mxu0 0.0
  %8486 = vmatpush2.msra.mxu0 0.0
  %8487 = vmatprep.subr.mxu0 0.0
  %8488 = vmatpush2.msra.mxu0 0.0
  %8489 = vmatprep.subr.mxu0 0.0
  %8490 = vmatpush2.msra.mxu0 0.0
  %8491 = vmatprep.subr.mxu0 0.0
  %8492 = vmatpush2.msra.mxu0 0.0
  %8493 = vmatprep.subr.mxu0 0.0
  %8494 = vmatpush2.msra.mxu0 0.0
  %8495 = vmatprep.subr.mxu0 0.0
  %8496 = vmatpush2.msra.mxu0 0.0
  %8497 = vmatprep.subr.mxu0 0.0
  %8498 = vmatpush2.msra.mxu0 0.0
  %8499 = vmatprep.subr.mxu0 0.0
  %8500 = vmatpush2.msra.mxu0 0.0
  %8501 = vmatprep.subr.mxu0 0.0
  %8502 = vmatpush2.msra.mxu0 0.0
  %8503 = vmatprep.subr.mxu0 0.0
  %8504 = vmatpush2.msra.mxu0 0.0
  %8505 = vmatprep.subr.mxu0 0.0
  %8506 = vmatpush2.msra.mxu0 0.0
  %8507 = vmatprep.subr.mxu0 0.0
  %8508 = vmatpush2.msra.mxu0 0.0
  %8509 = vmatprep.subr.mxu0 0.0
  %8510 = vmatpush2.msra.mxu0 0.0
  %8511 = vmatprep.mubr.f32.mxu0 0.0
  %8512 = vmatmul.mubr.f32.gmra.mxu0 %v8445
  %v8513 = vpop.f32.mrf.mxu0
  %v8514 = vadd.f32 0.0, %v8513
  %v8515 = vpop.f32.mrf.mxu0
  %8516 = vdwg.mxu0
  %8517 = vst.msk [vmem:[#allocation4] sm:$0x3] %vm33, %v8514
  // Predicated region
  $region34: #{lstm_attn_decoder_forward.1} parent=0 // pred_check
    _
  $region35: #{lstm_attn_decoder_forward.1} parent=0 // pred_check_branch
    %8519 = sbr.rel (0) target = $region37
  $region36: #{lstm_attn_decoder_forward.1} parent=0 // pred_region
    _
  $region37: #{lstm_attn_decoder_forward.1} parent=0 // pred_fallthru
    _
  // Predicated region
  $region38: #{lstm_attn_decoder_forward.1} parent=0 // pred_check
    _
  $region39: #{lstm_attn_decoder_forward.1} parent=0 // pred_check_branch
    %8521 = sbr.rel (0) target = $region41
  $region40: #{lstm_attn_decoder_forward.1} parent=0 // pred_region
    _
  $region41: #{lstm_attn_decoder_forward.1} parent=0 // pred_fallthru
    _

</llo_original>
